<compile_context>
chip_gen: v7x
topology: tpu7x:2x2x1
jax: 0.10.0
libtpu: 0.0.40
codegen_flags: <defaults>
</compile_context>

<pallas_src>
import jax
import jax.numpy as jnp
from jax.experimental import pallas as pl
from jax.experimental.pallas import tpu as pltpu


# ----------------------------- model constants ------------------------------

CIN = 3                      # input channels
COUT = 32                    # conv output channels
K = 7                        # conv kernel size (stride 1, no padding)
H = W = 32                   # spatial size implied by Linear(32*13*13, 10)
HO = WO = H - K + 1          # 26
HP = WP = HO // 2            # 13
NUM_CLASSES = 10
HW = H * W                   # 1024 flat positions per image (incl. invalid tail)
XPAD = 256                   # zero tail so shifted reads never go out of bounds


# ------------------------------ fused kernel --------------------------------

def _make_kernel(n_batch):
    NP = n_batch * HW        # conv / pool map width (lane axis)
    NPP = NP + 8             # + room for the in-row kw shifts (kw <= 6)

    def kernel(x_ref, w2_ref, b2_ref, wbig_ref, bfc_ref, out_ref, xb_ref, cv_ref):
        # x_ref    : (CIN, NP + XPAD)        f32   per-channel flat NCHW input, zero tail
        # w2_ref   : (K*COUT, CIN*K)         bf16  rows kw*COUT + co, cols ci*K + kh
        # b2_ref   : (COUT, 1)               f32   conv bias
        # wbig_ref : (NUM_CLASSES*COUT, HW)  f32   zero-expanded FC weight
        # bfc_ref  : (1, NUM_CLASSES)        f32   FC bias
        # out_ref  : (n_batch, NUM_CLASSES)  f32
        # xb_ref   : (CIN*K, NPP)            f32   scratch: kh-shifted channel rows
        # cv_ref   : (COUT, NP + 128)        f32   scratch: conv map + zeroed tail

        # ---- stage 1: in-kernel im2col, part 1 (kh shifts) --------------------
        # xb[ci*K + kh, t] = x_flat[ci, kh*W + t]
        for ci in range(CIN):
            for kh in range(K):
                r = ci * K + kh
                xb_ref[r:r + 1, :] = x_ref[ci:ci + 1, kh * W: kh * W + NPP]

        # ---- stage 2: conv as K accumulated lane-dense MXU matmuls (kw shifts) -
        # conv[co, j] = sum_kw  W_kw(32,21) @ xb[:, kw:kw+NP]
        acc = None
        for kw in range(K):
            lhs = w2_ref[kw * COUT:(kw + 1) * COUT, :]                  # (COUT, CIN*K) bf16
            rhs = xb_ref[:, kw:kw + NP].astype(jnp.bfloat16)            # (CIN*K, NP)   bf16
            d = jnp.dot(lhs, rhs, preferred_element_type=jnp.float32)   # f32 accumulate
            acc = d if acc is None else acc + d
        conv = jnp.maximum(acc + b2_ref[...], 0.0)                      # bias + ReLU

        # ---- stage 3: 2x2/2 max-pool via shifted slices of a padded scratch ----
        cv_ref[:, NP:] = jnp.zeros((COUT, 128), jnp.float32)            # keep tail finite
        cv_ref[:, :NP] = conv
        m = jnp.maximum(
            jnp.maximum(conv, cv_ref[:, 1:1 + NP]),
            jnp.maximum(cv_ref[:, W:W + NP], cv_ref[:, W + 1:W + 1 + NP]))
        # pooled value (n, co, hp, wp) now lives at m[co, n*HW + (2*hp)*W + 2*wp]

        # ---- stage 4: Linear, folded in via the zero-expanded weight -----------
        bfc = bfc_ref[...]                                              # (1, NUM_CLASSES)
        for o in range(NUM_CLASSES):
            wb = wbig_ref[o * COUT:(o + 1) * COUT, :]                   # (COUT, HW) f32
            for n in range(n_batch):
                m_n = m[:, n * HW:(n + 1) * HW]                         # (COUT, HW) f32
                val = jnp.sum(m_n * wb) + bfc[0, o]
                out_ref[n:n + 1, o:o + 1] = val.reshape(1, 1)

    return kernel


# --------------------- one-time (host) parameter re-layout -------------------

def prepare_params(params):
    """Re-layout the PyTorch weights for the fused kernel (done once, not per forward)."""
    w_conv = params["w_conv"].astype(jnp.float32)    # (COUT, CIN, K, K)  OIHW
    b_conv = params["b_conv"].astype(jnp.float32)    # (COUT,)
    w_fc = params["w_fc"].astype(jnp.float32)        # (COUT*HP*WP, 10) == torch weight.T
    b_fc = params["b_fc"].astype(jnp.float32)        # (10,)

    # Conv weight: rows kw*COUT + co, cols ci*K + kh  (matches the kernel's xb layout).
    w2 = jnp.transpose(w_conv, (3, 0, 1, 2)).reshape(K * COUT, CIN * K).astype(jnp.bfloat16)
    b2 = b_conv.reshape(COUT, 1)

    # FC weight zero-expanded onto the kernel's pooled layout:
    # pooled (co, hp, wp) sits at flat column (2*hp)*W + 2*wp of image n's 1024-wide slab.
    f = jnp.arange(COUT * HP * WP)
    co = f // (HP * WP)
    hp = (f % (HP * WP)) // WP
    wp = f % WP
    col = (2 * hp) * W + 2 * wp
    wbig = jnp.zeros((NUM_CLASSES, COUT, HW), jnp.float32)
    wbig = wbig.at[:, co, col].set(w_fc.T)           # scatter the 5408 real weights
    wbig = wbig.reshape(NUM_CLASSES * COUT, HW)

    bfc = b_fc.reshape(1, NUM_CLASSES)
    return {"w2": w2, "b2": b2, "wbig": wbig, "bfc": bfc}


# ------------------------------- forward pass --------------------------------

def vanilla_cnn_forward(x_nchw, prep):
    n_batch, cin, h, w = x_nchw.shape
    assert (cin, h, w) == (CIN, H, W), "Linear(32*13*13) pins the input to (N, 3, 32, 32)"
    NP = n_batch * HW

    # Tiny remaining XLA glue (~28 KB): per-channel flat view + zero tail pad.
    x_flat = jnp.transpose(x_nchw, (1, 0, 2, 3)).reshape(CIN, NP)
    x_flat = jnp.pad(x_flat, ((0, 0), (0, XPAD)))

    def fullspec(shape):
        return pl.BlockSpec(shape, lambda i: (0,) * len(shape))

    kernel = _make_kernel(n_batch)
    return pl.pallas_call(
        kernel,
        grid=(1,),
        in_specs=[fullspec(x_flat.shape),
                  fullspec(prep["w2"].shape),
                  fullspec(prep["b2"].shape),
                  fullspec(prep["wbig"].shape),
                  fullspec(prep["bfc"].shape)],
        out_specs=fullspec((n_batch, NUM_CLASSES)),
        out_shape=jax.ShapeDtypeStruct((n_batch, NUM_CLASSES), jnp.float32),
        scratch_shapes=[pltpu.VMEM((CIN * K, NP + 8), jnp.float32),
                        pltpu.VMEM((COUT, NP + 128), jnp.float32)],
        compiler_params=pltpu.CompilerParams(dimension_semantics=("arbitrary",)),
    )(x_flat, prep["w2"], prep["b2"], prep["wbig"], prep["bfc"])


# ------------------------------ pure-JAX reference ---------------------------

def reference_forward(x_nchw, params):
    conv = jax.lax.conv_general_dilated(
        x_nchw, params["w_conv"], (1, 1), "VALID",
        dimension_numbers=("NCHW", "OIHW", "NCHW"),
        precision=jax.lax.Precision.HIGHEST)
    conv = conv + params["b_conv"][None, :, None, None]
    conv = jnp.maximum(conv, 0.0)
    pooled = jax.lax.reduce_window(conv, -jnp.inf, jax.lax.max,
                                   (1, 1, 2, 2), (1, 1, 2, 2), "VALID")
    flat = pooled.reshape(x_nchw.shape[0], -1)
    return (jnp.dot(flat, params["w_fc"],
                    precision=jax.lax.Precision.HIGHEST) + params["b_fc"])


# ------------------------------------ main ------------------------------------

if __name__ == "__main__":
    key = jax.random.PRNGKey(0)
    k1, k2, k3, k4, kx = jax.random.split(key, 5)

    # Deterministic synthetic parameters (shapes from VanillaCNN.__init__).
    params = {
        "w_conv": jax.random.normal(k1, (COUT, CIN, K, K), jnp.float32) * 0.05,
        "b_conv": jax.random.normal(k2, (COUT,), jnp.float32) * 0.05,
        "w_fc":   jax.random.normal(k3, (COUT * HP * WP, NUM_CLASSES), jnp.float32) * 0.02,
        "b_fc":   jax.random.normal(k4, (NUM_CLASSES,), jnp.float32) * 0.02,
    }

    # The Linear layer hard-codes 32*13*13 inputs -> spatial must be 32x32; batch = 2.
    x = jax.random.normal(kx, (2, CIN, H, W), jnp.float32)

    prep = prepare_params(params)                  # one-time host-side weight re-layout
    out = jax.jit(vanilla_cnn_forward)(x, prep)
    out = jax.block_until_ready(out)

    ref = reference_forward(x, params)
    assert out.shape == (2, NUM_CLASSES), out.shape
    max_err = float(jnp.max(jnp.abs(out - ref)))
    if max_err > 5e-2:                             # loose bound: bf16 MXU operands
        raise AssertionError(f"mismatch vs reference: max |err| = {max_err}")

    print("KERNEL_OK")
</pallas_src>

<mosaic_0001>
module attributes {stable_mosaic.version = 11 : i64} {
  func.func @kernel(%arg0: i32, %arg1: memref<3x2304xf32, #tpu.memory_space<vmem>>, %arg2: memref<224x21xbf16, #tpu.memory_space<vmem>>, %arg3: memref<32x1xf32, #tpu.memory_space<vmem>>, %arg4: memref<320x1024xf32, #tpu.memory_space<vmem>>, %arg5: memref<1x10xf32, #tpu.memory_space<vmem>>, %arg6: memref<2x10xf32, #tpu.memory_space<vmem>>, %arg7: memref<21x2056xf32, #tpu.memory_space<vmem>>, %arg8: memref<32x2176xf32, #tpu.memory_space<vmem>>) attributes {dimension_semantics = [#tpu.dimension_semantics<arbitrary>], iteration_bounds = array<i64: 1>, scalar_prefetch = 0 : i64, scratch_operands = 2 : i64, tpu.core_type = #tpu.core_type<tc>, window_params = [{pipeline_mode = #tpu.pipeline_mode<synchronous>, transform_indices = @transform_0, window_bounds = array<i64: 3, 2304>}, {pipeline_mode = #tpu.pipeline_mode<synchronous>, transform_indices = @transform_1, window_bounds = array<i64: 224, 21>}, {pipeline_mode = #tpu.pipeline_mode<synchronous>, transform_indices = @transform_2, window_bounds = array<i64: 32, 1>}, {pipeline_mode = #tpu.pipeline_mode<synchronous>, transform_indices = @transform_3, window_bounds = array<i64: 320, 1024>}, {pipeline_mode = #tpu.pipeline_mode<synchronous>, transform_indices = @transform_4, window_bounds = array<i64: 1, 10>}, {pipeline_mode = #tpu.pipeline_mode<synchronous>, transform_indices = @transform_5, window_bounds = array<i64: 2, 10>}]} {
    %c0 = arith.constant 0 : index
    %c0_0 = arith.constant 0 : index
    %0 = vector.load %arg1[%c0, %c0_0] : memref<3x2304xf32, #tpu.memory_space<vmem>>, vector<1x2056xf32>
    %c0_1 = arith.constant 0 : index
    %c0_2 = arith.constant 0 : index
    %1 = vector.load %arg7[%c0_1, %c0_2] : memref<21x2056xf32, #tpu.memory_space<vmem>>, vector<1x2056xf32>
    tpu.vector_store %arg7[%c0_1, %c0_2], %0 {strides = array<i32>} : memref<21x2056xf32, #tpu.memory_space<vmem>>, vector<1x2056xf32>,
    %c0_3 = arith.constant 0 : index
    %c32 = arith.constant 32 : index
    %2 = vector.load %arg1[%c0_3, %c32] : memref<3x2304xf32, #tpu.memory_space<vmem>>, vector<1x2056xf32>
    %c1 = arith.constant 1 : index
    %c0_4 = arith.constant 0 : index
    %3 = vector.load %arg7[%c1, %c0_4] : memref<21x2056xf32, #tpu.memory_space<vmem>>, vector<1x2056xf32>
    tpu.vector_store %arg7[%c1, %c0_4], %2 {strides = array<i32>} : memref<21x2056xf32, #tpu.memory_space<vmem>>, vector<1x2056xf32>,
    %c0_5 = arith.constant 0 : index
    %c64 = arith.constant 64 : index
    %4 = vector.load %arg1[%c0_5, %c64] : memref<3x2304xf32, #tpu.memory_space<vmem>>, vector<1x2056xf32>
    %c2 = arith.constant 2 : index
    %c0_6 = arith.constant 0 : index
    %5 = vector.load %arg7[%c2, %c0_6] : memref<21x2056xf32, #tpu.memory_space<vmem>>, vector<1x2056xf32>
    tpu.vector_store %arg7[%c2, %c0_6], %4 {strides = array<i32>} : memref<21x2056xf32, #tpu.memory_space<vmem>>, vector<1x2056xf32>,
    %c0_7 = arith.constant 0 : index
    %c96 = arith.constant 96 : index
    %6 = vector.load %arg1[%c0_7, %c96] : memref<3x2304xf32, #tpu.memory_space<vmem>>, vector<1x2056xf32>
    %c3 = arith.constant 3 : index
    %c0_8 = arith.constant 0 : index
    %7 = vector.load %arg7[%c3, %c0_8] : memref<21x2056xf32, #tpu.memory_space<vmem>>, vector<1x2056xf32>
    tpu.vector_store %arg7[%c3, %c0_8], %6 {strides = array<i32>} : memref<21x2056xf32, #tpu.memory_space<vmem>>, vector<1x2056xf32>,
    %c0_9 = arith.constant 0 : index
    %c128 = arith.constant 128 : index
    %8 = vector.load %arg1[%c0_9, %c128] : memref<3x2304xf32, #tpu.memory_space<vmem>>, vector<1x2056xf32>
    %c4 = arith.constant 4 : index
    %c0_10 = arith.constant 0 : index
    %9 = vector.load %arg7[%c4, %c0_10] : memref<21x2056xf32, #tpu.memory_space<vmem>>, vector<1x2056xf32>
    tpu.vector_store %arg7[%c4, %c0_10], %8 {strides = array<i32>} : memref<21x2056xf32, #tpu.memory_space<vmem>>, vector<1x2056xf32>,
    %c0_11 = arith.constant 0 : index
    %c160 = arith.constant 160 : index
    %10 = vector.load %arg1[%c0_11, %c160] : memref<3x2304xf32, #tpu.memory_space<vmem>>, vector<1x2056xf32>
    %c5 = arith.constant 5 : index
    %c0_12 = arith.constant 0 : index
    %11 = vector.load %arg7[%c5, %c0_12] : memref<21x2056xf32, #tpu.memory_space<vmem>>, vector<1x2056xf32>
    tpu.vector_store %arg7[%c5, %c0_12], %10 {strides = array<i32>} : memref<21x2056xf32, #tpu.memory_space<vmem>>, vector<1x2056xf32>,
    %c0_13 = arith.constant 0 : index
    %c192 = arith.constant 192 : index
    %12 = vector.load %arg1[%c0_13, %c192] : memref<3x2304xf32, #tpu.memory_space<vmem>>, vector<1x2056xf32>
    %c6 = arith.constant 6 : index
    %c0_14 = arith.constant 0 : index
    %13 = vector.load %arg7[%c6, %c0_14] : memref<21x2056xf32, #tpu.memory_space<vmem>>, vector<1x2056xf32>
    tpu.vector_store %arg7[%c6, %c0_14], %12 {strides = array<i32>} : memref<21x2056xf32, #tpu.memory_space<vmem>>, vector<1x2056xf32>,
    %c1_15 = arith.constant 1 : index
    %c0_16 = arith.constant 0 : index
    %14 = vector.load %arg1[%c1_15, %c0_16] : memref<3x2304xf32, #tpu.memory_space<vmem>>, vector<1x2056xf32>
    %c7 = arith.constant 7 : index
    %c0_17 = arith.constant 0 : index
    %15 = vector.load %arg7[%c7, %c0_17] : memref<21x2056xf32, #tpu.memory_space<vmem>>, vector<1x2056xf32>
    tpu.vector_store %arg7[%c7, %c0_17], %14 {strides = array<i32>} : memref<21x2056xf32, #tpu.memory_space<vmem>>, vector<1x2056xf32>,
    %c1_18 = arith.constant 1 : index
    %c32_19 = arith.constant 32 : index
    %16 = vector.load %arg1[%c1_18, %c32_19] : memref<3x2304xf32, #tpu.memory_space<vmem>>, vector<1x2056xf32>
    %c8 = arith.constant 8 : index
    %c0_20 = arith.constant 0 : index
    %17 = vector.load %arg7[%c8, %c0_20] : memref<21x2056xf32, #tpu.memory_space<vmem>>, vector<1x2056xf32>
    tpu.vector_store %arg7[%c8, %c0_20], %16 {strides = array<i32>} : memref<21x2056xf32, #tpu.memory_space<vmem>>, vector<1x2056xf32>,
    %c1_21 = arith.constant 1 : index
    %c64_22 = arith.constant 64 : index
    %18 = vector.load %arg1[%c1_21, %c64_22] : memref<3x2304xf32, #tpu.memory_space<vmem>>, vector<1x2056xf32>
    %c9 = arith.constant 9 : index
    %c0_23 = arith.constant 0 : index
    %19 = vector.load %arg7[%c9, %c0_23] : memref<21x2056xf32, #tpu.memory_space<vmem>>, vector<1x2056xf32>
    tpu.vector_store %arg7[%c9, %c0_23], %18 {strides = array<i32>} : memref<21x2056xf32, #tpu.memory_space<vmem>>, vector<1x2056xf32>,
    %c1_24 = arith.constant 1 : index
    %c96_25 = arith.constant 96 : index
    %20 = vector.load %arg1[%c1_24, %c96_25] : memref<3x2304xf32, #tpu.memory_space<vmem>>, vector<1x2056xf32>
    %c10 = arith.constant 10 : index
    %c0_26 = arith.constant 0 : index
    %21 = vector.load %arg7[%c10, %c0_26] : memref<21x2056xf32, #tpu.memory_space<vmem>>, vector<1x2056xf32>
    tpu.vector_store %arg7[%c10, %c0_26], %20 {strides = array<i32>} : memref<21x2056xf32, #tpu.memory_space<vmem>>, vector<1x2056xf32>,
    %c1_27 = arith.constant 1 : index
    %c128_28 = arith.constant 128 : index
    %22 = vector.load %arg1[%c1_27, %c128_28] : memref<3x2304xf32, #tpu.memory_space<vmem>>, vector<1x2056xf32>
    %c11 = arith.constant 11 : index
    %c0_29 = arith.constant 0 : index
    %23 = vector.load %arg7[%c11, %c0_29] : memref<21x2056xf32, #tpu.memory_space<vmem>>, vector<1x2056xf32>
    tpu.vector_store %arg7[%c11, %c0_29], %22 {strides = array<i32>} : memref<21x2056xf32, #tpu.memory_space<vmem>>, vector<1x2056xf32>,
    %c1_30 = arith.constant 1 : index
    %c160_31 = arith.constant 160 : index
    %24 = vector.load %arg1[%c1_30, %c160_31] : memref<3x2304xf32, #tpu.memory_space<vmem>>, vector<1x2056xf32>
    %c12 = arith.constant 12 : index
    %c0_32 = arith.constant 0 : index
    %25 = vector.load %arg7[%c12, %c0_32] : memref<21x2056xf32, #tpu.memory_space<vmem>>, vector<1x2056xf32>
    tpu.vector_store %arg7[%c12, %c0_32], %24 {strides = array<i32>} : memref<21x2056xf32, #tpu.memory_space<vmem>>, vector<1x2056xf32>,
    %c1_33 = arith.constant 1 : index
    %c192_34 = arith.constant 192 : index
    %26 = vector.load %arg1[%c1_33, %c192_34] : memref<3x2304xf32, #tpu.memory_space<vmem>>, vector<1x2056xf32>
    %c13 = arith.constant 13 : index
    %c0_35 = arith.constant 0 : index
    %27 = vector.load %arg7[%c13, %c0_35] : memref<21x2056xf32, #tpu.memory_space<vmem>>, vector<1x2056xf32>
    tpu.vector_store %arg7[%c13, %c0_35], %26 {strides = array<i32>} : memref<21x2056xf32, #tpu.memory_space<vmem>>, vector<1x2056xf32>,
    %c2_36 = arith.constant 2 : index
    %c0_37 = arith.constant 0 : index
    %28 = vector.load %arg1[%c2_36, %c0_37] : memref<3x2304xf32, #tpu.memory_space<vmem>>, vector<1x2056xf32>
    %c14 = arith.constant 14 : index
    %c0_38 = arith.constant 0 : index
    %29 = vector.load %arg7[%c14, %c0_38] : memref<21x2056xf32, #tpu.memory_space<vmem>>, vector<1x2056xf32>
    tpu.vector_store %arg7[%c14, %c0_38], %28 {strides = array<i32>} : memref<21x2056xf32, #tpu.memory_space<vmem>>, vector<1x2056xf32>,
    %c2_39 = arith.constant 2 : index
    %c32_40 = arith.constant 32 : index
    %30 = vector.load %arg1[%c2_39, %c32_40] : memref<3x2304xf32, #tpu.memory_space<vmem>>, vector<1x2056xf32>
    %c15 = arith.constant 15 : index
    %c0_41 = arith.constant 0 : index
    %31 = vector.load %arg7[%c15, %c0_41] : memref<21x2056xf32, #tpu.memory_space<vmem>>, vector<1x2056xf32>
    tpu.vector_store %arg7[%c15, %c0_41], %30 {strides = array<i32>} : memref<21x2056xf32, #tpu.memory_space<vmem>>, vector<1x2056xf32>,
    %c2_42 = arith.constant 2 : index
    %c64_43 = arith.constant 64 : index
    %32 = vector.load %arg1[%c2_42, %c64_43] : memref<3x2304xf32, #tpu.memory_space<vmem>>, vector<1x2056xf32>
    %c16 = arith.constant 16 : index
    %c0_44 = arith.constant 0 : index
    %33 = vector.load %arg7[%c16, %c0_44] : memref<21x2056xf32, #tpu.memory_space<vmem>>, vector<1x2056xf32>
    tpu.vector_store %arg7[%c16, %c0_44], %32 {strides = array<i32>} : memref<21x2056xf32, #tpu.memory_space<vmem>>, vector<1x2056xf32>,
    %c2_45 = arith.constant 2 : index
    %c96_46 = arith.constant 96 : index
    %34 = vector.load %arg1[%c2_45, %c96_46] : memref<3x2304xf32, #tpu.memory_space<vmem>>, vector<1x2056xf32>
    %c17 = arith.constant 17 : index
    %c0_47 = arith.constant 0 : index
    %35 = vector.load %arg7[%c17, %c0_47] : memref<21x2056xf32, #tpu.memory_space<vmem>>, vector<1x2056xf32>
    tpu.vector_store %arg7[%c17, %c0_47], %34 {strides = array<i32>} : memref<21x2056xf32, #tpu.memory_space<vmem>>, vector<1x2056xf32>,
    %c2_48 = arith.constant 2 : index
    %c128_49 = arith.constant 128 : index
    %36 = vector.load %arg1[%c2_48, %c128_49] : memref<3x2304xf32, #tpu.memory_space<vmem>>, vector<1x2056xf32>
    %c18 = arith.constant 18 : index
    %c0_50 = arith.constant 0 : index
    %37 = vector.load %arg7[%c18, %c0_50] : memref<21x2056xf32, #tpu.memory_space<vmem>>, vector<1x2056xf32>
    tpu.vector_store %arg7[%c18, %c0_50], %36 {strides = array<i32>} : memref<21x2056xf32, #tpu.memory_space<vmem>>, vector<1x2056xf32>,
    %c2_51 = arith.constant 2 : index
    %c160_52 = arith.constant 160 : index
    %38 = vector.load %arg1[%c2_51, %c160_52] : memref<3x2304xf32, #tpu.memory_space<vmem>>, vector<1x2056xf32>
    %c19 = arith.constant 19 : index
    %c0_53 = arith.constant 0 : index
    %39 = vector.load %arg7[%c19, %c0_53] : memref<21x2056xf32, #tpu.memory_space<vmem>>, vector<1x2056xf32>
    tpu.vector_store %arg7[%c19, %c0_53], %38 {strides = array<i32>} : memref<21x2056xf32, #tpu.memory_space<vmem>>, vector<1x2056xf32>,
    %c2_54 = arith.constant 2 : index
    %c192_55 = arith.constant 192 : index
    %40 = vector.load %arg1[%c2_54, %c192_55] : memref<3x2304xf32, #tpu.memory_space<vmem>>, vector<1x2056xf32>
    %c20 = arith.constant 20 : index
    %c0_56 = arith.constant 0 : index
    %41 = vector.load %arg7[%c20, %c0_56] : memref<21x2056xf32, #tpu.memory_space<vmem>>, vector<1x2056xf32>
    tpu.vector_store %arg7[%c20, %c0_56], %40 {strides = array<i32>} : memref<21x2056xf32, #tpu.memory_space<vmem>>, vector<1x2056xf32>,
    %c0_57 = arith.constant 0 : index
    %c0_58 = arith.constant 0 : index
    %42 = vector.load %arg2[%c0_57, %c0_58] : memref<224x21xbf16, #tpu.memory_space<vmem>>, vector<32x21xbf16>
    %c0_59 = arith.constant 0 : index
    %c0_60 = arith.constant 0 : index
    %43 = vector.load %arg7[%c0_59, %c0_60] : memref<21x2056xf32, #tpu.memory_space<vmem>>, vector<21x2048xf32>
    %44 = arith.truncf %43 : vector<21x2048xf32> to vector<21x2048xbf16>
    %cst = arith.constant dense<0.000000e+00> : vector<32x2048xf32>
    %45 = tpu.matmul %42, %44, %cst {dimension_numbers = #tpu.dot_dimension_numbers<[1], [0], [0], [1], [0, 0, 1, 1], [], []>} : vector<32x21xbf16>, vector<21x2048xbf16>, vector<32x2048xf32> -> vector<32x2048xf32>
    %c32_61 = arith.constant 32 : index
    %c0_62 = arith.constant 0 : index
    %46 = vector.load %arg2[%c32_61, %c0_62] : memref<224x21xbf16, #tpu.memory_space<vmem>>, vector<32x21xbf16>
    %c0_63 = arith.constant 0 : index
    %c1_64 = arith.constant 1 : index
    %47 = vector.load %arg7[%c0_63, %c1_64] : memref<21x2056xf32, #tpu.memory_space<vmem>>, vector<21x2048xf32>
    %48 = arith.truncf %47 : vector<21x2048xf32> to vector<21x2048xbf16>
    %cst_65 = arith.constant dense<0.000000e+00> : vector<32x2048xf32>
    %49 = tpu.matmul %46, %48, %cst_65 {dimension_numbers = #tpu.dot_dimension_numbers<[1], [0], [0], [1], [0, 0, 1, 1], [], []>} : vector<32x21xbf16>, vector<21x2048xbf16>, vector<32x2048xf32> -> vector<32x2048xf32>
    %50 = arith.addf %45, %49 : vector<32x2048xf32>
    %c64_66 = arith.constant 64 : index
    %c0_67 = arith.constant 0 : index
    %51 = vector.load %arg2[%c64_66, %c0_67] : memref<224x21xbf16, #tpu.memory_space<vmem>>, vector<32x21xbf16>
    %c0_68 = arith.constant 0 : index
    %c2_69 = arith.constant 2 : index
    %52 = vector.load %arg7[%c0_68, %c2_69] : memref<21x2056xf32, #tpu.memory_space<vmem>>, vector<21x2048xf32>
    %53 = arith.truncf %52 : vector<21x2048xf32> to vector<21x2048xbf16>
    %cst_70 = arith.constant dense<0.000000e+00> : vector<32x2048xf32>
    %54 = tpu.matmul %51, %53, %cst_70 {dimension_numbers = #tpu.dot_dimension_numbers<[1], [0], [0], [1], [0, 0, 1, 1], [], []>} : vector<32x21xbf16>, vector<21x2048xbf16>, vector<32x2048xf32> -> vector<32x2048xf32>
    %55 = arith.addf %50, %54 : vector<32x2048xf32>
    %c96_71 = arith.constant 96 : index
    %c0_72 = arith.constant 0 : index
    %56 = vector.load %arg2[%c96_71, %c0_72] : memref<224x21xbf16, #tpu.memory_space<vmem>>, vector<32x21xbf16>
    %c0_73 = arith.constant 0 : index
    %c3_74 = arith.constant 3 : index
    %57 = vector.load %arg7[%c0_73, %c3_74] : memref<21x2056xf32, #tpu.memory_space<vmem>>, vector<21x2048xf32>
    %58 = arith.truncf %57 : vector<21x2048xf32> to vector<21x2048xbf16>
    %cst_75 = arith.constant dense<0.000000e+00> : vector<32x2048xf32>
    %59 = tpu.matmul %56, %58, %cst_75 {dimension_numbers = #tpu.dot_dimension_numbers<[1], [0], [0], [1], [0, 0, 1, 1], [], []>} : vector<32x21xbf16>, vector<21x2048xbf16>, vector<32x2048xf32> -> vector<32x2048xf32>
    %60 = arith.addf %55, %59 : vector<32x2048xf32>
    %c128_76 = arith.constant 128 : index
    %c0_77 = arith.constant 0 : index
    %61 = vector.load %arg2[%c128_76, %c0_77] : memref<224x21xbf16, #tpu.memory_space<vmem>>, vector<32x21xbf16>
    %c0_78 = arith.constant 0 : index
    %c4_79 = arith.constant 4 : index
    %62 = vector.load %arg7[%c0_78, %c4_79] : memref<21x2056xf32, #tpu.memory_space<vmem>>, vector<21x2048xf32>
    %63 = arith.truncf %62 : vector<21x2048xf32> to vector<21x2048xbf16>
    %cst_80 = arith.constant dense<0.000000e+00> : vector<32x2048xf32>
    %64 = tpu.matmul %61, %63, %cst_80 {dimension_numbers = #tpu.dot_dimension_numbers<[1], [0], [0], [1], [0, 0, 1, 1], [], []>} : vector<32x21xbf16>, vector<21x2048xbf16>, vector<32x2048xf32> -> vector<32x2048xf32>
    %65 = arith.addf %60, %64 : vector<32x2048xf32>
    %c160_81 = arith.constant 160 : index
    %c0_82 = arith.constant 0 : index
    %66 = vector.load %arg2[%c160_81, %c0_82] : memref<224x21xbf16, #tpu.memory_space<vmem>>, vector<32x21xbf16>
    %c0_83 = arith.constant 0 : index
    %c5_84 = arith.constant 5 : index
    %67 = vector.load %arg7[%c0_83, %c5_84] : memref<21x2056xf32, #tpu.memory_space<vmem>>, vector<21x2048xf32>
    %68 = arith.truncf %67 : vector<21x2048xf32> to vector<21x2048xbf16>
    %cst_85 = arith.constant dense<0.000000e+00> : vector<32x2048xf32>
    %69 = tpu.matmul %66, %68, %cst_85 {dimension_numbers = #tpu.dot_dimension_numbers<[1], [0], [0], [1], [0, 0, 1, 1], [], []>} : vector<32x21xbf16>, vector<21x2048xbf16>, vector<32x2048xf32> -> vector<32x2048xf32>
    %70 = arith.addf %65, %69 : vector<32x2048xf32>
    %c192_86 = arith.constant 192 : index
    %c0_87 = arith.constant 0 : index
    %71 = vector.load %arg2[%c192_86, %c0_87] : memref<224x21xbf16, #tpu.memory_space<vmem>>, vector<32x21xbf16>
    %c0_88 = arith.constant 0 : index
    %c6_89 = arith.constant 6 : index
    %72 = vector.load %arg7[%c0_88, %c6_89] : memref<21x2056xf32, #tpu.memory_space<vmem>>, vector<21x2048xf32>
    %73 = arith.truncf %72 : vector<21x2048xf32> to vector<21x2048xbf16>
    %cst_90 = arith.constant dense<0.000000e+00> : vector<32x2048xf32>
    %74 = tpu.matmul %71, %73, %cst_90 {dimension_numbers = #tpu.dot_dimension_numbers<[1], [0], [0], [1], [0, 0, 1, 1], [], []>} : vector<32x21xbf16>, vector<21x2048xbf16>, vector<32x2048xf32> -> vector<32x2048xf32>
    %75 = arith.addf %70, %74 : vector<32x2048xf32>
    %c0_91 = arith.constant 0 : index
    %c0_92 = arith.constant 0 : index
    %76 = vector.load %arg3[%c0_91, %c0_92] : memref<32x1xf32, #tpu.memory_space<vmem>>, vector<32x1xf32>
    %77 = vector.broadcast %76 : vector<32x1xf32> to vector<32x2048xf32>
    %78 = arith.addf %75, %77 : vector<32x2048xf32>
    %cst_93 = arith.constant 0.000000e+00 : f32
    %79 = vector.broadcast %cst_93 : f32 to vector<32x2048xf32>
    %80 = arith.maximumf %78, %79 : vector<32x2048xf32>
    %cst_94 = arith.constant 0.000000e+00 : f32
    %81 = vector.broadcast %cst_94 : f32 to vector<32x128xf32>
    %c0_95 = arith.constant 0 : index
    %c2048 = arith.constant 2048 : index
    %82 = vector.load %arg8[%c0_95, %c2048] : memref<32x2176xf32, #tpu.memory_space<vmem>>, vector<32x128xf32>
    tpu.vector_store %arg8[%c0_95, %c2048], %81 {strides = array<i32>} : memref<32x2176xf32, #tpu.memory_space<vmem>>, vector<32x128xf32>,
    %c0_96 = arith.constant 0 : index
    %c0_97 = arith.constant 0 : index
    %83 = vector.load %arg8[%c0_96, %c0_97] : memref<32x2176xf32, #tpu.memory_space<vmem>>, vector<32x2048xf32>
    tpu.vector_store %arg8[%c0_96, %c0_97], %80 {strides = array<i32>} : memref<32x2176xf32, #tpu.memory_space<vmem>>, vector<32x2048xf32>,
    %c0_98 = arith.constant 0 : index
    %c1_99 = arith.constant 1 : index
    %84 = vector.load %arg8[%c0_98, %c1_99] : memref<32x2176xf32, #tpu.memory_space<vmem>>, vector<32x2048xf32>
    %85 = arith.maximumf %80, %84 : vector<32x2048xf32>
    %c0_100 = arith.constant 0 : index
    %c32_101 = arith.constant 32 : index
    %86 = vector.load %arg8[%c0_100, %c32_101] : memref<32x2176xf32, #tpu.memory_space<vmem>>, vector<32x2048xf32>
    %c0_102 = arith.constant 0 : index
    %c33 = arith.constant 33 : index
    %87 = vector.load %arg8[%c0_102, %c33] : memref<32x2176xf32, #tpu.memory_space<vmem>>, vector<32x2048xf32>
    %88 = arith.maximumf %86, %87 : vector<32x2048xf32>
    %89 = arith.maximumf %85, %88 : vector<32x2048xf32>
    %c0_103 = arith.constant 0 : index
    %c0_104 = arith.constant 0 : index
    %90 = vector.load %arg5[%c0_103, %c0_104] : memref<1x10xf32, #tpu.memory_space<vmem>>, vector<1x10xf32>
    %c0_105 = arith.constant 0 : index
    %c0_106 = arith.constant 0 : index
    %91 = vector.load %arg4[%c0_105, %c0_106] : memref<320x1024xf32, #tpu.memory_space<vmem>>, vector<32x1024xf32>
    %92 = vector.extract_strided_slice %89 {offsets = [0, 0], sizes = [32, 1024], strides = [1, 1]} : vector<32x2048xf32> to vector<32x1024xf32>
    %93 = arith.mulf %92, %91 : vector<32x1024xf32>
    %94 = vector.shape_cast %93 : vector<32x1024xf32> to vector<1x32x1024xf32>
    %cst_107 = arith.constant dense<0.000000e+00> : vector<1xf32>
    %95 = vector.multi_reduction <add>, %94, %cst_107 [1, 2] : vector<1x32x1024xf32> to vector<1xf32>
    %96 = vector.shape_cast %95 : vector<1xf32> to vector<1x1x1xf32>
    %97 = vector.extract %96[0, 0, 0] : f32 from vector<1x1x1xf32>
    %98 = vector.extract_strided_slice %90 {offsets = [0, 0], sizes = [1, 1], strides = [1, 1]} : vector<1x10xf32> to vector<1x1xf32>
    %99 = vector.extract %98[0, 0] : f32 from vector<1x1xf32>
    %100 = arith.addf %97, %99 : f32
    %101 = vector.broadcast %100 : f32 to vector<1x1xf32>
    %c0_108 = arith.constant 0 : index
    %c0_109 = arith.constant 0 : index
    %102 = vector.load %arg6[%c0_108, %c0_109] : memref<2x10xf32, #tpu.memory_space<vmem>>, vector<1x1xf32>
    tpu.vector_store %arg6[%c0_108, %c0_109], %101 {strides = array<i32>} : memref<2x10xf32, #tpu.memory_space<vmem>>, vector<1x1xf32>,
    %103 = vector.extract_strided_slice %89 {offsets = [0, 1024], sizes = [32, 1024], strides = [1, 1]} : vector<32x2048xf32> to vector<32x1024xf32>
    %104 = arith.mulf %103, %91 : vector<32x1024xf32>
    %105 = vector.shape_cast %104 : vector<32x1024xf32> to vector<1x32x1024xf32>
    %cst_110 = arith.constant dense<0.000000e+00> : vector<1xf32>
    %106 = vector.multi_reduction <add>, %105, %cst_110 [1, 2] : vector<1x32x1024xf32> to vector<1xf32>
    %107 = vector.shape_cast %106 : vector<1xf32> to vector<1x1x1xf32>
    %108 = vector.extract %107[0, 0, 0] : f32 from vector<1x1x1xf32>
    %109 = vector.extract_strided_slice %90 {offsets = [0, 0], sizes = [1, 1], strides = [1, 1]} : vector<1x10xf32> to vector<1x1xf32>
    %110 = vector.extract %109[0, 0] : f32 from vector<1x1xf32>
    %111 = arith.addf %108, %110 : f32
    %112 = vector.broadcast %111 : f32 to vector<1x1xf32>
    %c1_111 = arith.constant 1 : index
    %c0_112 = arith.constant 0 : index
    %113 = vector.load %arg6[%c1_111, %c0_112] : memref<2x10xf32, #tpu.memory_space<vmem>>, vector<1x1xf32>
    tpu.vector_store %arg6[%c1_111, %c0_112], %112 {strides = array<i32>} : memref<2x10xf32, #tpu.memory_space<vmem>>, vector<1x1xf32>,
    %c32_113 = arith.constant 32 : index
    %c0_114 = arith.constant 0 : index
    %114 = vector.load %arg4[%c32_113, %c0_114] : memref<320x1024xf32, #tpu.memory_space<vmem>>, vector<32x1024xf32>
    %115 = vector.extract_strided_slice %89 {offsets = [0, 0], sizes = [32, 1024], strides = [1, 1]} : vector<32x2048xf32> to vector<32x1024xf32>
    %116 = arith.mulf %115, %114 : vector<32x1024xf32>
    %117 = vector.shape_cast %116 : vector<32x1024xf32> to vector<1x32x1024xf32>
    %cst_115 = arith.constant dense<0.000000e+00> : vector<1xf32>
    %118 = vector.multi_reduction <add>, %117, %cst_115 [1, 2] : vector<1x32x1024xf32> to vector<1xf32>
    %119 = vector.shape_cast %118 : vector<1xf32> to vector<1x1x1xf32>
    %120 = vector.extract %119[0, 0, 0] : f32 from vector<1x1x1xf32>
    %121 = vector.extract_strided_slice %90 {offsets = [0, 1], sizes = [1, 1], strides = [1, 1]} : vector<1x10xf32> to vector<1x1xf32>
    %122 = vector.extract %121[0, 0] : f32 from vector<1x1xf32>
    %123 = arith.addf %120, %122 : f32
    %124 = vector.broadcast %123 : f32 to vector<1x1xf32>
    %c0_116 = arith.constant 0 : index
    %c1_117 = arith.constant 1 : index
    %125 = vector.load %arg6[%c0_116, %c1_117] : memref<2x10xf32, #tpu.memory_space<vmem>>, vector<1x1xf32>
    tpu.vector_store %arg6[%c0_116, %c1_117], %124 {strides = array<i32>} : memref<2x10xf32, #tpu.memory_space<vmem>>, vector<1x1xf32>,
    %126 = vector.extract_strided_slice %89 {offsets = [0, 1024], sizes = [32, 1024], strides = [1, 1]} : vector<32x2048xf32> to vector<32x1024xf32>
    %127 = arith.mulf %126, %114 : vector<32x1024xf32>
    %128 = vector.shape_cast %127 : vector<32x1024xf32> to vector<1x32x1024xf32>
    %cst_118 = arith.constant dense<0.000000e+00> : vector<1xf32>
    %129 = vector.multi_reduction <add>, %128, %cst_118 [1, 2] : vector<1x32x1024xf32> to vector<1xf32>
    %130 = vector.shape_cast %129 : vector<1xf32> to vector<1x1x1xf32>
    %131 = vector.extract %130[0, 0, 0] : f32 from vector<1x1x1xf32>
    %132 = vector.extract_strided_slice %90 {offsets = [0, 1], sizes = [1, 1], strides = [1, 1]} : vector<1x10xf32> to vector<1x1xf32>
    %133 = vector.extract %132[0, 0] : f32 from vector<1x1xf32>
    %134 = arith.addf %131, %133 : f32
    %135 = vector.broadcast %134 : f32 to vector<1x1xf32>
    %c1_119 = arith.constant 1 : index
    %c1_120 = arith.constant 1 : index
    %136 = vector.load %arg6[%c1_119, %c1_120] : memref<2x10xf32, #tpu.memory_space<vmem>>, vector<1x1xf32>
    tpu.vector_store %arg6[%c1_119, %c1_120], %135 {strides = array<i32>} : memref<2x10xf32, #tpu.memory_space<vmem>>, vector<1x1xf32>,
    %c64_121 = arith.constant 64 : index
    %c0_122 = arith.constant 0 : index
    %137 = vector.load %arg4[%c64_121, %c0_122] : memref<320x1024xf32, #tpu.memory_space<vmem>>, vector<32x1024xf32>
    %138 = vector.extract_strided_slice %89 {offsets = [0, 0], sizes = [32, 1024], strides = [1, 1]} : vector<32x2048xf32> to vector<32x1024xf32>
    %139 = arith.mulf %138, %137 : vector<32x1024xf32>
    %140 = vector.shape_cast %139 : vector<32x1024xf32> to vector<1x32x1024xf32>
    %cst_123 = arith.constant dense<0.000000e+00> : vector<1xf32>
    %141 = vector.multi_reduction <add>, %140, %cst_123 [1, 2] : vector<1x32x1024xf32> to vector<1xf32>
    %142 = vector.shape_cast %141 : vector<1xf32> to vector<1x1x1xf32>
    %143 = vector.extract %142[0, 0, 0] : f32 from vector<1x1x1xf32>
    %144 = vector.extract_strided_slice %90 {offsets = [0, 2], sizes = [1, 1], strides = [1, 1]} : vector<1x10xf32> to vector<1x1xf32>
    %145 = vector.extract %144[0, 0] : f32 from vector<1x1xf32>
    %146 = arith.addf %143, %145 : f32
    %147 = vector.broadcast %146 : f32 to vector<1x1xf32>
    %c0_124 = arith.constant 0 : index
    %c2_125 = arith.constant 2 : index
    %148 = vector.load %arg6[%c0_124, %c2_125] : memref<2x10xf32, #tpu.memory_space<vmem>>, vector<1x1xf32>
    tpu.vector_store %arg6[%c0_124, %c2_125], %147 {strides = array<i32>} : memref<2x10xf32, #tpu.memory_space<vmem>>, vector<1x1xf32>,
    %149 = vector.extract_strided_slice %89 {offsets = [0, 1024], sizes = [32, 1024], strides = [1, 1]} : vector<32x2048xf32> to vector<32x1024xf32>
    %150 = arith.mulf %149, %137 : vector<32x1024xf32>
    %151 = vector.shape_cast %150 : vector<32x1024xf32> to vector<1x32x1024xf32>
    %cst_126 = arith.constant dense<0.000000e+00> : vector<1xf32>
    %152 = vector.multi_reduction <add>, %151, %cst_126 [1, 2] : vector<1x32x1024xf32> to vector<1xf32>
    %153 = vector.shape_cast %152 : vector<1xf32> to vector<1x1x1xf32>
    %154 = vector.extract %153[0, 0, 0] : f32 from vector<1x1x1xf32>
    %155 = vector.extract_strided_slice %90 {offsets = [0, 2], sizes = [1, 1], strides = [1, 1]} : vector<1x10xf32> to vector<1x1xf32>
    %156 = vector.extract %155[0, 0] : f32 from vector<1x1xf32>
    %157 = arith.addf %154, %156 : f32
    %158 = vector.broadcast %157 : f32 to vector<1x1xf32>
    %c1_127 = arith.constant 1 : index
    %c2_128 = arith.constant 2 : index
    %159 = vector.load %arg6[%c1_127, %c2_128] : memref<2x10xf32, #tpu.memory_space<vmem>>, vector<1x1xf32>
    tpu.vector_store %arg6[%c1_127, %c2_128], %158 {strides = array<i32>} : memref<2x10xf32, #tpu.memory_space<vmem>>, vector<1x1xf32>,
    %c96_129 = arith.constant 96 : index
    %c0_130 = arith.constant 0 : index
    %160 = vector.load %arg4[%c96_129, %c0_130] : memref<320x1024xf32, #tpu.memory_space<vmem>>, vector<32x1024xf32>
    %161 = vector.extract_strided_slice %89 {offsets = [0, 0], sizes = [32, 1024], strides = [1, 1]} : vector<32x2048xf32> to vector<32x1024xf32>
    %162 = arith.mulf %161, %160 : vector<32x1024xf32>
    %163 = vector.shape_cast %162 : vector<32x1024xf32> to vector<1x32x1024xf32>
    %cst_131 = arith.constant dense<0.000000e+00> : vector<1xf32>
    %164 = vector.multi_reduction <add>, %163, %cst_131 [1, 2] : vector<1x32x1024xf32> to vector<1xf32>
    %165 = vector.shape_cast %164 : vector<1xf32> to vector<1x1x1xf32>
    %166 = vector.extract %165[0, 0, 0] : f32 from vector<1x1x1xf32>
    %167 = vector.extract_strided_slice %90 {offsets = [0, 3], sizes = [1, 1], strides = [1, 1]} : vector<1x10xf32> to vector<1x1xf32>
    %168 = vector.extract %167[0, 0] : f32 from vector<1x1xf32>
    %169 = arith.addf %166, %168 : f32
    %170 = vector.broadcast %169 : f32 to vector<1x1xf32>
    %c0_132 = arith.constant 0 : index
    %c3_133 = arith.constant 3 : index
    %171 = vector.load %arg6[%c0_132, %c3_133] : memref<2x10xf32, #tpu.memory_space<vmem>>, vector<1x1xf32>
    tpu.vector_store %arg6[%c0_132, %c3_133], %170 {strides = array<i32>} : memref<2x10xf32, #tpu.memory_space<vmem>>, vector<1x1xf32>,
    %172 = vector.extract_strided_slice %89 {offsets = [0, 1024], sizes = [32, 1024], strides = [1, 1]} : vector<32x2048xf32> to vector<32x1024xf32>
    %173 = arith.mulf %172, %160 : vector<32x1024xf32>
    %174 = vector.shape_cast %173 : vector<32x1024xf32> to vector<1x32x1024xf32>
    %cst_134 = arith.constant dense<0.000000e+00> : vector<1xf32>
    %175 = vector.multi_reduction <add>, %174, %cst_134 [1, 2] : vector<1x32x1024xf32> to vector<1xf32>
    %176 = vector.shape_cast %175 : vector<1xf32> to vector<1x1x1xf32>
    %177 = vector.extract %176[0, 0, 0] : f32 from vector<1x1x1xf32>
    %178 = vector.extract_strided_slice %90 {offsets = [0, 3], sizes = [1, 1], strides = [1, 1]} : vector<1x10xf32> to vector<1x1xf32>
    %179 = vector.extract %178[0, 0] : f32 from vector<1x1xf32>
    %180 = arith.addf %177, %179 : f32
    %181 = vector.broadcast %180 : f32 to vector<1x1xf32>
    %c1_135 = arith.constant 1 : index
    %c3_136 = arith.constant 3 : index
    %182 = vector.load %arg6[%c1_135, %c3_136] : memref<2x10xf32, #tpu.memory_space<vmem>>, vector<1x1xf32>
    tpu.vector_store %arg6[%c1_135, %c3_136], %181 {strides = array<i32>} : memref<2x10xf32, #tpu.memory_space<vmem>>, vector<1x1xf32>,
    %c128_137 = arith.constant 128 : index
    %c0_138 = arith.constant 0 : index
    %183 = vector.load %arg4[%c128_137, %c0_138] : memref<320x1024xf32, #tpu.memory_space<vmem>>, vector<32x1024xf32>
    %184 = vector.extract_strided_slice %89 {offsets = [0, 0], sizes = [32, 1024], strides = [1, 1]} : vector<32x2048xf32> to vector<32x1024xf32>
    %185 = arith.mulf %184, %183 : vector<32x1024xf32>
    %186 = vector.shape_cast %185 : vector<32x1024xf32> to vector<1x32x1024xf32>
    %cst_139 = arith.constant dense<0.000000e+00> : vector<1xf32>
    %187 = vector.multi_reduction <add>, %186, %cst_139 [1, 2] : vector<1x32x1024xf32> to vector<1xf32>
    %188 = vector.shape_cast %187 : vector<1xf32> to vector<1x1x1xf32>
    %189 = vector.extract %188[0, 0, 0] : f32 from vector<1x1x1xf32>
    %190 = vector.extract_strided_slice %90 {offsets = [0, 4], sizes = [1, 1], strides = [1, 1]} : vector<1x10xf32> to vector<1x1xf32>
    %191 = vector.extract %190[0, 0] : f32 from vector<1x1xf32>
    %192 = arith.addf %189, %191 : f32
    %193 = vector.broadcast %192 : f32 to vector<1x1xf32>
    %c0_140 = arith.constant 0 : index
    %c4_141 = arith.constant 4 : index
    %194 = vector.load %arg6[%c0_140, %c4_141] : memref<2x10xf32, #tpu.memory_space<vmem>>, vector<1x1xf32>
    tpu.vector_store %arg6[%c0_140, %c4_141], %193 {strides = array<i32>} : memref<2x10xf32, #tpu.memory_space<vmem>>, vector<1x1xf32>,
    %195 = vector.extract_strided_slice %89 {offsets = [0, 1024], sizes = [32, 1024], strides = [1, 1]} : vector<32x2048xf32> to vector<32x1024xf32>
    %196 = arith.mulf %195, %183 : vector<32x1024xf32>
    %197 = vector.shape_cast %196 : vector<32x1024xf32> to vector<1x32x1024xf32>
    %cst_142 = arith.constant dense<0.000000e+00> : vector<1xf32>
    %198 = vector.multi_reduction <add>, %197, %cst_142 [1, 2] : vector<1x32x1024xf32> to vector<1xf32>
    %199 = vector.shape_cast %198 : vector<1xf32> to vector<1x1x1xf32>
    %200 = vector.extract %199[0, 0, 0] : f32 from vector<1x1x1xf32>
    %201 = vector.extract_strided_slice %90 {offsets = [0, 4], sizes = [1, 1], strides = [1, 1]} : vector<1x10xf32> to vector<1x1xf32>
    %202 = vector.extract %201[0, 0] : f32 from vector<1x1xf32>
    %203 = arith.addf %200, %202 : f32
    %204 = vector.broadcast %203 : f32 to vector<1x1xf32>
    %c1_143 = arith.constant 1 : index
    %c4_144 = arith.constant 4 : index
    %205 = vector.load %arg6[%c1_143, %c4_144] : memref<2x10xf32, #tpu.memory_space<vmem>>, vector<1x1xf32>
    tpu.vector_store %arg6[%c1_143, %c4_144], %204 {strides = array<i32>} : memref<2x10xf32, #tpu.memory_space<vmem>>, vector<1x1xf32>,
    %c160_145 = arith.constant 160 : index
    %c0_146 = arith.constant 0 : index
    %206 = vector.load %arg4[%c160_145, %c0_146] : memref<320x1024xf32, #tpu.memory_space<vmem>>, vector<32x1024xf32>
    %207 = vector.extract_strided_slice %89 {offsets = [0, 0], sizes = [32, 1024], strides = [1, 1]} : vector<32x2048xf32> to vector<32x1024xf32>
    %208 = arith.mulf %207, %206 : vector<32x1024xf32>
    %209 = vector.shape_cast %208 : vector<32x1024xf32> to vector<1x32x1024xf32>
    %cst_147 = arith.constant dense<0.000000e+00> : vector<1xf32>
    %210 = vector.multi_reduction <add>, %209, %cst_147 [1, 2] : vector<1x32x1024xf32> to vector<1xf32>
    %211 = vector.shape_cast %210 : vector<1xf32> to vector<1x1x1xf32>
    %212 = vector.extract %211[0, 0, 0] : f32 from vector<1x1x1xf32>
    %213 = vector.extract_strided_slice %90 {offsets = [0, 5], sizes = [1, 1], strides = [1, 1]} : vector<1x10xf32> to vector<1x1xf32>
    %214 = vector.extract %213[0, 0] : f32 from vector<1x1xf32>
    %215 = arith.addf %212, %214 : f32
    %216 = vector.broadcast %215 : f32 to vector<1x1xf32>
    %c0_148 = arith.constant 0 : index
    %c5_149 = arith.constant 5 : index
    %217 = vector.load %arg6[%c0_148, %c5_149] : memref<2x10xf32, #tpu.memory_space<vmem>>, vector<1x1xf32>
    tpu.vector_store %arg6[%c0_148, %c5_149], %216 {strides = array<i32>} : memref<2x10xf32, #tpu.memory_space<vmem>>, vector<1x1xf32>,
    %218 = vector.extract_strided_slice %89 {offsets = [0, 1024], sizes = [32, 1024], strides = [1, 1]} : vector<32x2048xf32> to vector<32x1024xf32>
    %219 = arith.mulf %218, %206 : vector<32x1024xf32>
    %220 = vector.shape_cast %219 : vector<32x1024xf32> to vector<1x32x1024xf32>
    %cst_150 = arith.constant dense<0.000000e+00> : vector<1xf32>
    %221 = vector.multi_reduction <add>, %220, %cst_150 [1, 2] : vector<1x32x1024xf32> to vector<1xf32>
    %222 = vector.shape_cast %221 : vector<1xf32> to vector<1x1x1xf32>
    %223 = vector.extract %222[0, 0, 0] : f32 from vector<1x1x1xf32>
    %224 = vector.extract_strided_slice %90 {offsets = [0, 5], sizes = [1, 1], strides = [1, 1]} : vector<1x10xf32> to vector<1x1xf32>
    %225 = vector.extract %224[0, 0] : f32 from vector<1x1xf32>
    %226 = arith.addf %223, %225 : f32
    %227 = vector.broadcast %226 : f32 to vector<1x1xf32>
    %c1_151 = arith.constant 1 : index
    %c5_152 = arith.constant 5 : index
    %228 = vector.load %arg6[%c1_151, %c5_152] : memref<2x10xf32, #tpu.memory_space<vmem>>, vector<1x1xf32>
    tpu.vector_store %arg6[%c1_151, %c5_152], %227 {strides = array<i32>} : memref<2x10xf32, #tpu.memory_space<vmem>>, vector<1x1xf32>,
    %c192_153 = arith.constant 192 : index
    %c0_154 = arith.constant 0 : index
    %229 = vector.load %arg4[%c192_153, %c0_154] : memref<320x1024xf32, #tpu.memory_space<vmem>>, vector<32x1024xf32>
    %230 = vector.extract_strided_slice %89 {offsets = [0, 0], sizes = [32, 1024], strides = [1, 1]} : vector<32x2048xf32> to vector<32x1024xf32>
    %231 = arith.mulf %230, %229 : vector<32x1024xf32>
    %232 = vector.shape_cast %231 : vector<32x1024xf32> to vector<1x32x1024xf32>
    %cst_155 = arith.constant dense<0.000000e+00> : vector<1xf32>
    %233 = vector.multi_reduction <add>, %232, %cst_155 [1, 2] : vector<1x32x1024xf32> to vector<1xf32>
    %234 = vector.shape_cast %233 : vector<1xf32> to vector<1x1x1xf32>
    %235 = vector.extract %234[0, 0, 0] : f32 from vector<1x1x1xf32>
    %236 = vector.extract_strided_slice %90 {offsets = [0, 6], sizes = [1, 1], strides = [1, 1]} : vector<1x10xf32> to vector<1x1xf32>
    %237 = vector.extract %236[0, 0] : f32 from vector<1x1xf32>
    %238 = arith.addf %235, %237 : f32
    %239 = vector.broadcast %238 : f32 to vector<1x1xf32>
    %c0_156 = arith.constant 0 : index
    %c6_157 = arith.constant 6 : index
    %240 = vector.load %arg6[%c0_156, %c6_157] : memref<2x10xf32, #tpu.memory_space<vmem>>, vector<1x1xf32>
    tpu.vector_store %arg6[%c0_156, %c6_157], %239 {strides = array<i32>} : memref<2x10xf32, #tpu.memory_space<vmem>>, vector<1x1xf32>,
    %241 = vector.extract_strided_slice %89 {offsets = [0, 1024], sizes = [32, 1024], strides = [1, 1]} : vector<32x2048xf32> to vector<32x1024xf32>
    %242 = arith.mulf %241, %229 : vector<32x1024xf32>
    %243 = vector.shape_cast %242 : vector<32x1024xf32> to vector<1x32x1024xf32>
    %cst_158 = arith.constant dense<0.000000e+00> : vector<1xf32>
    %244 = vector.multi_reduction <add>, %243, %cst_158 [1, 2] : vector<1x32x1024xf32> to vector<1xf32>
    %245 = vector.shape_cast %244 : vector<1xf32> to vector<1x1x1xf32>
    %246 = vector.extract %245[0, 0, 0] : f32 from vector<1x1x1xf32>
    %247 = vector.extract_strided_slice %90 {offsets = [0, 6], sizes = [1, 1], strides = [1, 1]} : vector<1x10xf32> to vector<1x1xf32>
    %248 = vector.extract %247[0, 0] : f32 from vector<1x1xf32>
    %249 = arith.addf %246, %248 : f32
    %250 = vector.broadcast %249 : f32 to vector<1x1xf32>
    %c1_159 = arith.constant 1 : index
    %c6_160 = arith.constant 6 : index
    %251 = vector.load %arg6[%c1_159, %c6_160] : memref<2x10xf32, #tpu.memory_space<vmem>>, vector<1x1xf32>
    tpu.vector_store %arg6[%c1_159, %c6_160], %250 {strides = array<i32>} : memref<2x10xf32, #tpu.memory_space<vmem>>, vector<1x1xf32>,
    %c224 = arith.constant 224 : index
    %c0_161 = arith.constant 0 : index
    %252 = vector.load %arg4[%c224, %c0_161] : memref<320x1024xf32, #tpu.memory_space<vmem>>, vector<32x1024xf32>
    %253 = vector.extract_strided_slice %89 {offsets = [0, 0], sizes = [32, 1024], strides = [1, 1]} : vector<32x2048xf32> to vector<32x1024xf32>
    %254 = arith.mulf %253, %252 : vector<32x1024xf32>
    %255 = vector.shape_cast %254 : vector<32x1024xf32> to vector<1x32x1024xf32>
    %cst_162 = arith.constant dense<0.000000e+00> : vector<1xf32>
    %256 = vector.multi_reduction <add>, %255, %cst_162 [1, 2] : vector<1x32x1024xf32> to vector<1xf32>
    %257 = vector.shape_cast %256 : vector<1xf32> to vector<1x1x1xf32>
    %258 = vector.extract %257[0, 0, 0] : f32 from vector<1x1x1xf32>
    %259 = vector.extract_strided_slice %90 {offsets = [0, 7], sizes = [1, 1], strides = [1, 1]} : vector<1x10xf32> to vector<1x1xf32>
    %260 = vector.extract %259[0, 0] : f32 from vector<1x1xf32>
    %261 = arith.addf %258, %260 : f32
    %262 = vector.broadcast %261 : f32 to vector<1x1xf32>
    %c0_163 = arith.constant 0 : index
    %c7_164 = arith.constant 7 : index
    %263 = vector.load %arg6[%c0_163, %c7_164] : memref<2x10xf32, #tpu.memory_space<vmem>>, vector<1x1xf32>
    tpu.vector_store %arg6[%c0_163, %c7_164], %262 {strides = array<i32>} : memref<2x10xf32, #tpu.memory_space<vmem>>, vector<1x1xf32>,
    %264 = vector.extract_strided_slice %89 {offsets = [0, 1024], sizes = [32, 1024], strides = [1, 1]} : vector<32x2048xf32> to vector<32x1024xf32>
    %265 = arith.mulf %264, %252 : vector<32x1024xf32>
    %266 = vector.shape_cast %265 : vector<32x1024xf32> to vector<1x32x1024xf32>
    %cst_165 = arith.constant dense<0.000000e+00> : vector<1xf32>
    %267 = vector.multi_reduction <add>, %266, %cst_165 [1, 2] : vector<1x32x1024xf32> to vector<1xf32>
    %268 = vector.shape_cast %267 : vector<1xf32> to vector<1x1x1xf32>
    %269 = vector.extract %268[0, 0, 0] : f32 from vector<1x1x1xf32>
    %270 = vector.extract_strided_slice %90 {offsets = [0, 7], sizes = [1, 1], strides = [1, 1]} : vector<1x10xf32> to vector<1x1xf32>
    %271 = vector.extract %270[0, 0] : f32 from vector<1x1xf32>
    %272 = arith.addf %269, %271 : f32
    %273 = vector.broadcast %272 : f32 to vector<1x1xf32>
    %c1_166 = arith.constant 1 : index
    %c7_167 = arith.constant 7 : index
    %274 = vector.load %arg6[%c1_166, %c7_167] : memref<2x10xf32, #tpu.memory_space<vmem>>, vector<1x1xf32>
    tpu.vector_store %arg6[%c1_166, %c7_167], %273 {strides = array<i32>} : memref<2x10xf32, #tpu.memory_space<vmem>>, vector<1x1xf32>,
    %c256 = arith.constant 256 : index
    %c0_168 = arith.constant 0 : index
    %275 = vector.load %arg4[%c256, %c0_168] : memref<320x1024xf32, #tpu.memory_space<vmem>>, vector<32x1024xf32>
    %276 = vector.extract_strided_slice %89 {offsets = [0, 0], sizes = [32, 1024], strides = [1, 1]} : vector<32x2048xf32> to vector<32x1024xf32>
    %277 = arith.mulf %276, %275 : vector<32x1024xf32>
    %278 = vector.shape_cast %277 : vector<32x1024xf32> to vector<1x32x1024xf32>
    %cst_169 = arith.constant dense<0.000000e+00> : vector<1xf32>
    %279 = vector.multi_reduction <add>, %278, %cst_169 [1, 2] : vector<1x32x1024xf32> to vector<1xf32>
    %280 = vector.shape_cast %279 : vector<1xf32> to vector<1x1x1xf32>
    %281 = vector.extract %280[0, 0, 0] : f32 from vector<1x1x1xf32>
    %282 = vector.extract_strided_slice %90 {offsets = [0, 8], sizes = [1, 1], strides = [1, 1]} : vector<1x10xf32> to vector<1x1xf32>
    %283 = vector.extract %282[0, 0] : f32 from vector<1x1xf32>
    %284 = arith.addf %281, %283 : f32
    %285 = vector.broadcast %284 : f32 to vector<1x1xf32>
    %c0_170 = arith.constant 0 : index
    %c8_171 = arith.constant 8 : index
    %286 = vector.load %arg6[%c0_170, %c8_171] : memref<2x10xf32, #tpu.memory_space<vmem>>, vector<1x1xf32>
    tpu.vector_store %arg6[%c0_170, %c8_171], %285 {strides = array<i32>} : memref<2x10xf32, #tpu.memory_space<vmem>>, vector<1x1xf32>,
    %287 = vector.extract_strided_slice %89 {offsets = [0, 1024], sizes = [32, 1024], strides = [1, 1]} : vector<32x2048xf32> to vector<32x1024xf32>
    %288 = arith.mulf %287, %275 : vector<32x1024xf32>
    %289 = vector.shape_cast %288 : vector<32x1024xf32> to vector<1x32x1024xf32>
    %cst_172 = arith.constant dense<0.000000e+00> : vector<1xf32>
    %290 = vector.multi_reduction <add>, %289, %cst_172 [1, 2] : vector<1x32x1024xf32> to vector<1xf32>
    %291 = vector.shape_cast %290 : vector<1xf32> to vector<1x1x1xf32>
    %292 = vector.extract %291[0, 0, 0] : f32 from vector<1x1x1xf32>
    %293 = vector.extract_strided_slice %90 {offsets = [0, 8], sizes = [1, 1], strides = [1, 1]} : vector<1x10xf32> to vector<1x1xf32>
    %294 = vector.extract %293[0, 0] : f32 from vector<1x1xf32>
    %295 = arith.addf %292, %294 : f32
    %296 = vector.broadcast %295 : f32 to vector<1x1xf32>
    %c1_173 = arith.constant 1 : index
    %c8_174 = arith.constant 8 : index
    %297 = vector.load %arg6[%c1_173, %c8_174] : memref<2x10xf32, #tpu.memory_space<vmem>>, vector<1x1xf32>
    tpu.vector_store %arg6[%c1_173, %c8_174], %296 {strides = array<i32>} : memref<2x10xf32, #tpu.memory_space<vmem>>, vector<1x1xf32>,
    %c288 = arith.constant 288 : index
    %c0_175 = arith.constant 0 : index
    %298 = vector.load %arg4[%c288, %c0_175] : memref<320x1024xf32, #tpu.memory_space<vmem>>, vector<32x1024xf32>
    %299 = vector.extract_strided_slice %89 {offsets = [0, 0], sizes = [32, 1024], strides = [1, 1]} : vector<32x2048xf32> to vector<32x1024xf32>
    %300 = arith.mulf %299, %298 : vector<32x1024xf32>
    %301 = vector.shape_cast %300 : vector<32x1024xf32> to vector<1x32x1024xf32>
    %cst_176 = arith.constant dense<0.000000e+00> : vector<1xf32>
    %302 = vector.multi_reduction <add>, %301, %cst_176 [1, 2] : vector<1x32x1024xf32> to vector<1xf32>
    %303 = vector.shape_cast %302 : vector<1xf32> to vector<1x1x1xf32>
    %304 = vector.extract %303[0, 0, 0] : f32 from vector<1x1x1xf32>
    %305 = vector.extract_strided_slice %90 {offsets = [0, 9], sizes = [1, 1], strides = [1, 1]} : vector<1x10xf32> to vector<1x1xf32>
    %306 = vector.extract %305[0, 0] : f32 from vector<1x1xf32>
    %307 = arith.addf %304, %306 : f32
    %308 = vector.broadcast %307 : f32 to vector<1x1xf32>
    %c0_177 = arith.constant 0 : index
    %c9_178 = arith.constant 9 : index
    %309 = vector.load %arg6[%c0_177, %c9_178] : memref<2x10xf32, #tpu.memory_space<vmem>>, vector<1x1xf32>
    tpu.vector_store %arg6[%c0_177, %c9_178], %308 {strides = array<i32>} : memref<2x10xf32, #tpu.memory_space<vmem>>, vector<1x1xf32>,
    %310 = vector.extract_strided_slice %89 {offsets = [0, 1024], sizes = [32, 1024], strides = [1, 1]} : vector<32x2048xf32> to vector<32x1024xf32>
    %311 = arith.mulf %310, %298 : vector<32x1024xf32>
    %312 = vector.shape_cast %311 : vector<32x1024xf32> to vector<1x32x1024xf32>
    %cst_179 = arith.constant dense<0.000000e+00> : vector<1xf32>
    %313 = vector.multi_reduction <add>, %312, %cst_179 [1, 2] : vector<1x32x1024xf32> to vector<1xf32>
    %314 = vector.shape_cast %313 : vector<1xf32> to vector<1x1x1xf32>
    %315 = vector.extract %314[0, 0, 0] : f32 from vector<1x1x1xf32>
    %316 = vector.extract_strided_slice %90 {offsets = [0, 9], sizes = [1, 1], strides = [1, 1]} : vector<1x10xf32> to vector<1x1xf32>
    %317 = vector.extract %316[0, 0] : f32 from vector<1x1xf32>
    %318 = arith.addf %315, %317 : f32
    %319 = vector.broadcast %318 : f32 to vector<1x1xf32>
    %c1_180 = arith.constant 1 : index
    %c9_181 = arith.constant 9 : index
    %320 = vector.load %arg6[%c1_180, %c9_181] : memref<2x10xf32, #tpu.memory_space<vmem>>, vector<1x1xf32>
    tpu.vector_store %arg6[%c1_180, %c9_181], %319 {strides = array<i32>} : memref<2x10xf32, #tpu.memory_space<vmem>>, vector<1x1xf32>,
    return
  }
  func.func @transform_0(%arg0: i32) -> (i32, i32) {
    %c0_i32 = arith.constant 0 : i32
    %c0_i32_0 = arith.constant 0 : i32
    %c0_i32_1 = arith.constant 0 : i32
    return %c0_i32, %c0_i32_0 : i32, i32
  }
  func.func @transform_1(%arg0: i32) -> (i32, i32) {
    %c0_i32 = arith.constant 0 : i32
    %c0_i32_0 = arith.constant 0 : i32
    %c0_i32_1 = arith.constant 0 : i32
    return %c0_i32, %c0_i32_0 : i32, i32
  }
  func.func @transform_2(%arg0: i32) -> (i32, i32) {
    %c0_i32 = arith.constant 0 : i32
    %c0_i32_0 = arith.constant 0 : i32
    %c0_i32_1 = arith.constant 0 : i32
    return %c0_i32, %c0_i32_0 : i32, i32
  }
  func.func @transform_3(%arg0: i32) -> (i32, i32) {
    %c0_i32 = arith.constant 0 : i32
    %c0_i32_0 = arith.constant 0 : i32
    %c0_i32_1 = arith.constant 0 : i32
    return %c0_i32, %c0_i32_0 : i32, i32
  }
  func.func @transform_4(%arg0: i32) -> (i32, i32) {
    %c0_i32 = arith.constant 0 : i32
    %c0_i32_0 = arith.constant 0 : i32
    %c0_i32_1 = arith.constant 0 : i32
    return %c0_i32, %c0_i32_0 : i32, i32
  }
  func.func @transform_5(%arg0: i32) -> (i32, i32) {
    %c0_i32 = arith.constant 0 : i32
    %c0_i32_0 = arith.constant 0 : i32
    %c0_i32_1 = arith.constant 0 : i32
    return %c0_i32, %c0_i32_0 : i32, i32
  }
}

</mosaic_0001>

<llo_original>
// kernel: vanilla_cnn_forward.1
$region0: #{vanilla_cnn_forward.1}
  #allocation0 [shape = 'u32[]', space=smem, size = 0x4, offset = 0x4, fixed_abs, tag = 'smem constant byte address 0x4 - core index']
  #allocation1 [shape = 'u32[144,128]{1,0:T(1,128)}', space=vmem, size = 0x12000, scoped, tag = 'internal scratch']
  #allocation2 [shape = 'f32[21,2056]{1,0:T(8,128)}', space=vmem, size = 0x33000, scoped, tag = 'scratch operand']
  #allocation3 [shape = 'f32[32,2176]{1,0:T(8,128)}', space=vmem, size = 0x44000, scoped, tag = 'scratch operand']
  %s0 = inlined_call_operand.vmem [shape: f32[3,2304], index: 0, kind: input, shape index: {}]
  %s1 = inlined_call_operand.vmem [shape: bf16[224,21], index: 1, kind: input, shape index: {}]
  %s2 = inlined_call_operand.vmem [shape: f32[32,1], index: 2, kind: input, shape index: {}]
  %s3 = inlined_call_operand.hbm [shape: f32[320,1024], index: 3, kind: input, shape index: {}]
  %s4 = inlined_call_operand.hbm [shape: f32[1,10], index: 4, kind: input, shape index: {}]
  %s5 = inlined_call_operand.hbm [shape: f32[2,10], index: 5, kind: output, shape index: {}]
  %s6 = sld [smem:[#allocation0]]
  $region38: #{vanilla_cnn_forward.1} parent=0
    _
  %s8 = ssub.s32 1, %s6
  %s9 = scalar_select 0, %s8, %s6
  $region1: #{vanilla_cnn_forward.1} parent=0
    #allocation4 [shape = 'u8[1310720]{0}', space=vmem, size = 0x140000, scoped, tag = 'input window, operand 3, single buffered']
    #allocation5 [shape = 's32[1]{0}', space=sflag, size = 0x4, scoped, tag = 'scoped memory for vanilla_cnn_forward.1']
    #allocation6 [shape = 's32[1]{0}', space=sflag, size = 0x4, scoped, tag = 'scoped memory for vanilla_cnn_forward.1']
    #allocation7 [shape = 'u8[512]{0}', space=vmem, size = 0x400, scoped, tag = 'input window, operand 4, single buffered']
    #allocation8 [shape = 's32[1]{0}', space=sflag, size = 0x4, scoped, tag = 'scoped memory for vanilla_cnn_forward.1']
    #allocation9 [shape = 'u8[1024]{0}', space=vmem, size = 0x400, scoped, tag = 'output window, operand 0, single buffered']
    %10 = vsyncpa [#allocation5], 0
    %11 = vsyncpa [#allocation8], 0
    %12 = vsyncpa [#allocation6], 0
    // Predicated region
    $region2: #{vanilla_cnn_forward.1} parent=1 // pred_check
      _
    $region3: #{vanilla_cnn_forward.1} parent=1 // pred_check_branch
      %14 = sbr.rel (0) target = $region5
    $region4: #{vanilla_cnn_forward.1} parent=1 // pred_region
      _
    $region5: #{vanilla_cnn_forward.1} parent=1 // pred_fallthru
      _
    // Predicated region
    $region6: #{vanilla_cnn_forward.1} parent=1 // pred_check
      _
    $region7: #{vanilla_cnn_forward.1} parent=1 // pred_check_branch
      %16 = sbr.rel (0) target = $region9
    $region8: #{vanilla_cnn_forward.1} parent=1 // pred_region
      _
    $region9: #{vanilla_cnn_forward.1} parent=1 // pred_fallthru
      _
    // Predicated region
    $region10: #{vanilla_cnn_forward.1} parent=1 // pred_check
      _
    $region11: #{vanilla_cnn_forward.1} parent=1 // pred_check_branch
      %18 = sbr.rel (0) target = $region13
    $region12: #{vanilla_cnn_forward.1} parent=1 // pred_region
      _
    $region13: #{vanilla_cnn_forward.1} parent=1 // pred_fallthru
      _
    // Predicated region
    $region14: #{vanilla_cnn_forward.1} parent=1 // pred_check
      _
    $region15: #{vanilla_cnn_forward.1} parent=1 // pred_check_branch
      %20 = sbr.rel (0) target = $region17
    $region16: #{vanilla_cnn_forward.1} parent=1 // pred_region
      %s22 = ssub.s32 40960, 40960
      %23 = vsyncadd [#allocation5], %s22
      %s24 = sshll.u32 [#allocation4], 4
      %s25 = int_to_ptr.vmem [resolvable:$true] %s24
      %30 = dma.hbm_to_vmem [thread:$0]  %s3, 40960, %s25, [#allocation5], 1024, 1024, 64
    $region17: #{vanilla_cnn_forward.1} parent=1 // pred_fallthru
      _
    // Predicated region
    $region18: #{vanilla_cnn_forward.1} parent=1 // pred_check
      _
    $region19: #{vanilla_cnn_forward.1} parent=1 // pred_check_branch
      %32 = sbr.rel (0) target = $region21
    $region20: #{vanilla_cnn_forward.1} parent=1 // pred_region
      %s34 = ssub.s32 16, 16
      %35 = vsyncadd [#allocation8], %s34
      %s37 = sshll.u32 [#allocation7], 4
      %s38 = int_to_ptr.vmem [resolvable:$true] %s37
      %40 = dma.hbm_to_vmem [thread:$0]  %s4, 16, %s38, [#allocation8]
    $region21: #{vanilla_cnn_forward.1} parent=1 // pred_fallthru
      _
    // Predicated region
    $region22: #{vanilla_cnn_forward.1} parent=1 // pred_check
      _
    $region23: #{vanilla_cnn_forward.1} parent=1 // pred_check_branch
      %42 = sbr.rel (0) target = $region25
    $region24: #{vanilla_cnn_forward.1} parent=1 // pred_region
      %43 = dma.done [#allocation5], 40960
    $region25: #{vanilla_cnn_forward.1} parent=1 // pred_fallthru
      _
    // Predicated region
    $region26: #{vanilla_cnn_forward.1} parent=1 // pred_check
      _
    $region27: #{vanilla_cnn_forward.1} parent=1 // pred_check_branch
      %45 = sbr.rel (0) target = $region29
    $region28: #{vanilla_cnn_forward.1} parent=1 // pred_region
      %46 = dma.done [#allocation8], 16
    $region29: #{vanilla_cnn_forward.1} parent=1 // pred_fallthru
      _
    %v48 = vld [vmem:[%s0] ss:$4 sm:$0xff]
    %s49 = scalar_lea.vmem %s0, 32
    %v50 = vld [vmem:[%s49] ss:$4 sm:$0xff]
    %s51 = scalar_lea.vmem %s0, 64
    %v52 = vld [vmem:[%s51] ss:$4 sm:$0x1]
    %53 = vst [vmem:[#allocation2] ss:$8 sm:$0xf] %v48
    %54 = vst [vmem:[#allocation2] ss:$8 sm:$0xf0] %v48
    %s55 = scalar_lea.vmem [#allocation2], 64
    %56 = vst [vmem:[%s55] ss:$8 sm:$0xf] %v50
    %57 = vst [vmem:[%s55] ss:$8 sm:$0xf0] %v50
    %v58 = vlaneseq
    %vm59 = vcmp.ge.s32.totalorder %v58, 0
    %vm60 = vcmp.lt.s32.totalorder %v58, 8
    %vm61 = vmand %vm59, %vm60
    %s62 = scalar_lea.vmem [#allocation2], 128
    %63 = vst.msk [vmem:[%s62] ss:$8 sm:$0x1] %vm61, %v52
    %64 = vst.msk [vmem:[%s62] ss:$8 sm:$0x0] %vm61, %v52
    %v65 = vld [vmem:[%s0] ss:$4 sm:$0xff]
    %v66 = vld [vmem:[%s49] ss:$4 sm:$0xff]
    %v67 = vld [vmem:[%s51] ss:$4 sm:$0x1]
    %71 = vrot.lane.b32.xlu0 %v65, 96
    %v72 = vpop.permute.xlu0 %71
    %73 = vrot.lane.b32.xlu0 %v66, 96
    %v74 = vpop.permute.xlu0 %73
    %75 = vrot.lane.b32.xlu0 %v67, 96
    %v76 = vpop.permute.xlu0 %75
    %v77 = vrot.slane %v72, 1
    %v78 = vrot.slane %v74, 1
    %v79 = vrot.slane %v76, 1
    %vm80 = vcmask 1046528
    %v81 = vsel %vm80, %v77, %v78
    %vm82 = vcmask 785408
    %v83 = vsel %vm82, %v72, %v81
    %v84 = vsel %vm80, %v78, %v79
    %v85 = vsel %vm82, %v74, %v84
    %s89 = scalar_lea.vmem [#allocation2], 1
    %90 = vst [vmem:[%s89] ss:$8 sm:$0xf] %v83
    %91 = vst [vmem:[%s89] ss:$8 sm:$0xf0] %v83
    %s92 = scalar_lea.vmem [#allocation2], 65
    %93 = vst [vmem:[%s92] ss:$8 sm:$0xf] %v85
    %94 = vst [vmem:[%s92] ss:$8 sm:$0xf0] %v85
    %s95 = scalar_lea.vmem [#allocation2], 129
    %96 = vst.msk [vmem:[%s95] ss:$8 sm:$0x1] %vm61, %v76
    %97 = vst.msk [vmem:[%s95] ss:$8 sm:$0x0] %vm61, %v76
    %v98 = vld [vmem:[%s0] ss:$4 sm:$0xff]
    %v99 = vld [vmem:[%s49] ss:$4 sm:$0xff]
    %v100 = vld [vmem:[%s51] ss:$4 sm:$0x1]
    %104 = vrot.lane.b32.xlu0 %v98, 64
    %v105 = vpop.permute.xlu0 %104
    %106 = vrot.lane.b32.xlu0 %v99, 64
    %v107 = vpop.permute.xlu0 %106
    %108 = vrot.lane.b32.xlu0 %v100, 64
    %v109 = vpop.permute.xlu0 %108
    %v110 = vrot.slane %v105, 1
    %v111 = vrot.slane %v107, 1
    %v112 = vrot.slane %v109, 1
    %v113 = vsel %vm80, %v110, %v111
    %vm114 = vcmask 523264
    %v115 = vsel %vm114, %v105, %v113
    %v116 = vsel %vm80, %v111, %v112
    %v117 = vsel %vm114, %v107, %v116
    %s121 = scalar_lea.vmem [#allocation2], 2
    %122 = vst [vmem:[%s121] ss:$8 sm:$0xf] %v115
    %123 = vst [vmem:[%s121] ss:$8 sm:$0xf0] %v115
    %s124 = scalar_lea.vmem [#allocation2], 66
    %125 = vst [vmem:[%s124] ss:$8 sm:$0xf] %v117
    %126 = vst [vmem:[%s124] ss:$8 sm:$0xf0] %v117
    %s127 = scalar_lea.vmem [#allocation2], 130
    %128 = vst.msk [vmem:[%s127] ss:$8 sm:$0x1] %vm61, %v109
    %129 = vst.msk [vmem:[%s127] ss:$8 sm:$0x0] %vm61, %v109
    %v130 = vld [vmem:[%s0] ss:$4 sm:$0xff]
    %v131 = vld [vmem:[%s49] ss:$4 sm:$0xff]
    %v132 = vld [vmem:[%s51] ss:$4 sm:$0x1]
    %136 = vrot.lane.b32.xlu0 %v130, 32
    %v137 = vpop.permute.xlu0 %136
    %138 = vrot.lane.b32.xlu0 %v131, 32
    %v139 = vpop.permute.xlu0 %138
    %140 = vrot.lane.b32.xlu0 %v132, 32
    %v141 = vpop.permute.xlu0 %140
    %v142 = vrot.slane %v137, 1
    %v143 = vrot.slane %v139, 1
    %v144 = vrot.slane %v141, 1
    %v145 = vsel %vm80, %v142, %v143
    %vm146 = vcmask 261120
    %v147 = vsel %vm146, %v137, %v145
    %v148 = vsel %vm80, %v143, %v144
    %v149 = vsel %vm146, %v139, %v148
    %s153 = scalar_lea.vmem [#allocation2], 3
    %154 = vst [vmem:[%s153] ss:$8 sm:$0xf] %v147
    %155 = vst [vmem:[%s153] ss:$8 sm:$0xf0] %v147
    %s156 = scalar_lea.vmem [#allocation2], 67
    %157 = vst [vmem:[%s156] ss:$8 sm:$0xf] %v149
    %158 = vst [vmem:[%s156] ss:$8 sm:$0xf0] %v149
    %s159 = scalar_lea.vmem [#allocation2], 131
    %160 = vst.msk [vmem:[%s159] ss:$8 sm:$0x1] %vm61, %v141
    %161 = vst.msk [vmem:[%s159] ss:$8 sm:$0x0] %vm61, %v141
    %s162 = scalar_lea.vmem %s0, 4
    %v163 = vld [vmem:[%s162] ss:$4 sm:$0xff]
    %s164 = scalar_lea.vmem %s0, 36
    %v165 = vld [vmem:[%s164] ss:$4 sm:$0xff]
    %s166 = scalar_lea.vmem %s0, 68
    %v167 = vld [vmem:[%s166] ss:$4 sm:$0x1]
    %s168 = scalar_lea.vmem [#allocation2], 4
    %169 = vst [vmem:[%s168] ss:$8 sm:$0xf] %v163
    %170 = vst [vmem:[%s168] ss:$8 sm:$0xf0] %v163
    %s171 = scalar_lea.vmem [#allocation2], 68
    %172 = vst [vmem:[%s171] ss:$8 sm:$0xf] %v165
    %173 = vst [vmem:[%s171] ss:$8 sm:$0xf0] %v165
    %s174 = scalar_lea.vmem [#allocation2], 132
    %175 = vst.msk [vmem:[%s174] ss:$8 sm:$0x1] %vm61, %v167
    %176 = vst.msk [vmem:[%s174] ss:$8 sm:$0x0] %vm61, %v167
    %v177 = vld [vmem:[%s162] ss:$4 sm:$0xff]
    %v178 = vld [vmem:[%s164] ss:$4 sm:$0xff]
    %v179 = vld [vmem:[%s166] ss:$4 sm:$0x1]
    %183 = vrot.lane.b32.xlu0 %v177, 96
    %v184 = vpop.permute.xlu0 %183
    %185 = vrot.lane.b32.xlu0 %v178, 96
    %v186 = vpop.permute.xlu0 %185
    %187 = vrot.lane.b32.xlu0 %v179, 96
    %v188 = vpop.permute.xlu0 %187
    %v189 = vrot.slane %v184, 1
    %v190 = vrot.slane %v186, 1
    %v191 = vrot.slane %v188, 1
    %v192 = vsel %vm80, %v189, %v190
    %v193 = vsel %vm82, %v184, %v192
    %v194 = vsel %vm80, %v190, %v191
    %v195 = vsel %vm82, %v186, %v194
    %s199 = scalar_lea.vmem [#allocation2], 5
    %200 = vst [vmem:[%s199] ss:$8 sm:$0xf] %v193
    %201 = vst [vmem:[%s199] ss:$8 sm:$0xf0] %v193
    %s202 = scalar_lea.vmem [#allocation2], 69
    %203 = vst [vmem:[%s202] ss:$8 sm:$0xf] %v195
    %204 = vst [vmem:[%s202] ss:$8 sm:$0xf0] %v195
    %s205 = scalar_lea.vmem [#allocation2], 133
    %206 = vst.msk [vmem:[%s205] ss:$8 sm:$0x1] %vm61, %v188
    %207 = vst.msk [vmem:[%s205] ss:$8 sm:$0x0] %vm61, %v188
    %v208 = vld [vmem:[%s162] ss:$4 sm:$0xff]
    %v209 = vld [vmem:[%s164] ss:$4 sm:$0xff]
    %v210 = vld [vmem:[%s166] ss:$4 sm:$0x1]
    %214 = vrot.lane.b32.xlu0 %v208, 64
    %v215 = vpop.permute.xlu0 %214
    %216 = vrot.lane.b32.xlu0 %v209, 64
    %v217 = vpop.permute.xlu0 %216
    %218 = vrot.lane.b32.xlu0 %v210, 64
    %v219 = vpop.permute.xlu0 %218
    %v220 = vrot.slane %v215, 1
    %v221 = vrot.slane %v217, 1
    %v222 = vrot.slane %v219, 1
    %v223 = vsel %vm80, %v220, %v221
    %v224 = vsel %vm114, %v215, %v223
    %v225 = vsel %vm80, %v221, %v222
    %v226 = vsel %vm114, %v217, %v225
    %s230 = scalar_lea.vmem [#allocation2], 6
    %231 = vst [vmem:[%s230] ss:$8 sm:$0xf] %v224
    %232 = vst [vmem:[%s230] ss:$8 sm:$0xf0] %v224
    %s233 = scalar_lea.vmem [#allocation2], 70
    %234 = vst [vmem:[%s233] ss:$8 sm:$0xf] %v226
    %235 = vst [vmem:[%s233] ss:$8 sm:$0xf0] %v226
    %s236 = scalar_lea.vmem [#allocation2], 134
    %237 = vst.msk [vmem:[%s236] ss:$8 sm:$0x1] %vm61, %v219
    %238 = vst.msk [vmem:[%s236] ss:$8 sm:$0x0] %vm61, %v219
    %s239 = scalar_lea.vmem %s0, 1
    %v240 = vld [vmem:[%s239] ss:$4 sm:$0xff]
    %s241 = scalar_lea.vmem %s0, 33
    %v242 = vld [vmem:[%s241] ss:$4 sm:$0xff]
    %s243 = scalar_lea.vmem %s0, 65
    %v244 = vld [vmem:[%s243] ss:$4 sm:$0x1]
    %s245 = scalar_lea.vmem [#allocation2], 7
    %246 = vst [vmem:[%s245] ss:$8 sm:$0xf] %v240
    %247 = vst [vmem:[%s245] ss:$8 sm:$0xf0] %v240
    %s248 = scalar_lea.vmem [#allocation2], 71
    %249 = vst [vmem:[%s248] ss:$8 sm:$0xf] %v242
    %250 = vst [vmem:[%s248] ss:$8 sm:$0xf0] %v242
    %s251 = scalar_lea.vmem [#allocation2], 135
    %252 = vst.msk [vmem:[%s251] ss:$8 sm:$0x1] %vm61, %v244
    %253 = vst.msk [vmem:[%s251] ss:$8 sm:$0x0] %vm61, %v244
    %v254 = vld [vmem:[%s239] ss:$4 sm:$0xff]
    %v255 = vld [vmem:[%s241] ss:$4 sm:$0xff]
    %v256 = vld [vmem:[%s243] ss:$4 sm:$0x1]
    %260 = vrot.lane.b32.xlu0 %v254, 96
    %v261 = vpop.permute.xlu0 %260
    %262 = vrot.lane.b32.xlu0 %v255, 96
    %v263 = vpop.permute.xlu0 %262
    %264 = vrot.lane.b32.xlu0 %v256, 96
    %v265 = vpop.permute.xlu0 %264
    %v266 = vrot.slane %v261, 1
    %v267 = vrot.slane %v263, 1
    %v268 = vrot.slane %v265, 1
    %v269 = vsel %vm80, %v266, %v267
    %v270 = vsel %vm82, %v261, %v269
    %v271 = vsel %vm80, %v267, %v268
    %v272 = vsel %vm82, %v263, %v271
    %s276 = scalar_lea.vmem [#allocation2], 136
    %277 = vst [vmem:[%s276] ss:$8 sm:$0xf] %v270
    %278 = vst [vmem:[%s276] ss:$8 sm:$0xf0] %v270
    %s279 = scalar_lea.vmem [#allocation2], 200
    %280 = vst [vmem:[%s279] ss:$8 sm:$0xf] %v272
    %281 = vst [vmem:[%s279] ss:$8 sm:$0xf0] %v272
    %s282 = scalar_lea.vmem [#allocation2], 264
    %283 = vst.msk [vmem:[%s282] ss:$8 sm:$0x1] %vm61, %v265
    %284 = vst.msk [vmem:[%s282] ss:$8 sm:$0x0] %vm61, %v265
    %v285 = vld [vmem:[%s239] ss:$4 sm:$0xff]
    %v286 = vld [vmem:[%s241] ss:$4 sm:$0xff]
    %v287 = vld [vmem:[%s243] ss:$4 sm:$0x1]
    %291 = vrot.lane.b32.xlu0 %v285, 64
    %v292 = vpop.permute.xlu0 %291
    %293 = vrot.lane.b32.xlu0 %v286, 64
    %v294 = vpop.permute.xlu0 %293
    %295 = vrot.lane.b32.xlu0 %v287, 64
    %v296 = vpop.permute.xlu0 %295
    %v297 = vrot.slane %v292, 1
    %v298 = vrot.slane %v294, 1
    %v299 = vrot.slane %v296, 1
    %v300 = vsel %vm80, %v297, %v298
    %v301 = vsel %vm114, %v292, %v300
    %v302 = vsel %vm80, %v298, %v299
    %v303 = vsel %vm114, %v294, %v302
    %s307 = scalar_lea.vmem [#allocation2], 137
    %308 = vst [vmem:[%s307] ss:$8 sm:$0xf] %v301
    %309 = vst [vmem:[%s307] ss:$8 sm:$0xf0] %v301
    %s310 = scalar_lea.vmem [#allocation2], 201
    %311 = vst [vmem:[%s310] ss:$8 sm:$0xf] %v303
    %312 = vst [vmem:[%s310] ss:$8 sm:$0xf0] %v303
    %s313 = scalar_lea.vmem [#allocation2], 265
    %314 = vst.msk [vmem:[%s313] ss:$8 sm:$0x1] %vm61, %v296
    %315 = vst.msk [vmem:[%s313] ss:$8 sm:$0x0] %vm61, %v296
    %v316 = vld [vmem:[%s239] ss:$4 sm:$0xff]
    %v317 = vld [vmem:[%s241] ss:$4 sm:$0xff]
    %v318 = vld [vmem:[%s243] ss:$4 sm:$0x1]
    %322 = vrot.lane.b32.xlu0 %v316, 32
    %v323 = vpop.permute.xlu0 %322
    %324 = vrot.lane.b32.xlu0 %v317, 32
    %v325 = vpop.permute.xlu0 %324
    %326 = vrot.lane.b32.xlu0 %v318, 32
    %v327 = vpop.permute.xlu0 %326
    %v328 = vrot.slane %v323, 1
    %v329 = vrot.slane %v325, 1
    %v330 = vrot.slane %v327, 1
    %v331 = vsel %vm80, %v328, %v329
    %v332 = vsel %vm146, %v323, %v331
    %v333 = vsel %vm80, %v329, %v330
    %v334 = vsel %vm146, %v325, %v333
    %s338 = scalar_lea.vmem [#allocation2], 138
    %339 = vst [vmem:[%s338] ss:$8 sm:$0xf] %v332
    %340 = vst [vmem:[%s338] ss:$8 sm:$0xf0] %v332
    %s341 = scalar_lea.vmem [#allocation2], 202
    %342 = vst [vmem:[%s341] ss:$8 sm:$0xf] %v334
    %343 = vst [vmem:[%s341] ss:$8 sm:$0xf0] %v334
    %s344 = scalar_lea.vmem [#allocation2], 266
    %345 = vst.msk [vmem:[%s344] ss:$8 sm:$0x1] %vm61, %v327
    %346 = vst.msk [vmem:[%s344] ss:$8 sm:$0x0] %vm61, %v327
    %s347 = scalar_lea.vmem %s0, 5
    %v348 = vld [vmem:[%s347] ss:$4 sm:$0xff]
    %s349 = scalar_lea.vmem %s0, 37
    %v350 = vld [vmem:[%s349] ss:$4 sm:$0xff]
    %s351 = scalar_lea.vmem %s0, 69
    %v352 = vld [vmem:[%s351] ss:$4 sm:$0x1]
    %s353 = scalar_lea.vmem [#allocation2], 139
    %354 = vst [vmem:[%s353] ss:$8 sm:$0xf] %v348
    %355 = vst [vmem:[%s353] ss:$8 sm:$0xf0] %v348
    %s356 = scalar_lea.vmem [#allocation2], 203
    %357 = vst [vmem:[%s356] ss:$8 sm:$0xf] %v350
    %358 = vst [vmem:[%s356] ss:$8 sm:$0xf0] %v350
    %s359 = scalar_lea.vmem [#allocation2], 267
    %360 = vst.msk [vmem:[%s359] ss:$8 sm:$0x1] %vm61, %v352
    %361 = vst.msk [vmem:[%s359] ss:$8 sm:$0x0] %vm61, %v352
    %v362 = vld [vmem:[%s347] ss:$4 sm:$0xff]
    %v363 = vld [vmem:[%s349] ss:$4 sm:$0xff]
    %v364 = vld [vmem:[%s351] ss:$4 sm:$0x1]
    %368 = vrot.lane.b32.xlu0 %v362, 96
    %v369 = vpop.permute.xlu0 %368
    %370 = vrot.lane.b32.xlu0 %v363, 96
    %v371 = vpop.permute.xlu0 %370
    %372 = vrot.lane.b32.xlu0 %v364, 96
    %v373 = vpop.permute.xlu0 %372
    %v374 = vrot.slane %v369, 1
    %v375 = vrot.slane %v371, 1
    %v376 = vrot.slane %v373, 1
    %v377 = vsel %vm80, %v374, %v375
    %v378 = vsel %vm82, %v369, %v377
    %v379 = vsel %vm80, %v375, %v376
    %v380 = vsel %vm82, %v371, %v379
    %s384 = scalar_lea.vmem [#allocation2], 140
    %385 = vst [vmem:[%s384] ss:$8 sm:$0xf] %v378
    %386 = vst [vmem:[%s384] ss:$8 sm:$0xf0] %v378
    %s387 = scalar_lea.vmem [#allocation2], 204
    %388 = vst [vmem:[%s387] ss:$8 sm:$0xf] %v380
    %389 = vst [vmem:[%s387] ss:$8 sm:$0xf0] %v380
    %s390 = scalar_lea.vmem [#allocation2], 268
    %391 = vst.msk [vmem:[%s390] ss:$8 sm:$0x1] %vm61, %v373
    %392 = vst.msk [vmem:[%s390] ss:$8 sm:$0x0] %vm61, %v373
    %v393 = vld [vmem:[%s347] ss:$4 sm:$0xff]
    %v394 = vld [vmem:[%s349] ss:$4 sm:$0xff]
    %v395 = vld [vmem:[%s351] ss:$4 sm:$0x1]
    %399 = vrot.lane.b32.xlu0 %v393, 64
    %v400 = vpop.permute.xlu0 %399
    %401 = vrot.lane.b32.xlu0 %v394, 64
    %v402 = vpop.permute.xlu0 %401
    %403 = vrot.lane.b32.xlu0 %v395, 64
    %v404 = vpop.permute.xlu0 %403
    %v405 = vrot.slane %v400, 1
    %v406 = vrot.slane %v402, 1
    %v407 = vrot.slane %v404, 1
    %v408 = vsel %vm80, %v405, %v406
    %v409 = vsel %vm114, %v400, %v408
    %v410 = vsel %vm80, %v406, %v407
    %v411 = vsel %vm114, %v402, %v410
    %s415 = scalar_lea.vmem [#allocation2], 141
    %416 = vst [vmem:[%s415] ss:$8 sm:$0xf] %v409
    %417 = vst [vmem:[%s415] ss:$8 sm:$0xf0] %v409
    %s418 = scalar_lea.vmem [#allocation2], 205
    %419 = vst [vmem:[%s418] ss:$8 sm:$0xf] %v411
    %420 = vst [vmem:[%s418] ss:$8 sm:$0xf0] %v411
    %s421 = scalar_lea.vmem [#allocation2], 269
    %422 = vst.msk [vmem:[%s421] ss:$8 sm:$0x1] %vm61, %v404
    %423 = vst.msk [vmem:[%s421] ss:$8 sm:$0x0] %vm61, %v404
    %s424 = scalar_lea.vmem %s0, 2
    %v425 = vld [vmem:[%s424] ss:$4 sm:$0xff]
    %s426 = scalar_lea.vmem %s0, 34
    %v427 = vld [vmem:[%s426] ss:$4 sm:$0xff]
    %s428 = scalar_lea.vmem %s0, 66
    %v429 = vld [vmem:[%s428] ss:$4 sm:$0x1]
    %s430 = scalar_lea.vmem [#allocation2], 142
    %431 = vst [vmem:[%s430] ss:$8 sm:$0xf] %v425
    %432 = vst [vmem:[%s430] ss:$8 sm:$0xf0] %v425
    %s433 = scalar_lea.vmem [#allocation2], 206
    %434 = vst [vmem:[%s433] ss:$8 sm:$0xf] %v427
    %435 = vst [vmem:[%s433] ss:$8 sm:$0xf0] %v427
    %s436 = scalar_lea.vmem [#allocation2], 270
    %437 = vst.msk [vmem:[%s436] ss:$8 sm:$0x1] %vm61, %v429
    %438 = vst.msk [vmem:[%s436] ss:$8 sm:$0x0] %vm61, %v429
    %v439 = vld [vmem:[%s424] ss:$4 sm:$0xff]
    %v440 = vld [vmem:[%s426] ss:$4 sm:$0xff]
    %v441 = vld [vmem:[%s428] ss:$4 sm:$0x1]
    %445 = vrot.lane.b32.xlu0 %v439, 96
    %v446 = vpop.permute.xlu0 %445
    %447 = vrot.lane.b32.xlu0 %v440, 96
    %v448 = vpop.permute.xlu0 %447
    %449 = vrot.lane.b32.xlu0 %v441, 96
    %v450 = vpop.permute.xlu0 %449
    %v451 = vrot.slane %v446, 1
    %v452 = vrot.slane %v448, 1
    %v453 = vrot.slane %v450, 1
    %v454 = vsel %vm80, %v451, %v452
    %v455 = vsel %vm82, %v446, %v454
    %v456 = vsel %vm80, %v452, %v453
    %v457 = vsel %vm82, %v448, %v456
    %s461 = scalar_lea.vmem [#allocation2], 143
    %462 = vst [vmem:[%s461] ss:$8 sm:$0xf] %v455
    %463 = vst [vmem:[%s461] ss:$8 sm:$0xf0] %v455
    %s464 = scalar_lea.vmem [#allocation2], 207
    %465 = vst [vmem:[%s464] ss:$8 sm:$0xf] %v457
    %466 = vst [vmem:[%s464] ss:$8 sm:$0xf0] %v457
    %s467 = scalar_lea.vmem [#allocation2], 271
    %468 = vst.msk [vmem:[%s467] ss:$8 sm:$0x1] %vm61, %v450
    %469 = vst.msk [vmem:[%s467] ss:$8 sm:$0x0] %vm61, %v450
    %v470 = vld [vmem:[%s424] ss:$4 sm:$0xff]
    %v471 = vld [vmem:[%s426] ss:$4 sm:$0xff]
    %v472 = vld [vmem:[%s428] ss:$4 sm:$0x1]
    %476 = vrot.lane.b32.xlu0 %v470, 64
    %v477 = vpop.permute.xlu0 %476
    %478 = vrot.lane.b32.xlu0 %v471, 64
    %v479 = vpop.permute.xlu0 %478
    %480 = vrot.lane.b32.xlu0 %v472, 64
    %v481 = vpop.permute.xlu0 %480
    %v482 = vrot.slane %v477, 1
    %v483 = vrot.slane %v479, 1
    %v484 = vrot.slane %v481, 1
    %v485 = vsel %vm80, %v482, %v483
    %v486 = vsel %vm114, %v477, %v485
    %v487 = vsel %vm80, %v483, %v484
    %v488 = vsel %vm114, %v479, %v487
    %s492 = scalar_lea.vmem [#allocation2], 272
    %493 = vst [vmem:[%s492] ss:$8 sm:$0xf] %v486
    %494 = vst [vmem:[%s492] ss:$8 sm:$0xf0] %v486
    %s495 = scalar_lea.vmem [#allocation2], 336
    %496 = vst [vmem:[%s495] ss:$8 sm:$0xf] %v488
    %497 = vst [vmem:[%s495] ss:$8 sm:$0xf0] %v488
    %s498 = scalar_lea.vmem [#allocation2], 400
    %499 = vst.msk [vmem:[%s498] ss:$8 sm:$0x1] %vm61, %v481
    %500 = vst.msk [vmem:[%s498] ss:$8 sm:$0x0] %vm61, %v481
    %v501 = vld [vmem:[%s424] ss:$4 sm:$0xff]
    %v502 = vld [vmem:[%s426] ss:$4 sm:$0xff]
    %v503 = vld [vmem:[%s428] ss:$4 sm:$0x1]
    %507 = vrot.lane.b32.xlu0 %v501, 32
    %v508 = vpop.permute.xlu0 %507
    %509 = vrot.lane.b32.xlu0 %v502, 32
    %v510 = vpop.permute.xlu0 %509
    %511 = vrot.lane.b32.xlu0 %v503, 32
    %v512 = vpop.permute.xlu0 %511
    %v513 = vrot.slane %v508, 1
    %v514 = vrot.slane %v510, 1
    %v515 = vrot.slane %v512, 1
    %v516 = vsel %vm80, %v513, %v514
    %v517 = vsel %vm146, %v508, %v516
    %v518 = vsel %vm80, %v514, %v515
    %v519 = vsel %vm146, %v510, %v518
    %s523 = scalar_lea.vmem [#allocation2], 273
    %524 = vst [vmem:[%s523] ss:$8 sm:$0xf] %v517
    %525 = vst [vmem:[%s523] ss:$8 sm:$0xf0] %v517
    %s526 = scalar_lea.vmem [#allocation2], 337
    %527 = vst [vmem:[%s526] ss:$8 sm:$0xf] %v519
    %528 = vst [vmem:[%s526] ss:$8 sm:$0xf0] %v519
    %s529 = scalar_lea.vmem [#allocation2], 401
    %530 = vst.msk [vmem:[%s529] ss:$8 sm:$0x1] %vm61, %v512
    %531 = vst.msk [vmem:[%s529] ss:$8 sm:$0x0] %vm61, %v512
    %s532 = scalar_lea.vmem %s0, 6
    %v533 = vld [vmem:[%s532] ss:$4 sm:$0xff]
    %s534 = scalar_lea.vmem %s0, 38
    %v535 = vld [vmem:[%s534] ss:$4 sm:$0xff]
    %s536 = scalar_lea.vmem %s0, 70
    %v537 = vld [vmem:[%s536] ss:$4 sm:$0x1]
    %s538 = scalar_lea.vmem [#allocation2], 274
    %539 = vst [vmem:[%s538] ss:$8 sm:$0xf] %v533
    %540 = vst [vmem:[%s538] ss:$8 sm:$0xf0] %v533
    %s541 = scalar_lea.vmem [#allocation2], 338
    %542 = vst [vmem:[%s541] ss:$8 sm:$0xf] %v535
    %543 = vst [vmem:[%s541] ss:$8 sm:$0xf0] %v535
    %s544 = scalar_lea.vmem [#allocation2], 402
    %545 = vst.msk [vmem:[%s544] ss:$8 sm:$0x1] %vm61, %v537
    %546 = vst.msk [vmem:[%s544] ss:$8 sm:$0x0] %vm61, %v537
    %v547 = vld [vmem:[%s532] ss:$4 sm:$0xff]
    %v548 = vld [vmem:[%s534] ss:$4 sm:$0xff]
    %v549 = vld [vmem:[%s536] ss:$4 sm:$0x1]
    %553 = vrot.lane.b32.xlu0 %v547, 96
    %v554 = vpop.permute.xlu0 %553
    %555 = vrot.lane.b32.xlu0 %v548, 96
    %v556 = vpop.permute.xlu0 %555
    %557 = vrot.lane.b32.xlu0 %v549, 96
    %v558 = vpop.permute.xlu0 %557
    %v559 = vrot.slane %v554, 1
    %v560 = vrot.slane %v556, 1
    %v561 = vrot.slane %v558, 1
    %v562 = vsel %vm80, %v559, %v560
    %v563 = vsel %vm82, %v554, %v562
    %v564 = vsel %vm80, %v560, %v561
    %v565 = vsel %vm82, %v556, %v564
    %s569 = scalar_lea.vmem [#allocation2], 275
    %570 = vst [vmem:[%s569] ss:$8 sm:$0xf] %v563
    %571 = vst [vmem:[%s569] ss:$8 sm:$0xf0] %v563
    %s572 = scalar_lea.vmem [#allocation2], 339
    %573 = vst [vmem:[%s572] ss:$8 sm:$0xf] %v565
    %574 = vst [vmem:[%s572] ss:$8 sm:$0xf0] %v565
    %s575 = scalar_lea.vmem [#allocation2], 403
    %576 = vst.msk [vmem:[%s575] ss:$8 sm:$0x1] %vm61, %v558
    %577 = vst.msk [vmem:[%s575] ss:$8 sm:$0x0] %vm61, %v558
    %v578 = vld [vmem:[%s532] ss:$4 sm:$0xff]
    %v579 = vld [vmem:[%s534] ss:$4 sm:$0xff]
    %v580 = vld [vmem:[%s536] ss:$4 sm:$0x1]
    %584 = vrot.lane.b32.xlu0 %v578, 64
    %v585 = vpop.permute.xlu0 %584
    %586 = vrot.lane.b32.xlu0 %v579, 64
    %v587 = vpop.permute.xlu0 %586
    %588 = vrot.lane.b32.xlu0 %v580, 64
    %v589 = vpop.permute.xlu0 %588
    %v590 = vrot.slane %v585, 1
    %v591 = vrot.slane %v587, 1
    %v592 = vrot.slane %v589, 1
    %v593 = vsel %vm80, %v590, %v591
    %v594 = vsel %vm114, %v585, %v593
    %v595 = vsel %vm80, %v591, %v592
    %v596 = vsel %vm114, %v587, %v595
    %s600 = scalar_lea.vmem [#allocation2], 276
    %601 = vst [vmem:[%s600] ss:$8 sm:$0xf] %v594
    %602 = vst [vmem:[%s600] ss:$8 sm:$0xf0] %v594
    %s603 = scalar_lea.vmem [#allocation2], 340
    %604 = vst [vmem:[%s603] ss:$8 sm:$0xf] %v596
    %605 = vst [vmem:[%s603] ss:$8 sm:$0xf0] %v596
    %s606 = scalar_lea.vmem [#allocation2], 404
    %607 = vst.msk [vmem:[%s606] ss:$8 sm:$0x1] %vm61, %v589
    %608 = vst.msk [vmem:[%s606] ss:$8 sm:$0x0] %vm61, %v589
    %v609 = vld [vmem:[%s1] sm:$0xf]
    %v610 = vld [vmem:[%s1 + $0x4] sm:$0xf]
    %v611 = vld [vmem:[%s1 + $0x8] sm:$0xf]
    %v612 = vld [vmem:[%s1 + $0xc] sm:$0xf]
    %v613 = vld [vmem:[#allocation2] sm:$0xff]
    %v614 = vld [vmem:[#allocation2 + $0x8] sm:$0xff]
    %v615 = vld [vmem:[#allocation2 + $0x10] sm:$0xff]
    %v616 = vld [vmem:[#allocation2 + $0x18] sm:$0xff]
    %v617 = vld [vmem:[#allocation2 + $0x20] sm:$0xff]
    %v618 = vld [vmem:[#allocation2 + $0x28] sm:$0xff]
    %v619 = vld [vmem:[#allocation2 + $0x30] sm:$0xff]
    %v620 = vld [vmem:[#allocation2 + $0x38] sm:$0xff]
    %v621 = vld [vmem:[#allocation2 + $0x40] sm:$0xff]
    %v622 = vld [vmem:[#allocation2 + $0x48] sm:$0xff]
    %v623 = vld [vmem:[#allocation2 + $0x50] sm:$0xff]
    %v624 = vld [vmem:[#allocation2 + $0x58] sm:$0xff]
    %v625 = vld [vmem:[#allocation2 + $0x60] sm:$0xff]
    %v626 = vld [vmem:[#allocation2 + $0x68] sm:$0xff]
    %v627 = vld [vmem:[#allocation2 + $0x70] sm:$0xff]
    %v628 = vld [vmem:[#allocation2 + $0x78] sm:$0xff]
    %v629 = vld [vmem:[#allocation2 + $0x88] sm:$0xff]
    %v630 = vld [vmem:[#allocation2 + $0x90] sm:$0xff]
    %v631 = vld [vmem:[#allocation2 + $0x98] sm:$0xff]
    %v632 = vld [vmem:[#allocation2 + $0xa0] sm:$0xff]
    %v633 = vld [vmem:[#allocation2 + $0xa8] sm:$0xff]
    %v634 = vld [vmem:[#allocation2 + $0xb0] sm:$0xff]
    %v635 = vld [vmem:[#allocation2 + $0xb8] sm:$0xff]
    %v636 = vld [vmem:[#allocation2 + $0xc0] sm:$0xff]
    %v637 = vld [vmem:[#allocation2 + $0xc8] sm:$0xff]
    %v638 = vld [vmem:[#allocation2 + $0xd0] sm:$0xff]
    %v639 = vld [vmem:[#allocation2 + $0xd8] sm:$0xff]
    %v640 = vld [vmem:[#allocation2 + $0xe0] sm:$0xff]
    %v641 = vld [vmem:[#allocation2 + $0xe8] sm:$0xff]
    %v642 = vld [vmem:[#allocation2 + $0xf0] sm:$0xff]
    %v643 = vld [vmem:[#allocation2 + $0xf8] sm:$0xff]
    %v644 = vld [vmem:[#allocation2 + $0x100] sm:$0xff]
    %v645 = vld [vmem:[#allocation2 + $0x110] sm:$0x1f]
    %v646 = vld [vmem:[#allocation2 + $0x118] sm:$0x1f]
    %v647 = vld [vmem:[#allocation2 + $0x120] sm:$0x1f]
    %v648 = vld [vmem:[#allocation2 + $0x128] sm:$0x1f]
    %v649 = vld [vmem:[#allocation2 + $0x130] sm:$0x1f]
    %v650 = vld [vmem:[#allocation2 + $0x138] sm:$0x1f]
    %v651 = vld [vmem:[#allocation2 + $0x140] sm:$0x1f]
    %v652 = vld [vmem:[#allocation2 + $0x148] sm:$0x1f]
    %v653 = vld [vmem:[#allocation2 + $0x150] sm:$0x1f]
    %v654 = vld [vmem:[#allocation2 + $0x158] sm:$0x1f]
    %v655 = vld [vmem:[#allocation2 + $0x160] sm:$0x1f]
    %v656 = vld [vmem:[#allocation2 + $0x168] sm:$0x1f]
    %v657 = vld [vmem:[#allocation2 + $0x170] sm:$0x1f]
    %v658 = vld [vmem:[#allocation2 + $0x178] sm:$0x1f]
    %v659 = vld [vmem:[#allocation2 + $0x180] sm:$0x1f]
    %v660 = vld [vmem:[#allocation2 + $0x188] sm:$0x1f]
    %v661 = vpack.c.bf16 %v629, %v613
    %v662 = vpack.c.bf16 %v630, %v614
    %v663 = vpack.c.bf16 %v631, %v615
    %v664 = vpack.c.bf16 %v632, %v616
    %v665 = vpack.c.bf16 %v633, %v617
    %v666 = vpack.c.bf16 %v634, %v618
    %v667 = vpack.c.bf16 %v635, %v619
    %v668 = vpack.c.bf16 %v636, %v620
    %v669 = vpack.c.bf16 %v637, %v621
    %v670 = vpack.c.bf16 %v638, %v622
    %v671 = vpack.c.bf16 %v639, %v623
    %v672 = vpack.c.bf16 %v640, %v624
    %v673 = vpack.c.bf16 %v641, %v625
    %v674 = vpack.c.bf16 %v642, %v626
    %v675 = vpack.c.bf16 %v643, %v627
    %v676 = vpack.c.bf16 %v644, %v628
    %v677 = vpack.c.bf16 %v645, %v645
    %v678 = vpack.c.bf16 %v646, %v646
    %v679 = vpack.c.bf16 %v647, %v647
    %v680 = vpack.c.bf16 %v648, %v648
    %v681 = vpack.c.bf16 %v649, %v649
    %v682 = vpack.c.bf16 %v650, %v650
    %v683 = vpack.c.bf16 %v651, %v651
    %v684 = vpack.c.bf16 %v652, %v652
    %v685 = vpack.c.bf16 %v653, %v653
    %v686 = vpack.c.bf16 %v654, %v654
    %v687 = vpack.c.bf16 %v655, %v655
    %v688 = vpack.c.bf16 %v656, %v656
    %v689 = vpack.c.bf16 %v657, %v657
    %v690 = vpack.c.bf16 %v658, %v658
    %v691 = vpack.c.bf16 %v659, %v659
    %v692 = vpack.c.bf16 %v660, %v660
    %v693 = vld [vmem:[%s1 + $0x10] sm:$0xf]
    %v694 = vld [vmem:[%s1 + $0x14] sm:$0xf]
    %v695 = vld [vmem:[%s1 + $0x18] sm:$0xf]
    %v696 = vld [vmem:[%s1 + $0x1c] sm:$0xf]
    %v697 = vld [vmem:[#allocation2 + $0x80] sm:$0xff]
    %v698 = vld [vmem:[#allocation2 + $0x108] sm:$0xff]
    %v699 = vld [vmem:[#allocation2 + $0x190] sm:$0x1f]
    %v700 = vpack.c.bf16 %v698, %v697
    %v701 = vpack.c.bf16 %v699, %v699
    %v706 = vunpack.c.l.b16 %v693
    %v707 = vunpack.c.l.b16 %v694
    %v708 = vunpack.c.l.b16 %v695
    %v709 = vunpack.c.l.b16 %v696
    %v710 = vpack.c.b16 %v707, %v706
    %v711 = vpack.c.b16 %v709, %v708
    %746 = vrot.lane.b32.xlu0 %v661, 127
    %v747 = vpop.permute.xlu0 %746
    %748 = vrot.lane.b32.xlu0 %v662, 127
    %v749 = vpop.permute.xlu0 %748
    %750 = vrot.lane.b32.xlu0 %v663, 127
    %v751 = vpop.permute.xlu0 %750
    %752 = vrot.lane.b32.xlu0 %v664, 127
    %v753 = vpop.permute.xlu0 %752
    %754 = vrot.lane.b32.xlu0 %v665, 127
    %v755 = vpop.permute.xlu0 %754
    %756 = vrot.lane.b32.xlu0 %v666, 127
    %v757 = vpop.permute.xlu0 %756
    %758 = vrot.lane.b32.xlu0 %v667, 127
    %v759 = vpop.permute.xlu0 %758
    %760 = vrot.lane.b32.xlu0 %v668, 127
    %v761 = vpop.permute.xlu0 %760
    %762 = vrot.lane.b32.xlu0 %v669, 127
    %v763 = vpop.permute.xlu0 %762
    %764 = vrot.lane.b32.xlu0 %v670, 127
    %v765 = vpop.permute.xlu0 %764
    %766 = vrot.lane.b32.xlu0 %v671, 127
    %v767 = vpop.permute.xlu0 %766
    %768 = vrot.lane.b32.xlu0 %v672, 127
    %v769 = vpop.permute.xlu0 %768
    %770 = vrot.lane.b32.xlu0 %v673, 127
    %v771 = vpop.permute.xlu0 %770
    %772 = vrot.lane.b32.xlu0 %v674, 127
    %v773 = vpop.permute.xlu0 %772
    %774 = vrot.lane.b32.xlu0 %v675, 127
    %v775 = vpop.permute.xlu0 %774
    %776 = vrot.lane.b32.xlu0 %v676, 127
    %v777 = vpop.permute.xlu0 %776
    %778 = vrot.lane.b32.xlu0 %v700, 127
    %v779 = vpop.permute.xlu0 %778
    %780 = vrot.lane.b32.xlu0 %v677, 127
    %v781 = vpop.permute.xlu0 %780
    %782 = vrot.lane.b32.xlu0 %v678, 127
    %v783 = vpop.permute.xlu0 %782
    %784 = vrot.lane.b32.xlu0 %v679, 127
    %v785 = vpop.permute.xlu0 %784
    %786 = vrot.lane.b32.xlu0 %v680, 127
    %v787 = vpop.permute.xlu0 %786
    %788 = vrot.lane.b32.xlu0 %v681, 127
    %v789 = vpop.permute.xlu0 %788
    %790 = vrot.lane.b32.xlu0 %v682, 127
    %v791 = vpop.permute.xlu0 %790
    %792 = vrot.lane.b32.xlu0 %v683, 127
    %v793 = vpop.permute.xlu0 %792
    %794 = vrot.lane.b32.xlu0 %v684, 127
    %v795 = vpop.permute.xlu0 %794
    %796 = vrot.lane.b32.xlu0 %v685, 127
    %v797 = vpop.permute.xlu0 %796
    %798 = vrot.lane.b32.xlu0 %v686, 127
    %v799 = vpop.permute.xlu0 %798
    %800 = vrot.lane.b32.xlu0 %v687, 127
    %v801 = vpop.permute.xlu0 %800
    %802 = vrot.lane.b32.xlu0 %v688, 127
    %v803 = vpop.permute.xlu0 %802
    %804 = vrot.lane.b32.xlu0 %v689, 127
    %v805 = vpop.permute.xlu0 %804
    %806 = vrot.lane.b32.xlu0 %v690, 127
    %v807 = vpop.permute.xlu0 %806
    %808 = vrot.lane.b32.xlu0 %v691, 127
    %v809 = vpop.permute.xlu0 %808
    %810 = vrot.lane.b32.xlu0 %v692, 127
    %v811 = vpop.permute.xlu0 %810
    %812 = vrot.lane.b32.xlu0 %v701, 127
    %v813 = vpop.permute.xlu0 %812
    %vm814 = vcmask 1039360
    %v815 = vsel %vm814, %v747, %v749
    %v816 = vsel %vm814, %v749, %v751
    %v817 = vsel %vm814, %v751, %v753
    %v818 = vsel %vm814, %v753, %v755
    %v819 = vsel %vm814, %v755, %v757
    %v820 = vsel %vm814, %v757, %v759
    %v821 = vsel %vm814, %v759, %v761
    %v822 = vsel %vm814, %v761, %v763
    %v823 = vsel %vm814, %v763, %v765
    %v824 = vsel %vm814, %v765, %v767
    %v825 = vsel %vm814, %v767, %v769
    %v826 = vsel %vm814, %v769, %v771
    %v827 = vsel %vm814, %v771, %v773
    %v828 = vsel %vm814, %v773, %v775
    %v829 = vsel %vm814, %v775, %v777
    %v830 = vsel %vm814, %v777, %v779
    %v831 = vsel %vm814, %v781, %v783
    %v832 = vsel %vm814, %v783, %v785
    %v833 = vsel %vm814, %v785, %v787
    %v834 = vsel %vm814, %v787, %v789
    %v835 = vsel %vm814, %v789, %v791
    %v836 = vsel %vm814, %v791, %v793
    %v837 = vsel %vm814, %v793, %v795
    %v838 = vsel %vm814, %v795, %v797
    %v839 = vsel %vm814, %v797, %v799
    %v840 = vsel %vm814, %v799, %v801
    %v841 = vsel %vm814, %v801, %v803
    %v842 = vsel %vm814, %v803, %v805
    %v843 = vsel %vm814, %v805, %v807
    %v844 = vsel %vm814, %v807, %v809
    %v845 = vsel %vm814, %v809, %v811
    %v846 = vsel %vm814, %v811, %v813
    %vm863 = vcmask 171008
    %v865 = vsel %vm863, %v710, 0
    %v868 = vsel %vm863, %v711, 0
    %vm870 = vcmask 1041408
    %vm871 = vcmask 1042432
    %v872 = vsel %vm870, 4294967295, 65535
    %v873 = vsel %vm871, %v872, 0
    %v875 = vand.u32 %v831, %v873
    %v878 = vand.u32 %v832, %v873
    %v881 = vand.u32 %v833, %v873
    %v884 = vand.u32 %v834, %v873
    %v887 = vand.u32 %v835, %v873
    %v890 = vand.u32 %v836, %v873
    %v893 = vand.u32 %v837, %v873
    %v896 = vand.u32 %v838, %v873
    %v899 = vand.u32 %v839, %v873
    %v902 = vand.u32 %v840, %v873
    %v905 = vand.u32 %v841, %v873
    %v908 = vand.u32 %v842, %v873
    %v911 = vand.u32 %v843, %v873
    %v914 = vand.u32 %v844, %v873
    %v917 = vand.u32 %v845, %v873
    %v920 = vand.u32 %v846, %v873
    %922 = vmatprep.subr.bf16.mxu0 %v816
    %923 = vmatpush1.bf16.msra.mxu0 %v815
    %924 = vmatprep.subr.bf16.mxu0 %v878
    %925 = vmatpush1.bf16.msra.mxu0 %v875
    %926 = vmatprep.subr.bf16.mxu0 0
    %927 = vmatpush1.bf16.msra.mxu0 0
    %928 = vmatprep.subr.bf16.mxu0 0
    %929 = vmatpush1.bf16.msra.mxu0 0
    %930 = vmatprep.subr.bf16.mxu0 0
    %931 = vmatpush1.bf16.msra.mxu0 0
    %932 = vmatprep.subr.bf16.mxu0 0
    %933 = vmatpush1.bf16.msra.mxu0 0
    %934 = vmatprep.subr.bf16.mxu0 0
    %935 = vmatpush1.bf16.msra.mxu0 0
    %936 = vmatprep.subr.bf16.mxu0 0
    %937 = vmatpush1.bf16.msra.mxu0 0
    %938 = vmatprep.subr.bf16.mxu0 0
    %939 = vmatpush1.bf16.msra.mxu0 0
    %940 = vmatprep.subr.bf16.mxu0 0
    %941 = vmatpush1.bf16.msra.mxu0 0
    %942 = vmatprep.subr.bf16.mxu0 0
    %943 = vmatpush1.bf16.msra.mxu0 0
    %944 = vmatprep.subr.bf16.mxu0 0
    %945 = vmatpush1.bf16.msra.mxu0 0
    %946 = vmatprep.subr.bf16.mxu0 0
    %947 = vmatpush1.bf16.msra.mxu0 0
    %948 = vmatprep.subr.bf16.mxu0 0
    %949 = vmatpush1.bf16.msra.mxu0 0
    %950 = vmatprep.subr.bf16.mxu0 0
    %951 = vmatpush1.bf16.msra.mxu0 0
    %952 = vmatprep.subr.bf16.mxu0 0
    %953 = vmatpush1.bf16.msra.mxu0 0
    %954 = vmatprep.mubr.bf16.mxu0 0
    %955 = vmatmul.mubr.bf16.gmra.mrb[0].mxu0 %v865
    %v956 = vpop.f32.mrb[0].mxu0
    %v957 = vadd.f32 0.0, %v956
    %v958 = vpop.f32.mrb[0].mxu0
    %v959 = vadd.f32 0.0, %v958
    %v960 = vpop.f32.mrb[0].mxu0
    %v961 = vadd.f32 0.0, %v960
    %v962 = vpop.f32.mrb[0].mxu0
    %v963 = vadd.f32 0.0, %v962
    %964 = vmatprep.mubr.bf16.mxu0 0
    %965 = vmatmul.mubr.bf16.gmra.mrb[0].mxu0 %v868
    %v966 = vpop.f32.mrb[0].mxu0
    %v967 = vadd.f32 0.0, %v966
    %v968 = vpop.f32.mrb[0].mxu0
    %v969 = vadd.f32 0.0, %v968
    %v970 = vpop.f32.mrb[0].mxu0
    %v971 = vadd.f32 0.0, %v970
    %v972 = vpop.f32.mrb[0].mxu0
    %v973 = vadd.f32 0.0, %v972
    %974 = vdwg.mxu0
    %975 = vmatprep.subr.bf16.mxu0 %v818
    %976 = vmatpush1.bf16.msra.mxu0 %v817
    %977 = vmatprep.subr.bf16.mxu0 %v884
    %978 = vmatpush1.bf16.msra.mxu0 %v881
    %979 = vmatprep.subr.bf16.mxu0 0
    %980 = vmatpush1.bf16.msra.mxu0 0
    %981 = vmatprep.subr.bf16.mxu0 0
    %982 = vmatpush1.bf16.msra.mxu0 0
    %983 = vmatprep.subr.bf16.mxu0 0
    %984 = vmatpush1.bf16.msra.mxu0 0
    %985 = vmatprep.subr.bf16.mxu0 0
    %986 = vmatpush1.bf16.msra.mxu0 0
    %987 = vmatprep.subr.bf16.mxu0 0
    %988 = vmatpush1.bf16.msra.mxu0 0
    %989 = vmatprep.subr.bf16.mxu0 0
    %990 = vmatpush1.bf16.msra.mxu0 0
    %991 = vmatprep.subr.bf16.mxu0 0
    %992 = vmatpush1.bf16.msra.mxu0 0
    %993 = vmatprep.subr.bf16.mxu0 0
    %994 = vmatpush1.bf16.msra.mxu0 0
    %995 = vmatprep.subr.bf16.mxu0 0
    %996 = vmatpush1.bf16.msra.mxu0 0
    %997 = vmatprep.subr.bf16.mxu0 0
    %998 = vmatpush1.bf16.msra.mxu0 0
    %999 = vmatprep.subr.bf16.mxu0 0
    %1000 = vmatpush1.bf16.msra.mxu0 0
    %1001 = vmatprep.subr.bf16.mxu0 0
    %1002 = vmatpush1.bf16.msra.mxu0 0
    %1003 = vmatprep.subr.bf16.mxu0 0
    %1004 = vmatpush1.bf16.msra.mxu0 0
    %1005 = vmatprep.subr.bf16.mxu0 0
    %1006 = vmatpush1.bf16.msra.mxu0 0
    %1007 = vmatprep.mubr.bf16.mxu0 0
    %1008 = vmatmul.mubr.bf16.gmra.mrb[0].mxu0 %v865
    %v1009 = vpop.f32.mrb[0].mxu0
    %v1010 = vadd.f32 0.0, %v1009
    %v1011 = vpop.f32.mrb[0].mxu0
    %v1012 = vadd.f32 0.0, %v1011
    %v1013 = vpop.f32.mrb[0].mxu0
    %v1014 = vadd.f32 0.0, %v1013
    %v1015 = vpop.f32.mrb[0].mxu0
    %v1016 = vadd.f32 0.0, %v1015
    %1017 = vmatprep.mubr.bf16.mxu0 0
    %1018 = vmatmul.mubr.bf16.gmra.mrb[0].mxu0 %v868
    %v1019 = vpop.f32.mrb[0].mxu0
    %v1020 = vadd.f32 0.0, %v1019
    %v1021 = vpop.f32.mrb[0].mxu0
    %v1022 = vadd.f32 0.0, %v1021
    %v1023 = vpop.f32.mrb[0].mxu0
    %v1024 = vadd.f32 0.0, %v1023
    %v1025 = vpop.f32.mrb[0].mxu0
    %v1026 = vadd.f32 0.0, %v1025
    %1027 = vdwg.mxu0
    %1028 = vmatprep.subr.bf16.mxu0 %v820
    %1029 = vmatpush1.bf16.msra.mxu0 %v819
    %1030 = vmatprep.subr.bf16.mxu0 %v890
    %1031 = vmatpush1.bf16.msra.mxu0 %v887
    %1032 = vmatprep.subr.bf16.mxu0 0
    %1033 = vmatpush1.bf16.msra.mxu0 0
    %1034 = vmatprep.subr.bf16.mxu0 0
    %1035 = vmatpush1.bf16.msra.mxu0 0
    %1036 = vmatprep.subr.bf16.mxu0 0
    %1037 = vmatpush1.bf16.msra.mxu0 0
    %1038 = vmatprep.subr.bf16.mxu0 0
    %1039 = vmatpush1.bf16.msra.mxu0 0
    %1040 = vmatprep.subr.bf16.mxu0 0
    %1041 = vmatpush1.bf16.msra.mxu0 0
    %1042 = vmatprep.subr.bf16.mxu0 0
    %1043 = vmatpush1.bf16.msra.mxu0 0
    %1044 = vmatprep.subr.bf16.mxu0 0
    %1045 = vmatpush1.bf16.msra.mxu0 0
    %1046 = vmatprep.subr.bf16.mxu0 0
    %1047 = vmatpush1.bf16.msra.mxu0 0
    %1048 = vmatprep.subr.bf16.mxu0 0
    %1049 = vmatpush1.bf16.msra.mxu0 0
    %1050 = vmatprep.subr.bf16.mxu0 0
    %1051 = vmatpush1.bf16.msra.mxu0 0
    %1052 = vmatprep.subr.bf16.mxu0 0
    %1053 = vmatpush1.bf16.msra.mxu0 0
    %1054 = vmatprep.subr.bf16.mxu0 0
    %1055 = vmatpush1.bf16.msra.mxu0 0
    %1056 = vmatprep.subr.bf16.mxu0 0
    %1057 = vmatpush1.bf16.msra.mxu0 0
    %1058 = vmatprep.subr.bf16.mxu0 0
    %1059 = vmatpush1.bf16.msra.mxu0 0
    %1060 = vmatprep.mubr.bf16.mxu0 0
    %1061 = vmatmul.mubr.bf16.gmra.mrb[0].mxu0 %v865
    %v1062 = vpop.f32.mrb[0].mxu0
    %v1063 = vadd.f32 0.0, %v1062
    %v1064 = vpop.f32.mrb[0].mxu0
    %v1065 = vadd.f32 0.0, %v1064
    %v1066 = vpop.f32.mrb[0].mxu0
    %v1067 = vadd.f32 0.0, %v1066
    %v1068 = vpop.f32.mrb[0].mxu0
    %v1069 = vadd.f32 0.0, %v1068
    %1070 = vmatprep.mubr.bf16.mxu0 0
    %1071 = vmatmul.mubr.bf16.gmra.mrb[0].mxu0 %v868
    %v1072 = vpop.f32.mrb[0].mxu0
    %v1073 = vadd.f32 0.0, %v1072
    %v1074 = vpop.f32.mrb[0].mxu0
    %v1075 = vadd.f32 0.0, %v1074
    %v1076 = vpop.f32.mrb[0].mxu0
    %v1077 = vadd.f32 0.0, %v1076
    %v1078 = vpop.f32.mrb[0].mxu0
    %v1079 = vadd.f32 0.0, %v1078
    %1080 = vdwg.mxu0
    %1081 = vmatprep.subr.bf16.mxu0 %v822
    %1082 = vmatpush1.bf16.msra.mxu0 %v821
    %1083 = vmatprep.subr.bf16.mxu0 %v896
    %1084 = vmatpush1.bf16.msra.mxu0 %v893
    %1085 = vmatprep.subr.bf16.mxu0 0
    %1086 = vmatpush1.bf16.msra.mxu0 0
    %1087 = vmatprep.subr.bf16.mxu0 0
    %1088 = vmatpush1.bf16.msra.mxu0 0
    %1089 = vmatprep.subr.bf16.mxu0 0
    %1090 = vmatpush1.bf16.msra.mxu0 0
    %1091 = vmatprep.subr.bf16.mxu0 0
    %1092 = vmatpush1.bf16.msra.mxu0 0
    %1093 = vmatprep.subr.bf16.mxu0 0
    %1094 = vmatpush1.bf16.msra.mxu0 0
    %1095 = vmatprep.subr.bf16.mxu0 0
    %1096 = vmatpush1.bf16.msra.mxu0 0
    %1097 = vmatprep.subr.bf16.mxu0 0
    %1098 = vmatpush1.bf16.msra.mxu0 0
    %1099 = vmatprep.subr.bf16.mxu0 0
    %1100 = vmatpush1.bf16.msra.mxu0 0
    %1101 = vmatprep.subr.bf16.mxu0 0
    %1102 = vmatpush1.bf16.msra.mxu0 0
    %1103 = vmatprep.subr.bf16.mxu0 0
    %1104 = vmatpush1.bf16.msra.mxu0 0
    %1105 = vmatprep.subr.bf16.mxu0 0
    %1106 = vmatpush1.bf16.msra.mxu0 0
    %1107 = vmatprep.subr.bf16.mxu0 0
    %1108 = vmatpush1.bf16.msra.mxu0 0
    %1109 = vmatprep.subr.bf16.mxu0 0
    %1110 = vmatpush1.bf16.msra.mxu0 0
    %1111 = vmatprep.subr.bf16.mxu0 0
    %1112 = vmatpush1.bf16.msra.mxu0 0
    %1113 = vmatprep.mubr.bf16.mxu0 0
    %1114 = vmatmul.mubr.bf16.gmra.mrb[0].mxu0 %v865
    %v1115 = vpop.f32.mrb[0].mxu0
    %v1116 = vadd.f32 0.0, %v1115
    %v1117 = vpop.f32.mrb[0].mxu0
    %v1118 = vadd.f32 0.0, %v1117
    %v1119 = vpop.f32.mrb[0].mxu0
    %v1120 = vadd.f32 0.0, %v1119
    %v1121 = vpop.f32.mrb[0].mxu0
    %v1122 = vadd.f32 0.0, %v1121
    %1123 = vmatprep.mubr.bf16.mxu0 0
    %1124 = vmatmul.mubr.bf16.gmra.mrb[0].mxu0 %v868
    %v1125 = vpop.f32.mrb[0].mxu0
    %v1126 = vadd.f32 0.0, %v1125
    %v1127 = vpop.f32.mrb[0].mxu0
    %v1128 = vadd.f32 0.0, %v1127
    %v1129 = vpop.f32.mrb[0].mxu0
    %v1130 = vadd.f32 0.0, %v1129
    %v1131 = vpop.f32.mrb[0].mxu0
    %v1132 = vadd.f32 0.0, %v1131
    %1133 = vdwg.mxu0
    %1134 = vmatprep.subr.bf16.mxu0 %v824
    %1135 = vmatpush1.bf16.msra.mxu0 %v823
    %1136 = vmatprep.subr.bf16.mxu0 %v902
    %1137 = vmatpush1.bf16.msra.mxu0 %v899
    %1138 = vmatprep.subr.bf16.mxu0 0
    %1139 = vmatpush1.bf16.msra.mxu0 0
    %1140 = vmatprep.subr.bf16.mxu0 0
    %1141 = vmatpush1.bf16.msra.mxu0 0
    %1142 = vmatprep.subr.bf16.mxu0 0
    %1143 = vmatpush1.bf16.msra.mxu0 0
    %1144 = vmatprep.subr.bf16.mxu0 0
    %1145 = vmatpush1.bf16.msra.mxu0 0
    %1146 = vmatprep.subr.bf16.mxu0 0
    %1147 = vmatpush1.bf16.msra.mxu0 0
    %1148 = vmatprep.subr.bf16.mxu0 0
    %1149 = vmatpush1.bf16.msra.mxu0 0
    %1150 = vmatprep.subr.bf16.mxu0 0
    %1151 = vmatpush1.bf16.msra.mxu0 0
    %1152 = vmatprep.subr.bf16.mxu0 0
    %1153 = vmatpush1.bf16.msra.mxu0 0
    %1154 = vmatprep.subr.bf16.mxu0 0
    %1155 = vmatpush1.bf16.msra.mxu0 0
    %1156 = vmatprep.subr.bf16.mxu0 0
    %1157 = vmatpush1.bf16.msra.mxu0 0
    %1158 = vmatprep.subr.bf16.mxu0 0
    %1159 = vmatpush1.bf16.msra.mxu0 0
    %1160 = vmatprep.subr.bf16.mxu0 0
    %1161 = vmatpush1.bf16.msra.mxu0 0
    %1162 = vmatprep.subr.bf16.mxu0 0
    %1163 = vmatpush1.bf16.msra.mxu0 0
    %1164 = vmatprep.subr.bf16.mxu0 0
    %1165 = vmatpush1.bf16.msra.mxu0 0
    %1166 = vmatprep.mubr.bf16.mxu0 0
    %1167 = vmatmul.mubr.bf16.gmra.mrb[0].mxu0 %v865
    %v1168 = vpop.f32.mrb[0].mxu0
    %v1169 = vadd.f32 0.0, %v1168
    %v1170 = vpop.f32.mrb[0].mxu0
    %v1171 = vadd.f32 0.0, %v1170
    %v1172 = vpop.f32.mrb[0].mxu0
    %v1173 = vadd.f32 0.0, %v1172
    %v1174 = vpop.f32.mrb[0].mxu0
    %v1175 = vadd.f32 0.0, %v1174
    %1176 = vmatprep.mubr.bf16.mxu0 0
    %1177 = vmatmul.mubr.bf16.gmra.mrb[0].mxu0 %v868
    %v1178 = vpop.f32.mrb[0].mxu0
    %v1179 = vadd.f32 0.0, %v1178
    %v1180 = vpop.f32.mrb[0].mxu0
    %v1181 = vadd.f32 0.0, %v1180
    %v1182 = vpop.f32.mrb[0].mxu0
    %v1183 = vadd.f32 0.0, %v1182
    %v1184 = vpop.f32.mrb[0].mxu0
    %v1185 = vadd.f32 0.0, %v1184
    %1186 = vdwg.mxu0
    %1187 = vmatprep.subr.bf16.mxu0 %v826
    %1188 = vmatpush1.bf16.msra.mxu0 %v825
    %1189 = vmatprep.subr.bf16.mxu0 %v908
    %1190 = vmatpush1.bf16.msra.mxu0 %v905
    %1191 = vmatprep.subr.bf16.mxu0 0
    %1192 = vmatpush1.bf16.msra.mxu0 0
    %1193 = vmatprep.subr.bf16.mxu0 0
    %1194 = vmatpush1.bf16.msra.mxu0 0
    %1195 = vmatprep.subr.bf16.mxu0 0
    %1196 = vmatpush1.bf16.msra.mxu0 0
    %1197 = vmatprep.subr.bf16.mxu0 0
    %1198 = vmatpush1.bf16.msra.mxu0 0
    %1199 = vmatprep.subr.bf16.mxu0 0
    %1200 = vmatpush1.bf16.msra.mxu0 0
    %1201 = vmatprep.subr.bf16.mxu0 0
    %1202 = vmatpush1.bf16.msra.mxu0 0
    %1203 = vmatprep.subr.bf16.mxu0 0
    %1204 = vmatpush1.bf16.msra.mxu0 0
    %1205 = vmatprep.subr.bf16.mxu0 0
    %1206 = vmatpush1.bf16.msra.mxu0 0
    %1207 = vmatprep.subr.bf16.mxu0 0
    %1208 = vmatpush1.bf16.msra.mxu0 0
    %1209 = vmatprep.subr.bf16.mxu0 0
    %1210 = vmatpush1.bf16.msra.mxu0 0
    %1211 = vmatprep.subr.bf16.mxu0 0
    %1212 = vmatpush1.bf16.msra.mxu0 0
    %1213 = vmatprep.subr.bf16.mxu0 0
    %1214 = vmatpush1.bf16.msra.mxu0 0
    %1215 = vmatprep.subr.bf16.mxu0 0
    %1216 = vmatpush1.bf16.msra.mxu0 0
    %1217 = vmatprep.subr.bf16.mxu0 0
    %1218 = vmatpush1.bf16.msra.mxu0 0
    %1219 = vmatprep.mubr.bf16.mxu0 0
    %1220 = vmatmul.mubr.bf16.gmra.mrb[0].mxu0 %v865
    %v1221 = vpop.f32.mrb[0].mxu0
    %v1222 = vadd.f32 0.0, %v1221
    %v1223 = vpop.f32.mrb[0].mxu0
    %v1224 = vadd.f32 0.0, %v1223
    %v1225 = vpop.f32.mrb[0].mxu0
    %v1226 = vadd.f32 0.0, %v1225
    %v1227 = vpop.f32.mrb[0].mxu0
    %v1228 = vadd.f32 0.0, %v1227
    %1229 = vmatprep.mubr.bf16.mxu0 0
    %1230 = vmatmul.mubr.bf16.gmra.mrb[0].mxu0 %v868
    %v1231 = vpop.f32.mrb[0].mxu0
    %v1232 = vadd.f32 0.0, %v1231
    %v1233 = vpop.f32.mrb[0].mxu0
    %v1234 = vadd.f32 0.0, %v1233
    %v1235 = vpop.f32.mrb[0].mxu0
    %v1236 = vadd.f32 0.0, %v1235
    %v1237 = vpop.f32.mrb[0].mxu0
    %v1238 = vadd.f32 0.0, %v1237
    %1239 = vdwg.mxu0
    %1240 = vmatprep.subr.bf16.mxu0 %v828
    %1241 = vmatpush1.bf16.msra.mxu0 %v827
    %1242 = vmatprep.subr.bf16.mxu0 %v914
    %1243 = vmatpush1.bf16.msra.mxu0 %v911
    %1244 = vmatprep.subr.bf16.mxu0 0
    %1245 = vmatpush1.bf16.msra.mxu0 0
    %1246 = vmatprep.subr.bf16.mxu0 0
    %1247 = vmatpush1.bf16.msra.mxu0 0
    %1248 = vmatprep.subr.bf16.mxu0 0
    %1249 = vmatpush1.bf16.msra.mxu0 0
    %1250 = vmatprep.subr.bf16.mxu0 0
    %1251 = vmatpush1.bf16.msra.mxu0 0
    %1252 = vmatprep.subr.bf16.mxu0 0
    %1253 = vmatpush1.bf16.msra.mxu0 0
    %1254 = vmatprep.subr.bf16.mxu0 0
    %1255 = vmatpush1.bf16.msra.mxu0 0
    %1256 = vmatprep.subr.bf16.mxu0 0
    %1257 = vmatpush1.bf16.msra.mxu0 0
    %1258 = vmatprep.subr.bf16.mxu0 0
    %1259 = vmatpush1.bf16.msra.mxu0 0
    %1260 = vmatprep.subr.bf16.mxu0 0
    %1261 = vmatpush1.bf16.msra.mxu0 0
    %1262 = vmatprep.subr.bf16.mxu0 0
    %1263 = vmatpush1.bf16.msra.mxu0 0
    %1264 = vmatprep.subr.bf16.mxu0 0
    %1265 = vmatpush1.bf16.msra.mxu0 0
    %1266 = vmatprep.subr.bf16.mxu0 0
    %1267 = vmatpush1.bf16.msra.mxu0 0
    %1268 = vmatprep.subr.bf16.mxu0 0
    %1269 = vmatpush1.bf16.msra.mxu0 0
    %1270 = vmatprep.subr.bf16.mxu0 0
    %1271 = vmatpush1.bf16.msra.mxu0 0
    %1272 = vmatprep.mubr.bf16.mxu0 0
    %1273 = vmatmul.mubr.bf16.gmra.mrb[0].mxu0 %v865
    %v1274 = vpop.f32.mrb[0].mxu0
    %v1275 = vadd.f32 0.0, %v1274
    %v1276 = vpop.f32.mrb[0].mxu0
    %v1277 = vadd.f32 0.0, %v1276
    %v1278 = vpop.f32.mrb[0].mxu0
    %v1279 = vadd.f32 0.0, %v1278
    %v1280 = vpop.f32.mrb[0].mxu0
    %v1281 = vadd.f32 0.0, %v1280
    %1282 = vmatprep.mubr.bf16.mxu0 0
    %1283 = vmatmul.mubr.bf16.gmra.mrb[0].mxu0 %v868
    %v1284 = vpop.f32.mrb[0].mxu0
    %v1285 = vadd.f32 0.0, %v1284
    %v1286 = vpop.f32.mrb[0].mxu0
    %v1287 = vadd.f32 0.0, %v1286
    %v1288 = vpop.f32.mrb[0].mxu0
    %v1289 = vadd.f32 0.0, %v1288
    %v1290 = vpop.f32.mrb[0].mxu0
    %v1291 = vadd.f32 0.0, %v1290
    %1292 = vdwg.mxu0
    %1293 = vmatprep.subr.bf16.mxu0 %v830
    %1294 = vmatpush1.bf16.msra.mxu0 %v829
    %1295 = vmatprep.subr.bf16.mxu0 %v920
    %1296 = vmatpush1.bf16.msra.mxu0 %v917
    %1297 = vmatprep.subr.bf16.mxu0 0
    %1298 = vmatpush1.bf16.msra.mxu0 0
    %1299 = vmatprep.subr.bf16.mxu0 0
    %1300 = vmatpush1.bf16.msra.mxu0 0
    %1301 = vmatprep.subr.bf16.mxu0 0
    %1302 = vmatpush1.bf16.msra.mxu0 0
    %1303 = vmatprep.subr.bf16.mxu0 0
    %1304 = vmatpush1.bf16.msra.mxu0 0
    %1305 = vmatprep.subr.bf16.mxu0 0
    %1306 = vmatpush1.bf16.msra.mxu0 0
    %1307 = vmatprep.subr.bf16.mxu0 0
    %1308 = vmatpush1.bf16.msra.mxu0 0
    %1309 = vmatprep.subr.bf16.mxu0 0
    %1310 = vmatpush1.bf16.msra.mxu0 0
    %1311 = vmatprep.subr.bf16.mxu0 0
    %1312 = vmatpush1.bf16.msra.mxu0 0
    %1313 = vmatprep.subr.bf16.mxu0 0
    %1314 = vmatpush1.bf16.msra.mxu0 0
    %1315 = vmatprep.subr.bf16.mxu0 0
    %1316 = vmatpush1.bf16.msra.mxu0 0
    %1317 = vmatprep.subr.bf16.mxu0 0
    %1318 = vmatpush1.bf16.msra.mxu0 0
    %1319 = vmatprep.subr.bf16.mxu0 0
    %1320 = vmatpush1.bf16.msra.mxu0 0
    %1321 = vmatprep.subr.bf16.mxu0 0
    %1322 = vmatpush1.bf16.msra.mxu0 0
    %1323 = vmatprep.subr.bf16.mxu0 0
    %1324 = vmatpush1.bf16.msra.mxu0 0
    %1325 = vmatprep.mubr.bf16.mxu0 0
    %1326 = vmatmul.mubr.bf16.gmra.mrb[0].mxu0 %v865
    %v1327 = vpop.f32.mrb[0].mxu0
    %v1328 = vadd.f32 0.0, %v1327
    %v1329 = vpop.f32.mrb[0].mxu0
    %v1330 = vadd.f32 0.0, %v1329
    %v1331 = vpop.f32.mrb[0].mxu0
    %v1332 = vadd.f32 0.0, %v1331
    %v1333 = vpop.f32.mrb[0].mxu0
    %v1334 = vadd.f32 0.0, %v1333
    %1335 = vmatprep.mubr.bf16.mxu0 0
    %1336 = vmatmul.mubr.bf16.gmra.mrb[0].mxu0 %v868
    %v1337 = vpop.f32.mrb[0].mxu0
    %v1338 = vadd.f32 0.0, %v1337
    %v1339 = vpop.f32.mrb[0].mxu0
    %v1340 = vadd.f32 0.0, %v1339
    %v1341 = vpop.f32.mrb[0].mxu0
    %v1342 = vadd.f32 0.0, %v1341
    %v1343 = vpop.f32.mrb[0].mxu0
    %v1344 = vadd.f32 0.0, %v1343
    %1345 = vdwg.mxu0
    %v1350 = vunpack.c.l.b16 %v609
    %v1351 = vunpack.c.l.b16 %v610
    %v1352 = vunpack.c.l.b16 %v611
    %v1353 = vunpack.c.l.b16 %v612
    %v1354 = vpack.c.b16 %v1351, %v1350
    %v1355 = vpack.c.b16 %v1353, %v1352
    %v1357 = vsel %vm863, %v1354, 0
    %v1360 = vsel %vm863, %v1355, 0
    %v1363 = vand.u32 %v677, %v873
    %v1366 = vand.u32 %v678, %v873
    %v1369 = vand.u32 %v679, %v873
    %v1372 = vand.u32 %v680, %v873
    %v1375 = vand.u32 %v681, %v873
    %v1378 = vand.u32 %v682, %v873
    %v1381 = vand.u32 %v683, %v873
    %v1384 = vand.u32 %v684, %v873
    %v1387 = vand.u32 %v685, %v873
    %v1390 = vand.u32 %v686, %v873
    %v1393 = vand.u32 %v687, %v873
    %v1396 = vand.u32 %v688, %v873
    %v1399 = vand.u32 %v689, %v873
    %v1402 = vand.u32 %v690, %v873
    %v1405 = vand.u32 %v691, %v873
    %v1408 = vand.u32 %v692, %v873
    %1410 = vmatprep.subr.bf16.mxu0 %v662
    %1411 = vmatpush1.bf16.msra.mxu0 %v661
    %1412 = vmatprep.subr.bf16.mxu0 %v1366
    %1413 = vmatpush1.bf16.msra.mxu0 %v1363
    %1414 = vmatprep.subr.bf16.mxu0 0
    %1415 = vmatpush1.bf16.msra.mxu0 0
    %1416 = vmatprep.subr.bf16.mxu0 0
    %1417 = vmatpush1.bf16.msra.mxu0 0
    %1418 = vmatprep.subr.bf16.mxu0 0
    %1419 = vmatpush1.bf16.msra.mxu0 0
    %1420 = vmatprep.subr.bf16.mxu0 0
    %1421 = vmatpush1.bf16.msra.mxu0 0
    %1422 = vmatprep.subr.bf16.mxu0 0
    %1423 = vmatpush1.bf16.msra.mxu0 0
    %1424 = vmatprep.subr.bf16.mxu0 0
    %1425 = vmatpush1.bf16.msra.mxu0 0
    %1426 = vmatprep.subr.bf16.mxu0 0
    %1427 = vmatpush1.bf16.msra.mxu0 0
    %1428 = vmatprep.subr.bf16.mxu0 0
    %1429 = vmatpush1.bf16.msra.mxu0 0
    %1430 = vmatprep.subr.bf16.mxu0 0
    %1431 = vmatpush1.bf16.msra.mxu0 0
    %1432 = vmatprep.subr.bf16.mxu0 0
    %1433 = vmatpush1.bf16.msra.mxu0 0
    %1434 = vmatprep.subr.bf16.mxu0 0
    %1435 = vmatpush1.bf16.msra.mxu0 0
    %1436 = vmatprep.subr.bf16.mxu0 0
    %1437 = vmatpush1.bf16.msra.mxu0 0
    %1438 = vmatprep.subr.bf16.mxu0 0
    %1439 = vmatpush1.bf16.msra.mxu0 0
    %1440 = vmatprep.subr.bf16.mxu0 0
    %1441 = vmatpush1.bf16.msra.mxu0 0
    %1442 = vmatprep.mubr.bf16.mxu0 0
    %1443 = vmatmul.mubr.bf16.gmra.mrb[0].mxu0 %v1357
    %v1444 = vpop.f32.mrb[0].mxu0
    %v1445 = vadd.f32 %v957, %v1444
    %v1446 = vpop.f32.mrb[0].mxu0
    %v1447 = vadd.f32 %v959, %v1446
    %v1448 = vpop.f32.mrb[0].mxu0
    %v1449 = vadd.f32 %v961, %v1448
    %v1450 = vpop.f32.mrb[0].mxu0
    %v1451 = vadd.f32 %v963, %v1450
    %1452 = vmatprep.mubr.bf16.mxu0 0
    %1453 = vmatmul.mubr.bf16.gmra.mrb[0].mxu0 %v1360
    %v1454 = vpop.f32.mrb[0].mxu0
    %v1455 = vadd.f32 %v967, %v1454
    %v1456 = vpop.f32.mrb[0].mxu0
    %v1457 = vadd.f32 %v969, %v1456
    %v1458 = vpop.f32.mrb[0].mxu0
    %v1459 = vadd.f32 %v971, %v1458
    %v1460 = vpop.f32.mrb[0].mxu0
    %v1461 = vadd.f32 %v973, %v1460
    %1462 = vdwg.mxu0
    %1463 = vmatprep.subr.bf16.mxu0 %v664
    %1464 = vmatpush1.bf16.msra.mxu0 %v663
    %1465 = vmatprep.subr.bf16.mxu0 %v1372
    %1466 = vmatpush1.bf16.msra.mxu0 %v1369
    %1467 = vmatprep.subr.bf16.mxu0 0
    %1468 = vmatpush1.bf16.msra.mxu0 0
    %1469 = vmatprep.subr.bf16.mxu0 0
    %1470 = vmatpush1.bf16.msra.mxu0 0
    %1471 = vmatprep.subr.bf16.mxu0 0
    %1472 = vmatpush1.bf16.msra.mxu0 0
    %1473 = vmatprep.subr.bf16.mxu0 0
    %1474 = vmatpush1.bf16.msra.mxu0 0
    %1475 = vmatprep.subr.bf16.mxu0 0
    %1476 = vmatpush1.bf16.msra.mxu0 0
    %1477 = vmatprep.subr.bf16.mxu0 0
    %1478 = vmatpush1.bf16.msra.mxu0 0
    %1479 = vmatprep.subr.bf16.mxu0 0
    %1480 = vmatpush1.bf16.msra.mxu0 0
    %1481 = vmatprep.subr.bf16.mxu0 0
    %1482 = vmatpush1.bf16.msra.mxu0 0
    %1483 = vmatprep.subr.bf16.mxu0 0
    %1484 = vmatpush1.bf16.msra.mxu0 0
    %1485 = vmatprep.subr.bf16.mxu0 0
    %1486 = vmatpush1.bf16.msra.mxu0 0
    %1487 = vmatprep.subr.bf16.mxu0 0
    %1488 = vmatpush1.bf16.msra.mxu0 0
    %1489 = vmatprep.subr.bf16.mxu0 0
    %1490 = vmatpush1.bf16.msra.mxu0 0
    %1491 = vmatprep.subr.bf16.mxu0 0
    %1492 = vmatpush1.bf16.msra.mxu0 0
    %1493 = vmatprep.subr.bf16.mxu0 0
    %1494 = vmatpush1.bf16.msra.mxu0 0
    %1495 = vmatprep.mubr.bf16.mxu0 0
    %1496 = vmatmul.mubr.bf16.gmra.mrb[0].mxu0 %v1357
    %v1497 = vpop.f32.mrb[0].mxu0
    %v1498 = vadd.f32 %v1010, %v1497
    %v1499 = vpop.f32.mrb[0].mxu0
    %v1500 = vadd.f32 %v1012, %v1499
    %v1501 = vpop.f32.mrb[0].mxu0
    %v1502 = vadd.f32 %v1014, %v1501
    %v1503 = vpop.f32.mrb[0].mxu0
    %v1504 = vadd.f32 %v1016, %v1503
    %1505 = vmatprep.mubr.bf16.mxu0 0
    %1506 = vmatmul.mubr.bf16.gmra.mrb[0].mxu0 %v1360
    %v1507 = vpop.f32.mrb[0].mxu0
    %v1508 = vadd.f32 %v1020, %v1507
    %v1509 = vpop.f32.mrb[0].mxu0
    %v1510 = vadd.f32 %v1022, %v1509
    %v1511 = vpop.f32.mrb[0].mxu0
    %v1512 = vadd.f32 %v1024, %v1511
    %v1513 = vpop.f32.mrb[0].mxu0
    %v1514 = vadd.f32 %v1026, %v1513
    %1515 = vdwg.mxu0
    %1516 = vmatprep.subr.bf16.mxu0 %v666
    %1517 = vmatpush1.bf16.msra.mxu0 %v665
    %1518 = vmatprep.subr.bf16.mxu0 %v1378
    %1519 = vmatpush1.bf16.msra.mxu0 %v1375
    %1520 = vmatprep.subr.bf16.mxu0 0
    %1521 = vmatpush1.bf16.msra.mxu0 0
    %1522 = vmatprep.subr.bf16.mxu0 0
    %1523 = vmatpush1.bf16.msra.mxu0 0
    %1524 = vmatprep.subr.bf16.mxu0 0
    %1525 = vmatpush1.bf16.msra.mxu0 0
    %1526 = vmatprep.subr.bf16.mxu0 0
    %1527 = vmatpush1.bf16.msra.mxu0 0
    %1528 = vmatprep.subr.bf16.mxu0 0
    %1529 = vmatpush1.bf16.msra.mxu0 0
    %1530 = vmatprep.subr.bf16.mxu0 0
    %1531 = vmatpush1.bf16.msra.mxu0 0
    %1532 = vmatprep.subr.bf16.mxu0 0
    %1533 = vmatpush1.bf16.msra.mxu0 0
    %1534 = vmatprep.subr.bf16.mxu0 0
    %1535 = vmatpush1.bf16.msra.mxu0 0
    %1536 = vmatprep.subr.bf16.mxu0 0
    %1537 = vmatpush1.bf16.msra.mxu0 0
    %1538 = vmatprep.subr.bf16.mxu0 0
    %1539 = vmatpush1.bf16.msra.mxu0 0
    %1540 = vmatprep.subr.bf16.mxu0 0
    %1541 = vmatpush1.bf16.msra.mxu0 0
    %1542 = vmatprep.subr.bf16.mxu0 0
    %1543 = vmatpush1.bf16.msra.mxu0 0
    %1544 = vmatprep.subr.bf16.mxu0 0
    %1545 = vmatpush1.bf16.msra.mxu0 0
    %1546 = vmatprep.subr.bf16.mxu0 0
    %1547 = vmatpush1.bf16.msra.mxu0 0
    %1548 = vmatprep.mubr.bf16.mxu0 0
    %1549 = vmatmul.mubr.bf16.gmra.mrb[0].mxu0 %v1357
    %v1550 = vpop.f32.mrb[0].mxu0
    %v1551 = vadd.f32 %v1063, %v1550
    %v1552 = vpop.f32.mrb[0].mxu0
    %v1553 = vadd.f32 %v1065, %v1552
    %v1554 = vpop.f32.mrb[0].mxu0
    %v1555 = vadd.f32 %v1067, %v1554
    %v1556 = vpop.f32.mrb[0].mxu0
    %v1557 = vadd.f32 %v1069, %v1556
    %1558 = vmatprep.mubr.bf16.mxu0 0
    %1559 = vmatmul.mubr.bf16.gmra.mrb[0].mxu0 %v1360
    %v1560 = vpop.f32.mrb[0].mxu0
    %v1561 = vadd.f32 %v1073, %v1560
    %v1562 = vpop.f32.mrb[0].mxu0
    %v1563 = vadd.f32 %v1075, %v1562
    %v1564 = vpop.f32.mrb[0].mxu0
    %v1565 = vadd.f32 %v1077, %v1564
    %v1566 = vpop.f32.mrb[0].mxu0
    %v1567 = vadd.f32 %v1079, %v1566
    %1568 = vdwg.mxu0
    %1569 = vmatprep.subr.bf16.mxu0 %v668
    %1570 = vmatpush1.bf16.msra.mxu0 %v667
    %1571 = vmatprep.subr.bf16.mxu0 %v1384
    %1572 = vmatpush1.bf16.msra.mxu0 %v1381
    %1573 = vmatprep.subr.bf16.mxu0 0
    %1574 = vmatpush1.bf16.msra.mxu0 0
    %1575 = vmatprep.subr.bf16.mxu0 0
    %1576 = vmatpush1.bf16.msra.mxu0 0
    %1577 = vmatprep.subr.bf16.mxu0 0
    %1578 = vmatpush1.bf16.msra.mxu0 0
    %1579 = vmatprep.subr.bf16.mxu0 0
    %1580 = vmatpush1.bf16.msra.mxu0 0
    %1581 = vmatprep.subr.bf16.mxu0 0
    %1582 = vmatpush1.bf16.msra.mxu0 0
    %1583 = vmatprep.subr.bf16.mxu0 0
    %1584 = vmatpush1.bf16.msra.mxu0 0
    %1585 = vmatprep.subr.bf16.mxu0 0
    %1586 = vmatpush1.bf16.msra.mxu0 0
    %1587 = vmatprep.subr.bf16.mxu0 0
    %1588 = vmatpush1.bf16.msra.mxu0 0
    %1589 = vmatprep.subr.bf16.mxu0 0
    %1590 = vmatpush1.bf16.msra.mxu0 0
    %1591 = vmatprep.subr.bf16.mxu0 0
    %1592 = vmatpush1.bf16.msra.mxu0 0
    %1593 = vmatprep.subr.bf16.mxu0 0
    %1594 = vmatpush1.bf16.msra.mxu0 0
    %1595 = vmatprep.subr.bf16.mxu0 0
    %1596 = vmatpush1.bf16.msra.mxu0 0
    %1597 = vmatprep.subr.bf16.mxu0 0
    %1598 = vmatpush1.bf16.msra.mxu0 0
    %1599 = vmatprep.subr.bf16.mxu0 0
    %1600 = vmatpush1.bf16.msra.mxu0 0
    %1601 = vmatprep.mubr.bf16.mxu0 0
    %1602 = vmatmul.mubr.bf16.gmra.mrb[0].mxu0 %v1357
    %v1603 = vpop.f32.mrb[0].mxu0
    %v1604 = vadd.f32 %v1116, %v1603
    %v1605 = vpop.f32.mrb[0].mxu0
    %v1606 = vadd.f32 %v1118, %v1605
    %v1607 = vpop.f32.mrb[0].mxu0
    %v1608 = vadd.f32 %v1120, %v1607
    %v1609 = vpop.f32.mrb[0].mxu0
    %v1610 = vadd.f32 %v1122, %v1609
    %1611 = vmatprep.mubr.bf16.mxu0 0
    %1612 = vmatmul.mubr.bf16.gmra.mrb[0].mxu0 %v1360
    %v1613 = vpop.f32.mrb[0].mxu0
    %v1614 = vadd.f32 %v1126, %v1613
    %v1615 = vpop.f32.mrb[0].mxu0
    %v1616 = vadd.f32 %v1128, %v1615
    %v1617 = vpop.f32.mrb[0].mxu0
    %v1618 = vadd.f32 %v1130, %v1617
    %v1619 = vpop.f32.mrb[0].mxu0
    %v1620 = vadd.f32 %v1132, %v1619
    %1621 = vdwg.mxu0
    %1622 = vmatprep.subr.bf16.mxu0 %v670
    %1623 = vmatpush1.bf16.msra.mxu0 %v669
    %1624 = vmatprep.subr.bf16.mxu0 %v1390
    %1625 = vmatpush1.bf16.msra.mxu0 %v1387
    %1626 = vmatprep.subr.bf16.mxu0 0
    %1627 = vmatpush1.bf16.msra.mxu0 0
    %1628 = vmatprep.subr.bf16.mxu0 0
    %1629 = vmatpush1.bf16.msra.mxu0 0
    %1630 = vmatprep.subr.bf16.mxu0 0
    %1631 = vmatpush1.bf16.msra.mxu0 0
    %1632 = vmatprep.subr.bf16.mxu0 0
    %1633 = vmatpush1.bf16.msra.mxu0 0
    %1634 = vmatprep.subr.bf16.mxu0 0
    %1635 = vmatpush1.bf16.msra.mxu0 0
    %1636 = vmatprep.subr.bf16.mxu0 0
    %1637 = vmatpush1.bf16.msra.mxu0 0
    %1638 = vmatprep.subr.bf16.mxu0 0
    %1639 = vmatpush1.bf16.msra.mxu0 0
    %1640 = vmatprep.subr.bf16.mxu0 0
    %1641 = vmatpush1.bf16.msra.mxu0 0
    %1642 = vmatprep.subr.bf16.mxu0 0
    %1643 = vmatpush1.bf16.msra.mxu0 0
    %1644 = vmatprep.subr.bf16.mxu0 0
    %1645 = vmatpush1.bf16.msra.mxu0 0
    %1646 = vmatprep.subr.bf16.mxu0 0
    %1647 = vmatpush1.bf16.msra.mxu0 0
    %1648 = vmatprep.subr.bf16.mxu0 0
    %1649 = vmatpush1.bf16.msra.mxu0 0
    %1650 = vmatprep.subr.bf16.mxu0 0
    %1651 = vmatpush1.bf16.msra.mxu0 0
    %1652 = vmatprep.subr.bf16.mxu0 0
    %1653 = vmatpush1.bf16.msra.mxu0 0
    %1654 = vmatprep.mubr.bf16.mxu0 0
    %1655 = vmatmul.mubr.bf16.gmra.mrb[0].mxu0 %v1357
    %v1656 = vpop.f32.mrb[0].mxu0
    %v1657 = vadd.f32 %v1169, %v1656
    %v1658 = vpop.f32.mrb[0].mxu0
    %v1659 = vadd.f32 %v1171, %v1658
    %v1660 = vpop.f32.mrb[0].mxu0
    %v1661 = vadd.f32 %v1173, %v1660
    %v1662 = vpop.f32.mrb[0].mxu0
    %v1663 = vadd.f32 %v1175, %v1662
    %1664 = vmatprep.mubr.bf16.mxu0 0
    %1665 = vmatmul.mubr.bf16.gmra.mrb[0].mxu0 %v1360
    %v1666 = vpop.f32.mrb[0].mxu0
    %v1667 = vadd.f32 %v1179, %v1666
    %v1668 = vpop.f32.mrb[0].mxu0
    %v1669 = vadd.f32 %v1181, %v1668
    %v1670 = vpop.f32.mrb[0].mxu0
    %v1671 = vadd.f32 %v1183, %v1670
    %v1672 = vpop.f32.mrb[0].mxu0
    %v1673 = vadd.f32 %v1185, %v1672
    %1674 = vdwg.mxu0
    %1675 = vmatprep.subr.bf16.mxu0 %v672
    %1676 = vmatpush1.bf16.msra.mxu0 %v671
    %1677 = vmatprep.subr.bf16.mxu0 %v1396
    %1678 = vmatpush1.bf16.msra.mxu0 %v1393
    %1679 = vmatprep.subr.bf16.mxu0 0
    %1680 = vmatpush1.bf16.msra.mxu0 0
    %1681 = vmatprep.subr.bf16.mxu0 0
    %1682 = vmatpush1.bf16.msra.mxu0 0
    %1683 = vmatprep.subr.bf16.mxu0 0
    %1684 = vmatpush1.bf16.msra.mxu0 0
    %1685 = vmatprep.subr.bf16.mxu0 0
    %1686 = vmatpush1.bf16.msra.mxu0 0
    %1687 = vmatprep.subr.bf16.mxu0 0
    %1688 = vmatpush1.bf16.msra.mxu0 0
    %1689 = vmatprep.subr.bf16.mxu0 0
    %1690 = vmatpush1.bf16.msra.mxu0 0
    %1691 = vmatprep.subr.bf16.mxu0 0
    %1692 = vmatpush1.bf16.msra.mxu0 0
    %1693 = vmatprep.subr.bf16.mxu0 0
    %1694 = vmatpush1.bf16.msra.mxu0 0
    %1695 = vmatprep.subr.bf16.mxu0 0
    %1696 = vmatpush1.bf16.msra.mxu0 0
    %1697 = vmatprep.subr.bf16.mxu0 0
    %1698 = vmatpush1.bf16.msra.mxu0 0
    %1699 = vmatprep.subr.bf16.mxu0 0
    %1700 = vmatpush1.bf16.msra.mxu0 0
    %1701 = vmatprep.subr.bf16.mxu0 0
    %1702 = vmatpush1.bf16.msra.mxu0 0
    %1703 = vmatprep.subr.bf16.mxu0 0
    %1704 = vmatpush1.bf16.msra.mxu0 0
    %1705 = vmatprep.subr.bf16.mxu0 0
    %1706 = vmatpush1.bf16.msra.mxu0 0
    %1707 = vmatprep.mubr.bf16.mxu0 0
    %1708 = vmatmul.mubr.bf16.gmra.mrb[0].mxu0 %v1357
    %v1709 = vpop.f32.mrb[0].mxu0
    %v1710 = vadd.f32 %v1222, %v1709
    %v1711 = vpop.f32.mrb[0].mxu0
    %v1712 = vadd.f32 %v1224, %v1711
    %v1713 = vpop.f32.mrb[0].mxu0
    %v1714 = vadd.f32 %v1226, %v1713
    %v1715 = vpop.f32.mrb[0].mxu0
    %v1716 = vadd.f32 %v1228, %v1715
    %1717 = vmatprep.mubr.bf16.mxu0 0
    %1718 = vmatmul.mubr.bf16.gmra.mrb[0].mxu0 %v1360
    %v1719 = vpop.f32.mrb[0].mxu0
    %v1720 = vadd.f32 %v1232, %v1719
    %v1721 = vpop.f32.mrb[0].mxu0
    %v1722 = vadd.f32 %v1234, %v1721
    %v1723 = vpop.f32.mrb[0].mxu0
    %v1724 = vadd.f32 %v1236, %v1723
    %v1725 = vpop.f32.mrb[0].mxu0
    %v1726 = vadd.f32 %v1238, %v1725
    %1727 = vdwg.mxu0
    %1728 = vmatprep.subr.bf16.mxu0 %v674
    %1729 = vmatpush1.bf16.msra.mxu0 %v673
    %1730 = vmatprep.subr.bf16.mxu0 %v1402
    %1731 = vmatpush1.bf16.msra.mxu0 %v1399
    %1732 = vmatprep.subr.bf16.mxu0 0
    %1733 = vmatpush1.bf16.msra.mxu0 0
    %1734 = vmatprep.subr.bf16.mxu0 0
    %1735 = vmatpush1.bf16.msra.mxu0 0
    %1736 = vmatprep.subr.bf16.mxu0 0
    %1737 = vmatpush1.bf16.msra.mxu0 0
    %1738 = vmatprep.subr.bf16.mxu0 0
    %1739 = vmatpush1.bf16.msra.mxu0 0
    %1740 = vmatprep.subr.bf16.mxu0 0
    %1741 = vmatpush1.bf16.msra.mxu0 0
    %1742 = vmatprep.subr.bf16.mxu0 0
    %1743 = vmatpush1.bf16.msra.mxu0 0
    %1744 = vmatprep.subr.bf16.mxu0 0
    %1745 = vmatpush1.bf16.msra.mxu0 0
    %1746 = vmatprep.subr.bf16.mxu0 0
    %1747 = vmatpush1.bf16.msra.mxu0 0
    %1748 = vmatprep.subr.bf16.mxu0 0
    %1749 = vmatpush1.bf16.msra.mxu0 0
    %1750 = vmatprep.subr.bf16.mxu0 0
    %1751 = vmatpush1.bf16.msra.mxu0 0
    %1752 = vmatprep.subr.bf16.mxu0 0
    %1753 = vmatpush1.bf16.msra.mxu0 0
    %1754 = vmatprep.subr.bf16.mxu0 0
    %1755 = vmatpush1.bf16.msra.mxu0 0
    %1756 = vmatprep.subr.bf16.mxu0 0
    %1757 = vmatpush1.bf16.msra.mxu0 0
    %1758 = vmatprep.subr.bf16.mxu0 0
    %1759 = vmatpush1.bf16.msra.mxu0 0
    %1760 = vmatprep.mubr.bf16.mxu0 0
    %1761 = vmatmul.mubr.bf16.gmra.mrb[0].mxu0 %v1357
    %v1762 = vpop.f32.mrb[0].mxu0
    %v1763 = vadd.f32 %v1275, %v1762
    %v1764 = vpop.f32.mrb[0].mxu0
    %v1765 = vadd.f32 %v1277, %v1764
    %v1766 = vpop.f32.mrb[0].mxu0
    %v1767 = vadd.f32 %v1279, %v1766
    %v1768 = vpop.f32.mrb[0].mxu0
    %v1769 = vadd.f32 %v1281, %v1768
    %1770 = vmatprep.mubr.bf16.mxu0 0
    %1771 = vmatmul.mubr.bf16.gmra.mrb[0].mxu0 %v1360
    %v1772 = vpop.f32.mrb[0].mxu0
    %v1773 = vadd.f32 %v1285, %v1772
    %v1774 = vpop.f32.mrb[0].mxu0
    %v1775 = vadd.f32 %v1287, %v1774
    %v1776 = vpop.f32.mrb[0].mxu0
    %v1777 = vadd.f32 %v1289, %v1776
    %v1778 = vpop.f32.mrb[0].mxu0
    %v1779 = vadd.f32 %v1291, %v1778
    %1780 = vdwg.mxu0
    %1781 = vmatprep.subr.bf16.mxu0 %v676
    %1782 = vmatpush1.bf16.msra.mxu0 %v675
    %1783 = vmatprep.subr.bf16.mxu0 %v1408
    %1784 = vmatpush1.bf16.msra.mxu0 %v1405
    %1785 = vmatprep.subr.bf16.mxu0 0
    %1786 = vmatpush1.bf16.msra.mxu0 0
    %1787 = vmatprep.subr.bf16.mxu0 0
    %1788 = vmatpush1.bf16.msra.mxu0 0
    %1789 = vmatprep.subr.bf16.mxu0 0
    %1790 = vmatpush1.bf16.msra.mxu0 0
    %1791 = vmatprep.subr.bf16.mxu0 0
    %1792 = vmatpush1.bf16.msra.mxu0 0
    %1793 = vmatprep.subr.bf16.mxu0 0
    %1794 = vmatpush1.bf16.msra.mxu0 0
    %1795 = vmatprep.subr.bf16.mxu0 0
    %1796 = vmatpush1.bf16.msra.mxu0 0
    %1797 = vmatprep.subr.bf16.mxu0 0
    %1798 = vmatpush1.bf16.msra.mxu0 0
    %1799 = vmatprep.subr.bf16.mxu0 0
    %1800 = vmatpush1.bf16.msra.mxu0 0
    %1801 = vmatprep.subr.bf16.mxu0 0
    %1802 = vmatpush1.bf16.msra.mxu0 0
    %1803 = vmatprep.subr.bf16.mxu0 0
    %1804 = vmatpush1.bf16.msra.mxu0 0
    %1805 = vmatprep.subr.bf16.mxu0 0
    %1806 = vmatpush1.bf16.msra.mxu0 0
    %1807 = vmatprep.subr.bf16.mxu0 0
    %1808 = vmatpush1.bf16.msra.mxu0 0
    %1809 = vmatprep.subr.bf16.mxu0 0
    %1810 = vmatpush1.bf16.msra.mxu0 0
    %1811 = vmatprep.subr.bf16.mxu0 0
    %1812 = vmatpush1.bf16.msra.mxu0 0
    %1813 = vmatprep.mubr.bf16.mxu0 0
    %1814 = vmatmul.mubr.bf16.gmra.mrb[0].mxu0 %v1357
    %v1815 = vpop.f32.mrb[0].mxu0
    %v1816 = vadd.f32 %v1328, %v1815
    %v1817 = vpop.f32.mrb[0].mxu0
    %v1818 = vadd.f32 %v1330, %v1817
    %v1819 = vpop.f32.mrb[0].mxu0
    %v1820 = vadd.f32 %v1332, %v1819
    %v1821 = vpop.f32.mrb[0].mxu0
    %v1822 = vadd.f32 %v1334, %v1821
    %1823 = vmatprep.mubr.bf16.mxu0 0
    %1824 = vmatmul.mubr.bf16.gmra.mrb[0].mxu0 %v1360
    %v1825 = vpop.f32.mrb[0].mxu0
    %v1826 = vadd.f32 %v1338, %v1825
    %v1827 = vpop.f32.mrb[0].mxu0
    %v1828 = vadd.f32 %v1340, %v1827
    %v1829 = vpop.f32.mrb[0].mxu0
    %v1830 = vadd.f32 %v1342, %v1829
    %v1831 = vpop.f32.mrb[0].mxu0
    %v1832 = vadd.f32 %v1344, %v1831
    %1833 = vdwg.mxu0
    %v1834 = vld [vmem:[%s1 + $0x20] sm:$0xf]
    %v1835 = vld [vmem:[%s1 + $0x24] sm:$0xf]
    %v1836 = vld [vmem:[%s1 + $0x28] sm:$0xf]
    %v1837 = vld [vmem:[%s1 + $0x2c] sm:$0xf]
    %v1842 = vunpack.c.l.b16 %v1834
    %v1843 = vunpack.c.l.b16 %v1835
    %v1844 = vunpack.c.l.b16 %v1836
    %v1845 = vunpack.c.l.b16 %v1837
    %v1846 = vpack.c.b16 %v1843, %v1842
    %v1847 = vpack.c.b16 %v1845, %v1844
    %1848 = vrot.lane.b32.xlu0 %v661, 126
    %v1849 = vpop.permute.xlu0 %1848
    %1850 = vrot.lane.b32.xlu0 %v662, 126
    %v1851 = vpop.permute.xlu0 %1850
    %1852 = vrot.lane.b32.xlu0 %v663, 126
    %v1853 = vpop.permute.xlu0 %1852
    %1854 = vrot.lane.b32.xlu0 %v664, 126
    %v1855 = vpop.permute.xlu0 %1854
    %1856 = vrot.lane.b32.xlu0 %v665, 126
    %v1857 = vpop.permute.xlu0 %1856
    %1858 = vrot.lane.b32.xlu0 %v666, 126
    %v1859 = vpop.permute.xlu0 %1858
    %1860 = vrot.lane.b32.xlu0 %v667, 126
    %v1861 = vpop.permute.xlu0 %1860
    %1862 = vrot.lane.b32.xlu0 %v668, 126
    %v1863 = vpop.permute.xlu0 %1862
    %1864 = vrot.lane.b32.xlu0 %v669, 126
    %v1865 = vpop.permute.xlu0 %1864
    %1866 = vrot.lane.b32.xlu0 %v670, 126
    %v1867 = vpop.permute.xlu0 %1866
    %1868 = vrot.lane.b32.xlu0 %v671, 126
    %v1869 = vpop.permute.xlu0 %1868
    %1870 = vrot.lane.b32.xlu0 %v672, 126
    %v1871 = vpop.permute.xlu0 %1870
    %1872 = vrot.lane.b32.xlu0 %v673, 126
    %v1873 = vpop.permute.xlu0 %1872
    %1874 = vrot.lane.b32.xlu0 %v674, 126
    %v1875 = vpop.permute.xlu0 %1874
    %1876 = vrot.lane.b32.xlu0 %v675, 126
    %v1877 = vpop.permute.xlu0 %1876
    %1878 = vrot.lane.b32.xlu0 %v676, 126
    %v1879 = vpop.permute.xlu0 %1878
    %1880 = vrot.lane.b32.xlu0 %v700, 126
    %v1881 = vpop.permute.xlu0 %1880
    %1882 = vrot.lane.b32.xlu0 %v677, 126
    %v1883 = vpop.permute.xlu0 %1882
    %1884 = vrot.lane.b32.xlu0 %v678, 126
    %v1885 = vpop.permute.xlu0 %1884
    %1886 = vrot.lane.b32.xlu0 %v679, 126
    %v1887 = vpop.permute.xlu0 %1886
    %1888 = vrot.lane.b32.xlu0 %v680, 126
    %v1889 = vpop.permute.xlu0 %1888
    %1890 = vrot.lane.b32.xlu0 %v681, 126
    %v1891 = vpop.permute.xlu0 %1890
    %1892 = vrot.lane.b32.xlu0 %v682, 126
    %v1893 = vpop.permute.xlu0 %1892
    %1894 = vrot.lane.b32.xlu0 %v683, 126
    %v1895 = vpop.permute.xlu0 %1894
    %1896 = vrot.lane.b32.xlu0 %v684, 126
    %v1897 = vpop.permute.xlu0 %1896
    %1898 = vrot.lane.b32.xlu0 %v685, 126
    %v1899 = vpop.permute.xlu0 %1898
    %1900 = vrot.lane.b32.xlu0 %v686, 126
    %v1901 = vpop.permute.xlu0 %1900
    %1902 = vrot.lane.b32.xlu0 %v687, 126
    %v1903 = vpop.permute.xlu0 %1902
    %1904 = vrot.lane.b32.xlu0 %v688, 126
    %v1905 = vpop.permute.xlu0 %1904
    %1906 = vrot.lane.b32.xlu0 %v689, 126
    %v1907 = vpop.permute.xlu0 %1906
    %1908 = vrot.lane.b32.xlu0 %v690, 126
    %v1909 = vpop.permute.xlu0 %1908
    %1910 = vrot.lane.b32.xlu0 %v691, 126
    %v1911 = vpop.permute.xlu0 %1910
    %1912 = vrot.lane.b32.xlu0 %v692, 126
    %v1913 = vpop.permute.xlu0 %1912
    %1914 = vrot.lane.b32.xlu0 %v701, 126
    %v1915 = vpop.permute.xlu0 %1914
    %vm1916 = vcmask 1031168
    %v1917 = vsel %vm1916, %v1849, %v1851
    %v1918 = vsel %vm1916, %v1851, %v1853
    %v1919 = vsel %vm1916, %v1853, %v1855
    %v1920 = vsel %vm1916, %v1855, %v1857
    %v1921 = vsel %vm1916, %v1857, %v1859
    %v1922 = vsel %vm1916, %v1859, %v1861
    %v1923 = vsel %vm1916, %v1861, %v1863
    %v1924 = vsel %vm1916, %v1863, %v1865
    %v1925 = vsel %vm1916, %v1865, %v1867
    %v1926 = vsel %vm1916, %v1867, %v1869
    %v1927 = vsel %vm1916, %v1869, %v1871
    %v1928 = vsel %vm1916, %v1871, %v1873
    %v1929 = vsel %vm1916, %v1873, %v1875
    %v1930 = vsel %vm1916, %v1875, %v1877
    %v1931 = vsel %vm1916, %v1877, %v1879
    %v1932 = vsel %vm1916, %v1879, %v1881
    %v1933 = vsel %vm1916, %v1883, %v1885
    %v1934 = vsel %vm1916, %v1885, %v1887
    %v1935 = vsel %vm1916, %v1887, %v1889
    %v1936 = vsel %vm1916, %v1889, %v1891
    %v1937 = vsel %vm1916, %v1891, %v1893
    %v1938 = vsel %vm1916, %v1893, %v1895
    %v1939 = vsel %vm1916, %v1895, %v1897
    %v1940 = vsel %vm1916, %v1897, %v1899
    %v1941 = vsel %vm1916, %v1899, %v1901
    %v1942 = vsel %vm1916, %v1901, %v1903
    %v1943 = vsel %vm1916, %v1903, %v1905
    %v1944 = vsel %vm1916, %v1905, %v1907
    %v1945 = vsel %vm1916, %v1907, %v1909
    %v1946 = vsel %vm1916, %v1909, %v1911
    %v1947 = vsel %vm1916, %v1911, %v1913
    %v1948 = vsel %vm1916, %v1913, %v1915
    %v1966 = vsel %vm863, %v1846, 0
    %v1969 = vsel %vm863, %v1847, 0
    %v1972 = vand.u32 %v1933, %v873
    %v1975 = vand.u32 %v1934, %v873
    %v1978 = vand.u32 %v1935, %v873
    %v1981 = vand.u32 %v1936, %v873
    %v1984 = vand.u32 %v1937, %v873
    %v1987 = vand.u32 %v1938, %v873
    %v1990 = vand.u32 %v1939, %v873
    %v1993 = vand.u32 %v1940, %v873
    %v1996 = vand.u32 %v1941, %v873
    %v1999 = vand.u32 %v1942, %v873
    %v2002 = vand.u32 %v1943, %v873
    %v2005 = vand.u32 %v1944, %v873
    %v2008 = vand.u32 %v1945, %v873
    %v2011 = vand.u32 %v1946, %v873
    %v2014 = vand.u32 %v1947, %v873
    %v2017 = vand.u32 %v1948, %v873
    %2019 = vmatprep.subr.bf16.mxu0 %v1918
    %2020 = vmatpush1.bf16.msra.mxu0 %v1917
    %2021 = vmatprep.subr.bf16.mxu0 %v1975
    %2022 = vmatpush1.bf16.msra.mxu0 %v1972
    %2023 = vmatprep.subr.bf16.mxu0 0
    %2024 = vmatpush1.bf16.msra.mxu0 0
    %2025 = vmatprep.subr.bf16.mxu0 0
    %2026 = vmatpush1.bf16.msra.mxu0 0
    %2027 = vmatprep.subr.bf16.mxu0 0
    %2028 = vmatpush1.bf16.msra.mxu0 0
    %2029 = vmatprep.subr.bf16.mxu0 0
    %2030 = vmatpush1.bf16.msra.mxu0 0
    %2031 = vmatprep.subr.bf16.mxu0 0
    %2032 = vmatpush1.bf16.msra.mxu0 0
    %2033 = vmatprep.subr.bf16.mxu0 0
    %2034 = vmatpush1.bf16.msra.mxu0 0
    %2035 = vmatprep.subr.bf16.mxu0 0
    %2036 = vmatpush1.bf16.msra.mxu0 0
    %2037 = vmatprep.subr.bf16.mxu0 0
    %2038 = vmatpush1.bf16.msra.mxu0 0
    %2039 = vmatprep.subr.bf16.mxu0 0
    %2040 = vmatpush1.bf16.msra.mxu0 0
    %2041 = vmatprep.subr.bf16.mxu0 0
    %2042 = vmatpush1.bf16.msra.mxu0 0
    %2043 = vmatprep.subr.bf16.mxu0 0
    %2044 = vmatpush1.bf16.msra.mxu0 0
    %2045 = vmatprep.subr.bf16.mxu0 0
    %2046 = vmatpush1.bf16.msra.mxu0 0
    %2047 = vmatprep.subr.bf16.mxu0 0
    %2048 = vmatpush1.bf16.msra.mxu0 0
    %2049 = vmatprep.subr.bf16.mxu0 0
    %2050 = vmatpush1.bf16.msra.mxu0 0
    %2051 = vmatprep.mubr.bf16.mxu0 0
    %2052 = vmatmul.mubr.bf16.gmra.mrb[0].mxu0 %v1966
    %v2053 = vpop.f32.mrb[0].mxu0
    %v2054 = vadd.f32 0.0, %v2053
    %v2055 = vpop.f32.mrb[0].mxu0
    %v2056 = vadd.f32 0.0, %v2055
    %v2057 = vpop.f32.mrb[0].mxu0
    %v2058 = vadd.f32 0.0, %v2057
    %v2059 = vpop.f32.mrb[0].mxu0
    %v2060 = vadd.f32 0.0, %v2059
    %2061 = vmatprep.mubr.bf16.mxu0 0
    %2062 = vmatmul.mubr.bf16.gmra.mrb[0].mxu0 %v1969
    %v2063 = vpop.f32.mrb[0].mxu0
    %v2064 = vadd.f32 0.0, %v2063
    %v2065 = vpop.f32.mrb[0].mxu0
    %v2066 = vadd.f32 0.0, %v2065
    %v2067 = vpop.f32.mrb[0].mxu0
    %v2068 = vadd.f32 0.0, %v2067
    %v2069 = vpop.f32.mrb[0].mxu0
    %v2070 = vadd.f32 0.0, %v2069
    %2071 = vdwg.mxu0
    %2072 = vmatprep.subr.bf16.mxu0 %v1920
    %2073 = vmatpush1.bf16.msra.mxu0 %v1919
    %2074 = vmatprep.subr.bf16.mxu0 %v1981
    %2075 = vmatpush1.bf16.msra.mxu0 %v1978
    %2076 = vmatprep.subr.bf16.mxu0 0
    %2077 = vmatpush1.bf16.msra.mxu0 0
    %2078 = vmatprep.subr.bf16.mxu0 0
    %2079 = vmatpush1.bf16.msra.mxu0 0
    %2080 = vmatprep.subr.bf16.mxu0 0
    %2081 = vmatpush1.bf16.msra.mxu0 0
    %2082 = vmatprep.subr.bf16.mxu0 0
    %2083 = vmatpush1.bf16.msra.mxu0 0
    %2084 = vmatprep.subr.bf16.mxu0 0
    %2085 = vmatpush1.bf16.msra.mxu0 0
    %2086 = vmatprep.subr.bf16.mxu0 0
    %2087 = vmatpush1.bf16.msra.mxu0 0
    %2088 = vmatprep.subr.bf16.mxu0 0
    %2089 = vmatpush1.bf16.msra.mxu0 0
    %2090 = vmatprep.subr.bf16.mxu0 0
    %2091 = vmatpush1.bf16.msra.mxu0 0
    %2092 = vmatprep.subr.bf16.mxu0 0
    %2093 = vmatpush1.bf16.msra.mxu0 0
    %2094 = vmatprep.subr.bf16.mxu0 0
    %2095 = vmatpush1.bf16.msra.mxu0 0
    %2096 = vmatprep.subr.bf16.mxu0 0
    %2097 = vmatpush1.bf16.msra.mxu0 0
    %2098 = vmatprep.subr.bf16.mxu0 0
    %2099 = vmatpush1.bf16.msra.mxu0 0
    %2100 = vmatprep.subr.bf16.mxu0 0
    %2101 = vmatpush1.bf16.msra.mxu0 0
    %2102 = vmatprep.subr.bf16.mxu0 0
    %2103 = vmatpush1.bf16.msra.mxu0 0
    %2104 = vmatprep.mubr.bf16.mxu0 0
    %2105 = vmatmul.mubr.bf16.gmra.mrb[0].mxu0 %v1966
    %v2106 = vpop.f32.mrb[0].mxu0
    %v2107 = vadd.f32 0.0, %v2106
    %v2108 = vpop.f32.mrb[0].mxu0
    %v2109 = vadd.f32 0.0, %v2108
    %v2110 = vpop.f32.mrb[0].mxu0
    %v2111 = vadd.f32 0.0, %v2110
    %v2112 = vpop.f32.mrb[0].mxu0
    %v2113 = vadd.f32 0.0, %v2112
    %2114 = vmatprep.mubr.bf16.mxu0 0
    %2115 = vmatmul.mubr.bf16.gmra.mrb[0].mxu0 %v1969
    %v2116 = vpop.f32.mrb[0].mxu0
    %v2117 = vadd.f32 0.0, %v2116
    %v2118 = vpop.f32.mrb[0].mxu0
    %v2119 = vadd.f32 0.0, %v2118
    %v2120 = vpop.f32.mrb[0].mxu0
    %v2121 = vadd.f32 0.0, %v2120
    %v2122 = vpop.f32.mrb[0].mxu0
    %v2123 = vadd.f32 0.0, %v2122
    %2124 = vdwg.mxu0
    %2125 = vmatprep.subr.bf16.mxu0 %v1922
    %2126 = vmatpush1.bf16.msra.mxu0 %v1921
    %2127 = vmatprep.subr.bf16.mxu0 %v1987
    %2128 = vmatpush1.bf16.msra.mxu0 %v1984
    %2129 = vmatprep.subr.bf16.mxu0 0
    %2130 = vmatpush1.bf16.msra.mxu0 0
    %2131 = vmatprep.subr.bf16.mxu0 0
    %2132 = vmatpush1.bf16.msra.mxu0 0
    %2133 = vmatprep.subr.bf16.mxu0 0
    %2134 = vmatpush1.bf16.msra.mxu0 0
    %2135 = vmatprep.subr.bf16.mxu0 0
    %2136 = vmatpush1.bf16.msra.mxu0 0
    %2137 = vmatprep.subr.bf16.mxu0 0
    %2138 = vmatpush1.bf16.msra.mxu0 0
    %2139 = vmatprep.subr.bf16.mxu0 0
    %2140 = vmatpush1.bf16.msra.mxu0 0
    %2141 = vmatprep.subr.bf16.mxu0 0
    %2142 = vmatpush1.bf16.msra.mxu0 0
    %2143 = vmatprep.subr.bf16.mxu0 0
    %2144 = vmatpush1.bf16.msra.mxu0 0
    %2145 = vmatprep.subr.bf16.mxu0 0
    %2146 = vmatpush1.bf16.msra.mxu0 0
    %2147 = vmatprep.subr.bf16.mxu0 0
    %2148 = vmatpush1.bf16.msra.mxu0 0
    %2149 = vmatprep.subr.bf16.mxu0 0
    %2150 = vmatpush1.bf16.msra.mxu0 0
    %2151 = vmatprep.subr.bf16.mxu0 0
    %2152 = vmatpush1.bf16.msra.mxu0 0
    %2153 = vmatprep.subr.bf16.mxu0 0
    %2154 = vmatpush1.bf16.msra.mxu0 0
    %2155 = vmatprep.subr.bf16.mxu0 0
    %2156 = vmatpush1.bf16.msra.mxu0 0
    %2157 = vmatprep.mubr.bf16.mxu0 0
    %2158 = vmatmul.mubr.bf16.gmra.mrb[0].mxu0 %v1966
    %v2159 = vpop.f32.mrb[0].mxu0
    %v2160 = vadd.f32 0.0, %v2159
    %v2161 = vpop.f32.mrb[0].mxu0
    %v2162 = vadd.f32 0.0, %v2161
    %v2163 = vpop.f32.mrb[0].mxu0
    %v2164 = vadd.f32 0.0, %v2163
    %v2165 = vpop.f32.mrb[0].mxu0
    %v2166 = vadd.f32 0.0, %v2165
    %2167 = vmatprep.mubr.bf16.mxu0 0
    %2168 = vmatmul.mubr.bf16.gmra.mrb[0].mxu0 %v1969
    %v2169 = vpop.f32.mrb[0].mxu0
    %v2170 = vadd.f32 0.0, %v2169
    %v2171 = vpop.f32.mrb[0].mxu0
    %v2172 = vadd.f32 0.0, %v2171
    %v2173 = vpop.f32.mrb[0].mxu0
    %v2174 = vadd.f32 0.0, %v2173
    %v2175 = vpop.f32.mrb[0].mxu0
    %v2176 = vadd.f32 0.0, %v2175
    %2177 = vdwg.mxu0
    %2178 = vmatprep.subr.bf16.mxu0 %v1924
    %2179 = vmatpush1.bf16.msra.mxu0 %v1923
    %2180 = vmatprep.subr.bf16.mxu0 %v1993
    %2181 = vmatpush1.bf16.msra.mxu0 %v1990
    %2182 = vmatprep.subr.bf16.mxu0 0
    %2183 = vmatpush1.bf16.msra.mxu0 0
    %2184 = vmatprep.subr.bf16.mxu0 0
    %2185 = vmatpush1.bf16.msra.mxu0 0
    %2186 = vmatprep.subr.bf16.mxu0 0
    %2187 = vmatpush1.bf16.msra.mxu0 0
    %2188 = vmatprep.subr.bf16.mxu0 0
    %2189 = vmatpush1.bf16.msra.mxu0 0
    %2190 = vmatprep.subr.bf16.mxu0 0
    %2191 = vmatpush1.bf16.msra.mxu0 0
    %2192 = vmatprep.subr.bf16.mxu0 0
    %2193 = vmatpush1.bf16.msra.mxu0 0
    %2194 = vmatprep.subr.bf16.mxu0 0
    %2195 = vmatpush1.bf16.msra.mxu0 0
    %2196 = vmatprep.subr.bf16.mxu0 0
    %2197 = vmatpush1.bf16.msra.mxu0 0
    %2198 = vmatprep.subr.bf16.mxu0 0
    %2199 = vmatpush1.bf16.msra.mxu0 0
    %2200 = vmatprep.subr.bf16.mxu0 0
    %2201 = vmatpush1.bf16.msra.mxu0 0
    %2202 = vmatprep.subr.bf16.mxu0 0
    %2203 = vmatpush1.bf16.msra.mxu0 0
    %2204 = vmatprep.subr.bf16.mxu0 0
    %2205 = vmatpush1.bf16.msra.mxu0 0
    %2206 = vmatprep.subr.bf16.mxu0 0
    %2207 = vmatpush1.bf16.msra.mxu0 0
    %2208 = vmatprep.subr.bf16.mxu0 0
    %2209 = vmatpush1.bf16.msra.mxu0 0
    %2210 = vmatprep.mubr.bf16.mxu0 0
    %2211 = vmatmul.mubr.bf16.gmra.mrb[0].mxu0 %v1966
    %v2212 = vpop.f32.mrb[0].mxu0
    %v2213 = vadd.f32 0.0, %v2212
    %v2214 = vpop.f32.mrb[0].mxu0
    %v2215 = vadd.f32 0.0, %v2214
    %v2216 = vpop.f32.mrb[0].mxu0
    %v2217 = vadd.f32 0.0, %v2216
    %v2218 = vpop.f32.mrb[0].mxu0
    %v2219 = vadd.f32 0.0, %v2218
    %2220 = vmatprep.mubr.bf16.mxu0 0
    %2221 = vmatmul.mubr.bf16.gmra.mrb[0].mxu0 %v1969
    %v2222 = vpop.f32.mrb[0].mxu0
    %v2223 = vadd.f32 0.0, %v2222
    %v2224 = vpop.f32.mrb[0].mxu0
    %v2225 = vadd.f32 0.0, %v2224
    %v2226 = vpop.f32.mrb[0].mxu0
    %v2227 = vadd.f32 0.0, %v2226
    %v2228 = vpop.f32.mrb[0].mxu0
    %v2229 = vadd.f32 0.0, %v2228
    %2230 = vdwg.mxu0
    %2231 = vmatprep.subr.bf16.mxu0 %v1926
    %2232 = vmatpush1.bf16.msra.mxu0 %v1925
    %2233 = vmatprep.subr.bf16.mxu0 %v1999
    %2234 = vmatpush1.bf16.msra.mxu0 %v1996
    %2235 = vmatprep.subr.bf16.mxu0 0
    %2236 = vmatpush1.bf16.msra.mxu0 0
    %2237 = vmatprep.subr.bf16.mxu0 0
    %2238 = vmatpush1.bf16.msra.mxu0 0
    %2239 = vmatprep.subr.bf16.mxu0 0
    %2240 = vmatpush1.bf16.msra.mxu0 0
    %2241 = vmatprep.subr.bf16.mxu0 0
    %2242 = vmatpush1.bf16.msra.mxu0 0
    %2243 = vmatprep.subr.bf16.mxu0 0
    %2244 = vmatpush1.bf16.msra.mxu0 0
    %2245 = vmatprep.subr.bf16.mxu0 0
    %2246 = vmatpush1.bf16.msra.mxu0 0
    %2247 = vmatprep.subr.bf16.mxu0 0
    %2248 = vmatpush1.bf16.msra.mxu0 0
    %2249 = vmatprep.subr.bf16.mxu0 0
    %2250 = vmatpush1.bf16.msra.mxu0 0
    %2251 = vmatprep.subr.bf16.mxu0 0
    %2252 = vmatpush1.bf16.msra.mxu0 0
    %2253 = vmatprep.subr.bf16.mxu0 0
    %2254 = vmatpush1.bf16.msra.mxu0 0
    %2255 = vmatprep.subr.bf16.mxu0 0
    %2256 = vmatpush1.bf16.msra.mxu0 0
    %2257 = vmatprep.subr.bf16.mxu0 0
    %2258 = vmatpush1.bf16.msra.mxu0 0
    %2259 = vmatprep.subr.bf16.mxu0 0
    %2260 = vmatpush1.bf16.msra.mxu0 0
    %2261 = vmatprep.subr.bf16.mxu0 0
    %2262 = vmatpush1.bf16.msra.mxu0 0
    %2263 = vmatprep.mubr.bf16.mxu0 0
    %2264 = vmatmul.mubr.bf16.gmra.mrb[0].mxu0 %v1966
    %v2265 = vpop.f32.mrb[0].mxu0
    %v2266 = vadd.f32 0.0, %v2265
    %v2267 = vpop.f32.mrb[0].mxu0
    %v2268 = vadd.f32 0.0, %v2267
    %v2269 = vpop.f32.mrb[0].mxu0
    %v2270 = vadd.f32 0.0, %v2269
    %v2271 = vpop.f32.mrb[0].mxu0
    %v2272 = vadd.f32 0.0, %v2271
    %2273 = vmatprep.mubr.bf16.mxu0 0
    %2274 = vmatmul.mubr.bf16.gmra.mrb[0].mxu0 %v1969
    %v2275 = vpop.f32.mrb[0].mxu0
    %v2276 = vadd.f32 0.0, %v2275
    %v2277 = vpop.f32.mrb[0].mxu0
    %v2278 = vadd.f32 0.0, %v2277
    %v2279 = vpop.f32.mrb[0].mxu0
    %v2280 = vadd.f32 0.0, %v2279
    %v2281 = vpop.f32.mrb[0].mxu0
    %v2282 = vadd.f32 0.0, %v2281
    %2283 = vdwg.mxu0
    %2284 = vmatprep.subr.bf16.mxu0 %v1928
    %2285 = vmatpush1.bf16.msra.mxu0 %v1927
    %2286 = vmatprep.subr.bf16.mxu0 %v2005
    %2287 = vmatpush1.bf16.msra.mxu0 %v2002
    %2288 = vmatprep.subr.bf16.mxu0 0
    %2289 = vmatpush1.bf16.msra.mxu0 0
    %2290 = vmatprep.subr.bf16.mxu0 0
    %2291 = vmatpush1.bf16.msra.mxu0 0
    %2292 = vmatprep.subr.bf16.mxu0 0
    %2293 = vmatpush1.bf16.msra.mxu0 0
    %2294 = vmatprep.subr.bf16.mxu0 0
    %2295 = vmatpush1.bf16.msra.mxu0 0
    %2296 = vmatprep.subr.bf16.mxu0 0
    %2297 = vmatpush1.bf16.msra.mxu0 0
    %2298 = vmatprep.subr.bf16.mxu0 0
    %2299 = vmatpush1.bf16.msra.mxu0 0
    %2300 = vmatprep.subr.bf16.mxu0 0
    %2301 = vmatpush1.bf16.msra.mxu0 0
    %2302 = vmatprep.subr.bf16.mxu0 0
    %2303 = vmatpush1.bf16.msra.mxu0 0
    %2304 = vmatprep.subr.bf16.mxu0 0
    %2305 = vmatpush1.bf16.msra.mxu0 0
    %2306 = vmatprep.subr.bf16.mxu0 0
    %2307 = vmatpush1.bf16.msra.mxu0 0
    %2308 = vmatprep.subr.bf16.mxu0 0
    %2309 = vmatpush1.bf16.msra.mxu0 0
    %2310 = vmatprep.subr.bf16.mxu0 0
    %2311 = vmatpush1.bf16.msra.mxu0 0
    %2312 = vmatprep.subr.bf16.mxu0 0
    %2313 = vmatpush1.bf16.msra.mxu0 0
    %2314 = vmatprep.subr.bf16.mxu0 0
    %2315 = vmatpush1.bf16.msra.mxu0 0
    %2316 = vmatprep.mubr.bf16.mxu0 0
    %2317 = vmatmul.mubr.bf16.gmra.mrb[0].mxu0 %v1966
    %v2318 = vpop.f32.mrb[0].mxu0
    %v2319 = vadd.f32 0.0, %v2318
    %v2320 = vpop.f32.mrb[0].mxu0
    %v2321 = vadd.f32 0.0, %v2320
    %v2322 = vpop.f32.mrb[0].mxu0
    %v2323 = vadd.f32 0.0, %v2322
    %v2324 = vpop.f32.mrb[0].mxu0
    %v2325 = vadd.f32 0.0, %v2324
    %2326 = vmatprep.mubr.bf16.mxu0 0
    %2327 = vmatmul.mubr.bf16.gmra.mrb[0].mxu0 %v1969
    %v2328 = vpop.f32.mrb[0].mxu0
    %v2329 = vadd.f32 0.0, %v2328
    %v2330 = vpop.f32.mrb[0].mxu0
    %v2331 = vadd.f32 0.0, %v2330
    %v2332 = vpop.f32.mrb[0].mxu0
    %v2333 = vadd.f32 0.0, %v2332
    %v2334 = vpop.f32.mrb[0].mxu0
    %v2335 = vadd.f32 0.0, %v2334
    %2336 = vdwg.mxu0
    %2337 = vmatprep.subr.bf16.mxu0 %v1930
    %2338 = vmatpush1.bf16.msra.mxu0 %v1929
    %2339 = vmatprep.subr.bf16.mxu0 %v2011
    %2340 = vmatpush1.bf16.msra.mxu0 %v2008
    %2341 = vmatprep.subr.bf16.mxu0 0
    %2342 = vmatpush1.bf16.msra.mxu0 0
    %2343 = vmatprep.subr.bf16.mxu0 0
    %2344 = vmatpush1.bf16.msra.mxu0 0
    %2345 = vmatprep.subr.bf16.mxu0 0
    %2346 = vmatpush1.bf16.msra.mxu0 0
    %2347 = vmatprep.subr.bf16.mxu0 0
    %2348 = vmatpush1.bf16.msra.mxu0 0
    %2349 = vmatprep.subr.bf16.mxu0 0
    %2350 = vmatpush1.bf16.msra.mxu0 0
    %2351 = vmatprep.subr.bf16.mxu0 0
    %2352 = vmatpush1.bf16.msra.mxu0 0
    %2353 = vmatprep.subr.bf16.mxu0 0
    %2354 = vmatpush1.bf16.msra.mxu0 0
    %2355 = vmatprep.subr.bf16.mxu0 0
    %2356 = vmatpush1.bf16.msra.mxu0 0
    %2357 = vmatprep.subr.bf16.mxu0 0
    %2358 = vmatpush1.bf16.msra.mxu0 0
    %2359 = vmatprep.subr.bf16.mxu0 0
    %2360 = vmatpush1.bf16.msra.mxu0 0
    %2361 = vmatprep.subr.bf16.mxu0 0
    %2362 = vmatpush1.bf16.msra.mxu0 0
    %2363 = vmatprep.subr.bf16.mxu0 0
    %2364 = vmatpush1.bf16.msra.mxu0 0
    %2365 = vmatprep.subr.bf16.mxu0 0
    %2366 = vmatpush1.bf16.msra.mxu0 0
    %2367 = vmatprep.subr.bf16.mxu0 0
    %2368 = vmatpush1.bf16.msra.mxu0 0
    %2369 = vmatprep.mubr.bf16.mxu0 0
    %2370 = vmatmul.mubr.bf16.gmra.mrb[0].mxu0 %v1966
    %v2371 = vpop.f32.mrb[0].mxu0
    %v2372 = vadd.f32 0.0, %v2371
    %v2373 = vpop.f32.mrb[0].mxu0
    %v2374 = vadd.f32 0.0, %v2373
    %v2375 = vpop.f32.mrb[0].mxu0
    %v2376 = vadd.f32 0.0, %v2375
    %v2377 = vpop.f32.mrb[0].mxu0
    %v2378 = vadd.f32 0.0, %v2377
    %2379 = vmatprep.mubr.bf16.mxu0 0
    %2380 = vmatmul.mubr.bf16.gmra.mrb[0].mxu0 %v1969
    %v2381 = vpop.f32.mrb[0].mxu0
    %v2382 = vadd.f32 0.0, %v2381
    %v2383 = vpop.f32.mrb[0].mxu0
    %v2384 = vadd.f32 0.0, %v2383
    %v2385 = vpop.f32.mrb[0].mxu0
    %v2386 = vadd.f32 0.0, %v2385
    %v2387 = vpop.f32.mrb[0].mxu0
    %v2388 = vadd.f32 0.0, %v2387
    %2389 = vdwg.mxu0
    %2390 = vmatprep.subr.bf16.mxu0 %v1932
    %2391 = vmatpush1.bf16.msra.mxu0 %v1931
    %2392 = vmatprep.subr.bf16.mxu0 %v2017
    %2393 = vmatpush1.bf16.msra.mxu0 %v2014
    %2394 = vmatprep.subr.bf16.mxu0 0
    %2395 = vmatpush1.bf16.msra.mxu0 0
    %2396 = vmatprep.subr.bf16.mxu0 0
    %2397 = vmatpush1.bf16.msra.mxu0 0
    %2398 = vmatprep.subr.bf16.mxu0 0
    %2399 = vmatpush1.bf16.msra.mxu0 0
    %2400 = vmatprep.subr.bf16.mxu0 0
    %2401 = vmatpush1.bf16.msra.mxu0 0
    %2402 = vmatprep.subr.bf16.mxu0 0
    %2403 = vmatpush1.bf16.msra.mxu0 0
    %2404 = vmatprep.subr.bf16.mxu0 0
    %2405 = vmatpush1.bf16.msra.mxu0 0
    %2406 = vmatprep.subr.bf16.mxu0 0
    %2407 = vmatpush1.bf16.msra.mxu0 0
    %2408 = vmatprep.subr.bf16.mxu0 0
    %2409 = vmatpush1.bf16.msra.mxu0 0
    %2410 = vmatprep.subr.bf16.mxu0 0
    %2411 = vmatpush1.bf16.msra.mxu0 0
    %2412 = vmatprep.subr.bf16.mxu0 0
    %2413 = vmatpush1.bf16.msra.mxu0 0
    %2414 = vmatprep.subr.bf16.mxu0 0
    %2415 = vmatpush1.bf16.msra.mxu0 0
    %2416 = vmatprep.subr.bf16.mxu0 0
    %2417 = vmatpush1.bf16.msra.mxu0 0
    %2418 = vmatprep.subr.bf16.mxu0 0
    %2419 = vmatpush1.bf16.msra.mxu0 0
    %2420 = vmatprep.subr.bf16.mxu0 0
    %2421 = vmatpush1.bf16.msra.mxu0 0
    %2422 = vmatprep.mubr.bf16.mxu0 0
    %2423 = vmatmul.mubr.bf16.gmra.mrb[0].mxu0 %v1966
    %v2424 = vpop.f32.mrb[0].mxu0
    %v2425 = vadd.f32 0.0, %v2424
    %v2426 = vpop.f32.mrb[0].mxu0
    %v2427 = vadd.f32 0.0, %v2426
    %v2428 = vpop.f32.mrb[0].mxu0
    %v2429 = vadd.f32 0.0, %v2428
    %v2430 = vpop.f32.mrb[0].mxu0
    %v2431 = vadd.f32 0.0, %v2430
    %2432 = vmatprep.mubr.bf16.mxu0 0
    %2433 = vmatmul.mubr.bf16.gmra.mrb[0].mxu0 %v1969
    %v2434 = vpop.f32.mrb[0].mxu0
    %v2435 = vadd.f32 0.0, %v2434
    %v2436 = vpop.f32.mrb[0].mxu0
    %v2437 = vadd.f32 0.0, %v2436
    %v2438 = vpop.f32.mrb[0].mxu0
    %v2439 = vadd.f32 0.0, %v2438
    %v2440 = vpop.f32.mrb[0].mxu0
    %v2441 = vadd.f32 0.0, %v2440
    %2442 = vdwg.mxu0
    %v2443 = vadd.f32 %v1445, %v2054
    %v2444 = vadd.f32 %v1447, %v2056
    %v2445 = vadd.f32 %v1498, %v2107
    %v2446 = vadd.f32 %v1500, %v2109
    %v2447 = vadd.f32 %v1551, %v2160
    %v2448 = vadd.f32 %v1553, %v2162
    %v2449 = vadd.f32 %v1604, %v2213
    %v2450 = vadd.f32 %v1606, %v2215
    %v2451 = vadd.f32 %v1657, %v2266
    %v2452 = vadd.f32 %v1659, %v2268
    %v2453 = vadd.f32 %v1710, %v2319
    %v2454 = vadd.f32 %v1712, %v2321
    %v2455 = vadd.f32 %v1763, %v2372
    %v2456 = vadd.f32 %v1765, %v2374
    %v2457 = vadd.f32 %v1816, %v2425
    %v2458 = vadd.f32 %v1818, %v2427
    %v2459 = vadd.f32 %v1449, %v2058
    %v2460 = vadd.f32 %v1451, %v2060
    %v2461 = vadd.f32 %v1502, %v2111
    %v2462 = vadd.f32 %v1504, %v2113
    %v2463 = vadd.f32 %v1555, %v2164
    %v2464 = vadd.f32 %v1557, %v2166
    %v2465 = vadd.f32 %v1608, %v2217
    %v2466 = vadd.f32 %v1610, %v2219
    %v2467 = vadd.f32 %v1661, %v2270
    %v2468 = vadd.f32 %v1663, %v2272
    %v2469 = vadd.f32 %v1714, %v2323
    %v2470 = vadd.f32 %v1716, %v2325
    %v2471 = vadd.f32 %v1767, %v2376
    %v2472 = vadd.f32 %v1769, %v2378
    %v2473 = vadd.f32 %v1820, %v2429
    %v2474 = vadd.f32 %v1822, %v2431
    %v2475 = vadd.f32 %v1455, %v2064
    %v2476 = vadd.f32 %v1457, %v2066
    %v2477 = vadd.f32 %v1508, %v2117
    %v2478 = vadd.f32 %v1510, %v2119
    %v2479 = vadd.f32 %v1561, %v2170
    %v2480 = vadd.f32 %v1563, %v2172
    %v2481 = vadd.f32 %v1614, %v2223
    %v2482 = vadd.f32 %v1616, %v2225
    %v2483 = vadd.f32 %v1667, %v2276
    %v2484 = vadd.f32 %v1669, %v2278
    %v2485 = vadd.f32 %v1720, %v2329
    %v2486 = vadd.f32 %v1722, %v2331
    %v2487 = vadd.f32 %v1773, %v2382
    %v2488 = vadd.f32 %v1775, %v2384
    %v2489 = vadd.f32 %v1826, %v2435
    %v2490 = vadd.f32 %v1828, %v2437
    %v2491 = vadd.f32 %v1459, %v2068
    %v2492 = vadd.f32 %v1461, %v2070
    %v2493 = vadd.f32 %v1512, %v2121
    %v2494 = vadd.f32 %v1514, %v2123
    %v2495 = vadd.f32 %v1565, %v2174
    %v2496 = vadd.f32 %v1567, %v2176
    %v2497 = vadd.f32 %v1618, %v2227
    %v2498 = vadd.f32 %v1620, %v2229
    %v2499 = vadd.f32 %v1671, %v2280
    %v2500 = vadd.f32 %v1673, %v2282
    %v2501 = vadd.f32 %v1724, %v2333
    %v2502 = vadd.f32 %v1726, %v2335
    %v2503 = vadd.f32 %v1777, %v2386
    %v2504 = vadd.f32 %v1779, %v2388
    %v2505 = vadd.f32 %v1830, %v2439
    %v2506 = vadd.f32 %v1832, %v2441
    %v2507 = vld [vmem:[%s1 + $0x30] sm:$0xf]
    %v2508 = vld [vmem:[%s1 + $0x34] sm:$0xf]
    %v2509 = vld [vmem:[%s1 + $0x38] sm:$0xf]
    %v2510 = vld [vmem:[%s1 + $0x3c] sm:$0xf]
    %v2515 = vunpack.c.l.b16 %v2507
    %v2516 = vunpack.c.l.b16 %v2508
    %v2517 = vunpack.c.l.b16 %v2509
    %v2518 = vunpack.c.l.b16 %v2510
    %v2519 = vpack.c.b16 %v2516, %v2515
    %v2520 = vpack.c.b16 %v2518, %v2517
    %2521 = vrot.lane.b32.xlu0 %v661, 125
    %v2522 = vpop.permute.xlu0 %2521
    %2523 = vrot.lane.b32.xlu0 %v662, 125
    %v2524 = vpop.permute.xlu0 %2523
    %2525 = vrot.lane.b32.xlu0 %v663, 125
    %v2526 = vpop.permute.xlu0 %2525
    %2527 = vrot.lane.b32.xlu0 %v664, 125
    %v2528 = vpop.permute.xlu0 %2527
    %2529 = vrot.lane.b32.xlu0 %v665, 125
    %v2530 = vpop.permute.xlu0 %2529
    %2531 = vrot.lane.b32.xlu0 %v666, 125
    %v2532 = vpop.permute.xlu0 %2531
    %2533 = vrot.lane.b32.xlu0 %v667, 125
    %v2534 = vpop.permute.xlu0 %2533
    %2535 = vrot.lane.b32.xlu0 %v668, 125
    %v2536 = vpop.permute.xlu0 %2535
    %2537 = vrot.lane.b32.xlu0 %v669, 125
    %v2538 = vpop.permute.xlu0 %2537
    %2539 = vrot.lane.b32.xlu0 %v670, 125
    %v2540 = vpop.permute.xlu0 %2539
    %2541 = vrot.lane.b32.xlu0 %v671, 125
    %v2542 = vpop.permute.xlu0 %2541
    %2543 = vrot.lane.b32.xlu0 %v672, 125
    %v2544 = vpop.permute.xlu0 %2543
    %2545 = vrot.lane.b32.xlu0 %v673, 125
    %v2546 = vpop.permute.xlu0 %2545
    %2547 = vrot.lane.b32.xlu0 %v674, 125
    %v2548 = vpop.permute.xlu0 %2547
    %2549 = vrot.lane.b32.xlu0 %v675, 125
    %v2550 = vpop.permute.xlu0 %2549
    %2551 = vrot.lane.b32.xlu0 %v676, 125
    %v2552 = vpop.permute.xlu0 %2551
    %2553 = vrot.lane.b32.xlu0 %v700, 125
    %v2554 = vpop.permute.xlu0 %2553
    %2555 = vrot.lane.b32.xlu0 %v677, 125
    %v2556 = vpop.permute.xlu0 %2555
    %2557 = vrot.lane.b32.xlu0 %v678, 125
    %v2558 = vpop.permute.xlu0 %2557
    %2559 = vrot.lane.b32.xlu0 %v679, 125
    %v2560 = vpop.permute.xlu0 %2559
    %2561 = vrot.lane.b32.xlu0 %v680, 125
    %v2562 = vpop.permute.xlu0 %2561
    %2563 = vrot.lane.b32.xlu0 %v681, 125
    %v2564 = vpop.permute.xlu0 %2563
    %2565 = vrot.lane.b32.xlu0 %v682, 125
    %v2566 = vpop.permute.xlu0 %2565
    %2567 = vrot.lane.b32.xlu0 %v683, 125
    %v2568 = vpop.permute.xlu0 %2567
    %2569 = vrot.lane.b32.xlu0 %v684, 125
    %v2570 = vpop.permute.xlu0 %2569
    %2571 = vrot.lane.b32.xlu0 %v685, 125
    %v2572 = vpop.permute.xlu0 %2571
    %2573 = vrot.lane.b32.xlu0 %v686, 125
    %v2574 = vpop.permute.xlu0 %2573
    %2575 = vrot.lane.b32.xlu0 %v687, 125
    %v2576 = vpop.permute.xlu0 %2575
    %2577 = vrot.lane.b32.xlu0 %v688, 125
    %v2578 = vpop.permute.xlu0 %2577
    %2579 = vrot.lane.b32.xlu0 %v689, 125
    %v2580 = vpop.permute.xlu0 %2579
    %2581 = vrot.lane.b32.xlu0 %v690, 125
    %v2582 = vpop.permute.xlu0 %2581
    %2583 = vrot.lane.b32.xlu0 %v691, 125
    %v2584 = vpop.permute.xlu0 %2583
    %2585 = vrot.lane.b32.xlu0 %v692, 125
    %v2586 = vpop.permute.xlu0 %2585
    %2587 = vrot.lane.b32.xlu0 %v701, 125
    %v2588 = vpop.permute.xlu0 %2587
    %vm2589 = vcmask 1022976
    %v2590 = vsel %vm2589, %v2522, %v2524
    %v2591 = vsel %vm2589, %v2524, %v2526
    %v2592 = vsel %vm2589, %v2526, %v2528
    %v2593 = vsel %vm2589, %v2528, %v2530
    %v2594 = vsel %vm2589, %v2530, %v2532
    %v2595 = vsel %vm2589, %v2532, %v2534
    %v2596 = vsel %vm2589, %v2534, %v2536
    %v2597 = vsel %vm2589, %v2536, %v2538
    %v2598 = vsel %vm2589, %v2538, %v2540
    %v2599 = vsel %vm2589, %v2540, %v2542
    %v2600 = vsel %vm2589, %v2542, %v2544
    %v2601 = vsel %vm2589, %v2544, %v2546
    %v2602 = vsel %vm2589, %v2546, %v2548
    %v2603 = vsel %vm2589, %v2548, %v2550
    %v2604 = vsel %vm2589, %v2550, %v2552
    %v2605 = vsel %vm2589, %v2552, %v2554
    %v2606 = vsel %vm2589, %v2556, %v2558
    %v2607 = vsel %vm2589, %v2558, %v2560
    %v2608 = vsel %vm2589, %v2560, %v2562
    %v2609 = vsel %vm2589, %v2562, %v2564
    %v2610 = vsel %vm2589, %v2564, %v2566
    %v2611 = vsel %vm2589, %v2566, %v2568
    %v2612 = vsel %vm2589, %v2568, %v2570
    %v2613 = vsel %vm2589, %v2570, %v2572
    %v2614 = vsel %vm2589, %v2572, %v2574
    %v2615 = vsel %vm2589, %v2574, %v2576
    %v2616 = vsel %vm2589, %v2576, %v2578
    %v2617 = vsel %vm2589, %v2578, %v2580
    %v2618 = vsel %vm2589, %v2580, %v2582
    %v2619 = vsel %vm2589, %v2582, %v2584
    %v2620 = vsel %vm2589, %v2584, %v2586
    %v2621 = vsel %vm2589, %v2586, %v2588
    %v2639 = vsel %vm863, %v2519, 0
    %v2642 = vsel %vm863, %v2520, 0
    %v2645 = vand.u32 %v2606, %v873
    %v2648 = vand.u32 %v2607, %v873
    %v2651 = vand.u32 %v2608, %v873
    %v2654 = vand.u32 %v2609, %v873
    %v2657 = vand.u32 %v2610, %v873
    %v2660 = vand.u32 %v2611, %v873
    %v2663 = vand.u32 %v2612, %v873
    %v2666 = vand.u32 %v2613, %v873
    %v2669 = vand.u32 %v2614, %v873
    %v2672 = vand.u32 %v2615, %v873
    %v2675 = vand.u32 %v2616, %v873
    %v2678 = vand.u32 %v2617, %v873
    %v2681 = vand.u32 %v2618, %v873
    %v2684 = vand.u32 %v2619, %v873
    %v2687 = vand.u32 %v2620, %v873
    %v2690 = vand.u32 %v2621, %v873
    %2692 = vmatprep.subr.bf16.mxu0 %v2591
    %2693 = vmatpush1.bf16.msra.mxu0 %v2590
    %2694 = vmatprep.subr.bf16.mxu0 %v2648
    %2695 = vmatpush1.bf16.msra.mxu0 %v2645
    %2696 = vmatprep.subr.bf16.mxu0 0
    %2697 = vmatpush1.bf16.msra.mxu0 0
    %2698 = vmatprep.subr.bf16.mxu0 0
    %2699 = vmatpush1.bf16.msra.mxu0 0
    %2700 = vmatprep.subr.bf16.mxu0 0
    %2701 = vmatpush1.bf16.msra.mxu0 0
    %2702 = vmatprep.subr.bf16.mxu0 0
    %2703 = vmatpush1.bf16.msra.mxu0 0
    %2704 = vmatprep.subr.bf16.mxu0 0
    %2705 = vmatpush1.bf16.msra.mxu0 0
    %2706 = vmatprep.subr.bf16.mxu0 0
    %2707 = vmatpush1.bf16.msra.mxu0 0
    %2708 = vmatprep.subr.bf16.mxu0 0
    %2709 = vmatpush1.bf16.msra.mxu0 0
    %2710 = vmatprep.subr.bf16.mxu0 0
    %2711 = vmatpush1.bf16.msra.mxu0 0
    %2712 = vmatprep.subr.bf16.mxu0 0
    %2713 = vmatpush1.bf16.msra.mxu0 0
    %2714 = vmatprep.subr.bf16.mxu0 0
    %2715 = vmatpush1.bf16.msra.mxu0 0
    %2716 = vmatprep.subr.bf16.mxu0 0
    %2717 = vmatpush1.bf16.msra.mxu0 0
    %2718 = vmatprep.subr.bf16.mxu0 0
    %2719 = vmatpush1.bf16.msra.mxu0 0
    %2720 = vmatprep.subr.bf16.mxu0 0
    %2721 = vmatpush1.bf16.msra.mxu0 0
    %2722 = vmatprep.subr.bf16.mxu0 0
    %2723 = vmatpush1.bf16.msra.mxu0 0
    %2724 = vmatprep.mubr.bf16.mxu0 0
    %2725 = vmatmul.mubr.bf16.gmra.mrb[0].mxu0 %v2639
    %v2726 = vpop.f32.mrb[0].mxu0
    %v2727 = vadd.f32 0.0, %v2726
    %v2728 = vpop.f32.mrb[0].mxu0
    %v2729 = vadd.f32 0.0, %v2728
    %v2730 = vpop.f32.mrb[0].mxu0
    %v2731 = vadd.f32 0.0, %v2730
    %v2732 = vpop.f32.mrb[0].mxu0
    %v2733 = vadd.f32 0.0, %v2732
    %2734 = vmatprep.mubr.bf16.mxu0 0
    %2735 = vmatmul.mubr.bf16.gmra.mrb[0].mxu0 %v2642
    %v2736 = vpop.f32.mrb[0].mxu0
    %v2737 = vadd.f32 0.0, %v2736
    %v2738 = vpop.f32.mrb[0].mxu0
    %v2739 = vadd.f32 0.0, %v2738
    %v2740 = vpop.f32.mrb[0].mxu0
    %v2741 = vadd.f32 0.0, %v2740
    %v2742 = vpop.f32.mrb[0].mxu0
    %v2743 = vadd.f32 0.0, %v2742
    %2744 = vdwg.mxu0
    %2745 = vmatprep.subr.bf16.mxu0 %v2593
    %2746 = vmatpush1.bf16.msra.mxu0 %v2592
    %2747 = vmatprep.subr.bf16.mxu0 %v2654
    %2748 = vmatpush1.bf16.msra.mxu0 %v2651
    %2749 = vmatprep.subr.bf16.mxu0 0
    %2750 = vmatpush1.bf16.msra.mxu0 0
    %2751 = vmatprep.subr.bf16.mxu0 0
    %2752 = vmatpush1.bf16.msra.mxu0 0
    %2753 = vmatprep.subr.bf16.mxu0 0
    %2754 = vmatpush1.bf16.msra.mxu0 0
    %2755 = vmatprep.subr.bf16.mxu0 0
    %2756 = vmatpush1.bf16.msra.mxu0 0
    %2757 = vmatprep.subr.bf16.mxu0 0
    %2758 = vmatpush1.bf16.msra.mxu0 0
    %2759 = vmatprep.subr.bf16.mxu0 0
    %2760 = vmatpush1.bf16.msra.mxu0 0
    %2761 = vmatprep.subr.bf16.mxu0 0
    %2762 = vmatpush1.bf16.msra.mxu0 0
    %2763 = vmatprep.subr.bf16.mxu0 0
    %2764 = vmatpush1.bf16.msra.mxu0 0
    %2765 = vmatprep.subr.bf16.mxu0 0
    %2766 = vmatpush1.bf16.msra.mxu0 0
    %2767 = vmatprep.subr.bf16.mxu0 0
    %2768 = vmatpush1.bf16.msra.mxu0 0
    %2769 = vmatprep.subr.bf16.mxu0 0
    %2770 = vmatpush1.bf16.msra.mxu0 0
    %2771 = vmatprep.subr.bf16.mxu0 0
    %2772 = vmatpush1.bf16.msra.mxu0 0
    %2773 = vmatprep.subr.bf16.mxu0 0
    %2774 = vmatpush1.bf16.msra.mxu0 0
    %2775 = vmatprep.subr.bf16.mxu0 0
    %2776 = vmatpush1.bf16.msra.mxu0 0
    %2777 = vmatprep.mubr.bf16.mxu0 0
    %2778 = vmatmul.mubr.bf16.gmra.mrb[0].mxu0 %v2639
    %v2779 = vpop.f32.mrb[0].mxu0
    %v2780 = vadd.f32 0.0, %v2779
    %v2781 = vpop.f32.mrb[0].mxu0
    %v2782 = vadd.f32 0.0, %v2781
    %v2783 = vpop.f32.mrb[0].mxu0
    %v2784 = vadd.f32 0.0, %v2783
    %v2785 = vpop.f32.mrb[0].mxu0
    %v2786 = vadd.f32 0.0, %v2785
    %2787 = vmatprep.mubr.bf16.mxu0 0
    %2788 = vmatmul.mubr.bf16.gmra.mrb[0].mxu0 %v2642
    %v2789 = vpop.f32.mrb[0].mxu0
    %v2790 = vadd.f32 0.0, %v2789
    %v2791 = vpop.f32.mrb[0].mxu0
    %v2792 = vadd.f32 0.0, %v2791
    %v2793 = vpop.f32.mrb[0].mxu0
    %v2794 = vadd.f32 0.0, %v2793
    %v2795 = vpop.f32.mrb[0].mxu0
    %v2796 = vadd.f32 0.0, %v2795
    %2797 = vdwg.mxu0
    %2798 = vmatprep.subr.bf16.mxu0 %v2595
    %2799 = vmatpush1.bf16.msra.mxu0 %v2594
    %2800 = vmatprep.subr.bf16.mxu0 %v2660
    %2801 = vmatpush1.bf16.msra.mxu0 %v2657
    %2802 = vmatprep.subr.bf16.mxu0 0
    %2803 = vmatpush1.bf16.msra.mxu0 0
    %2804 = vmatprep.subr.bf16.mxu0 0
    %2805 = vmatpush1.bf16.msra.mxu0 0
    %2806 = vmatprep.subr.bf16.mxu0 0
    %2807 = vmatpush1.bf16.msra.mxu0 0
    %2808 = vmatprep.subr.bf16.mxu0 0
    %2809 = vmatpush1.bf16.msra.mxu0 0
    %2810 = vmatprep.subr.bf16.mxu0 0
    %2811 = vmatpush1.bf16.msra.mxu0 0
    %2812 = vmatprep.subr.bf16.mxu0 0
    %2813 = vmatpush1.bf16.msra.mxu0 0
    %2814 = vmatprep.subr.bf16.mxu0 0
    %2815 = vmatpush1.bf16.msra.mxu0 0
    %2816 = vmatprep.subr.bf16.mxu0 0
    %2817 = vmatpush1.bf16.msra.mxu0 0
    %2818 = vmatprep.subr.bf16.mxu0 0
    %2819 = vmatpush1.bf16.msra.mxu0 0
    %2820 = vmatprep.subr.bf16.mxu0 0
    %2821 = vmatpush1.bf16.msra.mxu0 0
    %2822 = vmatprep.subr.bf16.mxu0 0
    %2823 = vmatpush1.bf16.msra.mxu0 0
    %2824 = vmatprep.subr.bf16.mxu0 0
    %2825 = vmatpush1.bf16.msra.mxu0 0
    %2826 = vmatprep.subr.bf16.mxu0 0
    %2827 = vmatpush1.bf16.msra.mxu0 0
    %2828 = vmatprep.subr.bf16.mxu0 0
    %2829 = vmatpush1.bf16.msra.mxu0 0
    %2830 = vmatprep.mubr.bf16.mxu0 0
    %2831 = vmatmul.mubr.bf16.gmra.mrb[0].mxu0 %v2639
    %v2832 = vpop.f32.mrb[0].mxu0
    %v2833 = vadd.f32 0.0, %v2832
    %v2834 = vpop.f32.mrb[0].mxu0
    %v2835 = vadd.f32 0.0, %v2834
    %v2836 = vpop.f32.mrb[0].mxu0
    %v2837 = vadd.f32 0.0, %v2836
    %v2838 = vpop.f32.mrb[0].mxu0
    %v2839 = vadd.f32 0.0, %v2838
    %2840 = vmatprep.mubr.bf16.mxu0 0
    %2841 = vmatmul.mubr.bf16.gmra.mrb[0].mxu0 %v2642
    %v2842 = vpop.f32.mrb[0].mxu0
    %v2843 = vadd.f32 0.0, %v2842
    %v2844 = vpop.f32.mrb[0].mxu0
    %v2845 = vadd.f32 0.0, %v2844
    %v2846 = vpop.f32.mrb[0].mxu0
    %v2847 = vadd.f32 0.0, %v2846
    %v2848 = vpop.f32.mrb[0].mxu0
    %v2849 = vadd.f32 0.0, %v2848
    %2850 = vdwg.mxu0
    %2851 = vmatprep.subr.bf16.mxu0 %v2597
    %2852 = vmatpush1.bf16.msra.mxu0 %v2596
    %2853 = vmatprep.subr.bf16.mxu0 %v2666
    %2854 = vmatpush1.bf16.msra.mxu0 %v2663
    %2855 = vmatprep.subr.bf16.mxu0 0
    %2856 = vmatpush1.bf16.msra.mxu0 0
    %2857 = vmatprep.subr.bf16.mxu0 0
    %2858 = vmatpush1.bf16.msra.mxu0 0
    %2859 = vmatprep.subr.bf16.mxu0 0
    %2860 = vmatpush1.bf16.msra.mxu0 0
    %2861 = vmatprep.subr.bf16.mxu0 0
    %2862 = vmatpush1.bf16.msra.mxu0 0
    %2863 = vmatprep.subr.bf16.mxu0 0
    %2864 = vmatpush1.bf16.msra.mxu0 0
    %2865 = vmatprep.subr.bf16.mxu0 0
    %2866 = vmatpush1.bf16.msra.mxu0 0
    %2867 = vmatprep.subr.bf16.mxu0 0
    %2868 = vmatpush1.bf16.msra.mxu0 0
    %2869 = vmatprep.subr.bf16.mxu0 0
    %2870 = vmatpush1.bf16.msra.mxu0 0
    %2871 = vmatprep.subr.bf16.mxu0 0
    %2872 = vmatpush1.bf16.msra.mxu0 0
    %2873 = vmatprep.subr.bf16.mxu0 0
    %2874 = vmatpush1.bf16.msra.mxu0 0
    %2875 = vmatprep.subr.bf16.mxu0 0
    %2876 = vmatpush1.bf16.msra.mxu0 0
    %2877 = vmatprep.subr.bf16.mxu0 0
    %2878 = vmatpush1.bf16.msra.mxu0 0
    %2879 = vmatprep.subr.bf16.mxu0 0
    %2880 = vmatpush1.bf16.msra.mxu0 0
    %2881 = vmatprep.subr.bf16.mxu0 0
    %2882 = vmatpush1.bf16.msra.mxu0 0
    %2883 = vmatprep.mubr.bf16.mxu0 0
    %2884 = vmatmul.mubr.bf16.gmra.mrb[0].mxu0 %v2639
    %v2885 = vpop.f32.mrb[0].mxu0
    %v2886 = vadd.f32 0.0, %v2885
    %v2887 = vpop.f32.mrb[0].mxu0
    %v2888 = vadd.f32 0.0, %v2887
    %v2889 = vpop.f32.mrb[0].mxu0
    %v2890 = vadd.f32 0.0, %v2889
    %v2891 = vpop.f32.mrb[0].mxu0
    %v2892 = vadd.f32 0.0, %v2891
    %2893 = vmatprep.mubr.bf16.mxu0 0
    %2894 = vmatmul.mubr.bf16.gmra.mrb[0].mxu0 %v2642
    %v2895 = vpop.f32.mrb[0].mxu0
    %v2896 = vadd.f32 0.0, %v2895
    %v2897 = vpop.f32.mrb[0].mxu0
    %v2898 = vadd.f32 0.0, %v2897
    %v2899 = vpop.f32.mrb[0].mxu0
    %v2900 = vadd.f32 0.0, %v2899
    %v2901 = vpop.f32.mrb[0].mxu0
    %v2902 = vadd.f32 0.0, %v2901
    %2903 = vdwg.mxu0
    %2904 = vmatprep.subr.bf16.mxu0 %v2599
    %2905 = vmatpush1.bf16.msra.mxu0 %v2598
    %2906 = vmatprep.subr.bf16.mxu0 %v2672
    %2907 = vmatpush1.bf16.msra.mxu0 %v2669
    %2908 = vmatprep.subr.bf16.mxu0 0
    %2909 = vmatpush1.bf16.msra.mxu0 0
    %2910 = vmatprep.subr.bf16.mxu0 0
    %2911 = vmatpush1.bf16.msra.mxu0 0
    %2912 = vmatprep.subr.bf16.mxu0 0
    %2913 = vmatpush1.bf16.msra.mxu0 0
    %2914 = vmatprep.subr.bf16.mxu0 0
    %2915 = vmatpush1.bf16.msra.mxu0 0
    %2916 = vmatprep.subr.bf16.mxu0 0
    %2917 = vmatpush1.bf16.msra.mxu0 0
    %2918 = vmatprep.subr.bf16.mxu0 0
    %2919 = vmatpush1.bf16.msra.mxu0 0
    %2920 = vmatprep.subr.bf16.mxu0 0
    %2921 = vmatpush1.bf16.msra.mxu0 0
    %2922 = vmatprep.subr.bf16.mxu0 0
    %2923 = vmatpush1.bf16.msra.mxu0 0
    %2924 = vmatprep.subr.bf16.mxu0 0
    %2925 = vmatpush1.bf16.msra.mxu0 0
    %2926 = vmatprep.subr.bf16.mxu0 0
    %2927 = vmatpush1.bf16.msra.mxu0 0
    %2928 = vmatprep.subr.bf16.mxu0 0
    %2929 = vmatpush1.bf16.msra.mxu0 0
    %2930 = vmatprep.subr.bf16.mxu0 0
    %2931 = vmatpush1.bf16.msra.mxu0 0
    %2932 = vmatprep.subr.bf16.mxu0 0
    %2933 = vmatpush1.bf16.msra.mxu0 0
    %2934 = vmatprep.subr.bf16.mxu0 0
    %2935 = vmatpush1.bf16.msra.mxu0 0
    %2936 = vmatprep.mubr.bf16.mxu0 0
    %2937 = vmatmul.mubr.bf16.gmra.mrb[0].mxu0 %v2639
    %v2938 = vpop.f32.mrb[0].mxu0
    %v2939 = vadd.f32 0.0, %v2938
    %v2940 = vpop.f32.mrb[0].mxu0
    %v2941 = vadd.f32 0.0, %v2940
    %v2942 = vpop.f32.mrb[0].mxu0
    %v2943 = vadd.f32 0.0, %v2942
    %v2944 = vpop.f32.mrb[0].mxu0
    %v2945 = vadd.f32 0.0, %v2944
    %2946 = vmatprep.mubr.bf16.mxu0 0
    %2947 = vmatmul.mubr.bf16.gmra.mrb[0].mxu0 %v2642
    %v2948 = vpop.f32.mrb[0].mxu0
    %v2949 = vadd.f32 0.0, %v2948
    %v2950 = vpop.f32.mrb[0].mxu0
    %v2951 = vadd.f32 0.0, %v2950
    %v2952 = vpop.f32.mrb[0].mxu0
    %v2953 = vadd.f32 0.0, %v2952
    %v2954 = vpop.f32.mrb[0].mxu0
    %v2955 = vadd.f32 0.0, %v2954
    %2956 = vdwg.mxu0
    %2957 = vmatprep.subr.bf16.mxu0 %v2601
    %2958 = vmatpush1.bf16.msra.mxu0 %v2600
    %2959 = vmatprep.subr.bf16.mxu0 %v2678
    %2960 = vmatpush1.bf16.msra.mxu0 %v2675
    %2961 = vmatprep.subr.bf16.mxu0 0
    %2962 = vmatpush1.bf16.msra.mxu0 0
    %2963 = vmatprep.subr.bf16.mxu0 0
    %2964 = vmatpush1.bf16.msra.mxu0 0
    %2965 = vmatprep.subr.bf16.mxu0 0
    %2966 = vmatpush1.bf16.msra.mxu0 0
    %2967 = vmatprep.subr.bf16.mxu0 0
    %2968 = vmatpush1.bf16.msra.mxu0 0
    %2969 = vmatprep.subr.bf16.mxu0 0
    %2970 = vmatpush1.bf16.msra.mxu0 0
    %2971 = vmatprep.subr.bf16.mxu0 0
    %2972 = vmatpush1.bf16.msra.mxu0 0
    %2973 = vmatprep.subr.bf16.mxu0 0
    %2974 = vmatpush1.bf16.msra.mxu0 0
    %2975 = vmatprep.subr.bf16.mxu0 0
    %2976 = vmatpush1.bf16.msra.mxu0 0
    %2977 = vmatprep.subr.bf16.mxu0 0
    %2978 = vmatpush1.bf16.msra.mxu0 0
    %2979 = vmatprep.subr.bf16.mxu0 0
    %2980 = vmatpush1.bf16.msra.mxu0 0
    %2981 = vmatprep.subr.bf16.mxu0 0
    %2982 = vmatpush1.bf16.msra.mxu0 0
    %2983 = vmatprep.subr.bf16.mxu0 0
    %2984 = vmatpush1.bf16.msra.mxu0 0
    %2985 = vmatprep.subr.bf16.mxu0 0
    %2986 = vmatpush1.bf16.msra.mxu0 0
    %2987 = vmatprep.subr.bf16.mxu0 0
    %2988 = vmatpush1.bf16.msra.mxu0 0
    %2989 = vmatprep.mubr.bf16.mxu0 0
    %2990 = vmatmul.mubr.bf16.gmra.mrb[0].mxu0 %v2639
    %v2991 = vpop.f32.mrb[0].mxu0
    %v2992 = vadd.f32 0.0, %v2991
    %v2993 = vpop.f32.mrb[0].mxu0
    %v2994 = vadd.f32 0.0, %v2993
    %v2995 = vpop.f32.mrb[0].mxu0
    %v2996 = vadd.f32 0.0, %v2995
    %v2997 = vpop.f32.mrb[0].mxu0
    %v2998 = vadd.f32 0.0, %v2997
    %2999 = vmatprep.mubr.bf16.mxu0 0
    %3000 = vmatmul.mubr.bf16.gmra.mrb[0].mxu0 %v2642
    %v3001 = vpop.f32.mrb[0].mxu0
    %v3002 = vadd.f32 0.0, %v3001
    %v3003 = vpop.f32.mrb[0].mxu0
    %v3004 = vadd.f32 0.0, %v3003
    %v3005 = vpop.f32.mrb[0].mxu0
    %v3006 = vadd.f32 0.0, %v3005
    %v3007 = vpop.f32.mrb[0].mxu0
    %v3008 = vadd.f32 0.0, %v3007
    %3009 = vdwg.mxu0
    %3010 = vmatprep.subr.bf16.mxu0 %v2603
    %3011 = vmatpush1.bf16.msra.mxu0 %v2602
    %3012 = vmatprep.subr.bf16.mxu0 %v2684
    %3013 = vmatpush1.bf16.msra.mxu0 %v2681
    %3014 = vmatprep.subr.bf16.mxu0 0
    %3015 = vmatpush1.bf16.msra.mxu0 0
    %3016 = vmatprep.subr.bf16.mxu0 0
    %3017 = vmatpush1.bf16.msra.mxu0 0
    %3018 = vmatprep.subr.bf16.mxu0 0
    %3019 = vmatpush1.bf16.msra.mxu0 0
    %3020 = vmatprep.subr.bf16.mxu0 0
    %3021 = vmatpush1.bf16.msra.mxu0 0
    %3022 = vmatprep.subr.bf16.mxu0 0
    %3023 = vmatpush1.bf16.msra.mxu0 0
    %3024 = vmatprep.subr.bf16.mxu0 0
    %3025 = vmatpush1.bf16.msra.mxu0 0
    %3026 = vmatprep.subr.bf16.mxu0 0
    %3027 = vmatpush1.bf16.msra.mxu0 0
    %3028 = vmatprep.subr.bf16.mxu0 0
    %3029 = vmatpush1.bf16.msra.mxu0 0
    %3030 = vmatprep.subr.bf16.mxu0 0
    %3031 = vmatpush1.bf16.msra.mxu0 0
    %3032 = vmatprep.subr.bf16.mxu0 0
    %3033 = vmatpush1.bf16.msra.mxu0 0
    %3034 = vmatprep.subr.bf16.mxu0 0
    %3035 = vmatpush1.bf16.msra.mxu0 0
    %3036 = vmatprep.subr.bf16.mxu0 0
    %3037 = vmatpush1.bf16.msra.mxu0 0
    %3038 = vmatprep.subr.bf16.mxu0 0
    %3039 = vmatpush1.bf16.msra.mxu0 0
    %3040 = vmatprep.subr.bf16.mxu0 0
    %3041 = vmatpush1.bf16.msra.mxu0 0
    %3042 = vmatprep.mubr.bf16.mxu0 0
    %3043 = vmatmul.mubr.bf16.gmra.mrb[0].mxu0 %v2639
    %v3044 = vpop.f32.mrb[0].mxu0
    %v3045 = vadd.f32 0.0, %v3044
    %v3046 = vpop.f32.mrb[0].mxu0
    %v3047 = vadd.f32 0.0, %v3046
    %v3048 = vpop.f32.mrb[0].mxu0
    %v3049 = vadd.f32 0.0, %v3048
    %v3050 = vpop.f32.mrb[0].mxu0
    %v3051 = vadd.f32 0.0, %v3050
    %3052 = vmatprep.mubr.bf16.mxu0 0
    %3053 = vmatmul.mubr.bf16.gmra.mrb[0].mxu0 %v2642
    %v3054 = vpop.f32.mrb[0].mxu0
    %v3055 = vadd.f32 0.0, %v3054
    %v3056 = vpop.f32.mrb[0].mxu0
    %v3057 = vadd.f32 0.0, %v3056
    %v3058 = vpop.f32.mrb[0].mxu0
    %v3059 = vadd.f32 0.0, %v3058
    %v3060 = vpop.f32.mrb[0].mxu0
    %v3061 = vadd.f32 0.0, %v3060
    %3062 = vdwg.mxu0
    %3063 = vmatprep.subr.bf16.mxu0 %v2605
    %3064 = vmatpush1.bf16.msra.mxu0 %v2604
    %3065 = vmatprep.subr.bf16.mxu0 %v2690
    %3066 = vmatpush1.bf16.msra.mxu0 %v2687
    %3067 = vmatprep.subr.bf16.mxu0 0
    %3068 = vmatpush1.bf16.msra.mxu0 0
    %3069 = vmatprep.subr.bf16.mxu0 0
    %3070 = vmatpush1.bf16.msra.mxu0 0
    %3071 = vmatprep.subr.bf16.mxu0 0
    %3072 = vmatpush1.bf16.msra.mxu0 0
    %3073 = vmatprep.subr.bf16.mxu0 0
    %3074 = vmatpush1.bf16.msra.mxu0 0
    %3075 = vmatprep.subr.bf16.mxu0 0
    %3076 = vmatpush1.bf16.msra.mxu0 0
    %3077 = vmatprep.subr.bf16.mxu0 0
    %3078 = vmatpush1.bf16.msra.mxu0 0
    %3079 = vmatprep.subr.bf16.mxu0 0
    %3080 = vmatpush1.bf16.msra.mxu0 0
    %3081 = vmatprep.subr.bf16.mxu0 0
    %3082 = vmatpush1.bf16.msra.mxu0 0
    %3083 = vmatprep.subr.bf16.mxu0 0
    %3084 = vmatpush1.bf16.msra.mxu0 0
    %3085 = vmatprep.subr.bf16.mxu0 0
    %3086 = vmatpush1.bf16.msra.mxu0 0
    %3087 = vmatprep.subr.bf16.mxu0 0
    %3088 = vmatpush1.bf16.msra.mxu0 0
    %3089 = vmatprep.subr.bf16.mxu0 0
    %3090 = vmatpush1.bf16.msra.mxu0 0
    %3091 = vmatprep.subr.bf16.mxu0 0
    %3092 = vmatpush1.bf16.msra.mxu0 0
    %3093 = vmatprep.subr.bf16.mxu0 0
    %3094 = vmatpush1.bf16.msra.mxu0 0
    %3095 = vmatprep.mubr.bf16.mxu0 0
    %3096 = vmatmul.mubr.bf16.gmra.mrb[0].mxu0 %v2639
    %v3097 = vpop.f32.mrb[0].mxu0
    %v3098 = vadd.f32 0.0, %v3097
    %v3099 = vpop.f32.mrb[0].mxu0
    %v3100 = vadd.f32 0.0, %v3099
    %v3101 = vpop.f32.mrb[0].mxu0
    %v3102 = vadd.f32 0.0, %v3101
    %v3103 = vpop.f32.mrb[0].mxu0
    %v3104 = vadd.f32 0.0, %v3103
    %3105 = vmatprep.mubr.bf16.mxu0 0
    %3106 = vmatmul.mubr.bf16.gmra.mrb[0].mxu0 %v2642
    %v3107 = vpop.f32.mrb[0].mxu0
    %v3108 = vadd.f32 0.0, %v3107
    %v3109 = vpop.f32.mrb[0].mxu0
    %v3110 = vadd.f32 0.0, %v3109
    %v3111 = vpop.f32.mrb[0].mxu0
    %v3112 = vadd.f32 0.0, %v3111
    %v3113 = vpop.f32.mrb[0].mxu0
    %v3114 = vadd.f32 0.0, %v3113
    %3115 = vdwg.mxu0
    %v3116 = vadd.f32 %v2443, %v2727
    %v3117 = vadd.f32 %v2444, %v2729
    %v3118 = vadd.f32 %v2445, %v2780
    %v3119 = vadd.f32 %v2446, %v2782
    %v3120 = vadd.f32 %v2447, %v2833
    %v3121 = vadd.f32 %v2448, %v2835
    %v3122 = vadd.f32 %v2449, %v2886
    %v3123 = vadd.f32 %v2450, %v2888
    %v3124 = vadd.f32 %v2451, %v2939
    %v3125 = vadd.f32 %v2452, %v2941
    %v3126 = vadd.f32 %v2453, %v2992
    %v3127 = vadd.f32 %v2454, %v2994
    %v3128 = vadd.f32 %v2455, %v3045
    %v3129 = vadd.f32 %v2456, %v3047
    %v3130 = vadd.f32 %v2457, %v3098
    %v3131 = vadd.f32 %v2458, %v3100
    %v3132 = vadd.f32 %v2459, %v2731
    %v3133 = vadd.f32 %v2460, %v2733
    %v3134 = vadd.f32 %v2461, %v2784
    %v3135 = vadd.f32 %v2462, %v2786
    %v3136 = vadd.f32 %v2463, %v2837
    %v3137 = vadd.f32 %v2464, %v2839
    %v3138 = vadd.f32 %v2465, %v2890
    %v3139 = vadd.f32 %v2466, %v2892
    %v3140 = vadd.f32 %v2467, %v2943
    %v3141 = vadd.f32 %v2468, %v2945
    %v3142 = vadd.f32 %v2469, %v2996
    %v3143 = vadd.f32 %v2470, %v2998
    %v3144 = vadd.f32 %v2471, %v3049
    %v3145 = vadd.f32 %v2472, %v3051
    %v3146 = vadd.f32 %v2473, %v3102
    %v3147 = vadd.f32 %v2474, %v3104
    %v3148 = vadd.f32 %v2475, %v2737
    %v3149 = vadd.f32 %v2476, %v2739
    %v3150 = vadd.f32 %v2477, %v2790
    %v3151 = vadd.f32 %v2478, %v2792
    %v3152 = vadd.f32 %v2479, %v2843
    %v3153 = vadd.f32 %v2480, %v2845
    %v3154 = vadd.f32 %v2481, %v2896
    %v3155 = vadd.f32 %v2482, %v2898
    %v3156 = vadd.f32 %v2483, %v2949
    %v3157 = vadd.f32 %v2484, %v2951
    %v3158 = vadd.f32 %v2485, %v3002
    %v3159 = vadd.f32 %v2486, %v3004
    %v3160 = vadd.f32 %v2487, %v3055
    %v3161 = vadd.f32 %v2488, %v3057
    %v3162 = vadd.f32 %v2489, %v3108
    %v3163 = vadd.f32 %v2490, %v3110
    %v3164 = vadd.f32 %v2491, %v2741
    %v3165 = vadd.f32 %v2492, %v2743
    %v3166 = vadd.f32 %v2493, %v2794
    %v3167 = vadd.f32 %v2494, %v2796
    %v3168 = vadd.f32 %v2495, %v2847
    %v3169 = vadd.f32 %v2496, %v2849
    %v3170 = vadd.f32 %v2497, %v2900
    %v3171 = vadd.f32 %v2498, %v2902
    %v3172 = vadd.f32 %v2499, %v2953
    %v3173 = vadd.f32 %v2500, %v2955
    %v3174 = vadd.f32 %v2501, %v3006
    %v3175 = vadd.f32 %v2502, %v3008
    %v3176 = vadd.f32 %v2503, %v3059
    %v3177 = vadd.f32 %v2504, %v3061
    %v3178 = vadd.f32 %v2505, %v3112
    %v3179 = vadd.f32 %v2506, %v3114
    %v3180 = vld [vmem:[%s1 + $0x40] sm:$0xf]
    %v3181 = vld [vmem:[%s1 + $0x44] sm:$0xf]
    %v3182 = vld [vmem:[%s1 + $0x48] sm:$0xf]
    %v3183 = vld [vmem:[%s1 + $0x4c] sm:$0xf]
    %v3188 = vunpack.c.l.b16 %v3180
    %v3189 = vunpack.c.l.b16 %v3181
    %v3190 = vunpack.c.l.b16 %v3182
    %v3191 = vunpack.c.l.b16 %v3183
    %v3192 = vpack.c.b16 %v3189, %v3188
    %v3193 = vpack.c.b16 %v3191, %v3190
    %3194 = vrot.lane.b32.xlu0 %v661, 124
    %v3195 = vpop.permute.xlu0 %3194
    %3196 = vrot.lane.b32.xlu0 %v662, 124
    %v3197 = vpop.permute.xlu0 %3196
    %3198 = vrot.lane.b32.xlu0 %v663, 124
    %v3199 = vpop.permute.xlu0 %3198
    %3200 = vrot.lane.b32.xlu0 %v664, 124
    %v3201 = vpop.permute.xlu0 %3200
    %3202 = vrot.lane.b32.xlu0 %v665, 124
    %v3203 = vpop.permute.xlu0 %3202
    %3204 = vrot.lane.b32.xlu0 %v666, 124
    %v3205 = vpop.permute.xlu0 %3204
    %3206 = vrot.lane.b32.xlu0 %v667, 124
    %v3207 = vpop.permute.xlu0 %3206
    %3208 = vrot.lane.b32.xlu0 %v668, 124
    %v3209 = vpop.permute.xlu0 %3208
    %3210 = vrot.lane.b32.xlu0 %v669, 124
    %v3211 = vpop.permute.xlu0 %3210
    %3212 = vrot.lane.b32.xlu0 %v670, 124
    %v3213 = vpop.permute.xlu0 %3212
    %3214 = vrot.lane.b32.xlu0 %v671, 124
    %v3215 = vpop.permute.xlu0 %3214
    %3216 = vrot.lane.b32.xlu0 %v672, 124
    %v3217 = vpop.permute.xlu0 %3216
    %3218 = vrot.lane.b32.xlu0 %v673, 124
    %v3219 = vpop.permute.xlu0 %3218
    %3220 = vrot.lane.b32.xlu0 %v674, 124
    %v3221 = vpop.permute.xlu0 %3220
    %3222 = vrot.lane.b32.xlu0 %v675, 124
    %v3223 = vpop.permute.xlu0 %3222
    %3224 = vrot.lane.b32.xlu0 %v676, 124
    %v3225 = vpop.permute.xlu0 %3224
    %3226 = vrot.lane.b32.xlu0 %v700, 124
    %v3227 = vpop.permute.xlu0 %3226
    %3228 = vrot.lane.b32.xlu0 %v677, 124
    %v3229 = vpop.permute.xlu0 %3228
    %3230 = vrot.lane.b32.xlu0 %v678, 124
    %v3231 = vpop.permute.xlu0 %3230
    %3232 = vrot.lane.b32.xlu0 %v679, 124
    %v3233 = vpop.permute.xlu0 %3232
    %3234 = vrot.lane.b32.xlu0 %v680, 124
    %v3235 = vpop.permute.xlu0 %3234
    %3236 = vrot.lane.b32.xlu0 %v681, 124
    %v3237 = vpop.permute.xlu0 %3236
    %3238 = vrot.lane.b32.xlu0 %v682, 124
    %v3239 = vpop.permute.xlu0 %3238
    %3240 = vrot.lane.b32.xlu0 %v683, 124
    %v3241 = vpop.permute.xlu0 %3240
    %3242 = vrot.lane.b32.xlu0 %v684, 124
    %v3243 = vpop.permute.xlu0 %3242
    %3244 = vrot.lane.b32.xlu0 %v685, 124
    %v3245 = vpop.permute.xlu0 %3244
    %3246 = vrot.lane.b32.xlu0 %v686, 124
    %v3247 = vpop.permute.xlu0 %3246
    %3248 = vrot.lane.b32.xlu0 %v687, 124
    %v3249 = vpop.permute.xlu0 %3248
    %3250 = vrot.lane.b32.xlu0 %v688, 124
    %v3251 = vpop.permute.xlu0 %3250
    %3252 = vrot.lane.b32.xlu0 %v689, 124
    %v3253 = vpop.permute.xlu0 %3252
    %3254 = vrot.lane.b32.xlu0 %v690, 124
    %v3255 = vpop.permute.xlu0 %3254
    %3256 = vrot.lane.b32.xlu0 %v691, 124
    %v3257 = vpop.permute.xlu0 %3256
    %3258 = vrot.lane.b32.xlu0 %v692, 124
    %v3259 = vpop.permute.xlu0 %3258
    %3260 = vrot.lane.b32.xlu0 %v701, 124
    %v3261 = vpop.permute.xlu0 %3260
    %vm3262 = vcmask 1014784
    %v3263 = vsel %vm3262, %v3195, %v3197
    %v3264 = vsel %vm3262, %v3197, %v3199
    %v3265 = vsel %vm3262, %v3199, %v3201
    %v3266 = vsel %vm3262, %v3201, %v3203
    %v3267 = vsel %vm3262, %v3203, %v3205
    %v3268 = vsel %vm3262, %v3205, %v3207
    %v3269 = vsel %vm3262, %v3207, %v3209
    %v3270 = vsel %vm3262, %v3209, %v3211
    %v3271 = vsel %vm3262, %v3211, %v3213
    %v3272 = vsel %vm3262, %v3213, %v3215
    %v3273 = vsel %vm3262, %v3215, %v3217
    %v3274 = vsel %vm3262, %v3217, %v3219
    %v3275 = vsel %vm3262, %v3219, %v3221
    %v3276 = vsel %vm3262, %v3221, %v3223
    %v3277 = vsel %vm3262, %v3223, %v3225
    %v3278 = vsel %vm3262, %v3225, %v3227
    %v3279 = vsel %vm3262, %v3229, %v3231
    %v3280 = vsel %vm3262, %v3231, %v3233
    %v3281 = vsel %vm3262, %v3233, %v3235
    %v3282 = vsel %vm3262, %v3235, %v3237
    %v3283 = vsel %vm3262, %v3237, %v3239
    %v3284 = vsel %vm3262, %v3239, %v3241
    %v3285 = vsel %vm3262, %v3241, %v3243
    %v3286 = vsel %vm3262, %v3243, %v3245
    %v3287 = vsel %vm3262, %v3245, %v3247
    %v3288 = vsel %vm3262, %v3247, %v3249
    %v3289 = vsel %vm3262, %v3249, %v3251
    %v3290 = vsel %vm3262, %v3251, %v3253
    %v3291 = vsel %vm3262, %v3253, %v3255
    %v3292 = vsel %vm3262, %v3255, %v3257
    %v3293 = vsel %vm3262, %v3257, %v3259
    %v3294 = vsel %vm3262, %v3259, %v3261
    %v3312 = vsel %vm863, %v3192, 0
    %v3315 = vsel %vm863, %v3193, 0
    %v3318 = vand.u32 %v3279, %v873
    %v3321 = vand.u32 %v3280, %v873
    %v3324 = vand.u32 %v3281, %v873
    %v3327 = vand.u32 %v3282, %v873
    %v3330 = vand.u32 %v3283, %v873
    %v3333 = vand.u32 %v3284, %v873
    %v3336 = vand.u32 %v3285, %v873
    %v3339 = vand.u32 %v3286, %v873
    %v3342 = vand.u32 %v3287, %v873
    %v3345 = vand.u32 %v3288, %v873
    %v3348 = vand.u32 %v3289, %v873
    %v3351 = vand.u32 %v3290, %v873
    %v3354 = vand.u32 %v3291, %v873
    %v3357 = vand.u32 %v3292, %v873
    %v3360 = vand.u32 %v3293, %v873
    %v3363 = vand.u32 %v3294, %v873
    %3365 = vmatprep.subr.bf16.mxu0 %v3264
    %3366 = vmatpush1.bf16.msra.mxu0 %v3263
    %3367 = vmatprep.subr.bf16.mxu0 %v3321
    %3368 = vmatpush1.bf16.msra.mxu0 %v3318
    %3369 = vmatprep.subr.bf16.mxu0 0
    %3370 = vmatpush1.bf16.msra.mxu0 0
    %3371 = vmatprep.subr.bf16.mxu0 0
    %3372 = vmatpush1.bf16.msra.mxu0 0
    %3373 = vmatprep.subr.bf16.mxu0 0
    %3374 = vmatpush1.bf16.msra.mxu0 0
    %3375 = vmatprep.subr.bf16.mxu0 0
    %3376 = vmatpush1.bf16.msra.mxu0 0
    %3377 = vmatprep.subr.bf16.mxu0 0
    %3378 = vmatpush1.bf16.msra.mxu0 0
    %3379 = vmatprep.subr.bf16.mxu0 0
    %3380 = vmatpush1.bf16.msra.mxu0 0
    %3381 = vmatprep.subr.bf16.mxu0 0
    %3382 = vmatpush1.bf16.msra.mxu0 0
    %3383 = vmatprep.subr.bf16.mxu0 0
    %3384 = vmatpush1.bf16.msra.mxu0 0
    %3385 = vmatprep.subr.bf16.mxu0 0
    %3386 = vmatpush1.bf16.msra.mxu0 0
    %3387 = vmatprep.subr.bf16.mxu0 0
    %3388 = vmatpush1.bf16.msra.mxu0 0
    %3389 = vmatprep.subr.bf16.mxu0 0
    %3390 = vmatpush1.bf16.msra.mxu0 0
    %3391 = vmatprep.subr.bf16.mxu0 0
    %3392 = vmatpush1.bf16.msra.mxu0 0
    %3393 = vmatprep.subr.bf16.mxu0 0
    %3394 = vmatpush1.bf16.msra.mxu0 0
    %3395 = vmatprep.subr.bf16.mxu0 0
    %3396 = vmatpush1.bf16.msra.mxu0 0
    %3397 = vmatprep.mubr.bf16.mxu0 0
    %3398 = vmatmul.mubr.bf16.gmra.mrb[0].mxu0 %v3312
    %v3399 = vpop.f32.mrb[0].mxu0
    %v3400 = vadd.f32 0.0, %v3399
    %v3401 = vpop.f32.mrb[0].mxu0
    %v3402 = vadd.f32 0.0, %v3401
    %v3403 = vpop.f32.mrb[0].mxu0
    %v3404 = vadd.f32 0.0, %v3403
    %v3405 = vpop.f32.mrb[0].mxu0
    %v3406 = vadd.f32 0.0, %v3405
    %3407 = vmatprep.mubr.bf16.mxu0 0
    %3408 = vmatmul.mubr.bf16.gmra.mrb[0].mxu0 %v3315
    %v3409 = vpop.f32.mrb[0].mxu0
    %v3410 = vadd.f32 0.0, %v3409
    %v3411 = vpop.f32.mrb[0].mxu0
    %v3412 = vadd.f32 0.0, %v3411
    %v3413 = vpop.f32.mrb[0].mxu0
    %v3414 = vadd.f32 0.0, %v3413
    %v3415 = vpop.f32.mrb[0].mxu0
    %v3416 = vadd.f32 0.0, %v3415
    %3417 = vdwg.mxu0
    %3418 = vmatprep.subr.bf16.mxu0 %v3266
    %3419 = vmatpush1.bf16.msra.mxu0 %v3265
    %3420 = vmatprep.subr.bf16.mxu0 %v3327
    %3421 = vmatpush1.bf16.msra.mxu0 %v3324
    %3422 = vmatprep.subr.bf16.mxu0 0
    %3423 = vmatpush1.bf16.msra.mxu0 0
    %3424 = vmatprep.subr.bf16.mxu0 0
    %3425 = vmatpush1.bf16.msra.mxu0 0
    %3426 = vmatprep.subr.bf16.mxu0 0
    %3427 = vmatpush1.bf16.msra.mxu0 0
    %3428 = vmatprep.subr.bf16.mxu0 0
    %3429 = vmatpush1.bf16.msra.mxu0 0
    %3430 = vmatprep.subr.bf16.mxu0 0
    %3431 = vmatpush1.bf16.msra.mxu0 0
    %3432 = vmatprep.subr.bf16.mxu0 0
    %3433 = vmatpush1.bf16.msra.mxu0 0
    %3434 = vmatprep.subr.bf16.mxu0 0
    %3435 = vmatpush1.bf16.msra.mxu0 0
    %3436 = vmatprep.subr.bf16.mxu0 0
    %3437 = vmatpush1.bf16.msra.mxu0 0
    %3438 = vmatprep.subr.bf16.mxu0 0
    %3439 = vmatpush1.bf16.msra.mxu0 0
    %3440 = vmatprep.subr.bf16.mxu0 0
    %3441 = vmatpush1.bf16.msra.mxu0 0
    %3442 = vmatprep.subr.bf16.mxu0 0
    %3443 = vmatpush1.bf16.msra.mxu0 0
    %3444 = vmatprep.subr.bf16.mxu0 0
    %3445 = vmatpush1.bf16.msra.mxu0 0
    %3446 = vmatprep.subr.bf16.mxu0 0
    %3447 = vmatpush1.bf16.msra.mxu0 0
    %3448 = vmatprep.subr.bf16.mxu0 0
    %3449 = vmatpush1.bf16.msra.mxu0 0
    %3450 = vmatprep.mubr.bf16.mxu0 0
    %3451 = vmatmul.mubr.bf16.gmra.mrb[0].mxu0 %v3312
    %v3452 = vpop.f32.mrb[0].mxu0
    %v3453 = vadd.f32 0.0, %v3452
    %v3454 = vpop.f32.mrb[0].mxu0
    %v3455 = vadd.f32 0.0, %v3454
    %v3456 = vpop.f32.mrb[0].mxu0
    %v3457 = vadd.f32 0.0, %v3456
    %v3458 = vpop.f32.mrb[0].mxu0
    %v3459 = vadd.f32 0.0, %v3458
    %3460 = vmatprep.mubr.bf16.mxu0 0
    %3461 = vmatmul.mubr.bf16.gmra.mrb[0].mxu0 %v3315
    %v3462 = vpop.f32.mrb[0].mxu0
    %v3463 = vadd.f32 0.0, %v3462
    %v3464 = vpop.f32.mrb[0].mxu0
    %v3465 = vadd.f32 0.0, %v3464
    %v3466 = vpop.f32.mrb[0].mxu0
    %v3467 = vadd.f32 0.0, %v3466
    %v3468 = vpop.f32.mrb[0].mxu0
    %v3469 = vadd.f32 0.0, %v3468
    %3470 = vdwg.mxu0
    %3471 = vmatprep.subr.bf16.mxu0 %v3268
    %3472 = vmatpush1.bf16.msra.mxu0 %v3267
    %3473 = vmatprep.subr.bf16.mxu0 %v3333
    %3474 = vmatpush1.bf16.msra.mxu0 %v3330
    %3475 = vmatprep.subr.bf16.mxu0 0
    %3476 = vmatpush1.bf16.msra.mxu0 0
    %3477 = vmatprep.subr.bf16.mxu0 0
    %3478 = vmatpush1.bf16.msra.mxu0 0
    %3479 = vmatprep.subr.bf16.mxu0 0
    %3480 = vmatpush1.bf16.msra.mxu0 0
    %3481 = vmatprep.subr.bf16.mxu0 0
    %3482 = vmatpush1.bf16.msra.mxu0 0
    %3483 = vmatprep.subr.bf16.mxu0 0
    %3484 = vmatpush1.bf16.msra.mxu0 0
    %3485 = vmatprep.subr.bf16.mxu0 0
    %3486 = vmatpush1.bf16.msra.mxu0 0
    %3487 = vmatprep.subr.bf16.mxu0 0
    %3488 = vmatpush1.bf16.msra.mxu0 0
    %3489 = vmatprep.subr.bf16.mxu0 0
    %3490 = vmatpush1.bf16.msra.mxu0 0
    %3491 = vmatprep.subr.bf16.mxu0 0
    %3492 = vmatpush1.bf16.msra.mxu0 0
    %3493 = vmatprep.subr.bf16.mxu0 0
    %3494 = vmatpush1.bf16.msra.mxu0 0
    %3495 = vmatprep.subr.bf16.mxu0 0
    %3496 = vmatpush1.bf16.msra.mxu0 0
    %3497 = vmatprep.subr.bf16.mxu0 0
    %3498 = vmatpush1.bf16.msra.mxu0 0
    %3499 = vmatprep.subr.bf16.mxu0 0
    %3500 = vmatpush1.bf16.msra.mxu0 0
    %3501 = vmatprep.subr.bf16.mxu0 0
    %3502 = vmatpush1.bf16.msra.mxu0 0
    %3503 = vmatprep.mubr.bf16.mxu0 0
    %3504 = vmatmul.mubr.bf16.gmra.mrb[0].mxu0 %v3312
    %v3505 = vpop.f32.mrb[0].mxu0
    %v3506 = vadd.f32 0.0, %v3505
    %v3507 = vpop.f32.mrb[0].mxu0
    %v3508 = vadd.f32 0.0, %v3507
    %v3509 = vpop.f32.mrb[0].mxu0
    %v3510 = vadd.f32 0.0, %v3509
    %v3511 = vpop.f32.mrb[0].mxu0
    %v3512 = vadd.f32 0.0, %v3511
    %3513 = vmatprep.mubr.bf16.mxu0 0
    %3514 = vmatmul.mubr.bf16.gmra.mrb[0].mxu0 %v3315
    %v3515 = vpop.f32.mrb[0].mxu0
    %v3516 = vadd.f32 0.0, %v3515
    %v3517 = vpop.f32.mrb[0].mxu0
    %v3518 = vadd.f32 0.0, %v3517
    %v3519 = vpop.f32.mrb[0].mxu0
    %v3520 = vadd.f32 0.0, %v3519
    %v3521 = vpop.f32.mrb[0].mxu0
    %v3522 = vadd.f32 0.0, %v3521
    %3523 = vdwg.mxu0
    %3524 = vmatprep.subr.bf16.mxu0 %v3270
    %3525 = vmatpush1.bf16.msra.mxu0 %v3269
    %3526 = vmatprep.subr.bf16.mxu0 %v3339
    %3527 = vmatpush1.bf16.msra.mxu0 %v3336
    %3528 = vmatprep.subr.bf16.mxu0 0
    %3529 = vmatpush1.bf16.msra.mxu0 0
    %3530 = vmatprep.subr.bf16.mxu0 0
    %3531 = vmatpush1.bf16.msra.mxu0 0
    %3532 = vmatprep.subr.bf16.mxu0 0
    %3533 = vmatpush1.bf16.msra.mxu0 0
    %3534 = vmatprep.subr.bf16.mxu0 0
    %3535 = vmatpush1.bf16.msra.mxu0 0
    %3536 = vmatprep.subr.bf16.mxu0 0
    %3537 = vmatpush1.bf16.msra.mxu0 0
    %3538 = vmatprep.subr.bf16.mxu0 0
    %3539 = vmatpush1.bf16.msra.mxu0 0
    %3540 = vmatprep.subr.bf16.mxu0 0
    %3541 = vmatpush1.bf16.msra.mxu0 0
    %3542 = vmatprep.subr.bf16.mxu0 0
    %3543 = vmatpush1.bf16.msra.mxu0 0
    %3544 = vmatprep.subr.bf16.mxu0 0
    %3545 = vmatpush1.bf16.msra.mxu0 0
    %3546 = vmatprep.subr.bf16.mxu0 0
    %3547 = vmatpush1.bf16.msra.mxu0 0
    %3548 = vmatprep.subr.bf16.mxu0 0
    %3549 = vmatpush1.bf16.msra.mxu0 0
    %3550 = vmatprep.subr.bf16.mxu0 0
    %3551 = vmatpush1.bf16.msra.mxu0 0
    %3552 = vmatprep.subr.bf16.mxu0 0
    %3553 = vmatpush1.bf16.msra.mxu0 0
    %3554 = vmatprep.subr.bf16.mxu0 0
    %3555 = vmatpush1.bf16.msra.mxu0 0
    %3556 = vmatprep.mubr.bf16.mxu0 0
    %3557 = vmatmul.mubr.bf16.gmra.mrb[0].mxu0 %v3312
    %v3558 = vpop.f32.mrb[0].mxu0
    %v3559 = vadd.f32 0.0, %v3558
    %v3560 = vpop.f32.mrb[0].mxu0
    %v3561 = vadd.f32 0.0, %v3560
    %v3562 = vpop.f32.mrb[0].mxu0
    %v3563 = vadd.f32 0.0, %v3562
    %v3564 = vpop.f32.mrb[0].mxu0
    %v3565 = vadd.f32 0.0, %v3564
    %3566 = vmatprep.mubr.bf16.mxu0 0
    %3567 = vmatmul.mubr.bf16.gmra.mrb[0].mxu0 %v3315
    %v3568 = vpop.f32.mrb[0].mxu0
    %v3569 = vadd.f32 0.0, %v3568
    %v3570 = vpop.f32.mrb[0].mxu0
    %v3571 = vadd.f32 0.0, %v3570
    %v3572 = vpop.f32.mrb[0].mxu0
    %v3573 = vadd.f32 0.0, %v3572
    %v3574 = vpop.f32.mrb[0].mxu0
    %v3575 = vadd.f32 0.0, %v3574
    %3576 = vdwg.mxu0
    %3577 = vmatprep.subr.bf16.mxu0 %v3272
    %3578 = vmatpush1.bf16.msra.mxu0 %v3271
    %3579 = vmatprep.subr.bf16.mxu0 %v3345
    %3580 = vmatpush1.bf16.msra.mxu0 %v3342
    %3581 = vmatprep.subr.bf16.mxu0 0
    %3582 = vmatpush1.bf16.msra.mxu0 0
    %3583 = vmatprep.subr.bf16.mxu0 0
    %3584 = vmatpush1.bf16.msra.mxu0 0
    %3585 = vmatprep.subr.bf16.mxu0 0
    %3586 = vmatpush1.bf16.msra.mxu0 0
    %3587 = vmatprep.subr.bf16.mxu0 0
    %3588 = vmatpush1.bf16.msra.mxu0 0
    %3589 = vmatprep.subr.bf16.mxu0 0
    %3590 = vmatpush1.bf16.msra.mxu0 0
    %3591 = vmatprep.subr.bf16.mxu0 0
    %3592 = vmatpush1.bf16.msra.mxu0 0
    %3593 = vmatprep.subr.bf16.mxu0 0
    %3594 = vmatpush1.bf16.msra.mxu0 0
    %3595 = vmatprep.subr.bf16.mxu0 0
    %3596 = vmatpush1.bf16.msra.mxu0 0
    %3597 = vmatprep.subr.bf16.mxu0 0
    %3598 = vmatpush1.bf16.msra.mxu0 0
    %3599 = vmatprep.subr.bf16.mxu0 0
    %3600 = vmatpush1.bf16.msra.mxu0 0
    %3601 = vmatprep.subr.bf16.mxu0 0
    %3602 = vmatpush1.bf16.msra.mxu0 0
    %3603 = vmatprep.subr.bf16.mxu0 0
    %3604 = vmatpush1.bf16.msra.mxu0 0
    %3605 = vmatprep.subr.bf16.mxu0 0
    %3606 = vmatpush1.bf16.msra.mxu0 0
    %3607 = vmatprep.subr.bf16.mxu0 0
    %3608 = vmatpush1.bf16.msra.mxu0 0
    %3609 = vmatprep.mubr.bf16.mxu0 0
    %3610 = vmatmul.mubr.bf16.gmra.mrb[0].mxu0 %v3312
    %v3611 = vpop.f32.mrb[0].mxu0
    %v3612 = vadd.f32 0.0, %v3611
    %v3613 = vpop.f32.mrb[0].mxu0
    %v3614 = vadd.f32 0.0, %v3613
    %v3615 = vpop.f32.mrb[0].mxu0
    %v3616 = vadd.f32 0.0, %v3615
    %v3617 = vpop.f32.mrb[0].mxu0
    %v3618 = vadd.f32 0.0, %v3617
    %3619 = vmatprep.mubr.bf16.mxu0 0
    %3620 = vmatmul.mubr.bf16.gmra.mrb[0].mxu0 %v3315
    %v3621 = vpop.f32.mrb[0].mxu0
    %v3622 = vadd.f32 0.0, %v3621
    %v3623 = vpop.f32.mrb[0].mxu0
    %v3624 = vadd.f32 0.0, %v3623
    %v3625 = vpop.f32.mrb[0].mxu0
    %v3626 = vadd.f32 0.0, %v3625
    %v3627 = vpop.f32.mrb[0].mxu0
    %v3628 = vadd.f32 0.0, %v3627
    %3629 = vdwg.mxu0
    %3630 = vmatprep.subr.bf16.mxu0 %v3274
    %3631 = vmatpush1.bf16.msra.mxu0 %v3273
    %3632 = vmatprep.subr.bf16.mxu0 %v3351
    %3633 = vmatpush1.bf16.msra.mxu0 %v3348
    %3634 = vmatprep.subr.bf16.mxu0 0
    %3635 = vmatpush1.bf16.msra.mxu0 0
    %3636 = vmatprep.subr.bf16.mxu0 0
    %3637 = vmatpush1.bf16.msra.mxu0 0
    %3638 = vmatprep.subr.bf16.mxu0 0
    %3639 = vmatpush1.bf16.msra.mxu0 0
    %3640 = vmatprep.subr.bf16.mxu0 0
    %3641 = vmatpush1.bf16.msra.mxu0 0
    %3642 = vmatprep.subr.bf16.mxu0 0
    %3643 = vmatpush1.bf16.msra.mxu0 0
    %3644 = vmatprep.subr.bf16.mxu0 0
    %3645 = vmatpush1.bf16.msra.mxu0 0
    %3646 = vmatprep.subr.bf16.mxu0 0
    %3647 = vmatpush1.bf16.msra.mxu0 0
    %3648 = vmatprep.subr.bf16.mxu0 0
    %3649 = vmatpush1.bf16.msra.mxu0 0
    %3650 = vmatprep.subr.bf16.mxu0 0
    %3651 = vmatpush1.bf16.msra.mxu0 0
    %3652 = vmatprep.subr.bf16.mxu0 0
    %3653 = vmatpush1.bf16.msra.mxu0 0
    %3654 = vmatprep.subr.bf16.mxu0 0
    %3655 = vmatpush1.bf16.msra.mxu0 0
    %3656 = vmatprep.subr.bf16.mxu0 0
    %3657 = vmatpush1.bf16.msra.mxu0 0
    %3658 = vmatprep.subr.bf16.mxu0 0
    %3659 = vmatpush1.bf16.msra.mxu0 0
    %3660 = vmatprep.subr.bf16.mxu0 0
    %3661 = vmatpush1.bf16.msra.mxu0 0
    %3662 = vmatprep.mubr.bf16.mxu0 0
    %3663 = vmatmul.mubr.bf16.gmra.mrb[0].mxu0 %v3312
    %v3664 = vpop.f32.mrb[0].mxu0
    %v3665 = vadd.f32 0.0, %v3664
    %v3666 = vpop.f32.mrb[0].mxu0
    %v3667 = vadd.f32 0.0, %v3666
    %v3668 = vpop.f32.mrb[0].mxu0
    %v3669 = vadd.f32 0.0, %v3668
    %v3670 = vpop.f32.mrb[0].mxu0
    %v3671 = vadd.f32 0.0, %v3670
    %3672 = vmatprep.mubr.bf16.mxu0 0
    %3673 = vmatmul.mubr.bf16.gmra.mrb[0].mxu0 %v3315
    %v3674 = vpop.f32.mrb[0].mxu0
    %v3675 = vadd.f32 0.0, %v3674
    %v3676 = vpop.f32.mrb[0].mxu0
    %v3677 = vadd.f32 0.0, %v3676
    %v3678 = vpop.f32.mrb[0].mxu0
    %v3679 = vadd.f32 0.0, %v3678
    %v3680 = vpop.f32.mrb[0].mxu0
    %v3681 = vadd.f32 0.0, %v3680
    %3682 = vdwg.mxu0
    %3683 = vmatprep.subr.bf16.mxu0 %v3276
    %3684 = vmatpush1.bf16.msra.mxu0 %v3275
    %3685 = vmatprep.subr.bf16.mxu0 %v3357
    %3686 = vmatpush1.bf16.msra.mxu0 %v3354
    %3687 = vmatprep.subr.bf16.mxu0 0
    %3688 = vmatpush1.bf16.msra.mxu0 0
    %3689 = vmatprep.subr.bf16.mxu0 0
    %3690 = vmatpush1.bf16.msra.mxu0 0
    %3691 = vmatprep.subr.bf16.mxu0 0
    %3692 = vmatpush1.bf16.msra.mxu0 0
    %3693 = vmatprep.subr.bf16.mxu0 0
    %3694 = vmatpush1.bf16.msra.mxu0 0
    %3695 = vmatprep.subr.bf16.mxu0 0
    %3696 = vmatpush1.bf16.msra.mxu0 0
    %3697 = vmatprep.subr.bf16.mxu0 0
    %3698 = vmatpush1.bf16.msra.mxu0 0
    %3699 = vmatprep.subr.bf16.mxu0 0
    %3700 = vmatpush1.bf16.msra.mxu0 0
    %3701 = vmatprep.subr.bf16.mxu0 0
    %3702 = vmatpush1.bf16.msra.mxu0 0
    %3703 = vmatprep.subr.bf16.mxu0 0
    %3704 = vmatpush1.bf16.msra.mxu0 0
    %3705 = vmatprep.subr.bf16.mxu0 0
    %3706 = vmatpush1.bf16.msra.mxu0 0
    %3707 = vmatprep.subr.bf16.mxu0 0
    %3708 = vmatpush1.bf16.msra.mxu0 0
    %3709 = vmatprep.subr.bf16.mxu0 0
    %3710 = vmatpush1.bf16.msra.mxu0 0
    %3711 = vmatprep.subr.bf16.mxu0 0
    %3712 = vmatpush1.bf16.msra.mxu0 0
    %3713 = vmatprep.subr.bf16.mxu0 0
    %3714 = vmatpush1.bf16.msra.mxu0 0
    %3715 = vmatprep.mubr.bf16.mxu0 0
    %3716 = vmatmul.mubr.bf16.gmra.mrb[0].mxu0 %v3312
    %v3717 = vpop.f32.mrb[0].mxu0
    %v3718 = vadd.f32 0.0, %v3717
    %v3719 = vpop.f32.mrb[0].mxu0
    %v3720 = vadd.f32 0.0, %v3719
    %v3721 = vpop.f32.mrb[0].mxu0
    %v3722 = vadd.f32 0.0, %v3721
    %v3723 = vpop.f32.mrb[0].mxu0
    %v3724 = vadd.f32 0.0, %v3723
    %3725 = vmatprep.mubr.bf16.mxu0 0
    %3726 = vmatmul.mubr.bf16.gmra.mrb[0].mxu0 %v3315
    %v3727 = vpop.f32.mrb[0].mxu0
    %v3728 = vadd.f32 0.0, %v3727
    %v3729 = vpop.f32.mrb[0].mxu0
    %v3730 = vadd.f32 0.0, %v3729
    %v3731 = vpop.f32.mrb[0].mxu0
    %v3732 = vadd.f32 0.0, %v3731
    %v3733 = vpop.f32.mrb[0].mxu0
    %v3734 = vadd.f32 0.0, %v3733
    %3735 = vdwg.mxu0
    %3736 = vmatprep.subr.bf16.mxu0 %v3278
    %3737 = vmatpush1.bf16.msra.mxu0 %v3277
    %3738 = vmatprep.subr.bf16.mxu0 %v3363
    %3739 = vmatpush1.bf16.msra.mxu0 %v3360
    %3740 = vmatprep.subr.bf16.mxu0 0
    %3741 = vmatpush1.bf16.msra.mxu0 0
    %3742 = vmatprep.subr.bf16.mxu0 0
    %3743 = vmatpush1.bf16.msra.mxu0 0
    %3744 = vmatprep.subr.bf16.mxu0 0
    %3745 = vmatpush1.bf16.msra.mxu0 0
    %3746 = vmatprep.subr.bf16.mxu0 0
    %3747 = vmatpush1.bf16.msra.mxu0 0
    %3748 = vmatprep.subr.bf16.mxu0 0
    %3749 = vmatpush1.bf16.msra.mxu0 0
    %3750 = vmatprep.subr.bf16.mxu0 0
    %3751 = vmatpush1.bf16.msra.mxu0 0
    %3752 = vmatprep.subr.bf16.mxu0 0
    %3753 = vmatpush1.bf16.msra.mxu0 0
    %3754 = vmatprep.subr.bf16.mxu0 0
    %3755 = vmatpush1.bf16.msra.mxu0 0
    %3756 = vmatprep.subr.bf16.mxu0 0
    %3757 = vmatpush1.bf16.msra.mxu0 0
    %3758 = vmatprep.subr.bf16.mxu0 0
    %3759 = vmatpush1.bf16.msra.mxu0 0
    %3760 = vmatprep.subr.bf16.mxu0 0
    %3761 = vmatpush1.bf16.msra.mxu0 0
    %3762 = vmatprep.subr.bf16.mxu0 0
    %3763 = vmatpush1.bf16.msra.mxu0 0
    %3764 = vmatprep.subr.bf16.mxu0 0
    %3765 = vmatpush1.bf16.msra.mxu0 0
    %3766 = vmatprep.subr.bf16.mxu0 0
    %3767 = vmatpush1.bf16.msra.mxu0 0
    %3768 = vmatprep.mubr.bf16.mxu0 0
    %3769 = vmatmul.mubr.bf16.gmra.mrb[0].mxu0 %v3312
    %v3770 = vpop.f32.mrb[0].mxu0
    %v3771 = vadd.f32 0.0, %v3770
    %v3772 = vpop.f32.mrb[0].mxu0
    %v3773 = vadd.f32 0.0, %v3772
    %v3774 = vpop.f32.mrb[0].mxu0
    %v3775 = vadd.f32 0.0, %v3774
    %v3776 = vpop.f32.mrb[0].mxu0
    %v3777 = vadd.f32 0.0, %v3776
    %3778 = vmatprep.mubr.bf16.mxu0 0
    %3779 = vmatmul.mubr.bf16.gmra.mrb[0].mxu0 %v3315
    %v3780 = vpop.f32.mrb[0].mxu0
    %v3781 = vadd.f32 0.0, %v3780
    %v3782 = vpop.f32.mrb[0].mxu0
    %v3783 = vadd.f32 0.0, %v3782
    %v3784 = vpop.f32.mrb[0].mxu0
    %v3785 = vadd.f32 0.0, %v3784
    %v3786 = vpop.f32.mrb[0].mxu0
    %v3787 = vadd.f32 0.0, %v3786
    %3788 = vdwg.mxu0
    %v3789 = vadd.f32 %v3116, %v3400
    %v3790 = vadd.f32 %v3117, %v3402
    %v3791 = vadd.f32 %v3118, %v3453
    %v3792 = vadd.f32 %v3119, %v3455
    %v3793 = vadd.f32 %v3120, %v3506
    %v3794 = vadd.f32 %v3121, %v3508
    %v3795 = vadd.f32 %v3122, %v3559
    %v3796 = vadd.f32 %v3123, %v3561
    %v3797 = vadd.f32 %v3124, %v3612
    %v3798 = vadd.f32 %v3125, %v3614
    %v3799 = vadd.f32 %v3126, %v3665
    %v3800 = vadd.f32 %v3127, %v3667
    %v3801 = vadd.f32 %v3128, %v3718
    %v3802 = vadd.f32 %v3129, %v3720
    %v3803 = vadd.f32 %v3130, %v3771
    %v3804 = vadd.f32 %v3131, %v3773
    %v3805 = vadd.f32 %v3132, %v3404
    %v3806 = vadd.f32 %v3133, %v3406
    %v3807 = vadd.f32 %v3134, %v3457
    %v3808 = vadd.f32 %v3135, %v3459
    %v3809 = vadd.f32 %v3136, %v3510
    %v3810 = vadd.f32 %v3137, %v3512
    %v3811 = vadd.f32 %v3138, %v3563
    %v3812 = vadd.f32 %v3139, %v3565
    %v3813 = vadd.f32 %v3140, %v3616
    %v3814 = vadd.f32 %v3141, %v3618
    %v3815 = vadd.f32 %v3142, %v3669
    %v3816 = vadd.f32 %v3143, %v3671
    %v3817 = vadd.f32 %v3144, %v3722
    %v3818 = vadd.f32 %v3145, %v3724
    %v3819 = vadd.f32 %v3146, %v3775
    %v3820 = vadd.f32 %v3147, %v3777
    %v3821 = vadd.f32 %v3148, %v3410
    %v3822 = vadd.f32 %v3149, %v3412
    %v3823 = vadd.f32 %v3150, %v3463
    %v3824 = vadd.f32 %v3151, %v3465
    %v3825 = vadd.f32 %v3152, %v3516
    %v3826 = vadd.f32 %v3153, %v3518
    %v3827 = vadd.f32 %v3154, %v3569
    %v3828 = vadd.f32 %v3155, %v3571
    %v3829 = vadd.f32 %v3156, %v3622
    %v3830 = vadd.f32 %v3157, %v3624
    %v3831 = vadd.f32 %v3158, %v3675
    %v3832 = vadd.f32 %v3159, %v3677
    %v3833 = vadd.f32 %v3160, %v3728
    %v3834 = vadd.f32 %v3161, %v3730
    %v3835 = vadd.f32 %v3162, %v3781
    %v3836 = vadd.f32 %v3163, %v3783
    %v3837 = vadd.f32 %v3164, %v3414
    %v3838 = vadd.f32 %v3165, %v3416
    %v3839 = vadd.f32 %v3166, %v3467
    %v3840 = vadd.f32 %v3167, %v3469
    %v3841 = vadd.f32 %v3168, %v3520
    %v3842 = vadd.f32 %v3169, %v3522
    %v3843 = vadd.f32 %v3170, %v3573
    %v3844 = vadd.f32 %v3171, %v3575
    %v3845 = vadd.f32 %v3172, %v3626
    %v3846 = vadd.f32 %v3173, %v3628
    %v3847 = vadd.f32 %v3174, %v3679
    %v3848 = vadd.f32 %v3175, %v3681
    %v3849 = vadd.f32 %v3176, %v3732
    %v3850 = vadd.f32 %v3177, %v3734
    %v3851 = vadd.f32 %v3178, %v3785
    %v3852 = vadd.f32 %v3179, %v3787
    %v3853 = vld [vmem:[%s1 + $0x50] sm:$0xf]
    %v3854 = vld [vmem:[%s1 + $0x54] sm:$0xf]
    %v3855 = vld [vmem:[%s1 + $0x58] sm:$0xf]
    %v3856 = vld [vmem:[%s1 + $0x5c] sm:$0xf]
    %v3861 = vunpack.c.l.b16 %v3853
    %v3862 = vunpack.c.l.b16 %v3854
    %v3863 = vunpack.c.l.b16 %v3855
    %v3864 = vunpack.c.l.b16 %v3856
    %v3865 = vpack.c.b16 %v3862, %v3861
    %v3866 = vpack.c.b16 %v3864, %v3863
    %3867 = vrot.lane.b32.xlu0 %v661, 123
    %v3868 = vpop.permute.xlu0 %3867
    %3869 = vrot.lane.b32.xlu0 %v662, 123
    %v3870 = vpop.permute.xlu0 %3869
    %3871 = vrot.lane.b32.xlu0 %v663, 123
    %v3872 = vpop.permute.xlu0 %3871
    %3873 = vrot.lane.b32.xlu0 %v664, 123
    %v3874 = vpop.permute.xlu0 %3873
    %3875 = vrot.lane.b32.xlu0 %v665, 123
    %v3876 = vpop.permute.xlu0 %3875
    %3877 = vrot.lane.b32.xlu0 %v666, 123
    %v3878 = vpop.permute.xlu0 %3877
    %3879 = vrot.lane.b32.xlu0 %v667, 123
    %v3880 = vpop.permute.xlu0 %3879
    %3881 = vrot.lane.b32.xlu0 %v668, 123
    %v3882 = vpop.permute.xlu0 %3881
    %3883 = vrot.lane.b32.xlu0 %v669, 123
    %v3884 = vpop.permute.xlu0 %3883
    %3885 = vrot.lane.b32.xlu0 %v670, 123
    %v3886 = vpop.permute.xlu0 %3885
    %3887 = vrot.lane.b32.xlu0 %v671, 123
    %v3888 = vpop.permute.xlu0 %3887
    %3889 = vrot.lane.b32.xlu0 %v672, 123
    %v3890 = vpop.permute.xlu0 %3889
    %3891 = vrot.lane.b32.xlu0 %v673, 123
    %v3892 = vpop.permute.xlu0 %3891
    %3893 = vrot.lane.b32.xlu0 %v674, 123
    %v3894 = vpop.permute.xlu0 %3893
    %3895 = vrot.lane.b32.xlu0 %v675, 123
    %v3896 = vpop.permute.xlu0 %3895
    %3897 = vrot.lane.b32.xlu0 %v676, 123
    %v3898 = vpop.permute.xlu0 %3897
    %3899 = vrot.lane.b32.xlu0 %v700, 123
    %v3900 = vpop.permute.xlu0 %3899
    %3901 = vrot.lane.b32.xlu0 %v677, 123
    %v3902 = vpop.permute.xlu0 %3901
    %3903 = vrot.lane.b32.xlu0 %v678, 123
    %v3904 = vpop.permute.xlu0 %3903
    %3905 = vrot.lane.b32.xlu0 %v679, 123
    %v3906 = vpop.permute.xlu0 %3905
    %3907 = vrot.lane.b32.xlu0 %v680, 123
    %v3908 = vpop.permute.xlu0 %3907
    %3909 = vrot.lane.b32.xlu0 %v681, 123
    %v3910 = vpop.permute.xlu0 %3909
    %3911 = vrot.lane.b32.xlu0 %v682, 123
    %v3912 = vpop.permute.xlu0 %3911
    %3913 = vrot.lane.b32.xlu0 %v683, 123
    %v3914 = vpop.permute.xlu0 %3913
    %3915 = vrot.lane.b32.xlu0 %v684, 123
    %v3916 = vpop.permute.xlu0 %3915
    %3917 = vrot.lane.b32.xlu0 %v685, 123
    %v3918 = vpop.permute.xlu0 %3917
    %3919 = vrot.lane.b32.xlu0 %v686, 123
    %v3920 = vpop.permute.xlu0 %3919
    %3921 = vrot.lane.b32.xlu0 %v687, 123
    %v3922 = vpop.permute.xlu0 %3921
    %3923 = vrot.lane.b32.xlu0 %v688, 123
    %v3924 = vpop.permute.xlu0 %3923
    %3925 = vrot.lane.b32.xlu0 %v689, 123
    %v3926 = vpop.permute.xlu0 %3925
    %3927 = vrot.lane.b32.xlu0 %v690, 123
    %v3928 = vpop.permute.xlu0 %3927
    %3929 = vrot.lane.b32.xlu0 %v691, 123
    %v3930 = vpop.permute.xlu0 %3929
    %3931 = vrot.lane.b32.xlu0 %v692, 123
    %v3932 = vpop.permute.xlu0 %3931
    %3933 = vrot.lane.b32.xlu0 %v701, 123
    %v3934 = vpop.permute.xlu0 %3933
    %vm3935 = vcmask 1006592
    %v3936 = vsel %vm3935, %v3868, %v3870
    %v3937 = vsel %vm3935, %v3870, %v3872
    %v3938 = vsel %vm3935, %v3872, %v3874
    %v3939 = vsel %vm3935, %v3874, %v3876
    %v3940 = vsel %vm3935, %v3876, %v3878
    %v3941 = vsel %vm3935, %v3878, %v3880
    %v3942 = vsel %vm3935, %v3880, %v3882
    %v3943 = vsel %vm3935, %v3882, %v3884
    %v3944 = vsel %vm3935, %v3884, %v3886
    %v3945 = vsel %vm3935, %v3886, %v3888
    %v3946 = vsel %vm3935, %v3888, %v3890
    %v3947 = vsel %vm3935, %v3890, %v3892
    %v3948 = vsel %vm3935, %v3892, %v3894
    %v3949 = vsel %vm3935, %v3894, %v3896
    %v3950 = vsel %vm3935, %v3896, %v3898
    %v3951 = vsel %vm3935, %v3898, %v3900
    %v3952 = vsel %vm3935, %v3902, %v3904
    %v3953 = vsel %vm3935, %v3904, %v3906
    %v3954 = vsel %vm3935, %v3906, %v3908
    %v3955 = vsel %vm3935, %v3908, %v3910
    %v3956 = vsel %vm3935, %v3910, %v3912
    %v3957 = vsel %vm3935, %v3912, %v3914
    %v3958 = vsel %vm3935, %v3914, %v3916
    %v3959 = vsel %vm3935, %v3916, %v3918
    %v3960 = vsel %vm3935, %v3918, %v3920
    %v3961 = vsel %vm3935, %v3920, %v3922
    %v3962 = vsel %vm3935, %v3922, %v3924
    %v3963 = vsel %vm3935, %v3924, %v3926
    %v3964 = vsel %vm3935, %v3926, %v3928
    %v3965 = vsel %vm3935, %v3928, %v3930
    %v3966 = vsel %vm3935, %v3930, %v3932
    %v3967 = vsel %vm3935, %v3932, %v3934
    %v3985 = vsel %vm863, %v3865, 0
    %v3988 = vsel %vm863, %v3866, 0
    %v3991 = vand.u32 %v3952, %v873
    %v3994 = vand.u32 %v3953, %v873
    %v3997 = vand.u32 %v3954, %v873
    %v4000 = vand.u32 %v3955, %v873
    %v4003 = vand.u32 %v3956, %v873
    %v4006 = vand.u32 %v3957, %v873
    %v4009 = vand.u32 %v3958, %v873
    %v4012 = vand.u32 %v3959, %v873
    %v4015 = vand.u32 %v3960, %v873
    %v4018 = vand.u32 %v3961, %v873
    %v4021 = vand.u32 %v3962, %v873
    %v4024 = vand.u32 %v3963, %v873
    %v4027 = vand.u32 %v3964, %v873
    %v4030 = vand.u32 %v3965, %v873
    %v4033 = vand.u32 %v3966, %v873
    %v4036 = vand.u32 %v3967, %v873
    %4038 = vmatprep.subr.bf16.mxu0 %v3937
    %4039 = vmatpush1.bf16.msra.mxu0 %v3936
    %4040 = vmatprep.subr.bf16.mxu0 %v3994
    %4041 = vmatpush1.bf16.msra.mxu0 %v3991
    %4042 = vmatprep.subr.bf16.mxu0 0
    %4043 = vmatpush1.bf16.msra.mxu0 0
    %4044 = vmatprep.subr.bf16.mxu0 0
    %4045 = vmatpush1.bf16.msra.mxu0 0
    %4046 = vmatprep.subr.bf16.mxu0 0
    %4047 = vmatpush1.bf16.msra.mxu0 0
    %4048 = vmatprep.subr.bf16.mxu0 0
    %4049 = vmatpush1.bf16.msra.mxu0 0
    %4050 = vmatprep.subr.bf16.mxu0 0
    %4051 = vmatpush1.bf16.msra.mxu0 0
    %4052 = vmatprep.subr.bf16.mxu0 0
    %4053 = vmatpush1.bf16.msra.mxu0 0
    %4054 = vmatprep.subr.bf16.mxu0 0
    %4055 = vmatpush1.bf16.msra.mxu0 0
    %4056 = vmatprep.subr.bf16.mxu0 0
    %4057 = vmatpush1.bf16.msra.mxu0 0
    %4058 = vmatprep.subr.bf16.mxu0 0
    %4059 = vmatpush1.bf16.msra.mxu0 0
    %4060 = vmatprep.subr.bf16.mxu0 0
    %4061 = vmatpush1.bf16.msra.mxu0 0
    %4062 = vmatprep.subr.bf16.mxu0 0
    %4063 = vmatpush1.bf16.msra.mxu0 0
    %4064 = vmatprep.subr.bf16.mxu0 0
    %4065 = vmatpush1.bf16.msra.mxu0 0
    %4066 = vmatprep.subr.bf16.mxu0 0
    %4067 = vmatpush1.bf16.msra.mxu0 0
    %4068 = vmatprep.subr.bf16.mxu0 0
    %4069 = vmatpush1.bf16.msra.mxu0 0
    %4070 = vmatprep.mubr.bf16.mxu0 0
    %4071 = vmatmul.mubr.bf16.gmra.mrb[0].mxu0 %v3985
    %v4072 = vpop.f32.mrb[0].mxu0
    %v4073 = vadd.f32 0.0, %v4072
    %v4074 = vpop.f32.mrb[0].mxu0
    %v4075 = vadd.f32 0.0, %v4074
    %v4076 = vpop.f32.mrb[0].mxu0
    %v4077 = vadd.f32 0.0, %v4076
    %v4078 = vpop.f32.mrb[0].mxu0
    %v4079 = vadd.f32 0.0, %v4078
    %4080 = vmatprep.mubr.bf16.mxu0 0
    %4081 = vmatmul.mubr.bf16.gmra.mrb[0].mxu0 %v3988
    %v4082 = vpop.f32.mrb[0].mxu0
    %v4083 = vadd.f32 0.0, %v4082
    %v4084 = vpop.f32.mrb[0].mxu0
    %v4085 = vadd.f32 0.0, %v4084
    %v4086 = vpop.f32.mrb[0].mxu0
    %v4087 = vadd.f32 0.0, %v4086
    %v4088 = vpop.f32.mrb[0].mxu0
    %v4089 = vadd.f32 0.0, %v4088
    %4090 = vdwg.mxu0
    %4091 = vmatprep.subr.bf16.mxu0 %v3939
    %4092 = vmatpush1.bf16.msra.mxu0 %v3938
    %4093 = vmatprep.subr.bf16.mxu0 %v4000
    %4094 = vmatpush1.bf16.msra.mxu0 %v3997
    %4095 = vmatprep.subr.bf16.mxu0 0
    %4096 = vmatpush1.bf16.msra.mxu0 0
    %4097 = vmatprep.subr.bf16.mxu0 0
    %4098 = vmatpush1.bf16.msra.mxu0 0
    %4099 = vmatprep.subr.bf16.mxu0 0
    %4100 = vmatpush1.bf16.msra.mxu0 0
    %4101 = vmatprep.subr.bf16.mxu0 0
    %4102 = vmatpush1.bf16.msra.mxu0 0
    %4103 = vmatprep.subr.bf16.mxu0 0
    %4104 = vmatpush1.bf16.msra.mxu0 0
    %4105 = vmatprep.subr.bf16.mxu0 0
    %4106 = vmatpush1.bf16.msra.mxu0 0
    %4107 = vmatprep.subr.bf16.mxu0 0
    %4108 = vmatpush1.bf16.msra.mxu0 0
    %4109 = vmatprep.subr.bf16.mxu0 0
    %4110 = vmatpush1.bf16.msra.mxu0 0
    %4111 = vmatprep.subr.bf16.mxu0 0
    %4112 = vmatpush1.bf16.msra.mxu0 0
    %4113 = vmatprep.subr.bf16.mxu0 0
    %4114 = vmatpush1.bf16.msra.mxu0 0
    %4115 = vmatprep.subr.bf16.mxu0 0
    %4116 = vmatpush1.bf16.msra.mxu0 0
    %4117 = vmatprep.subr.bf16.mxu0 0
    %4118 = vmatpush1.bf16.msra.mxu0 0
    %4119 = vmatprep.subr.bf16.mxu0 0
    %4120 = vmatpush1.bf16.msra.mxu0 0
    %4121 = vmatprep.subr.bf16.mxu0 0
    %4122 = vmatpush1.bf16.msra.mxu0 0
    %4123 = vmatprep.mubr.bf16.mxu0 0
    %4124 = vmatmul.mubr.bf16.gmra.mrb[0].mxu0 %v3985
    %v4125 = vpop.f32.mrb[0].mxu0
    %v4126 = vadd.f32 0.0, %v4125
    %v4127 = vpop.f32.mrb[0].mxu0
    %v4128 = vadd.f32 0.0, %v4127
    %v4129 = vpop.f32.mrb[0].mxu0
    %v4130 = vadd.f32 0.0, %v4129
    %v4131 = vpop.f32.mrb[0].mxu0
    %v4132 = vadd.f32 0.0, %v4131
    %4133 = vmatprep.mubr.bf16.mxu0 0
    %4134 = vmatmul.mubr.bf16.gmra.mrb[0].mxu0 %v3988
    %v4135 = vpop.f32.mrb[0].mxu0
    %v4136 = vadd.f32 0.0, %v4135
    %v4137 = vpop.f32.mrb[0].mxu0
    %v4138 = vadd.f32 0.0, %v4137
    %v4139 = vpop.f32.mrb[0].mxu0
    %v4140 = vadd.f32 0.0, %v4139
    %v4141 = vpop.f32.mrb[0].mxu0
    %v4142 = vadd.f32 0.0, %v4141
    %4143 = vdwg.mxu0
    %4144 = vmatprep.subr.bf16.mxu0 %v3941
    %4145 = vmatpush1.bf16.msra.mxu0 %v3940
    %4146 = vmatprep.subr.bf16.mxu0 %v4006
    %4147 = vmatpush1.bf16.msra.mxu0 %v4003
    %4148 = vmatprep.subr.bf16.mxu0 0
    %4149 = vmatpush1.bf16.msra.mxu0 0
    %4150 = vmatprep.subr.bf16.mxu0 0
    %4151 = vmatpush1.bf16.msra.mxu0 0
    %4152 = vmatprep.subr.bf16.mxu0 0
    %4153 = vmatpush1.bf16.msra.mxu0 0
    %4154 = vmatprep.subr.bf16.mxu0 0
    %4155 = vmatpush1.bf16.msra.mxu0 0
    %4156 = vmatprep.subr.bf16.mxu0 0
    %4157 = vmatpush1.bf16.msra.mxu0 0
    %4158 = vmatprep.subr.bf16.mxu0 0
    %4159 = vmatpush1.bf16.msra.mxu0 0
    %4160 = vmatprep.subr.bf16.mxu0 0
    %4161 = vmatpush1.bf16.msra.mxu0 0
    %4162 = vmatprep.subr.bf16.mxu0 0
    %4163 = vmatpush1.bf16.msra.mxu0 0
    %4164 = vmatprep.subr.bf16.mxu0 0
    %4165 = vmatpush1.bf16.msra.mxu0 0
    %4166 = vmatprep.subr.bf16.mxu0 0
    %4167 = vmatpush1.bf16.msra.mxu0 0
    %4168 = vmatprep.subr.bf16.mxu0 0
    %4169 = vmatpush1.bf16.msra.mxu0 0
    %4170 = vmatprep.subr.bf16.mxu0 0
    %4171 = vmatpush1.bf16.msra.mxu0 0
    %4172 = vmatprep.subr.bf16.mxu0 0
    %4173 = vmatpush1.bf16.msra.mxu0 0
    %4174 = vmatprep.subr.bf16.mxu0 0
    %4175 = vmatpush1.bf16.msra.mxu0 0
    %4176 = vmatprep.mubr.bf16.mxu0 0
    %4177 = vmatmul.mubr.bf16.gmra.mrb[0].mxu0 %v3985
    %v4178 = vpop.f32.mrb[0].mxu0
    %v4179 = vadd.f32 0.0, %v4178
    %v4180 = vpop.f32.mrb[0].mxu0
    %v4181 = vadd.f32 0.0, %v4180
    %v4182 = vpop.f32.mrb[0].mxu0
    %v4183 = vadd.f32 0.0, %v4182
    %v4184 = vpop.f32.mrb[0].mxu0
    %v4185 = vadd.f32 0.0, %v4184
    %4186 = vmatprep.mubr.bf16.mxu0 0
    %4187 = vmatmul.mubr.bf16.gmra.mrb[0].mxu0 %v3988
    %v4188 = vpop.f32.mrb[0].mxu0
    %v4189 = vadd.f32 0.0, %v4188
    %v4190 = vpop.f32.mrb[0].mxu0
    %v4191 = vadd.f32 0.0, %v4190
    %v4192 = vpop.f32.mrb[0].mxu0
    %v4193 = vadd.f32 0.0, %v4192
    %v4194 = vpop.f32.mrb[0].mxu0
    %v4195 = vadd.f32 0.0, %v4194
    %4196 = vdwg.mxu0
    %4197 = vmatprep.subr.bf16.mxu0 %v3943
    %4198 = vmatpush1.bf16.msra.mxu0 %v3942
    %4199 = vmatprep.subr.bf16.mxu0 %v4012
    %4200 = vmatpush1.bf16.msra.mxu0 %v4009
    %4201 = vmatprep.subr.bf16.mxu0 0
    %4202 = vmatpush1.bf16.msra.mxu0 0
    %4203 = vmatprep.subr.bf16.mxu0 0
    %4204 = vmatpush1.bf16.msra.mxu0 0
    %4205 = vmatprep.subr.bf16.mxu0 0
    %4206 = vmatpush1.bf16.msra.mxu0 0
    %4207 = vmatprep.subr.bf16.mxu0 0
    %4208 = vmatpush1.bf16.msra.mxu0 0
    %4209 = vmatprep.subr.bf16.mxu0 0
    %4210 = vmatpush1.bf16.msra.mxu0 0
    %4211 = vmatprep.subr.bf16.mxu0 0
    %4212 = vmatpush1.bf16.msra.mxu0 0
    %4213 = vmatprep.subr.bf16.mxu0 0
    %4214 = vmatpush1.bf16.msra.mxu0 0
    %4215 = vmatprep.subr.bf16.mxu0 0
    %4216 = vmatpush1.bf16.msra.mxu0 0
    %4217 = vmatprep.subr.bf16.mxu0 0
    %4218 = vmatpush1.bf16.msra.mxu0 0
    %4219 = vmatprep.subr.bf16.mxu0 0
    %4220 = vmatpush1.bf16.msra.mxu0 0
    %4221 = vmatprep.subr.bf16.mxu0 0
    %4222 = vmatpush1.bf16.msra.mxu0 0
    %4223 = vmatprep.subr.bf16.mxu0 0
    %4224 = vmatpush1.bf16.msra.mxu0 0
    %4225 = vmatprep.subr.bf16.mxu0 0
    %4226 = vmatpush1.bf16.msra.mxu0 0
    %4227 = vmatprep.subr.bf16.mxu0 0
    %4228 = vmatpush1.bf16.msra.mxu0 0
    %4229 = vmatprep.mubr.bf16.mxu0 0
    %4230 = vmatmul.mubr.bf16.gmra.mrb[0].mxu0 %v3985
    %v4231 = vpop.f32.mrb[0].mxu0
    %v4232 = vadd.f32 0.0, %v4231
    %v4233 = vpop.f32.mrb[0].mxu0
    %v4234 = vadd.f32 0.0, %v4233
    %v4235 = vpop.f32.mrb[0].mxu0
    %v4236 = vadd.f32 0.0, %v4235
    %v4237 = vpop.f32.mrb[0].mxu0
    %v4238 = vadd.f32 0.0, %v4237
    %4239 = vmatprep.mubr.bf16.mxu0 0
    %4240 = vmatmul.mubr.bf16.gmra.mrb[0].mxu0 %v3988
    %v4241 = vpop.f32.mrb[0].mxu0
    %v4242 = vadd.f32 0.0, %v4241
    %v4243 = vpop.f32.mrb[0].mxu0
    %v4244 = vadd.f32 0.0, %v4243
    %v4245 = vpop.f32.mrb[0].mxu0
    %v4246 = vadd.f32 0.0, %v4245
    %v4247 = vpop.f32.mrb[0].mxu0
    %v4248 = vadd.f32 0.0, %v4247
    %4249 = vdwg.mxu0
    %4250 = vmatprep.subr.bf16.mxu0 %v3945
    %4251 = vmatpush1.bf16.msra.mxu0 %v3944
    %4252 = vmatprep.subr.bf16.mxu0 %v4018
    %4253 = vmatpush1.bf16.msra.mxu0 %v4015
    %4254 = vmatprep.subr.bf16.mxu0 0
    %4255 = vmatpush1.bf16.msra.mxu0 0
    %4256 = vmatprep.subr.bf16.mxu0 0
    %4257 = vmatpush1.bf16.msra.mxu0 0
    %4258 = vmatprep.subr.bf16.mxu0 0
    %4259 = vmatpush1.bf16.msra.mxu0 0
    %4260 = vmatprep.subr.bf16.mxu0 0
    %4261 = vmatpush1.bf16.msra.mxu0 0
    %4262 = vmatprep.subr.bf16.mxu0 0
    %4263 = vmatpush1.bf16.msra.mxu0 0
    %4264 = vmatprep.subr.bf16.mxu0 0
    %4265 = vmatpush1.bf16.msra.mxu0 0
    %4266 = vmatprep.subr.bf16.mxu0 0
    %4267 = vmatpush1.bf16.msra.mxu0 0
    %4268 = vmatprep.subr.bf16.mxu0 0
    %4269 = vmatpush1.bf16.msra.mxu0 0
    %4270 = vmatprep.subr.bf16.mxu0 0
    %4271 = vmatpush1.bf16.msra.mxu0 0
    %4272 = vmatprep.subr.bf16.mxu0 0
    %4273 = vmatpush1.bf16.msra.mxu0 0
    %4274 = vmatprep.subr.bf16.mxu0 0
    %4275 = vmatpush1.bf16.msra.mxu0 0
    %4276 = vmatprep.subr.bf16.mxu0 0
    %4277 = vmatpush1.bf16.msra.mxu0 0
    %4278 = vmatprep.subr.bf16.mxu0 0
    %4279 = vmatpush1.bf16.msra.mxu0 0
    %4280 = vmatprep.subr.bf16.mxu0 0
    %4281 = vmatpush1.bf16.msra.mxu0 0
    %4282 = vmatprep.mubr.bf16.mxu0 0
    %4283 = vmatmul.mubr.bf16.gmra.mrb[0].mxu0 %v3985
    %v4284 = vpop.f32.mrb[0].mxu0
    %v4285 = vadd.f32 0.0, %v4284
    %v4286 = vpop.f32.mrb[0].mxu0
    %v4287 = vadd.f32 0.0, %v4286
    %v4288 = vpop.f32.mrb[0].mxu0
    %v4289 = vadd.f32 0.0, %v4288
    %v4290 = vpop.f32.mrb[0].mxu0
    %v4291 = vadd.f32 0.0, %v4290
    %4292 = vmatprep.mubr.bf16.mxu0 0
    %4293 = vmatmul.mubr.bf16.gmra.mrb[0].mxu0 %v3988
    %v4294 = vpop.f32.mrb[0].mxu0
    %v4295 = vadd.f32 0.0, %v4294
    %v4296 = vpop.f32.mrb[0].mxu0
    %v4297 = vadd.f32 0.0, %v4296
    %v4298 = vpop.f32.mrb[0].mxu0
    %v4299 = vadd.f32 0.0, %v4298
    %v4300 = vpop.f32.mrb[0].mxu0
    %v4301 = vadd.f32 0.0, %v4300
    %4302 = vdwg.mxu0
    %4303 = vmatprep.subr.bf16.mxu0 %v3947
    %4304 = vmatpush1.bf16.msra.mxu0 %v3946
    %4305 = vmatprep.subr.bf16.mxu0 %v4024
    %4306 = vmatpush1.bf16.msra.mxu0 %v4021
    %4307 = vmatprep.subr.bf16.mxu0 0
    %4308 = vmatpush1.bf16.msra.mxu0 0
    %4309 = vmatprep.subr.bf16.mxu0 0
    %4310 = vmatpush1.bf16.msra.mxu0 0
    %4311 = vmatprep.subr.bf16.mxu0 0
    %4312 = vmatpush1.bf16.msra.mxu0 0
    %4313 = vmatprep.subr.bf16.mxu0 0
    %4314 = vmatpush1.bf16.msra.mxu0 0
    %4315 = vmatprep.subr.bf16.mxu0 0
    %4316 = vmatpush1.bf16.msra.mxu0 0
    %4317 = vmatprep.subr.bf16.mxu0 0
    %4318 = vmatpush1.bf16.msra.mxu0 0
    %4319 = vmatprep.subr.bf16.mxu0 0
    %4320 = vmatpush1.bf16.msra.mxu0 0
    %4321 = vmatprep.subr.bf16.mxu0 0
    %4322 = vmatpush1.bf16.msra.mxu0 0
    %4323 = vmatprep.subr.bf16.mxu0 0
    %4324 = vmatpush1.bf16.msra.mxu0 0
    %4325 = vmatprep.subr.bf16.mxu0 0
    %4326 = vmatpush1.bf16.msra.mxu0 0
    %4327 = vmatprep.subr.bf16.mxu0 0
    %4328 = vmatpush1.bf16.msra.mxu0 0
    %4329 = vmatprep.subr.bf16.mxu0 0
    %4330 = vmatpush1.bf16.msra.mxu0 0
    %4331 = vmatprep.subr.bf16.mxu0 0
    %4332 = vmatpush1.bf16.msra.mxu0 0
    %4333 = vmatprep.subr.bf16.mxu0 0
    %4334 = vmatpush1.bf16.msra.mxu0 0
    %4335 = vmatprep.mubr.bf16.mxu0 0
    %4336 = vmatmul.mubr.bf16.gmra.mrb[0].mxu0 %v3985
    %v4337 = vpop.f32.mrb[0].mxu0
    %v4338 = vadd.f32 0.0, %v4337
    %v4339 = vpop.f32.mrb[0].mxu0
    %v4340 = vadd.f32 0.0, %v4339
    %v4341 = vpop.f32.mrb[0].mxu0
    %v4342 = vadd.f32 0.0, %v4341
    %v4343 = vpop.f32.mrb[0].mxu0
    %v4344 = vadd.f32 0.0, %v4343
    %4345 = vmatprep.mubr.bf16.mxu0 0
    %4346 = vmatmul.mubr.bf16.gmra.mrb[0].mxu0 %v3988
    %v4347 = vpop.f32.mrb[0].mxu0
    %v4348 = vadd.f32 0.0, %v4347
    %v4349 = vpop.f32.mrb[0].mxu0
    %v4350 = vadd.f32 0.0, %v4349
    %v4351 = vpop.f32.mrb[0].mxu0
    %v4352 = vadd.f32 0.0, %v4351
    %v4353 = vpop.f32.mrb[0].mxu0
    %v4354 = vadd.f32 0.0, %v4353
    %4355 = vdwg.mxu0
    %4356 = vmatprep.subr.bf16.mxu0 %v3949
    %4357 = vmatpush1.bf16.msra.mxu0 %v3948
    %4358 = vmatprep.subr.bf16.mxu0 %v4030
    %4359 = vmatpush1.bf16.msra.mxu0 %v4027
    %4360 = vmatprep.subr.bf16.mxu0 0
    %4361 = vmatpush1.bf16.msra.mxu0 0
    %4362 = vmatprep.subr.bf16.mxu0 0
    %4363 = vmatpush1.bf16.msra.mxu0 0
    %4364 = vmatprep.subr.bf16.mxu0 0
    %4365 = vmatpush1.bf16.msra.mxu0 0
    %4366 = vmatprep.subr.bf16.mxu0 0
    %4367 = vmatpush1.bf16.msra.mxu0 0
    %4368 = vmatprep.subr.bf16.mxu0 0
    %4369 = vmatpush1.bf16.msra.mxu0 0
    %4370 = vmatprep.subr.bf16.mxu0 0
    %4371 = vmatpush1.bf16.msra.mxu0 0
    %4372 = vmatprep.subr.bf16.mxu0 0
    %4373 = vmatpush1.bf16.msra.mxu0 0
    %4374 = vmatprep.subr.bf16.mxu0 0
    %4375 = vmatpush1.bf16.msra.mxu0 0
    %4376 = vmatprep.subr.bf16.mxu0 0
    %4377 = vmatpush1.bf16.msra.mxu0 0
    %4378 = vmatprep.subr.bf16.mxu0 0
    %4379 = vmatpush1.bf16.msra.mxu0 0
    %4380 = vmatprep.subr.bf16.mxu0 0
    %4381 = vmatpush1.bf16.msra.mxu0 0
    %4382 = vmatprep.subr.bf16.mxu0 0
    %4383 = vmatpush1.bf16.msra.mxu0 0
    %4384 = vmatprep.subr.bf16.mxu0 0
    %4385 = vmatpush1.bf16.msra.mxu0 0
    %4386 = vmatprep.subr.bf16.mxu0 0
    %4387 = vmatpush1.bf16.msra.mxu0 0
    %4388 = vmatprep.mubr.bf16.mxu0 0
    %4389 = vmatmul.mubr.bf16.gmra.mrb[0].mxu0 %v3985
    %v4390 = vpop.f32.mrb[0].mxu0
    %v4391 = vadd.f32 0.0, %v4390
    %v4392 = vpop.f32.mrb[0].mxu0
    %v4393 = vadd.f32 0.0, %v4392
    %v4394 = vpop.f32.mrb[0].mxu0
    %v4395 = vadd.f32 0.0, %v4394
    %v4396 = vpop.f32.mrb[0].mxu0
    %v4397 = vadd.f32 0.0, %v4396
    %4398 = vmatprep.mubr.bf16.mxu0 0
    %4399 = vmatmul.mubr.bf16.gmra.mrb[0].mxu0 %v3988
    %v4400 = vpop.f32.mrb[0].mxu0
    %v4401 = vadd.f32 0.0, %v4400
    %v4402 = vpop.f32.mrb[0].mxu0
    %v4403 = vadd.f32 0.0, %v4402
    %v4404 = vpop.f32.mrb[0].mxu0
    %v4405 = vadd.f32 0.0, %v4404
    %v4406 = vpop.f32.mrb[0].mxu0
    %v4407 = vadd.f32 0.0, %v4406
    %4408 = vdwg.mxu0
    %4409 = vmatprep.subr.bf16.mxu0 %v3951
    %4410 = vmatpush1.bf16.msra.mxu0 %v3950
    %4411 = vmatprep.subr.bf16.mxu0 %v4036
    %4412 = vmatpush1.bf16.msra.mxu0 %v4033
    %4413 = vmatprep.subr.bf16.mxu0 0
    %4414 = vmatpush1.bf16.msra.mxu0 0
    %4415 = vmatprep.subr.bf16.mxu0 0
    %4416 = vmatpush1.bf16.msra.mxu0 0
    %4417 = vmatprep.subr.bf16.mxu0 0
    %4418 = vmatpush1.bf16.msra.mxu0 0
    %4419 = vmatprep.subr.bf16.mxu0 0
    %4420 = vmatpush1.bf16.msra.mxu0 0
    %4421 = vmatprep.subr.bf16.mxu0 0
    %4422 = vmatpush1.bf16.msra.mxu0 0
    %4423 = vmatprep.subr.bf16.mxu0 0
    %4424 = vmatpush1.bf16.msra.mxu0 0
    %4425 = vmatprep.subr.bf16.mxu0 0
    %4426 = vmatpush1.bf16.msra.mxu0 0
    %4427 = vmatprep.subr.bf16.mxu0 0
    %4428 = vmatpush1.bf16.msra.mxu0 0
    %4429 = vmatprep.subr.bf16.mxu0 0
    %4430 = vmatpush1.bf16.msra.mxu0 0
    %4431 = vmatprep.subr.bf16.mxu0 0
    %4432 = vmatpush1.bf16.msra.mxu0 0
    %4433 = vmatprep.subr.bf16.mxu0 0
    %4434 = vmatpush1.bf16.msra.mxu0 0
    %4435 = vmatprep.subr.bf16.mxu0 0
    %4436 = vmatpush1.bf16.msra.mxu0 0
    %4437 = vmatprep.subr.bf16.mxu0 0
    %4438 = vmatpush1.bf16.msra.mxu0 0
    %4439 = vmatprep.subr.bf16.mxu0 0
    %4440 = vmatpush1.bf16.msra.mxu0 0
    %4441 = vmatprep.mubr.bf16.mxu0 0
    %4442 = vmatmul.mubr.bf16.gmra.mrb[0].mxu0 %v3985
    %v4443 = vpop.f32.mrb[0].mxu0
    %v4444 = vadd.f32 0.0, %v4443
    %v4445 = vpop.f32.mrb[0].mxu0
    %v4446 = vadd.f32 0.0, %v4445
    %v4447 = vpop.f32.mrb[0].mxu0
    %v4448 = vadd.f32 0.0, %v4447
    %v4449 = vpop.f32.mrb[0].mxu0
    %v4450 = vadd.f32 0.0, %v4449
    %4451 = vmatprep.mubr.bf16.mxu0 0
    %4452 = vmatmul.mubr.bf16.gmra.mrb[0].mxu0 %v3988
    %v4453 = vpop.f32.mrb[0].mxu0
    %v4454 = vadd.f32 0.0, %v4453
    %v4455 = vpop.f32.mrb[0].mxu0
    %v4456 = vadd.f32 0.0, %v4455
    %v4457 = vpop.f32.mrb[0].mxu0
    %v4458 = vadd.f32 0.0, %v4457
    %v4459 = vpop.f32.mrb[0].mxu0
    %v4460 = vadd.f32 0.0, %v4459
    %4461 = vdwg.mxu0
    %v4462 = vadd.f32 %v3789, %v4073
    %v4463 = vadd.f32 %v3790, %v4075
    %v4464 = vadd.f32 %v3791, %v4126
    %v4465 = vadd.f32 %v3792, %v4128
    %v4466 = vadd.f32 %v3793, %v4179
    %v4467 = vadd.f32 %v3794, %v4181
    %v4468 = vadd.f32 %v3795, %v4232
    %v4469 = vadd.f32 %v3796, %v4234
    %v4470 = vadd.f32 %v3797, %v4285
    %v4471 = vadd.f32 %v3798, %v4287
    %v4472 = vadd.f32 %v3799, %v4338
    %v4473 = vadd.f32 %v3800, %v4340
    %v4474 = vadd.f32 %v3801, %v4391
    %v4475 = vadd.f32 %v3802, %v4393
    %v4476 = vadd.f32 %v3803, %v4444
    %v4477 = vadd.f32 %v3804, %v4446
    %v4478 = vadd.f32 %v3805, %v4077
    %v4479 = vadd.f32 %v3806, %v4079
    %v4480 = vadd.f32 %v3807, %v4130
    %v4481 = vadd.f32 %v3808, %v4132
    %v4482 = vadd.f32 %v3809, %v4183
    %v4483 = vadd.f32 %v3810, %v4185
    %v4484 = vadd.f32 %v3811, %v4236
    %v4485 = vadd.f32 %v3812, %v4238
    %v4486 = vadd.f32 %v3813, %v4289
    %v4487 = vadd.f32 %v3814, %v4291
    %v4488 = vadd.f32 %v3815, %v4342
    %v4489 = vadd.f32 %v3816, %v4344
    %v4490 = vadd.f32 %v3817, %v4395
    %v4491 = vadd.f32 %v3818, %v4397
    %v4492 = vadd.f32 %v3819, %v4448
    %v4493 = vadd.f32 %v3820, %v4450
    %v4494 = vadd.f32 %v3821, %v4083
    %v4495 = vadd.f32 %v3822, %v4085
    %v4496 = vadd.f32 %v3823, %v4136
    %v4497 = vadd.f32 %v3824, %v4138
    %v4498 = vadd.f32 %v3825, %v4189
    %v4499 = vadd.f32 %v3826, %v4191
    %v4500 = vadd.f32 %v3827, %v4242
    %v4501 = vadd.f32 %v3828, %v4244
    %v4502 = vadd.f32 %v3829, %v4295
    %v4503 = vadd.f32 %v3830, %v4297
    %v4504 = vadd.f32 %v3831, %v4348
    %v4505 = vadd.f32 %v3832, %v4350
    %v4506 = vadd.f32 %v3833, %v4401
    %v4507 = vadd.f32 %v3834, %v4403
    %v4508 = vadd.f32 %v3835, %v4454
    %v4509 = vadd.f32 %v3836, %v4456
    %v4510 = vadd.f32 %v3837, %v4087
    %v4511 = vadd.f32 %v3838, %v4089
    %v4512 = vadd.f32 %v3839, %v4140
    %v4513 = vadd.f32 %v3840, %v4142
    %v4514 = vadd.f32 %v3841, %v4193
    %v4515 = vadd.f32 %v3842, %v4195
    %v4516 = vadd.f32 %v3843, %v4246
    %v4517 = vadd.f32 %v3844, %v4248
    %v4518 = vadd.f32 %v3845, %v4299
    %v4519 = vadd.f32 %v3846, %v4301
    %v4520 = vadd.f32 %v3847, %v4352
    %v4521 = vadd.f32 %v3848, %v4354
    %v4522 = vadd.f32 %v3849, %v4405
    %v4523 = vadd.f32 %v3850, %v4407
    %v4524 = vadd.f32 %v3851, %v4458
    %v4525 = vadd.f32 %v3852, %v4460
    %v4526 = vld [vmem:[%s1 + $0x60] sm:$0xf]
    %v4527 = vld [vmem:[%s1 + $0x64] sm:$0xf]
    %v4528 = vld [vmem:[%s1 + $0x68] sm:$0xf]
    %v4529 = vld [vmem:[%s1 + $0x6c] sm:$0xf]
    %v4534 = vunpack.c.l.b16 %v4526
    %v4535 = vunpack.c.l.b16 %v4527
    %v4536 = vunpack.c.l.b16 %v4528
    %v4537 = vunpack.c.l.b16 %v4529
    %v4538 = vpack.c.b16 %v4535, %v4534
    %v4539 = vpack.c.b16 %v4537, %v4536
    %4540 = vrot.lane.b32.xlu0 %v661, 122
    %v4541 = vpop.permute.xlu0 %4540
    %4542 = vrot.lane.b32.xlu0 %v662, 122
    %v4543 = vpop.permute.xlu0 %4542
    %4544 = vrot.lane.b32.xlu0 %v663, 122
    %v4545 = vpop.permute.xlu0 %4544
    %4546 = vrot.lane.b32.xlu0 %v664, 122
    %v4547 = vpop.permute.xlu0 %4546
    %4548 = vrot.lane.b32.xlu0 %v665, 122
    %v4549 = vpop.permute.xlu0 %4548
    %4550 = vrot.lane.b32.xlu0 %v666, 122
    %v4551 = vpop.permute.xlu0 %4550
    %4552 = vrot.lane.b32.xlu0 %v667, 122
    %v4553 = vpop.permute.xlu0 %4552
    %4554 = vrot.lane.b32.xlu0 %v668, 122
    %v4555 = vpop.permute.xlu0 %4554
    %4556 = vrot.lane.b32.xlu0 %v669, 122
    %v4557 = vpop.permute.xlu0 %4556
    %4558 = vrot.lane.b32.xlu0 %v670, 122
    %v4559 = vpop.permute.xlu0 %4558
    %4560 = vrot.lane.b32.xlu0 %v671, 122
    %v4561 = vpop.permute.xlu0 %4560
    %4562 = vrot.lane.b32.xlu0 %v672, 122
    %v4563 = vpop.permute.xlu0 %4562
    %4564 = vrot.lane.b32.xlu0 %v673, 122
    %v4565 = vpop.permute.xlu0 %4564
    %4566 = vrot.lane.b32.xlu0 %v674, 122
    %v4567 = vpop.permute.xlu0 %4566
    %4568 = vrot.lane.b32.xlu0 %v675, 122
    %v4569 = vpop.permute.xlu0 %4568
    %4570 = vrot.lane.b32.xlu0 %v676, 122
    %v4571 = vpop.permute.xlu0 %4570
    %4572 = vrot.lane.b32.xlu0 %v700, 122
    %v4573 = vpop.permute.xlu0 %4572
    %4574 = vrot.lane.b32.xlu0 %v677, 122
    %v4575 = vpop.permute.xlu0 %4574
    %4576 = vrot.lane.b32.xlu0 %v678, 122
    %v4577 = vpop.permute.xlu0 %4576
    %4578 = vrot.lane.b32.xlu0 %v679, 122
    %v4579 = vpop.permute.xlu0 %4578
    %4580 = vrot.lane.b32.xlu0 %v680, 122
    %v4581 = vpop.permute.xlu0 %4580
    %4582 = vrot.lane.b32.xlu0 %v681, 122
    %v4583 = vpop.permute.xlu0 %4582
    %4584 = vrot.lane.b32.xlu0 %v682, 122
    %v4585 = vpop.permute.xlu0 %4584
    %4586 = vrot.lane.b32.xlu0 %v683, 122
    %v4587 = vpop.permute.xlu0 %4586
    %4588 = vrot.lane.b32.xlu0 %v684, 122
    %v4589 = vpop.permute.xlu0 %4588
    %4590 = vrot.lane.b32.xlu0 %v685, 122
    %v4591 = vpop.permute.xlu0 %4590
    %4592 = vrot.lane.b32.xlu0 %v686, 122
    %v4593 = vpop.permute.xlu0 %4592
    %4594 = vrot.lane.b32.xlu0 %v687, 122
    %v4595 = vpop.permute.xlu0 %4594
    %4596 = vrot.lane.b32.xlu0 %v688, 122
    %v4597 = vpop.permute.xlu0 %4596
    %4598 = vrot.lane.b32.xlu0 %v689, 122
    %v4599 = vpop.permute.xlu0 %4598
    %4600 = vrot.lane.b32.xlu0 %v690, 122
    %v4601 = vpop.permute.xlu0 %4600
    %4602 = vrot.lane.b32.xlu0 %v691, 122
    %v4603 = vpop.permute.xlu0 %4602
    %4604 = vrot.lane.b32.xlu0 %v692, 122
    %v4605 = vpop.permute.xlu0 %4604
    %4606 = vrot.lane.b32.xlu0 %v701, 122
    %v4607 = vpop.permute.xlu0 %4606
    %vm4608 = vcmask 998400
    %v4609 = vsel %vm4608, %v4541, %v4543
    %v4610 = vsel %vm4608, %v4543, %v4545
    %v4611 = vsel %vm4608, %v4545, %v4547
    %v4612 = vsel %vm4608, %v4547, %v4549
    %v4613 = vsel %vm4608, %v4549, %v4551
    %v4614 = vsel %vm4608, %v4551, %v4553
    %v4615 = vsel %vm4608, %v4553, %v4555
    %v4616 = vsel %vm4608, %v4555, %v4557
    %v4617 = vsel %vm4608, %v4557, %v4559
    %v4618 = vsel %vm4608, %v4559, %v4561
    %v4619 = vsel %vm4608, %v4561, %v4563
    %v4620 = vsel %vm4608, %v4563, %v4565
    %v4621 = vsel %vm4608, %v4565, %v4567
    %v4622 = vsel %vm4608, %v4567, %v4569
    %v4623 = vsel %vm4608, %v4569, %v4571
    %v4624 = vsel %vm4608, %v4571, %v4573
    %v4625 = vsel %vm4608, %v4575, %v4577
    %v4626 = vsel %vm4608, %v4577, %v4579
    %v4627 = vsel %vm4608, %v4579, %v4581
    %v4628 = vsel %vm4608, %v4581, %v4583
    %v4629 = vsel %vm4608, %v4583, %v4585
    %v4630 = vsel %vm4608, %v4585, %v4587
    %v4631 = vsel %vm4608, %v4587, %v4589
    %v4632 = vsel %vm4608, %v4589, %v4591
    %v4633 = vsel %vm4608, %v4591, %v4593
    %v4634 = vsel %vm4608, %v4593, %v4595
    %v4635 = vsel %vm4608, %v4595, %v4597
    %v4636 = vsel %vm4608, %v4597, %v4599
    %v4637 = vsel %vm4608, %v4599, %v4601
    %v4638 = vsel %vm4608, %v4601, %v4603
    %v4639 = vsel %vm4608, %v4603, %v4605
    %v4640 = vsel %vm4608, %v4605, %v4607
    %v4658 = vsel %vm863, %v4538, 0
    %v4661 = vsel %vm863, %v4539, 0
    %v4664 = vand.u32 %v4625, %v873
    %v4667 = vand.u32 %v4626, %v873
    %v4670 = vand.u32 %v4627, %v873
    %v4673 = vand.u32 %v4628, %v873
    %v4676 = vand.u32 %v4629, %v873
    %v4679 = vand.u32 %v4630, %v873
    %v4682 = vand.u32 %v4631, %v873
    %v4685 = vand.u32 %v4632, %v873
    %v4688 = vand.u32 %v4633, %v873
    %v4691 = vand.u32 %v4634, %v873
    %v4694 = vand.u32 %v4635, %v873
    %v4697 = vand.u32 %v4636, %v873
    %v4700 = vand.u32 %v4637, %v873
    %v4703 = vand.u32 %v4638, %v873
    %v4706 = vand.u32 %v4639, %v873
    %v4709 = vand.u32 %v4640, %v873
    %4711 = vmatprep.subr.bf16.mxu0 %v4610
    %4712 = vmatpush1.bf16.msra.mxu0 %v4609
    %4713 = vmatprep.subr.bf16.mxu0 %v4667
    %4714 = vmatpush1.bf16.msra.mxu0 %v4664
    %4715 = vmatprep.subr.bf16.mxu0 0
    %4716 = vmatpush1.bf16.msra.mxu0 0
    %4717 = vmatprep.subr.bf16.mxu0 0
    %4718 = vmatpush1.bf16.msra.mxu0 0
    %4719 = vmatprep.subr.bf16.mxu0 0
    %4720 = vmatpush1.bf16.msra.mxu0 0
    %4721 = vmatprep.subr.bf16.mxu0 0
    %4722 = vmatpush1.bf16.msra.mxu0 0
    %4723 = vmatprep.subr.bf16.mxu0 0
    %4724 = vmatpush1.bf16.msra.mxu0 0
    %4725 = vmatprep.subr.bf16.mxu0 0
    %4726 = vmatpush1.bf16.msra.mxu0 0
    %4727 = vmatprep.subr.bf16.mxu0 0
    %4728 = vmatpush1.bf16.msra.mxu0 0
    %4729 = vmatprep.subr.bf16.mxu0 0
    %4730 = vmatpush1.bf16.msra.mxu0 0
    %4731 = vmatprep.subr.bf16.mxu0 0
    %4732 = vmatpush1.bf16.msra.mxu0 0
    %4733 = vmatprep.subr.bf16.mxu0 0
    %4734 = vmatpush1.bf16.msra.mxu0 0
    %4735 = vmatprep.subr.bf16.mxu0 0
    %4736 = vmatpush1.bf16.msra.mxu0 0
    %4737 = vmatprep.subr.bf16.mxu0 0
    %4738 = vmatpush1.bf16.msra.mxu0 0
    %4739 = vmatprep.subr.bf16.mxu0 0
    %4740 = vmatpush1.bf16.msra.mxu0 0
    %4741 = vmatprep.subr.bf16.mxu0 0
    %4742 = vmatpush1.bf16.msra.mxu0 0
    %4743 = vmatprep.mubr.bf16.mxu0 0
    %4744 = vmatmul.mubr.bf16.gmra.mrb[0].mxu0 %v4658
    %v4745 = vpop.f32.mrb[0].mxu0
    %v4746 = vadd.f32 0.0, %v4745
    %v4747 = vpop.f32.mrb[0].mxu0
    %v4748 = vadd.f32 0.0, %v4747
    %v4749 = vpop.f32.mrb[0].mxu0
    %v4750 = vadd.f32 0.0, %v4749
    %v4751 = vpop.f32.mrb[0].mxu0
    %v4752 = vadd.f32 0.0, %v4751
    %4753 = vmatprep.mubr.bf16.mxu0 0
    %4754 = vmatmul.mubr.bf16.gmra.mrb[0].mxu0 %v4661
    %v4755 = vpop.f32.mrb[0].mxu0
    %v4756 = vadd.f32 0.0, %v4755
    %v4757 = vpop.f32.mrb[0].mxu0
    %v4758 = vadd.f32 0.0, %v4757
    %v4759 = vpop.f32.mrb[0].mxu0
    %v4760 = vadd.f32 0.0, %v4759
    %v4761 = vpop.f32.mrb[0].mxu0
    %v4762 = vadd.f32 0.0, %v4761
    %4763 = vdwg.mxu0
    %4764 = vmatprep.subr.bf16.mxu0 %v4612
    %4765 = vmatpush1.bf16.msra.mxu0 %v4611
    %4766 = vmatprep.subr.bf16.mxu0 %v4673
    %4767 = vmatpush1.bf16.msra.mxu0 %v4670
    %4768 = vmatprep.subr.bf16.mxu0 0
    %4769 = vmatpush1.bf16.msra.mxu0 0
    %4770 = vmatprep.subr.bf16.mxu0 0
    %4771 = vmatpush1.bf16.msra.mxu0 0
    %4772 = vmatprep.subr.bf16.mxu0 0
    %4773 = vmatpush1.bf16.msra.mxu0 0
    %4774 = vmatprep.subr.bf16.mxu0 0
    %4775 = vmatpush1.bf16.msra.mxu0 0
    %4776 = vmatprep.subr.bf16.mxu0 0
    %4777 = vmatpush1.bf16.msra.mxu0 0
    %4778 = vmatprep.subr.bf16.mxu0 0
    %4779 = vmatpush1.bf16.msra.mxu0 0
    %4780 = vmatprep.subr.bf16.mxu0 0
    %4781 = vmatpush1.bf16.msra.mxu0 0
    %4782 = vmatprep.subr.bf16.mxu0 0
    %4783 = vmatpush1.bf16.msra.mxu0 0
    %4784 = vmatprep.subr.bf16.mxu0 0
    %4785 = vmatpush1.bf16.msra.mxu0 0
    %4786 = vmatprep.subr.bf16.mxu0 0
    %4787 = vmatpush1.bf16.msra.mxu0 0
    %4788 = vmatprep.subr.bf16.mxu0 0
    %4789 = vmatpush1.bf16.msra.mxu0 0
    %4790 = vmatprep.subr.bf16.mxu0 0
    %4791 = vmatpush1.bf16.msra.mxu0 0
    %4792 = vmatprep.subr.bf16.mxu0 0
    %4793 = vmatpush1.bf16.msra.mxu0 0
    %4794 = vmatprep.subr.bf16.mxu0 0
    %4795 = vmatpush1.bf16.msra.mxu0 0
    %4796 = vmatprep.mubr.bf16.mxu0 0
    %4797 = vmatmul.mubr.bf16.gmra.mrb[0].mxu0 %v4658
    %v4798 = vpop.f32.mrb[0].mxu0
    %v4799 = vadd.f32 0.0, %v4798
    %v4800 = vpop.f32.mrb[0].mxu0
    %v4801 = vadd.f32 0.0, %v4800
    %v4802 = vpop.f32.mrb[0].mxu0
    %v4803 = vadd.f32 0.0, %v4802
    %v4804 = vpop.f32.mrb[0].mxu0
    %v4805 = vadd.f32 0.0, %v4804
    %4806 = vmatprep.mubr.bf16.mxu0 0
    %4807 = vmatmul.mubr.bf16.gmra.mrb[0].mxu0 %v4661
    %v4808 = vpop.f32.mrb[0].mxu0
    %v4809 = vadd.f32 0.0, %v4808
    %v4810 = vpop.f32.mrb[0].mxu0
    %v4811 = vadd.f32 0.0, %v4810
    %v4812 = vpop.f32.mrb[0].mxu0
    %v4813 = vadd.f32 0.0, %v4812
    %v4814 = vpop.f32.mrb[0].mxu0
    %v4815 = vadd.f32 0.0, %v4814
    %4816 = vdwg.mxu0
    %4817 = vmatprep.subr.bf16.mxu0 %v4614
    %4818 = vmatpush1.bf16.msra.mxu0 %v4613
    %4819 = vmatprep.subr.bf16.mxu0 %v4679
    %4820 = vmatpush1.bf16.msra.mxu0 %v4676
    %4821 = vmatprep.subr.bf16.mxu0 0
    %4822 = vmatpush1.bf16.msra.mxu0 0
    %4823 = vmatprep.subr.bf16.mxu0 0
    %4824 = vmatpush1.bf16.msra.mxu0 0
    %4825 = vmatprep.subr.bf16.mxu0 0
    %4826 = vmatpush1.bf16.msra.mxu0 0
    %4827 = vmatprep.subr.bf16.mxu0 0
    %4828 = vmatpush1.bf16.msra.mxu0 0
    %4829 = vmatprep.subr.bf16.mxu0 0
    %4830 = vmatpush1.bf16.msra.mxu0 0
    %4831 = vmatprep.subr.bf16.mxu0 0
    %4832 = vmatpush1.bf16.msra.mxu0 0
    %4833 = vmatprep.subr.bf16.mxu0 0
    %4834 = vmatpush1.bf16.msra.mxu0 0
    %4835 = vmatprep.subr.bf16.mxu0 0
    %4836 = vmatpush1.bf16.msra.mxu0 0
    %4837 = vmatprep.subr.bf16.mxu0 0
    %4838 = vmatpush1.bf16.msra.mxu0 0
    %4839 = vmatprep.subr.bf16.mxu0 0
    %4840 = vmatpush1.bf16.msra.mxu0 0
    %4841 = vmatprep.subr.bf16.mxu0 0
    %4842 = vmatpush1.bf16.msra.mxu0 0
    %4843 = vmatprep.subr.bf16.mxu0 0
    %4844 = vmatpush1.bf16.msra.mxu0 0
    %4845 = vmatprep.subr.bf16.mxu0 0
    %4846 = vmatpush1.bf16.msra.mxu0 0
    %4847 = vmatprep.subr.bf16.mxu0 0
    %4848 = vmatpush1.bf16.msra.mxu0 0
    %4849 = vmatprep.mubr.bf16.mxu0 0
    %4850 = vmatmul.mubr.bf16.gmra.mrb[0].mxu0 %v4658
    %v4851 = vpop.f32.mrb[0].mxu0
    %v4852 = vadd.f32 0.0, %v4851
    %v4853 = vpop.f32.mrb[0].mxu0
    %v4854 = vadd.f32 0.0, %v4853
    %v4855 = vpop.f32.mrb[0].mxu0
    %v4856 = vadd.f32 0.0, %v4855
    %v4857 = vpop.f32.mrb[0].mxu0
    %v4858 = vadd.f32 0.0, %v4857
    %4859 = vmatprep.mubr.bf16.mxu0 0
    %4860 = vmatmul.mubr.bf16.gmra.mrb[0].mxu0 %v4661
    %v4861 = vpop.f32.mrb[0].mxu0
    %v4862 = vadd.f32 0.0, %v4861
    %v4863 = vpop.f32.mrb[0].mxu0
    %v4864 = vadd.f32 0.0, %v4863
    %v4865 = vpop.f32.mrb[0].mxu0
    %v4866 = vadd.f32 0.0, %v4865
    %v4867 = vpop.f32.mrb[0].mxu0
    %v4868 = vadd.f32 0.0, %v4867
    %4869 = vdwg.mxu0
    %4870 = vmatprep.subr.bf16.mxu0 %v4616
    %4871 = vmatpush1.bf16.msra.mxu0 %v4615
    %4872 = vmatprep.subr.bf16.mxu0 %v4685
    %4873 = vmatpush1.bf16.msra.mxu0 %v4682
    %4874 = vmatprep.subr.bf16.mxu0 0
    %4875 = vmatpush1.bf16.msra.mxu0 0
    %4876 = vmatprep.subr.bf16.mxu0 0
    %4877 = vmatpush1.bf16.msra.mxu0 0
    %4878 = vmatprep.subr.bf16.mxu0 0
    %4879 = vmatpush1.bf16.msra.mxu0 0
    %4880 = vmatprep.subr.bf16.mxu0 0
    %4881 = vmatpush1.bf16.msra.mxu0 0
    %4882 = vmatprep.subr.bf16.mxu0 0
    %4883 = vmatpush1.bf16.msra.mxu0 0
    %4884 = vmatprep.subr.bf16.mxu0 0
    %4885 = vmatpush1.bf16.msra.mxu0 0
    %4886 = vmatprep.subr.bf16.mxu0 0
    %4887 = vmatpush1.bf16.msra.mxu0 0
    %4888 = vmatprep.subr.bf16.mxu0 0
    %4889 = vmatpush1.bf16.msra.mxu0 0
    %4890 = vmatprep.subr.bf16.mxu0 0
    %4891 = vmatpush1.bf16.msra.mxu0 0
    %4892 = vmatprep.subr.bf16.mxu0 0
    %4893 = vmatpush1.bf16.msra.mxu0 0
    %4894 = vmatprep.subr.bf16.mxu0 0
    %4895 = vmatpush1.bf16.msra.mxu0 0
    %4896 = vmatprep.subr.bf16.mxu0 0
    %4897 = vmatpush1.bf16.msra.mxu0 0
    %4898 = vmatprep.subr.bf16.mxu0 0
    %4899 = vmatpush1.bf16.msra.mxu0 0
    %4900 = vmatprep.subr.bf16.mxu0 0
    %4901 = vmatpush1.bf16.msra.mxu0 0
    %4902 = vmatprep.mubr.bf16.mxu0 0
    %4903 = vmatmul.mubr.bf16.gmra.mrb[0].mxu0 %v4658
    %v4904 = vpop.f32.mrb[0].mxu0
    %v4905 = vadd.f32 0.0, %v4904
    %v4906 = vpop.f32.mrb[0].mxu0
    %v4907 = vadd.f32 0.0, %v4906
    %v4908 = vpop.f32.mrb[0].mxu0
    %v4909 = vadd.f32 0.0, %v4908
    %v4910 = vpop.f32.mrb[0].mxu0
    %v4911 = vadd.f32 0.0, %v4910
    %4912 = vmatprep.mubr.bf16.mxu0 0
    %4913 = vmatmul.mubr.bf16.gmra.mrb[0].mxu0 %v4661
    %v4914 = vpop.f32.mrb[0].mxu0
    %v4915 = vadd.f32 0.0, %v4914
    %v4916 = vpop.f32.mrb[0].mxu0
    %v4917 = vadd.f32 0.0, %v4916
    %v4918 = vpop.f32.mrb[0].mxu0
    %v4919 = vadd.f32 0.0, %v4918
    %v4920 = vpop.f32.mrb[0].mxu0
    %v4921 = vadd.f32 0.0, %v4920
    %4922 = vdwg.mxu0
    %4923 = vmatprep.subr.bf16.mxu0 %v4618
    %4924 = vmatpush1.bf16.msra.mxu0 %v4617
    %4925 = vmatprep.subr.bf16.mxu0 %v4691
    %4926 = vmatpush1.bf16.msra.mxu0 %v4688
    %4927 = vmatprep.subr.bf16.mxu0 0
    %4928 = vmatpush1.bf16.msra.mxu0 0
    %4929 = vmatprep.subr.bf16.mxu0 0
    %4930 = vmatpush1.bf16.msra.mxu0 0
    %4931 = vmatprep.subr.bf16.mxu0 0
    %4932 = vmatpush1.bf16.msra.mxu0 0
    %4933 = vmatprep.subr.bf16.mxu0 0
    %4934 = vmatpush1.bf16.msra.mxu0 0
    %4935 = vmatprep.subr.bf16.mxu0 0
    %4936 = vmatpush1.bf16.msra.mxu0 0
    %4937 = vmatprep.subr.bf16.mxu0 0
    %4938 = vmatpush1.bf16.msra.mxu0 0
    %4939 = vmatprep.subr.bf16.mxu0 0
    %4940 = vmatpush1.bf16.msra.mxu0 0
    %4941 = vmatprep.subr.bf16.mxu0 0
    %4942 = vmatpush1.bf16.msra.mxu0 0
    %4943 = vmatprep.subr.bf16.mxu0 0
    %4944 = vmatpush1.bf16.msra.mxu0 0
    %4945 = vmatprep.subr.bf16.mxu0 0
    %4946 = vmatpush1.bf16.msra.mxu0 0
    %4947 = vmatprep.subr.bf16.mxu0 0
    %4948 = vmatpush1.bf16.msra.mxu0 0
    %4949 = vmatprep.subr.bf16.mxu0 0
    %4950 = vmatpush1.bf16.msra.mxu0 0
    %4951 = vmatprep.subr.bf16.mxu0 0
    %4952 = vmatpush1.bf16.msra.mxu0 0
    %4953 = vmatprep.subr.bf16.mxu0 0
    %4954 = vmatpush1.bf16.msra.mxu0 0
    %4955 = vmatprep.mubr.bf16.mxu0 0
    %4956 = vmatmul.mubr.bf16.gmra.mrb[0].mxu0 %v4658
    %v4957 = vpop.f32.mrb[0].mxu0
    %v4958 = vadd.f32 0.0, %v4957
    %v4959 = vpop.f32.mrb[0].mxu0
    %v4960 = vadd.f32 0.0, %v4959
    %v4961 = vpop.f32.mrb[0].mxu0
    %v4962 = vadd.f32 0.0, %v4961
    %v4963 = vpop.f32.mrb[0].mxu0
    %v4964 = vadd.f32 0.0, %v4963
    %4965 = vmatprep.mubr.bf16.mxu0 0
    %4966 = vmatmul.mubr.bf16.gmra.mrb[0].mxu0 %v4661
    %v4967 = vpop.f32.mrb[0].mxu0
    %v4968 = vadd.f32 0.0, %v4967
    %v4969 = vpop.f32.mrb[0].mxu0
    %v4970 = vadd.f32 0.0, %v4969
    %v4971 = vpop.f32.mrb[0].mxu0
    %v4972 = vadd.f32 0.0, %v4971
    %v4973 = vpop.f32.mrb[0].mxu0
    %v4974 = vadd.f32 0.0, %v4973
    %4975 = vdwg.mxu0
    %4976 = vmatprep.subr.bf16.mxu0 %v4620
    %4977 = vmatpush1.bf16.msra.mxu0 %v4619
    %4978 = vmatprep.subr.bf16.mxu0 %v4697
    %4979 = vmatpush1.bf16.msra.mxu0 %v4694
    %4980 = vmatprep.subr.bf16.mxu0 0
    %4981 = vmatpush1.bf16.msra.mxu0 0
    %4982 = vmatprep.subr.bf16.mxu0 0
    %4983 = vmatpush1.bf16.msra.mxu0 0
    %4984 = vmatprep.subr.bf16.mxu0 0
    %4985 = vmatpush1.bf16.msra.mxu0 0
    %4986 = vmatprep.subr.bf16.mxu0 0
    %4987 = vmatpush1.bf16.msra.mxu0 0
    %4988 = vmatprep.subr.bf16.mxu0 0
    %4989 = vmatpush1.bf16.msra.mxu0 0
    %4990 = vmatprep.subr.bf16.mxu0 0
    %4991 = vmatpush1.bf16.msra.mxu0 0
    %4992 = vmatprep.subr.bf16.mxu0 0
    %4993 = vmatpush1.bf16.msra.mxu0 0
    %4994 = vmatprep.subr.bf16.mxu0 0
    %4995 = vmatpush1.bf16.msra.mxu0 0
    %4996 = vmatprep.subr.bf16.mxu0 0
    %4997 = vmatpush1.bf16.msra.mxu0 0
    %4998 = vmatprep.subr.bf16.mxu0 0
    %4999 = vmatpush1.bf16.msra.mxu0 0
    %5000 = vmatprep.subr.bf16.mxu0 0
    %5001 = vmatpush1.bf16.msra.mxu0 0
    %5002 = vmatprep.subr.bf16.mxu0 0
    %5003 = vmatpush1.bf16.msra.mxu0 0
    %5004 = vmatprep.subr.bf16.mxu0 0
    %5005 = vmatpush1.bf16.msra.mxu0 0
    %5006 = vmatprep.subr.bf16.mxu0 0
    %5007 = vmatpush1.bf16.msra.mxu0 0
    %5008 = vmatprep.mubr.bf16.mxu0 0
    %5009 = vmatmul.mubr.bf16.gmra.mrb[0].mxu0 %v4658
    %v5010 = vpop.f32.mrb[0].mxu0
    %v5011 = vadd.f32 0.0, %v5010
    %v5012 = vpop.f32.mrb[0].mxu0
    %v5013 = vadd.f32 0.0, %v5012
    %v5014 = vpop.f32.mrb[0].mxu0
    %v5015 = vadd.f32 0.0, %v5014
    %v5016 = vpop.f32.mrb[0].mxu0
    %v5017 = vadd.f32 0.0, %v5016
    %5018 = vmatprep.mubr.bf16.mxu0 0
    %5019 = vmatmul.mubr.bf16.gmra.mrb[0].mxu0 %v4661
    %v5020 = vpop.f32.mrb[0].mxu0
    %v5021 = vadd.f32 0.0, %v5020
    %v5022 = vpop.f32.mrb[0].mxu0
    %v5023 = vadd.f32 0.0, %v5022
    %v5024 = vpop.f32.mrb[0].mxu0
    %v5025 = vadd.f32 0.0, %v5024
    %v5026 = vpop.f32.mrb[0].mxu0
    %v5027 = vadd.f32 0.0, %v5026
    %5028 = vdwg.mxu0
    %5029 = vmatprep.subr.bf16.mxu0 %v4622
    %5030 = vmatpush1.bf16.msra.mxu0 %v4621
    %5031 = vmatprep.subr.bf16.mxu0 %v4703
    %5032 = vmatpush1.bf16.msra.mxu0 %v4700
    %5033 = vmatprep.subr.bf16.mxu0 0
    %5034 = vmatpush1.bf16.msra.mxu0 0
    %5035 = vmatprep.subr.bf16.mxu0 0
    %5036 = vmatpush1.bf16.msra.mxu0 0
    %5037 = vmatprep.subr.bf16.mxu0 0
    %5038 = vmatpush1.bf16.msra.mxu0 0
    %5039 = vmatprep.subr.bf16.mxu0 0
    %5040 = vmatpush1.bf16.msra.mxu0 0
    %5041 = vmatprep.subr.bf16.mxu0 0
    %5042 = vmatpush1.bf16.msra.mxu0 0
    %5043 = vmatprep.subr.bf16.mxu0 0
    %5044 = vmatpush1.bf16.msra.mxu0 0
    %5045 = vmatprep.subr.bf16.mxu0 0
    %5046 = vmatpush1.bf16.msra.mxu0 0
    %5047 = vmatprep.subr.bf16.mxu0 0
    %5048 = vmatpush1.bf16.msra.mxu0 0
    %5049 = vmatprep.subr.bf16.mxu0 0
    %5050 = vmatpush1.bf16.msra.mxu0 0
    %5051 = vmatprep.subr.bf16.mxu0 0
    %5052 = vmatpush1.bf16.msra.mxu0 0
    %5053 = vmatprep.subr.bf16.mxu0 0
    %5054 = vmatpush1.bf16.msra.mxu0 0
    %5055 = vmatprep.subr.bf16.mxu0 0
    %5056 = vmatpush1.bf16.msra.mxu0 0
    %5057 = vmatprep.subr.bf16.mxu0 0
    %5058 = vmatpush1.bf16.msra.mxu0 0
    %5059 = vmatprep.subr.bf16.mxu0 0
    %5060 = vmatpush1.bf16.msra.mxu0 0
    %5061 = vmatprep.mubr.bf16.mxu0 0
    %5062 = vmatmul.mubr.bf16.gmra.mrb[0].mxu0 %v4658
    %v5063 = vpop.f32.mrb[0].mxu0
    %v5064 = vadd.f32 0.0, %v5063
    %v5065 = vpop.f32.mrb[0].mxu0
    %v5066 = vadd.f32 0.0, %v5065
    %v5067 = vpop.f32.mrb[0].mxu0
    %v5068 = vadd.f32 0.0, %v5067
    %v5069 = vpop.f32.mrb[0].mxu0
    %v5070 = vadd.f32 0.0, %v5069
    %5071 = vmatprep.mubr.bf16.mxu0 0
    %5072 = vmatmul.mubr.bf16.gmra.mrb[0].mxu0 %v4661
    %v5073 = vpop.f32.mrb[0].mxu0
    %v5074 = vadd.f32 0.0, %v5073
    %v5075 = vpop.f32.mrb[0].mxu0
    %v5076 = vadd.f32 0.0, %v5075
    %v5077 = vpop.f32.mrb[0].mxu0
    %v5078 = vadd.f32 0.0, %v5077
    %v5079 = vpop.f32.mrb[0].mxu0
    %v5080 = vadd.f32 0.0, %v5079
    %5081 = vdwg.mxu0
    %5082 = vmatprep.subr.bf16.mxu0 %v4624
    %5083 = vmatpush1.bf16.msra.mxu0 %v4623
    %5084 = vmatprep.subr.bf16.mxu0 %v4709
    %5085 = vmatpush1.bf16.msra.mxu0 %v4706
    %5086 = vmatprep.subr.bf16.mxu0 0
    %5087 = vmatpush1.bf16.msra.mxu0 0
    %5088 = vmatprep.subr.bf16.mxu0 0
    %5089 = vmatpush1.bf16.msra.mxu0 0
    %5090 = vmatprep.subr.bf16.mxu0 0
    %5091 = vmatpush1.bf16.msra.mxu0 0
    %5092 = vmatprep.subr.bf16.mxu0 0
    %5093 = vmatpush1.bf16.msra.mxu0 0
    %5094 = vmatprep.subr.bf16.mxu0 0
    %5095 = vmatpush1.bf16.msra.mxu0 0
    %5096 = vmatprep.subr.bf16.mxu0 0
    %5097 = vmatpush1.bf16.msra.mxu0 0
    %5098 = vmatprep.subr.bf16.mxu0 0
    %5099 = vmatpush1.bf16.msra.mxu0 0
    %5100 = vmatprep.subr.bf16.mxu0 0
    %5101 = vmatpush1.bf16.msra.mxu0 0
    %5102 = vmatprep.subr.bf16.mxu0 0
    %5103 = vmatpush1.bf16.msra.mxu0 0
    %5104 = vmatprep.subr.bf16.mxu0 0
    %5105 = vmatpush1.bf16.msra.mxu0 0
    %5106 = vmatprep.subr.bf16.mxu0 0
    %5107 = vmatpush1.bf16.msra.mxu0 0
    %5108 = vmatprep.subr.bf16.mxu0 0
    %5109 = vmatpush1.bf16.msra.mxu0 0
    %5110 = vmatprep.subr.bf16.mxu0 0
    %5111 = vmatpush1.bf16.msra.mxu0 0
    %5112 = vmatprep.subr.bf16.mxu0 0
    %5113 = vmatpush1.bf16.msra.mxu0 0
    %5114 = vmatprep.mubr.bf16.mxu0 0
    %5115 = vmatmul.mubr.bf16.gmra.mrb[0].mxu0 %v4658
    %v5116 = vpop.f32.mrb[0].mxu0
    %v5117 = vadd.f32 0.0, %v5116
    %v5118 = vpop.f32.mrb[0].mxu0
    %v5119 = vadd.f32 0.0, %v5118
    %v5120 = vpop.f32.mrb[0].mxu0
    %v5121 = vadd.f32 0.0, %v5120
    %v5122 = vpop.f32.mrb[0].mxu0
    %v5123 = vadd.f32 0.0, %v5122
    %5124 = vmatprep.mubr.bf16.mxu0 0
    %5125 = vmatmul.mubr.bf16.gmra.mrb[0].mxu0 %v4661
    %v5126 = vpop.f32.mrb[0].mxu0
    %v5127 = vadd.f32 0.0, %v5126
    %v5128 = vpop.f32.mrb[0].mxu0
    %v5129 = vadd.f32 0.0, %v5128
    %v5130 = vpop.f32.mrb[0].mxu0
    %v5131 = vadd.f32 0.0, %v5130
    %v5132 = vpop.f32.mrb[0].mxu0
    %v5133 = vadd.f32 0.0, %v5132
    %5134 = vdwg.mxu0
    %v5135 = vadd.f32 %v4462, %v4746
    %v5136 = vadd.f32 %v4463, %v4748
    %v5137 = vadd.f32 %v4464, %v4799
    %v5138 = vadd.f32 %v4465, %v4801
    %v5139 = vadd.f32 %v4466, %v4852
    %v5140 = vadd.f32 %v4467, %v4854
    %v5141 = vadd.f32 %v4468, %v4905
    %v5142 = vadd.f32 %v4469, %v4907
    %v5143 = vadd.f32 %v4470, %v4958
    %v5144 = vadd.f32 %v4471, %v4960
    %v5145 = vadd.f32 %v4472, %v5011
    %v5146 = vadd.f32 %v4473, %v5013
    %v5147 = vadd.f32 %v4474, %v5064
    %v5148 = vadd.f32 %v4475, %v5066
    %v5149 = vadd.f32 %v4476, %v5117
    %v5150 = vadd.f32 %v4477, %v5119
    %v5151 = vadd.f32 %v4478, %v4750
    %v5152 = vadd.f32 %v4479, %v4752
    %v5153 = vadd.f32 %v4480, %v4803
    %v5154 = vadd.f32 %v4481, %v4805
    %v5155 = vadd.f32 %v4482, %v4856
    %v5156 = vadd.f32 %v4483, %v4858
    %v5157 = vadd.f32 %v4484, %v4909
    %v5158 = vadd.f32 %v4485, %v4911
    %v5159 = vadd.f32 %v4486, %v4962
    %v5160 = vadd.f32 %v4487, %v4964
    %v5161 = vadd.f32 %v4488, %v5015
    %v5162 = vadd.f32 %v4489, %v5017
    %v5163 = vadd.f32 %v4490, %v5068
    %v5164 = vadd.f32 %v4491, %v5070
    %v5165 = vadd.f32 %v4492, %v5121
    %v5166 = vadd.f32 %v4493, %v5123
    %v5167 = vadd.f32 %v4494, %v4756
    %v5168 = vadd.f32 %v4495, %v4758
    %v5169 = vadd.f32 %v4496, %v4809
    %v5170 = vadd.f32 %v4497, %v4811
    %v5171 = vadd.f32 %v4498, %v4862
    %v5172 = vadd.f32 %v4499, %v4864
    %v5173 = vadd.f32 %v4500, %v4915
    %v5174 = vadd.f32 %v4501, %v4917
    %v5175 = vadd.f32 %v4502, %v4968
    %v5176 = vadd.f32 %v4503, %v4970
    %v5177 = vadd.f32 %v4504, %v5021
    %v5178 = vadd.f32 %v4505, %v5023
    %v5179 = vadd.f32 %v4506, %v5074
    %v5180 = vadd.f32 %v4507, %v5076
    %v5181 = vadd.f32 %v4508, %v5127
    %v5182 = vadd.f32 %v4509, %v5129
    %v5183 = vadd.f32 %v4510, %v4760
    %v5184 = vadd.f32 %v4511, %v4762
    %v5185 = vadd.f32 %v4512, %v4813
    %v5186 = vadd.f32 %v4513, %v4815
    %v5187 = vadd.f32 %v4514, %v4866
    %v5188 = vadd.f32 %v4515, %v4868
    %v5189 = vadd.f32 %v4516, %v4919
    %v5190 = vadd.f32 %v4517, %v4921
    %v5191 = vadd.f32 %v4518, %v4972
    %v5192 = vadd.f32 %v4519, %v4974
    %v5193 = vadd.f32 %v4520, %v5025
    %v5194 = vadd.f32 %v4521, %v5027
    %v5195 = vadd.f32 %v4522, %v5078
    %v5196 = vadd.f32 %v4523, %v5080
    %v5197 = vadd.f32 %v4524, %v5131
    %v5198 = vadd.f32 %v4525, %v5133
    %v5199 = vld [vmem:[%s2] sm:$0xff]
    %v5200 = vld [vmem:[%s2 + $0x8] sm:$0xff]
    %v5201 = vld [vmem:[%s2 + $0x10] sm:$0xff]
    %v5202 = vld [vmem:[%s2 + $0x18] sm:$0xff]
    %5204 = vset.pattern.permute.xlu0 0
    %5205 = vperm.xlu0 %5204, %v5199
    %v5206 = vpop.permute.xlu0 %5205
    %5209 = vset.pattern.permute.xlu0 0
    %5210 = vperm.xlu0 %5209, %v5200
    %v5211 = vpop.permute.xlu0 %5210
    %5214 = vset.pattern.permute.xlu0 0
    %5215 = vperm.xlu0 %5214, %v5201
    %v5216 = vpop.permute.xlu0 %5215
    %5219 = vset.pattern.permute.xlu0 0
    %5220 = vperm.xlu0 %5219, %v5202
    %v5221 = vpop.permute.xlu0 %5220
    %v5223 = vadd.f32 %v5135, %v5206
    %v5224 = vadd.f32 %v5136, %v5206
    %v5225 = vadd.f32 %v5137, %v5206
    %v5226 = vadd.f32 %v5138, %v5206
    %v5227 = vadd.f32 %v5139, %v5206
    %v5228 = vadd.f32 %v5140, %v5206
    %v5229 = vadd.f32 %v5141, %v5206
    %v5230 = vadd.f32 %v5142, %v5206
    %v5231 = vadd.f32 %v5143, %v5206
    %v5232 = vadd.f32 %v5144, %v5206
    %v5233 = vadd.f32 %v5145, %v5206
    %v5234 = vadd.f32 %v5146, %v5206
    %v5235 = vadd.f32 %v5147, %v5206
    %v5236 = vadd.f32 %v5148, %v5206
    %v5237 = vadd.f32 %v5149, %v5206
    %v5238 = vadd.f32 %v5150, %v5206
    %v5239 = vadd.f32 %v5151, %v5211
    %v5240 = vadd.f32 %v5152, %v5211
    %v5241 = vadd.f32 %v5153, %v5211
    %v5242 = vadd.f32 %v5154, %v5211
    %v5243 = vadd.f32 %v5155, %v5211
    %v5244 = vadd.f32 %v5156, %v5211
    %v5245 = vadd.f32 %v5157, %v5211
    %v5246 = vadd.f32 %v5158, %v5211
    %v5247 = vadd.f32 %v5159, %v5211
    %v5248 = vadd.f32 %v5160, %v5211
    %v5249 = vadd.f32 %v5161, %v5211
    %v5250 = vadd.f32 %v5162, %v5211
    %v5251 = vadd.f32 %v5163, %v5211
    %v5252 = vadd.f32 %v5164, %v5211
    %v5253 = vadd.f32 %v5165, %v5211
    %v5254 = vadd.f32 %v5166, %v5211
    %v5255 = vadd.f32 %v5167, %v5216
    %v5256 = vadd.f32 %v5168, %v5216
    %v5257 = vadd.f32 %v5169, %v5216
    %v5258 = vadd.f32 %v5170, %v5216
    %v5259 = vadd.f32 %v5171, %v5216
    %v5260 = vadd.f32 %v5172, %v5216
    %v5261 = vadd.f32 %v5173, %v5216
    %v5262 = vadd.f32 %v5174, %v5216
    %v5263 = vadd.f32 %v5175, %v5216
    %v5264 = vadd.f32 %v5176, %v5216
    %v5265 = vadd.f32 %v5177, %v5216
    %v5266 = vadd.f32 %v5178, %v5216
    %v5267 = vadd.f32 %v5179, %v5216
    %v5268 = vadd.f32 %v5180, %v5216
    %v5269 = vadd.f32 %v5181, %v5216
    %v5270 = vadd.f32 %v5182, %v5216
    %v5271 = vadd.f32 %v5183, %v5221
    %v5272 = vadd.f32 %v5184, %v5221
    %v5273 = vadd.f32 %v5185, %v5221
    %v5274 = vadd.f32 %v5186, %v5221
    %v5275 = vadd.f32 %v5187, %v5221
    %v5276 = vadd.f32 %v5188, %v5221
    %v5277 = vadd.f32 %v5189, %v5221
    %v5278 = vadd.f32 %v5190, %v5221
    %v5279 = vadd.f32 %v5191, %v5221
    %v5280 = vadd.f32 %v5192, %v5221
    %v5281 = vadd.f32 %v5193, %v5221
    %v5282 = vadd.f32 %v5194, %v5221
    %v5283 = vadd.f32 %v5195, %v5221
    %v5284 = vadd.f32 %v5196, %v5221
    %v5285 = vadd.f32 %v5197, %v5221
    %v5286 = vadd.f32 %v5198, %v5221
    %v5287 = vmax.f32 %v5223, 0.0
    %v5288 = vmax.f32 %v5224, 0.0
    %v5289 = vmax.f32 %v5225, 0.0
    %v5290 = vmax.f32 %v5226, 0.0
    %v5291 = vmax.f32 %v5227, 0.0
    %v5292 = vmax.f32 %v5228, 0.0
    %v5293 = vmax.f32 %v5229, 0.0
    %v5294 = vmax.f32 %v5230, 0.0
    %v5295 = vmax.f32 %v5231, 0.0
    %v5296 = vmax.f32 %v5232, 0.0
    %v5297 = vmax.f32 %v5233, 0.0
    %v5298 = vmax.f32 %v5234, 0.0
    %v5299 = vmax.f32 %v5235, 0.0
    %v5300 = vmax.f32 %v5236, 0.0
    %v5301 = vmax.f32 %v5237, 0.0
    %v5302 = vmax.f32 %v5238, 0.0
    %v5303 = vmax.f32 %v5239, 0.0
    %v5304 = vmax.f32 %v5240, 0.0
    %v5305 = vmax.f32 %v5241, 0.0
    %v5306 = vmax.f32 %v5242, 0.0
    %v5307 = vmax.f32 %v5243, 0.0
    %v5308 = vmax.f32 %v5244, 0.0
    %v5309 = vmax.f32 %v5245, 0.0
    %v5310 = vmax.f32 %v5246, 0.0
    %v5311 = vmax.f32 %v5247, 0.0
    %v5312 = vmax.f32 %v5248, 0.0
    %v5313 = vmax.f32 %v5249, 0.0
    %v5314 = vmax.f32 %v5250, 0.0
    %v5315 = vmax.f32 %v5251, 0.0
    %v5316 = vmax.f32 %v5252, 0.0
    %v5317 = vmax.f32 %v5253, 0.0
    %v5318 = vmax.f32 %v5254, 0.0
    %v5319 = vmax.f32 %v5255, 0.0
    %v5320 = vmax.f32 %v5256, 0.0
    %v5321 = vmax.f32 %v5257, 0.0
    %v5322 = vmax.f32 %v5258, 0.0
    %v5323 = vmax.f32 %v5259, 0.0
    %v5324 = vmax.f32 %v5260, 0.0
    %v5325 = vmax.f32 %v5261, 0.0
    %v5326 = vmax.f32 %v5262, 0.0
    %v5327 = vmax.f32 %v5263, 0.0
    %v5328 = vmax.f32 %v5264, 0.0
    %v5329 = vmax.f32 %v5265, 0.0
    %v5330 = vmax.f32 %v5266, 0.0
    %v5331 = vmax.f32 %v5267, 0.0
    %v5332 = vmax.f32 %v5268, 0.0
    %v5333 = vmax.f32 %v5269, 0.0
    %v5334 = vmax.f32 %v5270, 0.0
    %v5335 = vmax.f32 %v5271, 0.0
    %v5336 = vmax.f32 %v5272, 0.0
    %v5337 = vmax.f32 %v5273, 0.0
    %v5338 = vmax.f32 %v5274, 0.0
    %v5339 = vmax.f32 %v5275, 0.0
    %v5340 = vmax.f32 %v5276, 0.0
    %v5341 = vmax.f32 %v5277, 0.0
    %v5342 = vmax.f32 %v5278, 0.0
    %v5343 = vmax.f32 %v5279, 0.0
    %v5344 = vmax.f32 %v5280, 0.0
    %v5345 = vmax.f32 %v5281, 0.0
    %v5346 = vmax.f32 %v5282, 0.0
    %v5347 = vmax.f32 %v5283, 0.0
    %v5348 = vmax.f32 %v5284, 0.0
    %v5349 = vmax.f32 %v5285, 0.0
    %v5350 = vmax.f32 %v5286, 0.0
    %5351 = vst [vmem:[#allocation3 + $0x80] sm:$0xff] 0.0
    %5352 = vst [vmem:[#allocation3 + $0x108] sm:$0xff] 0.0
    %5353 = vst [vmem:[#allocation3 + $0x190] sm:$0xff] 0.0
    %5354 = vst [vmem:[#allocation3 + $0x218] sm:$0xff] 0.0
    %5355 = vst [vmem:[#allocation3] sm:$0xff] %v5287
    %5356 = vst [vmem:[#allocation3 + $0x8] sm:$0xff] %v5288
    %5357 = vst [vmem:[#allocation3 + $0x10] sm:$0xff] %v5289
    %5358 = vst [vmem:[#allocation3 + $0x18] sm:$0xff] %v5290
    %5359 = vst [vmem:[#allocation3 + $0x20] sm:$0xff] %v5291
    %5360 = vst [vmem:[#allocation3 + $0x28] sm:$0xff] %v5292
    %5361 = vst [vmem:[#allocation3 + $0x30] sm:$0xff] %v5293
    %5362 = vst [vmem:[#allocation3 + $0x38] sm:$0xff] %v5294
    %5363 = vst [vmem:[#allocation3 + $0x40] sm:$0xff] %v5295
    %5364 = vst [vmem:[#allocation3 + $0x48] sm:$0xff] %v5296
    %5365 = vst [vmem:[#allocation3 + $0x50] sm:$0xff] %v5297
    %5366 = vst [vmem:[#allocation3 + $0x58] sm:$0xff] %v5298
    %5367 = vst [vmem:[#allocation3 + $0x60] sm:$0xff] %v5299
    %5368 = vst [vmem:[#allocation3 + $0x68] sm:$0xff] %v5300
    %5369 = vst [vmem:[#allocation3 + $0x70] sm:$0xff] %v5301
    %5370 = vst [vmem:[#allocation3 + $0x78] sm:$0xff] %v5302
    %5371 = vst [vmem:[#allocation3 + $0x88] sm:$0xff] %v5303
    %5372 = vst [vmem:[#allocation3 + $0x90] sm:$0xff] %v5304
    %5373 = vst [vmem:[#allocation3 + $0x98] sm:$0xff] %v5305
    %5374 = vst [vmem:[#allocation3 + $0xa0] sm:$0xff] %v5306
    %5375 = vst [vmem:[#allocation3 + $0xa8] sm:$0xff] %v5307
    %5376 = vst [vmem:[#allocation3 + $0xb0] sm:$0xff] %v5308
    %5377 = vst [vmem:[#allocation3 + $0xb8] sm:$0xff] %v5309
    %5378 = vst [vmem:[#allocation3 + $0xc0] sm:$0xff] %v5310
    %5379 = vst [vmem:[#allocation3 + $0xc8] sm:$0xff] %v5311
    %5380 = vst [vmem:[#allocation3 + $0xd0] sm:$0xff] %v5312
    %5381 = vst [vmem:[#allocation3 + $0xd8] sm:$0xff] %v5313
    %5382 = vst [vmem:[#allocation3 + $0xe0] sm:$0xff] %v5314
    %5383 = vst [vmem:[#allocation3 + $0xe8] sm:$0xff] %v5315
    %5384 = vst [vmem:[#allocation3 + $0xf0] sm:$0xff] %v5316
    %5385 = vst [vmem:[#allocation3 + $0xf8] sm:$0xff] %v5317
    %5386 = vst [vmem:[#allocation3 + $0x100] sm:$0xff] %v5318
    %5387 = vst [vmem:[#allocation3 + $0x110] sm:$0xff] %v5319
    %5388 = vst [vmem:[#allocation3 + $0x118] sm:$0xff] %v5320
    %5389 = vst [vmem:[#allocation3 + $0x120] sm:$0xff] %v5321
    %5390 = vst [vmem:[#allocation3 + $0x128] sm:$0xff] %v5322
    %5391 = vst [vmem:[#allocation3 + $0x130] sm:$0xff] %v5323
    %5392 = vst [vmem:[#allocation3 + $0x138] sm:$0xff] %v5324
    %5393 = vst [vmem:[#allocation3 + $0x140] sm:$0xff] %v5325
    %5394 = vst [vmem:[#allocation3 + $0x148] sm:$0xff] %v5326
    %5395 = vst [vmem:[#allocation3 + $0x150] sm:$0xff] %v5327
    %5396 = vst [vmem:[#allocation3 + $0x158] sm:$0xff] %v5328
    %5397 = vst [vmem:[#allocation3 + $0x160] sm:$0xff] %v5329
    %5398 = vst [vmem:[#allocation3 + $0x168] sm:$0xff] %v5330
    %5399 = vst [vmem:[#allocation3 + $0x170] sm:$0xff] %v5331
    %5400 = vst [vmem:[#allocation3 + $0x178] sm:$0xff] %v5332
    %5401 = vst [vmem:[#allocation3 + $0x180] sm:$0xff] %v5333
    %5402 = vst [vmem:[#allocation3 + $0x188] sm:$0xff] %v5334
    %5403 = vst [vmem:[#allocation3 + $0x198] sm:$0xff] %v5335
    %5404 = vst [vmem:[#allocation3 + $0x1a0] sm:$0xff] %v5336
    %5405 = vst [vmem:[#allocation3 + $0x1a8] sm:$0xff] %v5337
    %5406 = vst [vmem:[#allocation3 + $0x1b0] sm:$0xff] %v5338
    %5407 = vst [vmem:[#allocation3 + $0x1b8] sm:$0xff] %v5339
    %5408 = vst [vmem:[#allocation3 + $0x1c0] sm:$0xff] %v5340
    %5409 = vst [vmem:[#allocation3 + $0x1c8] sm:$0xff] %v5341
    %5410 = vst [vmem:[#allocation3 + $0x1d0] sm:$0xff] %v5342
    %5411 = vst [vmem:[#allocation3 + $0x1d8] sm:$0xff] %v5343
    %5412 = vst [vmem:[#allocation3 + $0x1e0] sm:$0xff] %v5344
    %5413 = vst [vmem:[#allocation3 + $0x1e8] sm:$0xff] %v5345
    %5414 = vst [vmem:[#allocation3 + $0x1f0] sm:$0xff] %v5346
    %5415 = vst [vmem:[#allocation3 + $0x1f8] sm:$0xff] %v5347
    %5416 = vst [vmem:[#allocation3 + $0x200] sm:$0xff] %v5348
    %5417 = vst [vmem:[#allocation3 + $0x208] sm:$0xff] %v5349
    %5418 = vst [vmem:[#allocation3 + $0x210] sm:$0xff] %v5350
    %v5419 = vld [vmem:[#allocation3] sm:$0xff]
    %v5420 = vld [vmem:[#allocation3 + $0x8] sm:$0xff]
    %v5421 = vld [vmem:[#allocation3 + $0x10] sm:$0xff]
    %v5422 = vld [vmem:[#allocation3 + $0x18] sm:$0xff]
    %v5423 = vld [vmem:[#allocation3 + $0x20] sm:$0xff]
    %v5424 = vld [vmem:[#allocation3 + $0x28] sm:$0xff]
    %v5425 = vld [vmem:[#allocation3 + $0x30] sm:$0xff]
    %v5426 = vld [vmem:[#allocation3 + $0x38] sm:$0xff]
    %v5427 = vld [vmem:[#allocation3 + $0x40] sm:$0xff]
    %v5428 = vld [vmem:[#allocation3 + $0x48] sm:$0xff]
    %v5429 = vld [vmem:[#allocation3 + $0x50] sm:$0xff]
    %v5430 = vld [vmem:[#allocation3 + $0x58] sm:$0xff]
    %v5431 = vld [vmem:[#allocation3 + $0x60] sm:$0xff]
    %v5432 = vld [vmem:[#allocation3 + $0x68] sm:$0xff]
    %v5433 = vld [vmem:[#allocation3 + $0x70] sm:$0xff]
    %v5434 = vld [vmem:[#allocation3 + $0x78] sm:$0xff]
    %v5435 = vld [vmem:[#allocation3 + $0x80] sm:$0xff]
    %v5436 = vld [vmem:[#allocation3 + $0x88] sm:$0xff]
    %v5437 = vld [vmem:[#allocation3 + $0x90] sm:$0xff]
    %v5438 = vld [vmem:[#allocation3 + $0x98] sm:$0xff]
    %v5439 = vld [vmem:[#allocation3 + $0xa0] sm:$0xff]
    %v5440 = vld [vmem:[#allocation3 + $0xa8] sm:$0xff]
    %v5441 = vld [vmem:[#allocation3 + $0xb0] sm:$0xff]
    %v5442 = vld [vmem:[#allocation3 + $0xb8] sm:$0xff]
    %v5443 = vld [vmem:[#allocation3 + $0xc0] sm:$0xff]
    %v5444 = vld [vmem:[#allocation3 + $0xc8] sm:$0xff]
    %v5445 = vld [vmem:[#allocation3 + $0xd0] sm:$0xff]
    %v5446 = vld [vmem:[#allocation3 + $0xd8] sm:$0xff]
    %v5447 = vld [vmem:[#allocation3 + $0xe0] sm:$0xff]
    %v5448 = vld [vmem:[#allocation3 + $0xe8] sm:$0xff]
    %v5449 = vld [vmem:[#allocation3 + $0xf0] sm:$0xff]
    %v5450 = vld [vmem:[#allocation3 + $0xf8] sm:$0xff]
    %v5451 = vld [vmem:[#allocation3 + $0x100] sm:$0xff]
    %v5452 = vld [vmem:[#allocation3 + $0x108] sm:$0xff]
    %v5453 = vld [vmem:[#allocation3 + $0x110] sm:$0xff]
    %v5454 = vld [vmem:[#allocation3 + $0x118] sm:$0xff]
    %v5455 = vld [vmem:[#allocation3 + $0x120] sm:$0xff]
    %v5456 = vld [vmem:[#allocation3 + $0x128] sm:$0xff]
    %v5457 = vld [vmem:[#allocation3 + $0x130] sm:$0xff]
    %v5458 = vld [vmem:[#allocation3 + $0x138] sm:$0xff]
    %v5459 = vld [vmem:[#allocation3 + $0x140] sm:$0xff]
    %v5460 = vld [vmem:[#allocation3 + $0x148] sm:$0xff]
    %v5461 = vld [vmem:[#allocation3 + $0x150] sm:$0xff]
    %v5462 = vld [vmem:[#allocation3 + $0x158] sm:$0xff]
    %v5463 = vld [vmem:[#allocation3 + $0x160] sm:$0xff]
    %v5464 = vld [vmem:[#allocation3 + $0x168] sm:$0xff]
    %v5465 = vld [vmem:[#allocation3 + $0x170] sm:$0xff]
    %v5466 = vld [vmem:[#allocation3 + $0x178] sm:$0xff]
    %v5467 = vld [vmem:[#allocation3 + $0x180] sm:$0xff]
    %v5468 = vld [vmem:[#allocation3 + $0x188] sm:$0xff]
    %v5469 = vld [vmem:[#allocation3 + $0x190] sm:$0xff]
    %v5470 = vld [vmem:[#allocation3 + $0x198] sm:$0xff]
    %v5471 = vld [vmem:[#allocation3 + $0x1a0] sm:$0xff]
    %v5472 = vld [vmem:[#allocation3 + $0x1a8] sm:$0xff]
    %v5473 = vld [vmem:[#allocation3 + $0x1b0] sm:$0xff]
    %v5474 = vld [vmem:[#allocation3 + $0x1b8] sm:$0xff]
    %v5475 = vld [vmem:[#allocation3 + $0x1c0] sm:$0xff]
    %v5476 = vld [vmem:[#allocation3 + $0x1c8] sm:$0xff]
    %v5477 = vld [vmem:[#allocation3 + $0x1d0] sm:$0xff]
    %v5478 = vld [vmem:[#allocation3 + $0x1d8] sm:$0xff]
    %v5479 = vld [vmem:[#allocation3 + $0x1e0] sm:$0xff]
    %v5480 = vld [vmem:[#allocation3 + $0x1e8] sm:$0xff]
    %v5481 = vld [vmem:[#allocation3 + $0x1f0] sm:$0xff]
    %v5482 = vld [vmem:[#allocation3 + $0x1f8] sm:$0xff]
    %v5483 = vld [vmem:[#allocation3 + $0x200] sm:$0xff]
    %v5484 = vld [vmem:[#allocation3 + $0x208] sm:$0xff]
    %v5485 = vld [vmem:[#allocation3 + $0x210] sm:$0xff]
    %v5486 = vld [vmem:[#allocation3 + $0x218] sm:$0xff]
    %5555 = vrot.lane.b32.xlu0 %v5419, 127
    %v5556 = vpop.permute.xlu0 %5555
    %5557 = vrot.lane.b32.xlu0 %v5420, 127
    %v5558 = vpop.permute.xlu0 %5557
    %5559 = vrot.lane.b32.xlu0 %v5421, 127
    %v5560 = vpop.permute.xlu0 %5559
    %5561 = vrot.lane.b32.xlu0 %v5422, 127
    %v5562 = vpop.permute.xlu0 %5561
    %5563 = vrot.lane.b32.xlu0 %v5423, 127
    %v5564 = vpop.permute.xlu0 %5563
    %5565 = vrot.lane.b32.xlu0 %v5424, 127
    %v5566 = vpop.permute.xlu0 %5565
    %5567 = vrot.lane.b32.xlu0 %v5425, 127
    %v5568 = vpop.permute.xlu0 %5567
    %5569 = vrot.lane.b32.xlu0 %v5426, 127
    %v5570 = vpop.permute.xlu0 %5569
    %5571 = vrot.lane.b32.xlu0 %v5427, 127
    %v5572 = vpop.permute.xlu0 %5571
    %5573 = vrot.lane.b32.xlu0 %v5428, 127
    %v5574 = vpop.permute.xlu0 %5573
    %5575 = vrot.lane.b32.xlu0 %v5429, 127
    %v5576 = vpop.permute.xlu0 %5575
    %5577 = vrot.lane.b32.xlu0 %v5430, 127
    %v5578 = vpop.permute.xlu0 %5577
    %5579 = vrot.lane.b32.xlu0 %v5431, 127
    %v5580 = vpop.permute.xlu0 %5579
    %5581 = vrot.lane.b32.xlu0 %v5432, 127
    %v5582 = vpop.permute.xlu0 %5581
    %5583 = vrot.lane.b32.xlu0 %v5433, 127
    %v5584 = vpop.permute.xlu0 %5583
    %5585 = vrot.lane.b32.xlu0 %v5434, 127
    %v5586 = vpop.permute.xlu0 %5585
    %5587 = vrot.lane.b32.xlu0 %v5435, 127
    %v5588 = vpop.permute.xlu0 %5587
    %5589 = vrot.lane.b32.xlu0 %v5436, 127
    %v5590 = vpop.permute.xlu0 %5589
    %5591 = vrot.lane.b32.xlu0 %v5437, 127
    %v5592 = vpop.permute.xlu0 %5591
    %5593 = vrot.lane.b32.xlu0 %v5438, 127
    %v5594 = vpop.permute.xlu0 %5593
    %5595 = vrot.lane.b32.xlu0 %v5439, 127
    %v5596 = vpop.permute.xlu0 %5595
    %5597 = vrot.lane.b32.xlu0 %v5440, 127
    %v5598 = vpop.permute.xlu0 %5597
    %5599 = vrot.lane.b32.xlu0 %v5441, 127
    %v5600 = vpop.permute.xlu0 %5599
    %5601 = vrot.lane.b32.xlu0 %v5442, 127
    %v5602 = vpop.permute.xlu0 %5601
    %5603 = vrot.lane.b32.xlu0 %v5443, 127
    %v5604 = vpop.permute.xlu0 %5603
    %5605 = vrot.lane.b32.xlu0 %v5444, 127
    %v5606 = vpop.permute.xlu0 %5605
    %5607 = vrot.lane.b32.xlu0 %v5445, 127
    %v5608 = vpop.permute.xlu0 %5607
    %5609 = vrot.lane.b32.xlu0 %v5446, 127
    %v5610 = vpop.permute.xlu0 %5609
    %5611 = vrot.lane.b32.xlu0 %v5447, 127
    %v5612 = vpop.permute.xlu0 %5611
    %5613 = vrot.lane.b32.xlu0 %v5448, 127
    %v5614 = vpop.permute.xlu0 %5613
    %5615 = vrot.lane.b32.xlu0 %v5449, 127
    %v5616 = vpop.permute.xlu0 %5615
    %5617 = vrot.lane.b32.xlu0 %v5450, 127
    %v5618 = vpop.permute.xlu0 %5617
    %5619 = vrot.lane.b32.xlu0 %v5451, 127
    %v5620 = vpop.permute.xlu0 %5619
    %5621 = vrot.lane.b32.xlu0 %v5452, 127
    %v5622 = vpop.permute.xlu0 %5621
    %5623 = vrot.lane.b32.xlu0 %v5453, 127
    %v5624 = vpop.permute.xlu0 %5623
    %5625 = vrot.lane.b32.xlu0 %v5454, 127
    %v5626 = vpop.permute.xlu0 %5625
    %5627 = vrot.lane.b32.xlu0 %v5455, 127
    %v5628 = vpop.permute.xlu0 %5627
    %5629 = vrot.lane.b32.xlu0 %v5456, 127
    %v5630 = vpop.permute.xlu0 %5629
    %5631 = vrot.lane.b32.xlu0 %v5457, 127
    %v5632 = vpop.permute.xlu0 %5631
    %5633 = vrot.lane.b32.xlu0 %v5458, 127
    %v5634 = vpop.permute.xlu0 %5633
    %5635 = vrot.lane.b32.xlu0 %v5459, 127
    %v5636 = vpop.permute.xlu0 %5635
    %5637 = vrot.lane.b32.xlu0 %v5460, 127
    %v5638 = vpop.permute.xlu0 %5637
    %5639 = vrot.lane.b32.xlu0 %v5461, 127
    %v5640 = vpop.permute.xlu0 %5639
    %5641 = vrot.lane.b32.xlu0 %v5462, 127
    %v5642 = vpop.permute.xlu0 %5641
    %5643 = vrot.lane.b32.xlu0 %v5463, 127
    %v5644 = vpop.permute.xlu0 %5643
    %5645 = vrot.lane.b32.xlu0 %v5464, 127
    %v5646 = vpop.permute.xlu0 %5645
    %5647 = vrot.lane.b32.xlu0 %v5465, 127
    %v5648 = vpop.permute.xlu0 %5647
    %5649 = vrot.lane.b32.xlu0 %v5466, 127
    %v5650 = vpop.permute.xlu0 %5649
    %5651 = vrot.lane.b32.xlu0 %v5467, 127
    %v5652 = vpop.permute.xlu0 %5651
    %5653 = vrot.lane.b32.xlu0 %v5468, 127
    %v5654 = vpop.permute.xlu0 %5653
    %5655 = vrot.lane.b32.xlu0 %v5469, 127
    %v5656 = vpop.permute.xlu0 %5655
    %5657 = vrot.lane.b32.xlu0 %v5470, 127
    %v5658 = vpop.permute.xlu0 %5657
    %5659 = vrot.lane.b32.xlu0 %v5471, 127
    %v5660 = vpop.permute.xlu0 %5659
    %5661 = vrot.lane.b32.xlu0 %v5472, 127
    %v5662 = vpop.permute.xlu0 %5661
    %5663 = vrot.lane.b32.xlu0 %v5473, 127
    %v5664 = vpop.permute.xlu0 %5663
    %5665 = vrot.lane.b32.xlu0 %v5474, 127
    %v5666 = vpop.permute.xlu0 %5665
    %5667 = vrot.lane.b32.xlu0 %v5475, 127
    %v5668 = vpop.permute.xlu0 %5667
    %5669 = vrot.lane.b32.xlu0 %v5476, 127
    %v5670 = vpop.permute.xlu0 %5669
    %5671 = vrot.lane.b32.xlu0 %v5477, 127
    %v5672 = vpop.permute.xlu0 %5671
    %5673 = vrot.lane.b32.xlu0 %v5478, 127
    %v5674 = vpop.permute.xlu0 %5673
    %5675 = vrot.lane.b32.xlu0 %v5479, 127
    %v5676 = vpop.permute.xlu0 %5675
    %5677 = vrot.lane.b32.xlu0 %v5480, 127
    %v5678 = vpop.permute.xlu0 %5677
    %5679 = vrot.lane.b32.xlu0 %v5481, 127
    %v5680 = vpop.permute.xlu0 %5679
    %5681 = vrot.lane.b32.xlu0 %v5482, 127
    %v5682 = vpop.permute.xlu0 %5681
    %5683 = vrot.lane.b32.xlu0 %v5483, 127
    %v5684 = vpop.permute.xlu0 %5683
    %5685 = vrot.lane.b32.xlu0 %v5484, 127
    %v5686 = vpop.permute.xlu0 %5685
    %5687 = vrot.lane.b32.xlu0 %v5485, 127
    %v5688 = vpop.permute.xlu0 %5687
    %5689 = vrot.lane.b32.xlu0 %v5486, 127
    %v5690 = vpop.permute.xlu0 %5689
    %vm5691 = vcmask 1039360
    %v5692 = vsel %vm5691, %v5556, %v5558
    %v5693 = vsel %vm5691, %v5558, %v5560
    %v5694 = vsel %vm5691, %v5560, %v5562
    %v5695 = vsel %vm5691, %v5562, %v5564
    %v5696 = vsel %vm5691, %v5564, %v5566
    %v5697 = vsel %vm5691, %v5566, %v5568
    %v5698 = vsel %vm5691, %v5568, %v5570
    %v5699 = vsel %vm5691, %v5570, %v5572
    %v5700 = vsel %vm5691, %v5572, %v5574
    %v5701 = vsel %vm5691, %v5574, %v5576
    %v5702 = vsel %vm5691, %v5576, %v5578
    %v5703 = vsel %vm5691, %v5578, %v5580
    %v5704 = vsel %vm5691, %v5580, %v5582
    %v5705 = vsel %vm5691, %v5582, %v5584
    %v5706 = vsel %vm5691, %v5584, %v5586
    %v5707 = vsel %vm5691, %v5586, %v5588
    %v5708 = vsel %vm5691, %v5590, %v5592
    %v5709 = vsel %vm5691, %v5592, %v5594
    %v5710 = vsel %vm5691, %v5594, %v5596
    %v5711 = vsel %vm5691, %v5596, %v5598
    %v5712 = vsel %vm5691, %v5598, %v5600
    %v5713 = vsel %vm5691, %v5600, %v5602
    %v5714 = vsel %vm5691, %v5602, %v5604
    %v5715 = vsel %vm5691, %v5604, %v5606
    %v5716 = vsel %vm5691, %v5606, %v5608
    %v5717 = vsel %vm5691, %v5608, %v5610
    %v5718 = vsel %vm5691, %v5610, %v5612
    %v5719 = vsel %vm5691, %v5612, %v5614
    %v5720 = vsel %vm5691, %v5614, %v5616
    %v5721 = vsel %vm5691, %v5616, %v5618
    %v5722 = vsel %vm5691, %v5618, %v5620
    %v5723 = vsel %vm5691, %v5620, %v5622
    %v5724 = vsel %vm5691, %v5624, %v5626
    %v5725 = vsel %vm5691, %v5626, %v5628
    %v5726 = vsel %vm5691, %v5628, %v5630
    %v5727 = vsel %vm5691, %v5630, %v5632
    %v5728 = vsel %vm5691, %v5632, %v5634
    %v5729 = vsel %vm5691, %v5634, %v5636
    %v5730 = vsel %vm5691, %v5636, %v5638
    %v5731 = vsel %vm5691, %v5638, %v5640
    %v5732 = vsel %vm5691, %v5640, %v5642
    %v5733 = vsel %vm5691, %v5642, %v5644
    %v5734 = vsel %vm5691, %v5644, %v5646
    %v5735 = vsel %vm5691, %v5646, %v5648
    %v5736 = vsel %vm5691, %v5648, %v5650
    %v5737 = vsel %vm5691, %v5650, %v5652
    %v5738 = vsel %vm5691, %v5652, %v5654
    %v5739 = vsel %vm5691, %v5654, %v5656
    %v5740 = vsel %vm5691, %v5658, %v5660
    %v5741 = vsel %vm5691, %v5660, %v5662
    %v5742 = vsel %vm5691, %v5662, %v5664
    %v5743 = vsel %vm5691, %v5664, %v5666
    %v5744 = vsel %vm5691, %v5666, %v5668
    %v5745 = vsel %vm5691, %v5668, %v5670
    %v5746 = vsel %vm5691, %v5670, %v5672
    %v5747 = vsel %vm5691, %v5672, %v5674
    %v5748 = vsel %vm5691, %v5674, %v5676
    %v5749 = vsel %vm5691, %v5676, %v5678
    %v5750 = vsel %vm5691, %v5678, %v5680
    %v5751 = vsel %vm5691, %v5680, %v5682
    %v5752 = vsel %vm5691, %v5682, %v5684
    %v5753 = vsel %vm5691, %v5684, %v5686
    %v5754 = vsel %vm5691, %v5686, %v5688
    %v5755 = vsel %vm5691, %v5688, %v5690
    %v5820 = vmax.f32 %v5287, %v5692
    %v5821 = vmax.f32 %v5288, %v5693
    %v5822 = vmax.f32 %v5289, %v5694
    %v5823 = vmax.f32 %v5290, %v5695
    %v5824 = vmax.f32 %v5291, %v5696
    %v5825 = vmax.f32 %v5292, %v5697
    %v5826 = vmax.f32 %v5293, %v5698
    %v5827 = vmax.f32 %v5294, %v5699
    %v5828 = vmax.f32 %v5295, %v5700
    %v5829 = vmax.f32 %v5296, %v5701
    %v5830 = vmax.f32 %v5297, %v5702
    %v5831 = vmax.f32 %v5298, %v5703
    %v5832 = vmax.f32 %v5299, %v5704
    %v5833 = vmax.f32 %v5300, %v5705
    %v5834 = vmax.f32 %v5301, %v5706
    %v5835 = vmax.f32 %v5302, %v5707
    %v5836 = vmax.f32 %v5303, %v5708
    %v5837 = vmax.f32 %v5304, %v5709
    %v5838 = vmax.f32 %v5305, %v5710
    %v5839 = vmax.f32 %v5306, %v5711
    %v5840 = vmax.f32 %v5307, %v5712
    %v5841 = vmax.f32 %v5308, %v5713
    %v5842 = vmax.f32 %v5309, %v5714
    %v5843 = vmax.f32 %v5310, %v5715
    %v5844 = vmax.f32 %v5311, %v5716
    %v5845 = vmax.f32 %v5312, %v5717
    %v5846 = vmax.f32 %v5313, %v5718
    %v5847 = vmax.f32 %v5314, %v5719
    %v5848 = vmax.f32 %v5315, %v5720
    %v5849 = vmax.f32 %v5316, %v5721
    %v5850 = vmax.f32 %v5317, %v5722
    %v5851 = vmax.f32 %v5318, %v5723
    %v5852 = vmax.f32 %v5319, %v5724
    %v5853 = vmax.f32 %v5320, %v5725
    %v5854 = vmax.f32 %v5321, %v5726
    %v5855 = vmax.f32 %v5322, %v5727
    %v5856 = vmax.f32 %v5323, %v5728
    %v5857 = vmax.f32 %v5324, %v5729
    %v5858 = vmax.f32 %v5325, %v5730
    %v5859 = vmax.f32 %v5326, %v5731
    %v5860 = vmax.f32 %v5327, %v5732
    %v5861 = vmax.f32 %v5328, %v5733
    %v5862 = vmax.f32 %v5329, %v5734
    %v5863 = vmax.f32 %v5330, %v5735
    %v5864 = vmax.f32 %v5331, %v5736
    %v5865 = vmax.f32 %v5332, %v5737
    %v5866 = vmax.f32 %v5333, %v5738
    %v5867 = vmax.f32 %v5334, %v5739
    %v5868 = vmax.f32 %v5335, %v5740
    %v5869 = vmax.f32 %v5336, %v5741
    %v5870 = vmax.f32 %v5337, %v5742
    %v5871 = vmax.f32 %v5338, %v5743
    %v5872 = vmax.f32 %v5339, %v5744
    %v5873 = vmax.f32 %v5340, %v5745
    %v5874 = vmax.f32 %v5341, %v5746
    %v5875 = vmax.f32 %v5342, %v5747
    %v5876 = vmax.f32 %v5343, %v5748
    %v5877 = vmax.f32 %v5344, %v5749
    %v5878 = vmax.f32 %v5345, %v5750
    %v5879 = vmax.f32 %v5346, %v5751
    %v5880 = vmax.f32 %v5347, %v5752
    %v5881 = vmax.f32 %v5348, %v5753
    %v5882 = vmax.f32 %v5349, %v5754
    %v5883 = vmax.f32 %v5350, %v5755
    %v5888 = vmax.f32 %v5419, %v5692
    %v5889 = vmax.f32 %v5420, %v5693
    %v5890 = vmax.f32 %v5421, %v5694
    %v5891 = vmax.f32 %v5422, %v5695
    %v5892 = vmax.f32 %v5423, %v5696
    %v5893 = vmax.f32 %v5424, %v5697
    %v5894 = vmax.f32 %v5425, %v5698
    %v5895 = vmax.f32 %v5426, %v5699
    %v5896 = vmax.f32 %v5427, %v5700
    %v5897 = vmax.f32 %v5428, %v5701
    %v5898 = vmax.f32 %v5429, %v5702
    %v5899 = vmax.f32 %v5430, %v5703
    %v5900 = vmax.f32 %v5431, %v5704
    %v5901 = vmax.f32 %v5432, %v5705
    %v5902 = vmax.f32 %v5433, %v5706
    %v5903 = vmax.f32 %v5434, %v5707
    %v5904 = vmax.f32 %v5435, %v5588
    %v5905 = vmax.f32 %v5436, %v5708
    %v5906 = vmax.f32 %v5437, %v5709
    %v5907 = vmax.f32 %v5438, %v5710
    %v5908 = vmax.f32 %v5439, %v5711
    %v5909 = vmax.f32 %v5440, %v5712
    %v5910 = vmax.f32 %v5441, %v5713
    %v5911 = vmax.f32 %v5442, %v5714
    %v5912 = vmax.f32 %v5443, %v5715
    %v5913 = vmax.f32 %v5444, %v5716
    %v5914 = vmax.f32 %v5445, %v5717
    %v5915 = vmax.f32 %v5446, %v5718
    %v5916 = vmax.f32 %v5447, %v5719
    %v5917 = vmax.f32 %v5448, %v5720
    %v5918 = vmax.f32 %v5449, %v5721
    %v5919 = vmax.f32 %v5450, %v5722
    %v5920 = vmax.f32 %v5451, %v5723
    %v5921 = vmax.f32 %v5452, %v5622
    %v5922 = vmax.f32 %v5453, %v5724
    %v5923 = vmax.f32 %v5454, %v5725
    %v5924 = vmax.f32 %v5455, %v5726
    %v5925 = vmax.f32 %v5456, %v5727
    %v5926 = vmax.f32 %v5457, %v5728
    %v5927 = vmax.f32 %v5458, %v5729
    %v5928 = vmax.f32 %v5459, %v5730
    %v5929 = vmax.f32 %v5460, %v5731
    %v5930 = vmax.f32 %v5461, %v5732
    %v5931 = vmax.f32 %v5462, %v5733
    %v5932 = vmax.f32 %v5463, %v5734
    %v5933 = vmax.f32 %v5464, %v5735
    %v5934 = vmax.f32 %v5465, %v5736
    %v5935 = vmax.f32 %v5466, %v5737
    %v5936 = vmax.f32 %v5467, %v5738
    %v5937 = vmax.f32 %v5468, %v5739
    %v5938 = vmax.f32 %v5469, %v5656
    %v5939 = vmax.f32 %v5470, %v5740
    %v5940 = vmax.f32 %v5471, %v5741
    %v5941 = vmax.f32 %v5472, %v5742
    %v5942 = vmax.f32 %v5473, %v5743
    %v5943 = vmax.f32 %v5474, %v5744
    %v5944 = vmax.f32 %v5475, %v5745
    %v5945 = vmax.f32 %v5476, %v5746
    %v5946 = vmax.f32 %v5477, %v5747
    %v5947 = vmax.f32 %v5478, %v5748
    %v5948 = vmax.f32 %v5479, %v5749
    %v5949 = vmax.f32 %v5480, %v5750
    %v5950 = vmax.f32 %v5481, %v5751
    %v5951 = vmax.f32 %v5482, %v5752
    %v5952 = vmax.f32 %v5483, %v5753
    %v5953 = vmax.f32 %v5484, %v5754
    %v5954 = vmax.f32 %v5485, %v5755
    %v5955 = vmax.f32 %v5486, %v5690
    %6024 = vrot.lane.b32.xlu0 %v5888, 96
    %v6025 = vpop.permute.xlu0 %6024
    %6026 = vrot.lane.b32.xlu0 %v5889, 96
    %v6027 = vpop.permute.xlu0 %6026
    %6028 = vrot.lane.b32.xlu0 %v5890, 96
    %v6029 = vpop.permute.xlu0 %6028
    %6030 = vrot.lane.b32.xlu0 %v5891, 96
    %v6031 = vpop.permute.xlu0 %6030
    %6032 = vrot.lane.b32.xlu0 %v5892, 96
    %v6033 = vpop.permute.xlu0 %6032
    %6034 = vrot.lane.b32.xlu0 %v5893, 96
    %v6035 = vpop.permute.xlu0 %6034
    %6036 = vrot.lane.b32.xlu0 %v5894, 96
    %v6037 = vpop.permute.xlu0 %6036
    %6038 = vrot.lane.b32.xlu0 %v5895, 96
    %v6039 = vpop.permute.xlu0 %6038
    %6040 = vrot.lane.b32.xlu0 %v5896, 96
    %v6041 = vpop.permute.xlu0 %6040
    %6042 = vrot.lane.b32.xlu0 %v5897, 96
    %v6043 = vpop.permute.xlu0 %6042
    %6044 = vrot.lane.b32.xlu0 %v5898, 96
    %v6045 = vpop.permute.xlu0 %6044
    %6046 = vrot.lane.b32.xlu0 %v5899, 96
    %v6047 = vpop.permute.xlu0 %6046
    %6048 = vrot.lane.b32.xlu0 %v5900, 96
    %v6049 = vpop.permute.xlu0 %6048
    %6050 = vrot.lane.b32.xlu0 %v5901, 96
    %v6051 = vpop.permute.xlu0 %6050
    %6052 = vrot.lane.b32.xlu0 %v5902, 96
    %v6053 = vpop.permute.xlu0 %6052
    %6054 = vrot.lane.b32.xlu0 %v5903, 96
    %v6055 = vpop.permute.xlu0 %6054
    %6056 = vrot.lane.b32.xlu0 %v5904, 96
    %v6057 = vpop.permute.xlu0 %6056
    %6058 = vrot.lane.b32.xlu0 %v5905, 96
    %v6059 = vpop.permute.xlu0 %6058
    %6060 = vrot.lane.b32.xlu0 %v5906, 96
    %v6061 = vpop.permute.xlu0 %6060
    %6062 = vrot.lane.b32.xlu0 %v5907, 96
    %v6063 = vpop.permute.xlu0 %6062
    %6064 = vrot.lane.b32.xlu0 %v5908, 96
    %v6065 = vpop.permute.xlu0 %6064
    %6066 = vrot.lane.b32.xlu0 %v5909, 96
    %v6067 = vpop.permute.xlu0 %6066
    %6068 = vrot.lane.b32.xlu0 %v5910, 96
    %v6069 = vpop.permute.xlu0 %6068
    %6070 = vrot.lane.b32.xlu0 %v5911, 96
    %v6071 = vpop.permute.xlu0 %6070
    %6072 = vrot.lane.b32.xlu0 %v5912, 96
    %v6073 = vpop.permute.xlu0 %6072
    %6074 = vrot.lane.b32.xlu0 %v5913, 96
    %v6075 = vpop.permute.xlu0 %6074
    %6076 = vrot.lane.b32.xlu0 %v5914, 96
    %v6077 = vpop.permute.xlu0 %6076
    %6078 = vrot.lane.b32.xlu0 %v5915, 96
    %v6079 = vpop.permute.xlu0 %6078
    %6080 = vrot.lane.b32.xlu0 %v5916, 96
    %v6081 = vpop.permute.xlu0 %6080
    %6082 = vrot.lane.b32.xlu0 %v5917, 96
    %v6083 = vpop.permute.xlu0 %6082
    %6084 = vrot.lane.b32.xlu0 %v5918, 96
    %v6085 = vpop.permute.xlu0 %6084
    %6086 = vrot.lane.b32.xlu0 %v5919, 96
    %v6087 = vpop.permute.xlu0 %6086
    %6088 = vrot.lane.b32.xlu0 %v5920, 96
    %v6089 = vpop.permute.xlu0 %6088
    %6090 = vrot.lane.b32.xlu0 %v5921, 96
    %v6091 = vpop.permute.xlu0 %6090
    %6092 = vrot.lane.b32.xlu0 %v5922, 96
    %v6093 = vpop.permute.xlu0 %6092
    %6094 = vrot.lane.b32.xlu0 %v5923, 96
    %v6095 = vpop.permute.xlu0 %6094
    %6096 = vrot.lane.b32.xlu0 %v5924, 96
    %v6097 = vpop.permute.xlu0 %6096
    %6098 = vrot.lane.b32.xlu0 %v5925, 96
    %v6099 = vpop.permute.xlu0 %6098
    %6100 = vrot.lane.b32.xlu0 %v5926, 96
    %v6101 = vpop.permute.xlu0 %6100
    %6102 = vrot.lane.b32.xlu0 %v5927, 96
    %v6103 = vpop.permute.xlu0 %6102
    %6104 = vrot.lane.b32.xlu0 %v5928, 96
    %v6105 = vpop.permute.xlu0 %6104
    %6106 = vrot.lane.b32.xlu0 %v5929, 96
    %v6107 = vpop.permute.xlu0 %6106
    %6108 = vrot.lane.b32.xlu0 %v5930, 96
    %v6109 = vpop.permute.xlu0 %6108
    %6110 = vrot.lane.b32.xlu0 %v5931, 96
    %v6111 = vpop.permute.xlu0 %6110
    %6112 = vrot.lane.b32.xlu0 %v5932, 96
    %v6113 = vpop.permute.xlu0 %6112
    %6114 = vrot.lane.b32.xlu0 %v5933, 96
    %v6115 = vpop.permute.xlu0 %6114
    %6116 = vrot.lane.b32.xlu0 %v5934, 96
    %v6117 = vpop.permute.xlu0 %6116
    %6118 = vrot.lane.b32.xlu0 %v5935, 96
    %v6119 = vpop.permute.xlu0 %6118
    %6120 = vrot.lane.b32.xlu0 %v5936, 96
    %v6121 = vpop.permute.xlu0 %6120
    %6122 = vrot.lane.b32.xlu0 %v5937, 96
    %v6123 = vpop.permute.xlu0 %6122
    %6124 = vrot.lane.b32.xlu0 %v5938, 96
    %v6125 = vpop.permute.xlu0 %6124
    %6126 = vrot.lane.b32.xlu0 %v5939, 96
    %v6127 = vpop.permute.xlu0 %6126
    %6128 = vrot.lane.b32.xlu0 %v5940, 96
    %v6129 = vpop.permute.xlu0 %6128
    %6130 = vrot.lane.b32.xlu0 %v5941, 96
    %v6131 = vpop.permute.xlu0 %6130
    %6132 = vrot.lane.b32.xlu0 %v5942, 96
    %v6133 = vpop.permute.xlu0 %6132
    %6134 = vrot.lane.b32.xlu0 %v5943, 96
    %v6135 = vpop.permute.xlu0 %6134
    %6136 = vrot.lane.b32.xlu0 %v5944, 96
    %v6137 = vpop.permute.xlu0 %6136
    %6138 = vrot.lane.b32.xlu0 %v5945, 96
    %v6139 = vpop.permute.xlu0 %6138
    %6140 = vrot.lane.b32.xlu0 %v5946, 96
    %v6141 = vpop.permute.xlu0 %6140
    %6142 = vrot.lane.b32.xlu0 %v5947, 96
    %v6143 = vpop.permute.xlu0 %6142
    %6144 = vrot.lane.b32.xlu0 %v5948, 96
    %v6145 = vpop.permute.xlu0 %6144
    %6146 = vrot.lane.b32.xlu0 %v5949, 96
    %v6147 = vpop.permute.xlu0 %6146
    %6148 = vrot.lane.b32.xlu0 %v5950, 96
    %v6149 = vpop.permute.xlu0 %6148
    %6150 = vrot.lane.b32.xlu0 %v5951, 96
    %v6151 = vpop.permute.xlu0 %6150
    %6152 = vrot.lane.b32.xlu0 %v5952, 96
    %v6153 = vpop.permute.xlu0 %6152
    %6154 = vrot.lane.b32.xlu0 %v5953, 96
    %v6155 = vpop.permute.xlu0 %6154
    %6156 = vrot.lane.b32.xlu0 %v5954, 96
    %v6157 = vpop.permute.xlu0 %6156
    %6158 = vrot.lane.b32.xlu0 %v5955, 96
    %v6159 = vpop.permute.xlu0 %6158
    %v6160 = vsel %vm82, %v6025, %v6027
    %v6161 = vsel %vm82, %v6027, %v6029
    %v6162 = vsel %vm82, %v6029, %v6031
    %v6163 = vsel %vm82, %v6031, %v6033
    %v6164 = vsel %vm82, %v6033, %v6035
    %v6165 = vsel %vm82, %v6035, %v6037
    %v6166 = vsel %vm82, %v6037, %v6039
    %v6167 = vsel %vm82, %v6039, %v6041
    %v6168 = vsel %vm82, %v6041, %v6043
    %v6169 = vsel %vm82, %v6043, %v6045
    %v6170 = vsel %vm82, %v6045, %v6047
    %v6171 = vsel %vm82, %v6047, %v6049
    %v6172 = vsel %vm82, %v6049, %v6051
    %v6173 = vsel %vm82, %v6051, %v6053
    %v6174 = vsel %vm82, %v6053, %v6055
    %v6175 = vsel %vm82, %v6055, %v6057
    %v6176 = vsel %vm82, %v6059, %v6061
    %v6177 = vsel %vm82, %v6061, %v6063
    %v6178 = vsel %vm82, %v6063, %v6065
    %v6179 = vsel %vm82, %v6065, %v6067
    %v6180 = vsel %vm82, %v6067, %v6069
    %v6181 = vsel %vm82, %v6069, %v6071
    %v6182 = vsel %vm82, %v6071, %v6073
    %v6183 = vsel %vm82, %v6073, %v6075
    %v6184 = vsel %vm82, %v6075, %v6077
    %v6185 = vsel %vm82, %v6077, %v6079
    %v6186 = vsel %vm82, %v6079, %v6081
    %v6187 = vsel %vm82, %v6081, %v6083
    %v6188 = vsel %vm82, %v6083, %v6085
    %v6189 = vsel %vm82, %v6085, %v6087
    %v6190 = vsel %vm82, %v6087, %v6089
    %v6191 = vsel %vm82, %v6089, %v6091
    %v6192 = vsel %vm82, %v6093, %v6095
    %v6193 = vsel %vm82, %v6095, %v6097
    %v6194 = vsel %vm82, %v6097, %v6099
    %v6195 = vsel %vm82, %v6099, %v6101
    %v6196 = vsel %vm82, %v6101, %v6103
    %v6197 = vsel %vm82, %v6103, %v6105
    %v6198 = vsel %vm82, %v6105, %v6107
    %v6199 = vsel %vm82, %v6107, %v6109
    %v6200 = vsel %vm82, %v6109, %v6111
    %v6201 = vsel %vm82, %v6111, %v6113
    %v6202 = vsel %vm82, %v6113, %v6115
    %v6203 = vsel %vm82, %v6115, %v6117
    %v6204 = vsel %vm82, %v6117, %v6119
    %v6205 = vsel %vm82, %v6119, %v6121
    %v6206 = vsel %vm82, %v6121, %v6123
    %v6207 = vsel %vm82, %v6123, %v6125
    %v6208 = vsel %vm82, %v6127, %v6129
    %v6209 = vsel %vm82, %v6129, %v6131
    %v6210 = vsel %vm82, %v6131, %v6133
    %v6211 = vsel %vm82, %v6133, %v6135
    %v6212 = vsel %vm82, %v6135, %v6137
    %v6213 = vsel %vm82, %v6137, %v6139
    %v6214 = vsel %vm82, %v6139, %v6141
    %v6215 = vsel %vm82, %v6141, %v6143
    %v6216 = vsel %vm82, %v6143, %v6145
    %v6217 = vsel %vm82, %v6145, %v6147
    %v6218 = vsel %vm82, %v6147, %v6149
    %v6219 = vsel %vm82, %v6149, %v6151
    %v6220 = vsel %vm82, %v6151, %v6153
    %v6221 = vsel %vm82, %v6153, %v6155
    %v6222 = vsel %vm82, %v6155, %v6157
    %v6223 = vsel %vm82, %v6157, %v6159
    %v6288 = vmax.f32 %v5820, %v6160
    %v6289 = vmax.f32 %v5821, %v6161
    %v6290 = vmax.f32 %v5822, %v6162
    %v6291 = vmax.f32 %v5823, %v6163
    %v6292 = vmax.f32 %v5824, %v6164
    %v6293 = vmax.f32 %v5825, %v6165
    %v6294 = vmax.f32 %v5826, %v6166
    %v6295 = vmax.f32 %v5827, %v6167
    %v6296 = vmax.f32 %v5828, %v6168
    %v6297 = vmax.f32 %v5829, %v6169
    %v6298 = vmax.f32 %v5830, %v6170
    %v6299 = vmax.f32 %v5831, %v6171
    %v6300 = vmax.f32 %v5832, %v6172
    %v6301 = vmax.f32 %v5833, %v6173
    %v6302 = vmax.f32 %v5834, %v6174
    %v6303 = vmax.f32 %v5835, %v6175
    %v6304 = vmax.f32 %v5836, %v6176
    %v6305 = vmax.f32 %v5837, %v6177
    %v6306 = vmax.f32 %v5838, %v6178
    %v6307 = vmax.f32 %v5839, %v6179
    %v6308 = vmax.f32 %v5840, %v6180
    %v6309 = vmax.f32 %v5841, %v6181
    %v6310 = vmax.f32 %v5842, %v6182
    %v6311 = vmax.f32 %v5843, %v6183
    %v6312 = vmax.f32 %v5844, %v6184
    %v6313 = vmax.f32 %v5845, %v6185
    %v6314 = vmax.f32 %v5846, %v6186
    %v6315 = vmax.f32 %v5847, %v6187
    %v6316 = vmax.f32 %v5848, %v6188
    %v6317 = vmax.f32 %v5849, %v6189
    %v6318 = vmax.f32 %v5850, %v6190
    %v6319 = vmax.f32 %v5851, %v6191
    %v6320 = vmax.f32 %v5852, %v6192
    %v6321 = vmax.f32 %v5853, %v6193
    %v6322 = vmax.f32 %v5854, %v6194
    %v6323 = vmax.f32 %v5855, %v6195
    %v6324 = vmax.f32 %v5856, %v6196
    %v6325 = vmax.f32 %v5857, %v6197
    %v6326 = vmax.f32 %v5858, %v6198
    %v6327 = vmax.f32 %v5859, %v6199
    %v6328 = vmax.f32 %v5860, %v6200
    %v6329 = vmax.f32 %v5861, %v6201
    %v6330 = vmax.f32 %v5862, %v6202
    %v6331 = vmax.f32 %v5863, %v6203
    %v6332 = vmax.f32 %v5864, %v6204
    %v6333 = vmax.f32 %v5865, %v6205
    %v6334 = vmax.f32 %v5866, %v6206
    %v6335 = vmax.f32 %v5867, %v6207
    %v6336 = vmax.f32 %v5868, %v6208
    %v6337 = vmax.f32 %v5869, %v6209
    %v6338 = vmax.f32 %v5870, %v6210
    %v6339 = vmax.f32 %v5871, %v6211
    %v6340 = vmax.f32 %v5872, %v6212
    %v6341 = vmax.f32 %v5873, %v6213
    %v6342 = vmax.f32 %v5874, %v6214
    %v6343 = vmax.f32 %v5875, %v6215
    %v6344 = vmax.f32 %v5876, %v6216
    %v6345 = vmax.f32 %v5877, %v6217
    %v6346 = vmax.f32 %v5878, %v6218
    %v6347 = vmax.f32 %v5879, %v6219
    %v6348 = vmax.f32 %v5880, %v6220
    %v6349 = vmax.f32 %v5881, %v6221
    %v6350 = vmax.f32 %v5882, %v6222
    %v6351 = vmax.f32 %v5883, %v6223
    %v6352 = vld [vmem:[#allocation7] sm:$0x1]
    %v6353 = vld [vmem:[#allocation4] sm:$0xff]
    %v6354 = vld [vmem:[#allocation4 + $0x8] sm:$0xff]
    %v6355 = vld [vmem:[#allocation4 + $0x10] sm:$0xff]
    %v6356 = vld [vmem:[#allocation4 + $0x18] sm:$0xff]
    %v6357 = vld [vmem:[#allocation4 + $0x20] sm:$0xff]
    %v6358 = vld [vmem:[#allocation4 + $0x28] sm:$0xff]
    %v6359 = vld [vmem:[#allocation4 + $0x30] sm:$0xff]
    %v6360 = vld [vmem:[#allocation4 + $0x38] sm:$0xff]
    %v6361 = vld [vmem:[#allocation4 + $0x40] sm:$0xff]
    %v6362 = vld [vmem:[#allocation4 + $0x48] sm:$0xff]
    %v6363 = vld [vmem:[#allocation4 + $0x50] sm:$0xff]
    %v6364 = vld [vmem:[#allocation4 + $0x58] sm:$0xff]
    %v6365 = vld [vmem:[#allocation4 + $0x60] sm:$0xff]
    %v6366 = vld [vmem:[#allocation4 + $0x68] sm:$0xff]
    %v6367 = vld [vmem:[#allocation4 + $0x70] sm:$0xff]
    %v6368 = vld [vmem:[#allocation4 + $0x78] sm:$0xff]
    %v6369 = vld [vmem:[#allocation4 + $0x80] sm:$0xff]
    %v6370 = vld [vmem:[#allocation4 + $0x88] sm:$0xff]
    %v6371 = vld [vmem:[#allocation4 + $0x90] sm:$0xff]
    %v6372 = vld [vmem:[#allocation4 + $0x98] sm:$0xff]
    %v6373 = vld [vmem:[#allocation4 + $0xa0] sm:$0xff]
    %v6374 = vld [vmem:[#allocation4 + $0xa8] sm:$0xff]
    %v6375 = vld [vmem:[#allocation4 + $0xb0] sm:$0xff]
    %v6376 = vld [vmem:[#allocation4 + $0xb8] sm:$0xff]
    %v6377 = vld [vmem:[#allocation4 + $0xc0] sm:$0xff]
    %v6378 = vld [vmem:[#allocation4 + $0xc8] sm:$0xff]
    %v6379 = vld [vmem:[#allocation4 + $0xd0] sm:$0xff]
    %v6380 = vld [vmem:[#allocation4 + $0xd8] sm:$0xff]
    %v6381 = vld [vmem:[#allocation4 + $0xe0] sm:$0xff]
    %v6382 = vld [vmem:[#allocation4 + $0xe8] sm:$0xff]
    %v6383 = vld [vmem:[#allocation4 + $0xf0] sm:$0xff]
    %v6384 = vld [vmem:[#allocation4 + $0xf8] sm:$0xff]
    %v6385 = vmul.f32 %v6288, %v6353
    %v6386 = vmul.f32 %v6289, %v6354
    %v6387 = vmul.f32 %v6290, %v6355
    %v6388 = vmul.f32 %v6291, %v6356
    %v6389 = vmul.f32 %v6292, %v6357
    %v6390 = vmul.f32 %v6293, %v6358
    %v6391 = vmul.f32 %v6294, %v6359
    %v6392 = vmul.f32 %v6295, %v6360
    %v6393 = vmul.f32 %v6304, %v6361
    %v6394 = vmul.f32 %v6305, %v6362
    %v6395 = vmul.f32 %v6306, %v6363
    %v6396 = vmul.f32 %v6307, %v6364
    %v6397 = vmul.f32 %v6308, %v6365
    %v6398 = vmul.f32 %v6309, %v6366
    %v6399 = vmul.f32 %v6310, %v6367
    %v6400 = vmul.f32 %v6311, %v6368
    %v6401 = vmul.f32 %v6320, %v6369
    %v6402 = vmul.f32 %v6321, %v6370
    %v6403 = vmul.f32 %v6322, %v6371
    %v6404 = vmul.f32 %v6323, %v6372
    %v6405 = vmul.f32 %v6324, %v6373
    %v6406 = vmul.f32 %v6325, %v6374
    %v6407 = vmul.f32 %v6326, %v6375
    %v6408 = vmul.f32 %v6327, %v6376
    %v6409 = vmul.f32 %v6336, %v6377
    %v6410 = vmul.f32 %v6337, %v6378
    %v6411 = vmul.f32 %v6338, %v6379
    %v6412 = vmul.f32 %v6339, %v6380
    %v6413 = vmul.f32 %v6340, %v6381
    %v6414 = vmul.f32 %v6341, %v6382
    %v6415 = vmul.f32 %v6342, %v6383
    %v6416 = vmul.f32 %v6343, %v6384
    %v6417 = vadd.f32 %v6385, %v6386
    %v6418 = vadd.f32 %v6417, %v6387
    %v6419 = vadd.f32 %v6418, %v6388
    %v6420 = vadd.f32 %v6419, %v6389
    %v6421 = vadd.f32 %v6420, %v6390
    %v6422 = vadd.f32 %v6421, %v6391
    %v6423 = vadd.f32 %v6422, %v6392
    %v6424 = vadd.f32 %v6423, %v6393
    %v6425 = vadd.f32 %v6424, %v6394
    %v6426 = vadd.f32 %v6425, %v6395
    %v6427 = vadd.f32 %v6426, %v6396
    %v6428 = vadd.f32 %v6427, %v6397
    %v6429 = vadd.f32 %v6428, %v6398
    %v6430 = vadd.f32 %v6429, %v6399
    %v6431 = vadd.f32 %v6430, %v6400
    %v6432 = vadd.f32 %v6431, %v6401
    %v6433 = vadd.f32 %v6432, %v6402
    %v6434 = vadd.f32 %v6433, %v6403
    %v6435 = vadd.f32 %v6434, %v6404
    %v6436 = vadd.f32 %v6435, %v6405
    %v6437 = vadd.f32 %v6436, %v6406
    %v6438 = vadd.f32 %v6437, %v6407
    %v6439 = vadd.f32 %v6438, %v6408
    %v6440 = vadd.f32 %v6439, %v6409
    %v6441 = vadd.f32 %v6440, %v6410
    %v6442 = vadd.f32 %v6441, %v6411
    %v6443 = vadd.f32 %v6442, %v6412
    %v6444 = vadd.f32 %v6443, %v6413
    %v6445 = vadd.f32 %v6444, %v6414
    %v6446 = vadd.f32 %v6445, %v6415
    %v6447 = vadd.f32 %v6446, %v6416
    %6448 = vadd.xlane.f32.xlu0 %v6447
    %v6449 = vpop.xlane.xlu0 %6448
    %v6450 = vrot.slane %v6449, 4
    %v6451 = vadd.f32 %v6449, %v6450
    %v6452 = vrot.slane %v6451, 2
    %v6453 = vadd.f32 %v6451, %v6452
    %v6454 = vrot.slane %v6453, 1
    %v6455 = vadd.f32 %v6453, %v6454
    %s6456 = vtos %v6455
    %s6457 = vtos %v6352
    %s6458 = sadd.f32 %s6456, %s6457
    %v6459 = vstv %s6458
    %vm6460 = vcmask 0
    %6461 = vst.msk [vmem:[#allocation9] sm:$0x1] %vm6460, %v6459
    %v6462 = vmul.f32 %v6296, %v6353
    %v6463 = vmul.f32 %v6297, %v6354
    %v6464 = vmul.f32 %v6298, %v6355
    %v6465 = vmul.f32 %v6299, %v6356
    %v6466 = vmul.f32 %v6300, %v6357
    %v6467 = vmul.f32 %v6301, %v6358
    %v6468 = vmul.f32 %v6302, %v6359
    %v6469 = vmul.f32 %v6303, %v6360
    %v6470 = vmul.f32 %v6312, %v6361
    %v6471 = vmul.f32 %v6313, %v6362
    %v6472 = vmul.f32 %v6314, %v6363
    %v6473 = vmul.f32 %v6315, %v6364
    %v6474 = vmul.f32 %v6316, %v6365
    %v6475 = vmul.f32 %v6317, %v6366
    %v6476 = vmul.f32 %v6318, %v6367
    %v6477 = vmul.f32 %v6319, %v6368
    %v6478 = vmul.f32 %v6328, %v6369
    %v6479 = vmul.f32 %v6329, %v6370
    %v6480 = vmul.f32 %v6330, %v6371
    %v6481 = vmul.f32 %v6331, %v6372
    %v6482 = vmul.f32 %v6332, %v6373
    %v6483 = vmul.f32 %v6333, %v6374
    %v6484 = vmul.f32 %v6334, %v6375
    %v6485 = vmul.f32 %v6335, %v6376
    %v6486 = vmul.f32 %v6344, %v6377
    %v6487 = vmul.f32 %v6345, %v6378
    %v6488 = vmul.f32 %v6346, %v6379
    %v6489 = vmul.f32 %v6347, %v6380
    %v6490 = vmul.f32 %v6348, %v6381
    %v6491 = vmul.f32 %v6349, %v6382
    %v6492 = vmul.f32 %v6350, %v6383
    %v6493 = vmul.f32 %v6351, %v6384
    %v6494 = vadd.f32 %v6462, %v6463
    %v6495 = vadd.f32 %v6494, %v6464
    %v6496 = vadd.f32 %v6495, %v6465
    %v6497 = vadd.f32 %v6496, %v6466
    %v6498 = vadd.f32 %v6497, %v6467
    %v6499 = vadd.f32 %v6498, %v6468
    %v6500 = vadd.f32 %v6499, %v6469
    %v6501 = vadd.f32 %v6500, %v6470
    %v6502 = vadd.f32 %v6501, %v6471
    %v6503 = vadd.f32 %v6502, %v6472
    %v6504 = vadd.f32 %v6503, %v6473
    %v6505 = vadd.f32 %v6504, %v6474
    %v6506 = vadd.f32 %v6505, %v6475
    %v6507 = vadd.f32 %v6506, %v6476
    %v6508 = vadd.f32 %v6507, %v6477
    %v6509 = vadd.f32 %v6508, %v6478
    %v6510 = vadd.f32 %v6509, %v6479
    %v6511 = vadd.f32 %v6510, %v6480
    %v6512 = vadd.f32 %v6511, %v6481
    %v6513 = vadd.f32 %v6512, %v6482
    %v6514 = vadd.f32 %v6513, %v6483
    %v6515 = vadd.f32 %v6514, %v6484
    %v6516 = vadd.f32 %v6515, %v6485
    %v6517 = vadd.f32 %v6516, %v6486
    %v6518 = vadd.f32 %v6517, %v6487
    %v6519 = vadd.f32 %v6518, %v6488
    %v6520 = vadd.f32 %v6519, %v6489
    %v6521 = vadd.f32 %v6520, %v6490
    %v6522 = vadd.f32 %v6521, %v6491
    %v6523 = vadd.f32 %v6522, %v6492
    %v6524 = vadd.f32 %v6523, %v6493
    %6525 = vadd.xlane.f32.xlu0 %v6524
    %v6526 = vpop.xlane.xlu0 %6525
    %v6527 = vrot.slane %v6526, 4
    %v6528 = vadd.f32 %v6526, %v6527
    %v6529 = vrot.slane %v6528, 2
    %v6530 = vadd.f32 %v6528, %v6529
    %v6531 = vrot.slane %v6530, 1
    %v6532 = vadd.f32 %v6530, %v6531
    %s6533 = vtos %v6532
    %s6534 = sadd.f32 %s6533, %s6457
    %v6535 = vstv %s6534
    %6536 = vst.msk [vmem:[#allocation9 + $0x1] sm:$0x1] %vm6460, %v6535
    %v6537 = vld [vmem:[#allocation4 + $0x100] sm:$0xff]
    %v6538 = vld [vmem:[#allocation4 + $0x108] sm:$0xff]
    %v6539 = vld [vmem:[#allocation4 + $0x110] sm:$0xff]
    %v6540 = vld [vmem:[#allocation4 + $0x118] sm:$0xff]
    %v6541 = vld [vmem:[#allocation4 + $0x120] sm:$0xff]
    %v6542 = vld [vmem:[#allocation4 + $0x128] sm:$0xff]
    %v6543 = vld [vmem:[#allocation4 + $0x130] sm:$0xff]
    %v6544 = vld [vmem:[#allocation4 + $0x138] sm:$0xff]
    %v6545 = vld [vmem:[#allocation4 + $0x140] sm:$0xff]
    %v6546 = vld [vmem:[#allocation4 + $0x148] sm:$0xff]
    %v6547 = vld [vmem:[#allocation4 + $0x150] sm:$0xff]
    %v6548 = vld [vmem:[#allocation4 + $0x158] sm:$0xff]
    %v6549 = vld [vmem:[#allocation4 + $0x160] sm:$0xff]
    %v6550 = vld [vmem:[#allocation4 + $0x168] sm:$0xff]
    %v6551 = vld [vmem:[#allocation4 + $0x170] sm:$0xff]
    %v6552 = vld [vmem:[#allocation4 + $0x178] sm:$0xff]
    %v6553 = vld [vmem:[#allocation4 + $0x180] sm:$0xff]
    %v6554 = vld [vmem:[#allocation4 + $0x188] sm:$0xff]
    %v6555 = vld [vmem:[#allocation4 + $0x190] sm:$0xff]
    %v6556 = vld [vmem:[#allocation4 + $0x198] sm:$0xff]
    %v6557 = vld [vmem:[#allocation4 + $0x1a0] sm:$0xff]
    %v6558 = vld [vmem:[#allocation4 + $0x1a8] sm:$0xff]
    %v6559 = vld [vmem:[#allocation4 + $0x1b0] sm:$0xff]
    %v6560 = vld [vmem:[#allocation4 + $0x1b8] sm:$0xff]
    %v6561 = vld [vmem:[#allocation4 + $0x1c0] sm:$0xff]
    %v6562 = vld [vmem:[#allocation4 + $0x1c8] sm:$0xff]
    %v6563 = vld [vmem:[#allocation4 + $0x1d0] sm:$0xff]
    %v6564 = vld [vmem:[#allocation4 + $0x1d8] sm:$0xff]
    %v6565 = vld [vmem:[#allocation4 + $0x1e0] sm:$0xff]
    %v6566 = vld [vmem:[#allocation4 + $0x1e8] sm:$0xff]
    %v6567 = vld [vmem:[#allocation4 + $0x1f0] sm:$0xff]
    %v6568 = vld [vmem:[#allocation4 + $0x1f8] sm:$0xff]
    %v6569 = vmul.f32 %v6288, %v6537
    %v6570 = vmul.f32 %v6289, %v6538
    %v6571 = vmul.f32 %v6290, %v6539
    %v6572 = vmul.f32 %v6291, %v6540
    %v6573 = vmul.f32 %v6292, %v6541
    %v6574 = vmul.f32 %v6293, %v6542
    %v6575 = vmul.f32 %v6294, %v6543
    %v6576 = vmul.f32 %v6295, %v6544
    %v6577 = vmul.f32 %v6304, %v6545
    %v6578 = vmul.f32 %v6305, %v6546
    %v6579 = vmul.f32 %v6306, %v6547
    %v6580 = vmul.f32 %v6307, %v6548
    %v6581 = vmul.f32 %v6308, %v6549
    %v6582 = vmul.f32 %v6309, %v6550
    %v6583 = vmul.f32 %v6310, %v6551
    %v6584 = vmul.f32 %v6311, %v6552
    %v6585 = vmul.f32 %v6320, %v6553
    %v6586 = vmul.f32 %v6321, %v6554
    %v6587 = vmul.f32 %v6322, %v6555
    %v6588 = vmul.f32 %v6323, %v6556
    %v6589 = vmul.f32 %v6324, %v6557
    %v6590 = vmul.f32 %v6325, %v6558
    %v6591 = vmul.f32 %v6326, %v6559
    %v6592 = vmul.f32 %v6327, %v6560
    %v6593 = vmul.f32 %v6336, %v6561
    %v6594 = vmul.f32 %v6337, %v6562
    %v6595 = vmul.f32 %v6338, %v6563
    %v6596 = vmul.f32 %v6339, %v6564
    %v6597 = vmul.f32 %v6340, %v6565
    %v6598 = vmul.f32 %v6341, %v6566
    %v6599 = vmul.f32 %v6342, %v6567
    %v6600 = vmul.f32 %v6343, %v6568
    %v6601 = vadd.f32 %v6569, %v6570
    %v6602 = vadd.f32 %v6601, %v6571
    %v6603 = vadd.f32 %v6602, %v6572
    %v6604 = vadd.f32 %v6603, %v6573
    %v6605 = vadd.f32 %v6604, %v6574
    %v6606 = vadd.f32 %v6605, %v6575
    %v6607 = vadd.f32 %v6606, %v6576
    %v6608 = vadd.f32 %v6607, %v6577
    %v6609 = vadd.f32 %v6608, %v6578
    %v6610 = vadd.f32 %v6609, %v6579
    %v6611 = vadd.f32 %v6610, %v6580
    %v6612 = vadd.f32 %v6611, %v6581
    %v6613 = vadd.f32 %v6612, %v6582
    %v6614 = vadd.f32 %v6613, %v6583
    %v6615 = vadd.f32 %v6614, %v6584
    %v6616 = vadd.f32 %v6615, %v6585
    %v6617 = vadd.f32 %v6616, %v6586
    %v6618 = vadd.f32 %v6617, %v6587
    %v6619 = vadd.f32 %v6618, %v6588
    %v6620 = vadd.f32 %v6619, %v6589
    %v6621 = vadd.f32 %v6620, %v6590
    %v6622 = vadd.f32 %v6621, %v6591
    %v6623 = vadd.f32 %v6622, %v6592
    %v6624 = vadd.f32 %v6623, %v6593
    %v6625 = vadd.f32 %v6624, %v6594
    %v6626 = vadd.f32 %v6625, %v6595
    %v6627 = vadd.f32 %v6626, %v6596
    %v6628 = vadd.f32 %v6627, %v6597
    %v6629 = vadd.f32 %v6628, %v6598
    %v6630 = vadd.f32 %v6629, %v6599
    %v6631 = vadd.f32 %v6630, %v6600
    %6632 = vadd.xlane.f32.xlu0 %v6631
    %v6633 = vpop.xlane.xlu0 %6632
    %v6634 = vrot.slane %v6633, 4
    %v6635 = vadd.f32 %v6633, %v6634
    %v6636 = vrot.slane %v6635, 2
    %v6637 = vadd.f32 %v6635, %v6636
    %v6638 = vrot.slane %v6637, 1
    %v6639 = vadd.f32 %v6637, %v6638
    %s6640 = vtos %v6639
    %6641 = vrot.lane.b32.xlu0 %v6352, 127
    %v6642 = vpop.permute.xlu0 %6641
    %s6643 = vtos %v6642
    %s6644 = sadd.f32 %s6640, %s6643
    %v6645 = vstv %s6644
    %vm6646 = vcmask 8200
    %6647 = vst.msk [vmem:[#allocation9] sm:$0x1] %vm6646, %v6645
    %v6648 = vmul.f32 %v6296, %v6537
    %v6649 = vmul.f32 %v6297, %v6538
    %v6650 = vmul.f32 %v6298, %v6539
    %v6651 = vmul.f32 %v6299, %v6540
    %v6652 = vmul.f32 %v6300, %v6541
    %v6653 = vmul.f32 %v6301, %v6542
    %v6654 = vmul.f32 %v6302, %v6543
    %v6655 = vmul.f32 %v6303, %v6544
    %v6656 = vmul.f32 %v6312, %v6545
    %v6657 = vmul.f32 %v6313, %v6546
    %v6658 = vmul.f32 %v6314, %v6547
    %v6659 = vmul.f32 %v6315, %v6548
    %v6660 = vmul.f32 %v6316, %v6549
    %v6661 = vmul.f32 %v6317, %v6550
    %v6662 = vmul.f32 %v6318, %v6551
    %v6663 = vmul.f32 %v6319, %v6552
    %v6664 = vmul.f32 %v6328, %v6553
    %v6665 = vmul.f32 %v6329, %v6554
    %v6666 = vmul.f32 %v6330, %v6555
    %v6667 = vmul.f32 %v6331, %v6556
    %v6668 = vmul.f32 %v6332, %v6557
    %v6669 = vmul.f32 %v6333, %v6558
    %v6670 = vmul.f32 %v6334, %v6559
    %v6671 = vmul.f32 %v6335, %v6560
    %v6672 = vmul.f32 %v6344, %v6561
    %v6673 = vmul.f32 %v6345, %v6562
    %v6674 = vmul.f32 %v6346, %v6563
    %v6675 = vmul.f32 %v6347, %v6564
    %v6676 = vmul.f32 %v6348, %v6565
    %v6677 = vmul.f32 %v6349, %v6566
    %v6678 = vmul.f32 %v6350, %v6567
    %v6679 = vmul.f32 %v6351, %v6568
    %v6680 = vadd.f32 %v6648, %v6649
    %v6681 = vadd.f32 %v6680, %v6650
    %v6682 = vadd.f32 %v6681, %v6651
    %v6683 = vadd.f32 %v6682, %v6652
    %v6684 = vadd.f32 %v6683, %v6653
    %v6685 = vadd.f32 %v6684, %v6654
    %v6686 = vadd.f32 %v6685, %v6655
    %v6687 = vadd.f32 %v6686, %v6656
    %v6688 = vadd.f32 %v6687, %v6657
    %v6689 = vadd.f32 %v6688, %v6658
    %v6690 = vadd.f32 %v6689, %v6659
    %v6691 = vadd.f32 %v6690, %v6660
    %v6692 = vadd.f32 %v6691, %v6661
    %v6693 = vadd.f32 %v6692, %v6662
    %v6694 = vadd.f32 %v6693, %v6663
    %v6695 = vadd.f32 %v6694, %v6664
    %v6696 = vadd.f32 %v6695, %v6665
    %v6697 = vadd.f32 %v6696, %v6666
    %v6698 = vadd.f32 %v6697, %v6667
    %v6699 = vadd.f32 %v6698, %v6668
    %v6700 = vadd.f32 %v6699, %v6669
    %v6701 = vadd.f32 %v6700, %v6670
    %v6702 = vadd.f32 %v6701, %v6671
    %v6703 = vadd.f32 %v6702, %v6672
    %v6704 = vadd.f32 %v6703, %v6673
    %v6705 = vadd.f32 %v6704, %v6674
    %v6706 = vadd.f32 %v6705, %v6675
    %v6707 = vadd.f32 %v6706, %v6676
    %v6708 = vadd.f32 %v6707, %v6677
    %v6709 = vadd.f32 %v6708, %v6678
    %v6710 = vadd.f32 %v6709, %v6679
    %6711 = vadd.xlane.f32.xlu0 %v6710
    %v6712 = vpop.xlane.xlu0 %6711
    %v6713 = vrot.slane %v6712, 4
    %v6714 = vadd.f32 %v6712, %v6713
    %v6715 = vrot.slane %v6714, 2
    %v6716 = vadd.f32 %v6714, %v6715
    %v6717 = vrot.slane %v6716, 1
    %v6718 = vadd.f32 %v6716, %v6717
    %s6719 = vtos %v6718
    %s6720 = sadd.f32 %s6719, %s6643
    %v6721 = vstv %s6720
    %6722 = vst.msk [vmem:[#allocation9 + $0x1] sm:$0x1] %vm6646, %v6721
    %v6723 = vld [vmem:[#allocation4 + $0x200] sm:$0xff]
    %v6724 = vld [vmem:[#allocation4 + $0x208] sm:$0xff]
    %v6725 = vld [vmem:[#allocation4 + $0x210] sm:$0xff]
    %v6726 = vld [vmem:[#allocation4 + $0x218] sm:$0xff]
    %v6727 = vld [vmem:[#allocation4 + $0x220] sm:$0xff]
    %v6728 = vld [vmem:[#allocation4 + $0x228] sm:$0xff]
    %v6729 = vld [vmem:[#allocation4 + $0x230] sm:$0xff]
    %v6730 = vld [vmem:[#allocation4 + $0x238] sm:$0xff]
    %v6731 = vld [vmem:[#allocation4 + $0x240] sm:$0xff]
    %v6732 = vld [vmem:[#allocation4 + $0x248] sm:$0xff]
    %v6733 = vld [vmem:[#allocation4 + $0x250] sm:$0xff]
    %v6734 = vld [vmem:[#allocation4 + $0x258] sm:$0xff]
    %v6735 = vld [vmem:[#allocation4 + $0x260] sm:$0xff]
    %v6736 = vld [vmem:[#allocation4 + $0x268] sm:$0xff]
    %v6737 = vld [vmem:[#allocation4 + $0x270] sm:$0xff]
    %v6738 = vld [vmem:[#allocation4 + $0x278] sm:$0xff]
    %v6739 = vld [vmem:[#allocation4 + $0x280] sm:$0xff]
    %v6740 = vld [vmem:[#allocation4 + $0x288] sm:$0xff]
    %v6741 = vld [vmem:[#allocation4 + $0x290] sm:$0xff]
    %v6742 = vld [vmem:[#allocation4 + $0x298] sm:$0xff]
    %v6743 = vld [vmem:[#allocation4 + $0x2a0] sm:$0xff]
    %v6744 = vld [vmem:[#allocation4 + $0x2a8] sm:$0xff]
    %v6745 = vld [vmem:[#allocation4 + $0x2b0] sm:$0xff]
    %v6746 = vld [vmem:[#allocation4 + $0x2b8] sm:$0xff]
    %v6747 = vld [vmem:[#allocation4 + $0x2c0] sm:$0xff]
    %v6748 = vld [vmem:[#allocation4 + $0x2c8] sm:$0xff]
    %v6749 = vld [vmem:[#allocation4 + $0x2d0] sm:$0xff]
    %v6750 = vld [vmem:[#allocation4 + $0x2d8] sm:$0xff]
    %v6751 = vld [vmem:[#allocation4 + $0x2e0] sm:$0xff]
    %v6752 = vld [vmem:[#allocation4 + $0x2e8] sm:$0xff]
    %v6753 = vld [vmem:[#allocation4 + $0x2f0] sm:$0xff]
    %v6754 = vld [vmem:[#allocation4 + $0x2f8] sm:$0xff]
    %v6755 = vmul.f32 %v6288, %v6723
    %v6756 = vmul.f32 %v6289, %v6724
    %v6757 = vmul.f32 %v6290, %v6725
    %v6758 = vmul.f32 %v6291, %v6726
    %v6759 = vmul.f32 %v6292, %v6727
    %v6760 = vmul.f32 %v6293, %v6728
    %v6761 = vmul.f32 %v6294, %v6729
    %v6762 = vmul.f32 %v6295, %v6730
    %v6763 = vmul.f32 %v6304, %v6731
    %v6764 = vmul.f32 %v6305, %v6732
    %v6765 = vmul.f32 %v6306, %v6733
    %v6766 = vmul.f32 %v6307, %v6734
    %v6767 = vmul.f32 %v6308, %v6735
    %v6768 = vmul.f32 %v6309, %v6736
    %v6769 = vmul.f32 %v6310, %v6737
    %v6770 = vmul.f32 %v6311, %v6738
    %v6771 = vmul.f32 %v6320, %v6739
    %v6772 = vmul.f32 %v6321, %v6740
    %v6773 = vmul.f32 %v6322, %v6741
    %v6774 = vmul.f32 %v6323, %v6742
    %v6775 = vmul.f32 %v6324, %v6743
    %v6776 = vmul.f32 %v6325, %v6744
    %v6777 = vmul.f32 %v6326, %v6745
    %v6778 = vmul.f32 %v6327, %v6746
    %v6779 = vmul.f32 %v6336, %v6747
    %v6780 = vmul.f32 %v6337, %v6748
    %v6781 = vmul.f32 %v6338, %v6749
    %v6782 = vmul.f32 %v6339, %v6750
    %v6783 = vmul.f32 %v6340, %v6751
    %v6784 = vmul.f32 %v6341, %v6752
    %v6785 = vmul.f32 %v6342, %v6753
    %v6786 = vmul.f32 %v6343, %v6754
    %v6787 = vadd.f32 %v6755, %v6756
    %v6788 = vadd.f32 %v6787, %v6757
    %v6789 = vadd.f32 %v6788, %v6758
    %v6790 = vadd.f32 %v6789, %v6759
    %v6791 = vadd.f32 %v6790, %v6760
    %v6792 = vadd.f32 %v6791, %v6761
    %v6793 = vadd.f32 %v6792, %v6762
    %v6794 = vadd.f32 %v6793, %v6763
    %v6795 = vadd.f32 %v6794, %v6764
    %v6796 = vadd.f32 %v6795, %v6765
    %v6797 = vadd.f32 %v6796, %v6766
    %v6798 = vadd.f32 %v6797, %v6767
    %v6799 = vadd.f32 %v6798, %v6768
    %v6800 = vadd.f32 %v6799, %v6769
    %v6801 = vadd.f32 %v6800, %v6770
    %v6802 = vadd.f32 %v6801, %v6771
    %v6803 = vadd.f32 %v6802, %v6772
    %v6804 = vadd.f32 %v6803, %v6773
    %v6805 = vadd.f32 %v6804, %v6774
    %v6806 = vadd.f32 %v6805, %v6775
    %v6807 = vadd.f32 %v6806, %v6776
    %v6808 = vadd.f32 %v6807, %v6777
    %v6809 = vadd.f32 %v6808, %v6778
    %v6810 = vadd.f32 %v6809, %v6779
    %v6811 = vadd.f32 %v6810, %v6780
    %v6812 = vadd.f32 %v6811, %v6781
    %v6813 = vadd.f32 %v6812, %v6782
    %v6814 = vadd.f32 %v6813, %v6783
    %v6815 = vadd.f32 %v6814, %v6784
    %v6816 = vadd.f32 %v6815, %v6785
    %v6817 = vadd.f32 %v6816, %v6786
    %6818 = vadd.xlane.f32.xlu0 %v6817
    %v6819 = vpop.xlane.xlu0 %6818
    %v6820 = vrot.slane %v6819, 4
    %v6821 = vadd.f32 %v6819, %v6820
    %v6822 = vrot.slane %v6821, 2
    %v6823 = vadd.f32 %v6821, %v6822
    %v6824 = vrot.slane %v6823, 1
    %v6825 = vadd.f32 %v6823, %v6824
    %s6826 = vtos %v6825
    %6827 = vrot.lane.b32.xlu0 %v6352, 126
    %v6828 = vpop.permute.xlu0 %6827
    %s6829 = vtos %v6828
    %s6830 = sadd.f32 %s6826, %s6829
    %v6831 = vstv %s6830
    %vm6832 = vcmask 16400
    %6833 = vst.msk [vmem:[#allocation9] sm:$0x1] %vm6832, %v6831
    %v6834 = vmul.f32 %v6296, %v6723
    %v6835 = vmul.f32 %v6297, %v6724
    %v6836 = vmul.f32 %v6298, %v6725
    %v6837 = vmul.f32 %v6299, %v6726
    %v6838 = vmul.f32 %v6300, %v6727
    %v6839 = vmul.f32 %v6301, %v6728
    %v6840 = vmul.f32 %v6302, %v6729
    %v6841 = vmul.f32 %v6303, %v6730
    %v6842 = vmul.f32 %v6312, %v6731
    %v6843 = vmul.f32 %v6313, %v6732
    %v6844 = vmul.f32 %v6314, %v6733
    %v6845 = vmul.f32 %v6315, %v6734
    %v6846 = vmul.f32 %v6316, %v6735
    %v6847 = vmul.f32 %v6317, %v6736
    %v6848 = vmul.f32 %v6318, %v6737
    %v6849 = vmul.f32 %v6319, %v6738
    %v6850 = vmul.f32 %v6328, %v6739
    %v6851 = vmul.f32 %v6329, %v6740
    %v6852 = vmul.f32 %v6330, %v6741
    %v6853 = vmul.f32 %v6331, %v6742
    %v6854 = vmul.f32 %v6332, %v6743
    %v6855 = vmul.f32 %v6333, %v6744
    %v6856 = vmul.f32 %v6334, %v6745
    %v6857 = vmul.f32 %v6335, %v6746
    %v6858 = vmul.f32 %v6344, %v6747
    %v6859 = vmul.f32 %v6345, %v6748
    %v6860 = vmul.f32 %v6346, %v6749
    %v6861 = vmul.f32 %v6347, %v6750
    %v6862 = vmul.f32 %v6348, %v6751
    %v6863 = vmul.f32 %v6349, %v6752
    %v6864 = vmul.f32 %v6350, %v6753
    %v6865 = vmul.f32 %v6351, %v6754
    %v6866 = vadd.f32 %v6834, %v6835
    %v6867 = vadd.f32 %v6866, %v6836
    %v6868 = vadd.f32 %v6867, %v6837
    %v6869 = vadd.f32 %v6868, %v6838
    %v6870 = vadd.f32 %v6869, %v6839
    %v6871 = vadd.f32 %v6870, %v6840
    %v6872 = vadd.f32 %v6871, %v6841
    %v6873 = vadd.f32 %v6872, %v6842
    %v6874 = vadd.f32 %v6873, %v6843
    %v6875 = vadd.f32 %v6874, %v6844
    %v6876 = vadd.f32 %v6875, %v6845
    %v6877 = vadd.f32 %v6876, %v6846
    %v6878 = vadd.f32 %v6877, %v6847
    %v6879 = vadd.f32 %v6878, %v6848
    %v6880 = vadd.f32 %v6879, %v6849
    %v6881 = vadd.f32 %v6880, %v6850
    %v6882 = vadd.f32 %v6881, %v6851
    %v6883 = vadd.f32 %v6882, %v6852
    %v6884 = vadd.f32 %v6883, %v6853
    %v6885 = vadd.f32 %v6884, %v6854
    %v6886 = vadd.f32 %v6885, %v6855
    %v6887 = vadd.f32 %v6886, %v6856
    %v6888 = vadd.f32 %v6887, %v6857
    %v6889 = vadd.f32 %v6888, %v6858
    %v6890 = vadd.f32 %v6889, %v6859
    %v6891 = vadd.f32 %v6890, %v6860
    %v6892 = vadd.f32 %v6891, %v6861
    %v6893 = vadd.f32 %v6892, %v6862
    %v6894 = vadd.f32 %v6893, %v6863
    %v6895 = vadd.f32 %v6894, %v6864
    %v6896 = vadd.f32 %v6895, %v6865
    %6897 = vadd.xlane.f32.xlu0 %v6896
    %v6898 = vpop.xlane.xlu0 %6897
    %v6899 = vrot.slane %v6898, 4
    %v6900 = vadd.f32 %v6898, %v6899
    %v6901 = vrot.slane %v6900, 2
    %v6902 = vadd.f32 %v6900, %v6901
    %v6903 = vrot.slane %v6902, 1
    %v6904 = vadd.f32 %v6902, %v6903
    %s6905 = vtos %v6904
    %s6906 = sadd.f32 %s6905, %s6829
    %v6907 = vstv %s6906
    %6908 = vst.msk [vmem:[#allocation9 + $0x1] sm:$0x1] %vm6832, %v6907
    %v6909 = vld [vmem:[#allocation4 + $0x300] sm:$0xff]
    %v6910 = vld [vmem:[#allocation4 + $0x308] sm:$0xff]
    %v6911 = vld [vmem:[#allocation4 + $0x310] sm:$0xff]
    %v6912 = vld [vmem:[#allocation4 + $0x318] sm:$0xff]
    %v6913 = vld [vmem:[#allocation4 + $0x320] sm:$0xff]
    %v6914 = vld [vmem:[#allocation4 + $0x328] sm:$0xff]
    %v6915 = vld [vmem:[#allocation4 + $0x330] sm:$0xff]
    %v6916 = vld [vmem:[#allocation4 + $0x338] sm:$0xff]
    %v6917 = vld [vmem:[#allocation4 + $0x340] sm:$0xff]
    %v6918 = vld [vmem:[#allocation4 + $0x348] sm:$0xff]
    %v6919 = vld [vmem:[#allocation4 + $0x350] sm:$0xff]
    %v6920 = vld [vmem:[#allocation4 + $0x358] sm:$0xff]
    %v6921 = vld [vmem:[#allocation4 + $0x360] sm:$0xff]
    %v6922 = vld [vmem:[#allocation4 + $0x368] sm:$0xff]
    %v6923 = vld [vmem:[#allocation4 + $0x370] sm:$0xff]
    %v6924 = vld [vmem:[#allocation4 + $0x378] sm:$0xff]
    %v6925 = vld [vmem:[#allocation4 + $0x380] sm:$0xff]
    %v6926 = vld [vmem:[#allocation4 + $0x388] sm:$0xff]
    %v6927 = vld [vmem:[#allocation4 + $0x390] sm:$0xff]
    %v6928 = vld [vmem:[#allocation4 + $0x398] sm:$0xff]
    %v6929 = vld [vmem:[#allocation4 + $0x3a0] sm:$0xff]
    %v6930 = vld [vmem:[#allocation4 + $0x3a8] sm:$0xff]
    %v6931 = vld [vmem:[#allocation4 + $0x3b0] sm:$0xff]
    %v6932 = vld [vmem:[#allocation4 + $0x3b8] sm:$0xff]
    %v6933 = vld [vmem:[#allocation4 + $0x3c0] sm:$0xff]
    %v6934 = vld [vmem:[#allocation4 + $0x3c8] sm:$0xff]
    %v6935 = vld [vmem:[#allocation4 + $0x3d0] sm:$0xff]
    %v6936 = vld [vmem:[#allocation4 + $0x3d8] sm:$0xff]
    %v6937 = vld [vmem:[#allocation4 + $0x3e0] sm:$0xff]
    %v6938 = vld [vmem:[#allocation4 + $0x3e8] sm:$0xff]
    %v6939 = vld [vmem:[#allocation4 + $0x3f0] sm:$0xff]
    %v6940 = vld [vmem:[#allocation4 + $0x3f8] sm:$0xff]
    %v6941 = vmul.f32 %v6288, %v6909
    %v6942 = vmul.f32 %v6289, %v6910
    %v6943 = vmul.f32 %v6290, %v6911
    %v6944 = vmul.f32 %v6291, %v6912
    %v6945 = vmul.f32 %v6292, %v6913
    %v6946 = vmul.f32 %v6293, %v6914
    %v6947 = vmul.f32 %v6294, %v6915
    %v6948 = vmul.f32 %v6295, %v6916
    %v6949 = vmul.f32 %v6304, %v6917
    %v6950 = vmul.f32 %v6305, %v6918
    %v6951 = vmul.f32 %v6306, %v6919
    %v6952 = vmul.f32 %v6307, %v6920
    %v6953 = vmul.f32 %v6308, %v6921
    %v6954 = vmul.f32 %v6309, %v6922
    %v6955 = vmul.f32 %v6310, %v6923
    %v6956 = vmul.f32 %v6311, %v6924
    %v6957 = vmul.f32 %v6320, %v6925
    %v6958 = vmul.f32 %v6321, %v6926
    %v6959 = vmul.f32 %v6322, %v6927
    %v6960 = vmul.f32 %v6323, %v6928
    %v6961 = vmul.f32 %v6324, %v6929
    %v6962 = vmul.f32 %v6325, %v6930
    %v6963 = vmul.f32 %v6326, %v6931
    %v6964 = vmul.f32 %v6327, %v6932
    %v6965 = vmul.f32 %v6336, %v6933
    %v6966 = vmul.f32 %v6337, %v6934
    %v6967 = vmul.f32 %v6338, %v6935
    %v6968 = vmul.f32 %v6339, %v6936
    %v6969 = vmul.f32 %v6340, %v6937
    %v6970 = vmul.f32 %v6341, %v6938
    %v6971 = vmul.f32 %v6342, %v6939
    %v6972 = vmul.f32 %v6343, %v6940
    %v6973 = vadd.f32 %v6941, %v6942
    %v6974 = vadd.f32 %v6973, %v6943
    %v6975 = vadd.f32 %v6974, %v6944
    %v6976 = vadd.f32 %v6975, %v6945
    %v6977 = vadd.f32 %v6976, %v6946
    %v6978 = vadd.f32 %v6977, %v6947
    %v6979 = vadd.f32 %v6978, %v6948
    %v6980 = vadd.f32 %v6979, %v6949
    %v6981 = vadd.f32 %v6980, %v6950
    %v6982 = vadd.f32 %v6981, %v6951
    %v6983 = vadd.f32 %v6982, %v6952
    %v6984 = vadd.f32 %v6983, %v6953
    %v6985 = vadd.f32 %v6984, %v6954
    %v6986 = vadd.f32 %v6985, %v6955
    %v6987 = vadd.f32 %v6986, %v6956
    %v6988 = vadd.f32 %v6987, %v6957
    %v6989 = vadd.f32 %v6988, %v6958
    %v6990 = vadd.f32 %v6989, %v6959
    %v6991 = vadd.f32 %v6990, %v6960
    %v6992 = vadd.f32 %v6991, %v6961
    %v6993 = vadd.f32 %v6992, %v6962
    %v6994 = vadd.f32 %v6993, %v6963
    %v6995 = vadd.f32 %v6994, %v6964
    %v6996 = vadd.f32 %v6995, %v6965
    %v6997 = vadd.f32 %v6996, %v6966
    %v6998 = vadd.f32 %v6997, %v6967
    %v6999 = vadd.f32 %v6998, %v6968
    %v7000 = vadd.f32 %v6999, %v6969
    %v7001 = vadd.f32 %v7000, %v6970
    %v7002 = vadd.f32 %v7001, %v6971
    %v7003 = vadd.f32 %v7002, %v6972
    %7004 = vadd.xlane.f32.xlu0 %v7003
    %v7005 = vpop.xlane.xlu0 %7004
    %v7006 = vrot.slane %v7005, 4
    %v7007 = vadd.f32 %v7005, %v7006
    %v7008 = vrot.slane %v7007, 2
    %v7009 = vadd.f32 %v7007, %v7008
    %v7010 = vrot.slane %v7009, 1
    %v7011 = vadd.f32 %v7009, %v7010
    %s7012 = vtos %v7011
    %7013 = vrot.lane.b32.xlu0 %v6352, 125
    %v7014 = vpop.permute.xlu0 %7013
    %s7015 = vtos %v7014
    %s7016 = sadd.f32 %s7012, %s7015
    %v7017 = vstv %s7016
    %vm7018 = vcmask 24600
    %7019 = vst.msk [vmem:[#allocation9] sm:$0x1] %vm7018, %v7017
    %v7020 = vmul.f32 %v6296, %v6909
    %v7021 = vmul.f32 %v6297, %v6910
    %v7022 = vmul.f32 %v6298, %v6911
    %v7023 = vmul.f32 %v6299, %v6912
    %v7024 = vmul.f32 %v6300, %v6913
    %v7025 = vmul.f32 %v6301, %v6914
    %v7026 = vmul.f32 %v6302, %v6915
    %v7027 = vmul.f32 %v6303, %v6916
    %v7028 = vmul.f32 %v6312, %v6917
    %v7029 = vmul.f32 %v6313, %v6918
    %v7030 = vmul.f32 %v6314, %v6919
    %v7031 = vmul.f32 %v6315, %v6920
    %v7032 = vmul.f32 %v6316, %v6921
    %v7033 = vmul.f32 %v6317, %v6922
    %v7034 = vmul.f32 %v6318, %v6923
    %v7035 = vmul.f32 %v6319, %v6924
    %v7036 = vmul.f32 %v6328, %v6925
    %v7037 = vmul.f32 %v6329, %v6926
    %v7038 = vmul.f32 %v6330, %v6927
    %v7039 = vmul.f32 %v6331, %v6928
    %v7040 = vmul.f32 %v6332, %v6929
    %v7041 = vmul.f32 %v6333, %v6930
    %v7042 = vmul.f32 %v6334, %v6931
    %v7043 = vmul.f32 %v6335, %v6932
    %v7044 = vmul.f32 %v6344, %v6933
    %v7045 = vmul.f32 %v6345, %v6934
    %v7046 = vmul.f32 %v6346, %v6935
    %v7047 = vmul.f32 %v6347, %v6936
    %v7048 = vmul.f32 %v6348, %v6937
    %v7049 = vmul.f32 %v6349, %v6938
    %v7050 = vmul.f32 %v6350, %v6939
    %v7051 = vmul.f32 %v6351, %v6940
    %v7052 = vadd.f32 %v7020, %v7021
    %v7053 = vadd.f32 %v7052, %v7022
    %v7054 = vadd.f32 %v7053, %v7023
    %v7055 = vadd.f32 %v7054, %v7024
    %v7056 = vadd.f32 %v7055, %v7025
    %v7057 = vadd.f32 %v7056, %v7026
    %v7058 = vadd.f32 %v7057, %v7027
    %v7059 = vadd.f32 %v7058, %v7028
    %v7060 = vadd.f32 %v7059, %v7029
    %v7061 = vadd.f32 %v7060, %v7030
    %v7062 = vadd.f32 %v7061, %v7031
    %v7063 = vadd.f32 %v7062, %v7032
    %v7064 = vadd.f32 %v7063, %v7033
    %v7065 = vadd.f32 %v7064, %v7034
    %v7066 = vadd.f32 %v7065, %v7035
    %v7067 = vadd.f32 %v7066, %v7036
    %v7068 = vadd.f32 %v7067, %v7037
    %v7069 = vadd.f32 %v7068, %v7038
    %v7070 = vadd.f32 %v7069, %v7039
    %v7071 = vadd.f32 %v7070, %v7040
    %v7072 = vadd.f32 %v7071, %v7041
    %v7073 = vadd.f32 %v7072, %v7042
    %v7074 = vadd.f32 %v7073, %v7043
    %v7075 = vadd.f32 %v7074, %v7044
    %v7076 = vadd.f32 %v7075, %v7045
    %v7077 = vadd.f32 %v7076, %v7046
    %v7078 = vadd.f32 %v7077, %v7047
    %v7079 = vadd.f32 %v7078, %v7048
    %v7080 = vadd.f32 %v7079, %v7049
    %v7081 = vadd.f32 %v7080, %v7050
    %v7082 = vadd.f32 %v7081, %v7051
    %7083 = vadd.xlane.f32.xlu0 %v7082
    %v7084 = vpop.xlane.xlu0 %7083
    %v7085 = vrot.slane %v7084, 4
    %v7086 = vadd.f32 %v7084, %v7085
    %v7087 = vrot.slane %v7086, 2
    %v7088 = vadd.f32 %v7086, %v7087
    %v7089 = vrot.slane %v7088, 1
    %v7090 = vadd.f32 %v7088, %v7089
    %s7091 = vtos %v7090
    %s7092 = sadd.f32 %s7091, %s7015
    %v7093 = vstv %s7092
    %7094 = vst.msk [vmem:[#allocation9 + $0x1] sm:$0x1] %vm7018, %v7093
    %v7095 = vld [vmem:[#allocation4 + $0x400] sm:$0xff]
    %v7096 = vld [vmem:[#allocation4 + $0x408] sm:$0xff]
    %v7097 = vld [vmem:[#allocation4 + $0x410] sm:$0xff]
    %v7098 = vld [vmem:[#allocation4 + $0x418] sm:$0xff]
    %v7099 = vld [vmem:[#allocation4 + $0x420] sm:$0xff]
    %v7100 = vld [vmem:[#allocation4 + $0x428] sm:$0xff]
    %v7101 = vld [vmem:[#allocation4 + $0x430] sm:$0xff]
    %v7102 = vld [vmem:[#allocation4 + $0x438] sm:$0xff]
    %v7103 = vld [vmem:[#allocation4 + $0x440] sm:$0xff]
    %v7104 = vld [vmem:[#allocation4 + $0x448] sm:$0xff]
    %v7105 = vld [vmem:[#allocation4 + $0x450] sm:$0xff]
    %v7106 = vld [vmem:[#allocation4 + $0x458] sm:$0xff]
    %v7107 = vld [vmem:[#allocation4 + $0x460] sm:$0xff]
    %v7108 = vld [vmem:[#allocation4 + $0x468] sm:$0xff]
    %v7109 = vld [vmem:[#allocation4 + $0x470] sm:$0xff]
    %v7110 = vld [vmem:[#allocation4 + $0x478] sm:$0xff]
    %v7111 = vld [vmem:[#allocation4 + $0x480] sm:$0xff]
    %v7112 = vld [vmem:[#allocation4 + $0x488] sm:$0xff]
    %v7113 = vld [vmem:[#allocation4 + $0x490] sm:$0xff]
    %v7114 = vld [vmem:[#allocation4 + $0x498] sm:$0xff]
    %v7115 = vld [vmem:[#allocation4 + $0x4a0] sm:$0xff]
    %v7116 = vld [vmem:[#allocation4 + $0x4a8] sm:$0xff]
    %v7117 = vld [vmem:[#allocation4 + $0x4b0] sm:$0xff]
    %v7118 = vld [vmem:[#allocation4 + $0x4b8] sm:$0xff]
    %v7119 = vld [vmem:[#allocation4 + $0x4c0] sm:$0xff]
    %v7120 = vld [vmem:[#allocation4 + $0x4c8] sm:$0xff]
    %v7121 = vld [vmem:[#allocation4 + $0x4d0] sm:$0xff]
    %v7122 = vld [vmem:[#allocation4 + $0x4d8] sm:$0xff]
    %v7123 = vld [vmem:[#allocation4 + $0x4e0] sm:$0xff]
    %v7124 = vld [vmem:[#allocation4 + $0x4e8] sm:$0xff]
    %v7125 = vld [vmem:[#allocation4 + $0x4f0] sm:$0xff]
    %v7126 = vld [vmem:[#allocation4 + $0x4f8] sm:$0xff]
    %v7127 = vmul.f32 %v6288, %v7095
    %v7128 = vmul.f32 %v6289, %v7096
    %v7129 = vmul.f32 %v6290, %v7097
    %v7130 = vmul.f32 %v6291, %v7098
    %v7131 = vmul.f32 %v6292, %v7099
    %v7132 = vmul.f32 %v6293, %v7100
    %v7133 = vmul.f32 %v6294, %v7101
    %v7134 = vmul.f32 %v6295, %v7102
    %v7135 = vmul.f32 %v6304, %v7103
    %v7136 = vmul.f32 %v6305, %v7104
    %v7137 = vmul.f32 %v6306, %v7105
    %v7138 = vmul.f32 %v6307, %v7106
    %v7139 = vmul.f32 %v6308, %v7107
    %v7140 = vmul.f32 %v6309, %v7108
    %v7141 = vmul.f32 %v6310, %v7109
    %v7142 = vmul.f32 %v6311, %v7110
    %v7143 = vmul.f32 %v6320, %v7111
    %v7144 = vmul.f32 %v6321, %v7112
    %v7145 = vmul.f32 %v6322, %v7113
    %v7146 = vmul.f32 %v6323, %v7114
    %v7147 = vmul.f32 %v6324, %v7115
    %v7148 = vmul.f32 %v6325, %v7116
    %v7149 = vmul.f32 %v6326, %v7117
    %v7150 = vmul.f32 %v6327, %v7118
    %v7151 = vmul.f32 %v6336, %v7119
    %v7152 = vmul.f32 %v6337, %v7120
    %v7153 = vmul.f32 %v6338, %v7121
    %v7154 = vmul.f32 %v6339, %v7122
    %v7155 = vmul.f32 %v6340, %v7123
    %v7156 = vmul.f32 %v6341, %v7124
    %v7157 = vmul.f32 %v6342, %v7125
    %v7158 = vmul.f32 %v6343, %v7126
    %v7159 = vadd.f32 %v7127, %v7128
    %v7160 = vadd.f32 %v7159, %v7129
    %v7161 = vadd.f32 %v7160, %v7130
    %v7162 = vadd.f32 %v7161, %v7131
    %v7163 = vadd.f32 %v7162, %v7132
    %v7164 = vadd.f32 %v7163, %v7133
    %v7165 = vadd.f32 %v7164, %v7134
    %v7166 = vadd.f32 %v7165, %v7135
    %v7167 = vadd.f32 %v7166, %v7136
    %v7168 = vadd.f32 %v7167, %v7137
    %v7169 = vadd.f32 %v7168, %v7138
    %v7170 = vadd.f32 %v7169, %v7139
    %v7171 = vadd.f32 %v7170, %v7140
    %v7172 = vadd.f32 %v7171, %v7141
    %v7173 = vadd.f32 %v7172, %v7142
    %v7174 = vadd.f32 %v7173, %v7143
    %v7175 = vadd.f32 %v7174, %v7144
    %v7176 = vadd.f32 %v7175, %v7145
    %v7177 = vadd.f32 %v7176, %v7146
    %v7178 = vadd.f32 %v7177, %v7147
    %v7179 = vadd.f32 %v7178, %v7148
    %v7180 = vadd.f32 %v7179, %v7149
    %v7181 = vadd.f32 %v7180, %v7150
    %v7182 = vadd.f32 %v7181, %v7151
    %v7183 = vadd.f32 %v7182, %v7152
    %v7184 = vadd.f32 %v7183, %v7153
    %v7185 = vadd.f32 %v7184, %v7154
    %v7186 = vadd.f32 %v7185, %v7155
    %v7187 = vadd.f32 %v7186, %v7156
    %v7188 = vadd.f32 %v7187, %v7157
    %v7189 = vadd.f32 %v7188, %v7158
    %7190 = vadd.xlane.f32.xlu0 %v7189
    %v7191 = vpop.xlane.xlu0 %7190
    %v7192 = vrot.slane %v7191, 4
    %v7193 = vadd.f32 %v7191, %v7192
    %v7194 = vrot.slane %v7193, 2
    %v7195 = vadd.f32 %v7193, %v7194
    %v7196 = vrot.slane %v7195, 1
    %v7197 = vadd.f32 %v7195, %v7196
    %s7198 = vtos %v7197
    %7199 = vrot.lane.b32.xlu0 %v6352, 124
    %v7200 = vpop.permute.xlu0 %7199
    %s7201 = vtos %v7200
    %s7202 = sadd.f32 %s7198, %s7201
    %v7203 = vstv %s7202
    %vm7204 = vcmask 32800
    %7205 = vst.msk [vmem:[#allocation9] sm:$0x1] %vm7204, %v7203
    %v7206 = vmul.f32 %v6296, %v7095
    %v7207 = vmul.f32 %v6297, %v7096
    %v7208 = vmul.f32 %v6298, %v7097
    %v7209 = vmul.f32 %v6299, %v7098
    %v7210 = vmul.f32 %v6300, %v7099
    %v7211 = vmul.f32 %v6301, %v7100
    %v7212 = vmul.f32 %v6302, %v7101
    %v7213 = vmul.f32 %v6303, %v7102
    %v7214 = vmul.f32 %v6312, %v7103
    %v7215 = vmul.f32 %v6313, %v7104
    %v7216 = vmul.f32 %v6314, %v7105
    %v7217 = vmul.f32 %v6315, %v7106
    %v7218 = vmul.f32 %v6316, %v7107
    %v7219 = vmul.f32 %v6317, %v7108
    %v7220 = vmul.f32 %v6318, %v7109
    %v7221 = vmul.f32 %v6319, %v7110
    %v7222 = vmul.f32 %v6328, %v7111
    %v7223 = vmul.f32 %v6329, %v7112
    %v7224 = vmul.f32 %v6330, %v7113
    %v7225 = vmul.f32 %v6331, %v7114
    %v7226 = vmul.f32 %v6332, %v7115
    %v7227 = vmul.f32 %v6333, %v7116
    %v7228 = vmul.f32 %v6334, %v7117
    %v7229 = vmul.f32 %v6335, %v7118
    %v7230 = vmul.f32 %v6344, %v7119
    %v7231 = vmul.f32 %v6345, %v7120
    %v7232 = vmul.f32 %v6346, %v7121
    %v7233 = vmul.f32 %v6347, %v7122
    %v7234 = vmul.f32 %v6348, %v7123
    %v7235 = vmul.f32 %v6349, %v7124
    %v7236 = vmul.f32 %v6350, %v7125
    %v7237 = vmul.f32 %v6351, %v7126
    %v7238 = vadd.f32 %v7206, %v7207
    %v7239 = vadd.f32 %v7238, %v7208
    %v7240 = vadd.f32 %v7239, %v7209
    %v7241 = vadd.f32 %v7240, %v7210
    %v7242 = vadd.f32 %v7241, %v7211
    %v7243 = vadd.f32 %v7242, %v7212
    %v7244 = vadd.f32 %v7243, %v7213
    %v7245 = vadd.f32 %v7244, %v7214
    %v7246 = vadd.f32 %v7245, %v7215
    %v7247 = vadd.f32 %v7246, %v7216
    %v7248 = vadd.f32 %v7247, %v7217
    %v7249 = vadd.f32 %v7248, %v7218
    %v7250 = vadd.f32 %v7249, %v7219
    %v7251 = vadd.f32 %v7250, %v7220
    %v7252 = vadd.f32 %v7251, %v7221
    %v7253 = vadd.f32 %v7252, %v7222
    %v7254 = vadd.f32 %v7253, %v7223
    %v7255 = vadd.f32 %v7254, %v7224
    %v7256 = vadd.f32 %v7255, %v7225
    %v7257 = vadd.f32 %v7256, %v7226
    %v7258 = vadd.f32 %v7257, %v7227
    %v7259 = vadd.f32 %v7258, %v7228
    %v7260 = vadd.f32 %v7259, %v7229
    %v7261 = vadd.f32 %v7260, %v7230
    %v7262 = vadd.f32 %v7261, %v7231
    %v7263 = vadd.f32 %v7262, %v7232
    %v7264 = vadd.f32 %v7263, %v7233
    %v7265 = vadd.f32 %v7264, %v7234
    %v7266 = vadd.f32 %v7265, %v7235
    %v7267 = vadd.f32 %v7266, %v7236
    %v7268 = vadd.f32 %v7267, %v7237
    %7269 = vadd.xlane.f32.xlu0 %v7268
    %v7270 = vpop.xlane.xlu0 %7269
    %v7271 = vrot.slane %v7270, 4
    %v7272 = vadd.f32 %v7270, %v7271
    %v7273 = vrot.slane %v7272, 2
    %v7274 = vadd.f32 %v7272, %v7273
    %v7275 = vrot.slane %v7274, 1
    %v7276 = vadd.f32 %v7274, %v7275
    %s7277 = vtos %v7276
    %s7278 = sadd.f32 %s7277, %s7201
    %v7279 = vstv %s7278
    %7280 = vst.msk [vmem:[#allocation9 + $0x1] sm:$0x1] %vm7204, %v7279
    %v7281 = vld [vmem:[#allocation4 + $0x500] sm:$0xff]
    %v7282 = vld [vmem:[#allocation4 + $0x508] sm:$0xff]
    %v7283 = vld [vmem:[#allocation4 + $0x510] sm:$0xff]
    %v7284 = vld [vmem:[#allocation4 + $0x518] sm:$0xff]
    %v7285 = vld [vmem:[#allocation4 + $0x520] sm:$0xff]
    %v7286 = vld [vmem:[#allocation4 + $0x528] sm:$0xff]
    %v7287 = vld [vmem:[#allocation4 + $0x530] sm:$0xff]
    %v7288 = vld [vmem:[#allocation4 + $0x538] sm:$0xff]
    %v7289 = vld [vmem:[#allocation4 + $0x540] sm:$0xff]
    %v7290 = vld [vmem:[#allocation4 + $0x548] sm:$0xff]
    %v7291 = vld [vmem:[#allocation4 + $0x550] sm:$0xff]
    %v7292 = vld [vmem:[#allocation4 + $0x558] sm:$0xff]
    %v7293 = vld [vmem:[#allocation4 + $0x560] sm:$0xff]
    %v7294 = vld [vmem:[#allocation4 + $0x568] sm:$0xff]
    %v7295 = vld [vmem:[#allocation4 + $0x570] sm:$0xff]
    %v7296 = vld [vmem:[#allocation4 + $0x578] sm:$0xff]
    %v7297 = vld [vmem:[#allocation4 + $0x580] sm:$0xff]
    %v7298 = vld [vmem:[#allocation4 + $0x588] sm:$0xff]
    %v7299 = vld [vmem:[#allocation4 + $0x590] sm:$0xff]
    %v7300 = vld [vmem:[#allocation4 + $0x598] sm:$0xff]
    %v7301 = vld [vmem:[#allocation4 + $0x5a0] sm:$0xff]
    %v7302 = vld [vmem:[#allocation4 + $0x5a8] sm:$0xff]
    %v7303 = vld [vmem:[#allocation4 + $0x5b0] sm:$0xff]
    %v7304 = vld [vmem:[#allocation4 + $0x5b8] sm:$0xff]
    %v7305 = vld [vmem:[#allocation4 + $0x5c0] sm:$0xff]
    %v7306 = vld [vmem:[#allocation4 + $0x5c8] sm:$0xff]
    %v7307 = vld [vmem:[#allocation4 + $0x5d0] sm:$0xff]
    %v7308 = vld [vmem:[#allocation4 + $0x5d8] sm:$0xff]
    %v7309 = vld [vmem:[#allocation4 + $0x5e0] sm:$0xff]
    %v7310 = vld [vmem:[#allocation4 + $0x5e8] sm:$0xff]
    %v7311 = vld [vmem:[#allocation4 + $0x5f0] sm:$0xff]
    %v7312 = vld [vmem:[#allocation4 + $0x5f8] sm:$0xff]
    %v7313 = vmul.f32 %v6288, %v7281
    %v7314 = vmul.f32 %v6289, %v7282
    %v7315 = vmul.f32 %v6290, %v7283
    %v7316 = vmul.f32 %v6291, %v7284
    %v7317 = vmul.f32 %v6292, %v7285
    %v7318 = vmul.f32 %v6293, %v7286
    %v7319 = vmul.f32 %v6294, %v7287
    %v7320 = vmul.f32 %v6295, %v7288
    %v7321 = vmul.f32 %v6304, %v7289
    %v7322 = vmul.f32 %v6305, %v7290
    %v7323 = vmul.f32 %v6306, %v7291
    %v7324 = vmul.f32 %v6307, %v7292
    %v7325 = vmul.f32 %v6308, %v7293
    %v7326 = vmul.f32 %v6309, %v7294
    %v7327 = vmul.f32 %v6310, %v7295
    %v7328 = vmul.f32 %v6311, %v7296
    %v7329 = vmul.f32 %v6320, %v7297
    %v7330 = vmul.f32 %v6321, %v7298
    %v7331 = vmul.f32 %v6322, %v7299
    %v7332 = vmul.f32 %v6323, %v7300
    %v7333 = vmul.f32 %v6324, %v7301
    %v7334 = vmul.f32 %v6325, %v7302
    %v7335 = vmul.f32 %v6326, %v7303
    %v7336 = vmul.f32 %v6327, %v7304
    %v7337 = vmul.f32 %v6336, %v7305
    %v7338 = vmul.f32 %v6337, %v7306
    %v7339 = vmul.f32 %v6338, %v7307
    %v7340 = vmul.f32 %v6339, %v7308
    %v7341 = vmul.f32 %v6340, %v7309
    %v7342 = vmul.f32 %v6341, %v7310
    %v7343 = vmul.f32 %v6342, %v7311
    %v7344 = vmul.f32 %v6343, %v7312
    %v7345 = vadd.f32 %v7313, %v7314
    %v7346 = vadd.f32 %v7345, %v7315
    %v7347 = vadd.f32 %v7346, %v7316
    %v7348 = vadd.f32 %v7347, %v7317
    %v7349 = vadd.f32 %v7348, %v7318
    %v7350 = vadd.f32 %v7349, %v7319
    %v7351 = vadd.f32 %v7350, %v7320
    %v7352 = vadd.f32 %v7351, %v7321
    %v7353 = vadd.f32 %v7352, %v7322
    %v7354 = vadd.f32 %v7353, %v7323
    %v7355 = vadd.f32 %v7354, %v7324
    %v7356 = vadd.f32 %v7355, %v7325
    %v7357 = vadd.f32 %v7356, %v7326
    %v7358 = vadd.f32 %v7357, %v7327
    %v7359 = vadd.f32 %v7358, %v7328
    %v7360 = vadd.f32 %v7359, %v7329
    %v7361 = vadd.f32 %v7360, %v7330
    %v7362 = vadd.f32 %v7361, %v7331
    %v7363 = vadd.f32 %v7362, %v7332
    %v7364 = vadd.f32 %v7363, %v7333
    %v7365 = vadd.f32 %v7364, %v7334
    %v7366 = vadd.f32 %v7365, %v7335
    %v7367 = vadd.f32 %v7366, %v7336
    %v7368 = vadd.f32 %v7367, %v7337
    %v7369 = vadd.f32 %v7368, %v7338
    %v7370 = vadd.f32 %v7369, %v7339
    %v7371 = vadd.f32 %v7370, %v7340
    %v7372 = vadd.f32 %v7371, %v7341
    %v7373 = vadd.f32 %v7372, %v7342
    %v7374 = vadd.f32 %v7373, %v7343
    %v7375 = vadd.f32 %v7374, %v7344
    %7376 = vadd.xlane.f32.xlu0 %v7375
    %v7377 = vpop.xlane.xlu0 %7376
    %v7378 = vrot.slane %v7377, 4
    %v7379 = vadd.f32 %v7377, %v7378
    %v7380 = vrot.slane %v7379, 2
    %v7381 = vadd.f32 %v7379, %v7380
    %v7382 = vrot.slane %v7381, 1
    %v7383 = vadd.f32 %v7381, %v7382
    %s7384 = vtos %v7383
    %7385 = vrot.lane.b32.xlu0 %v6352, 123
    %v7386 = vpop.permute.xlu0 %7385
    %s7387 = vtos %v7386
    %s7388 = sadd.f32 %s7384, %s7387
    %v7389 = vstv %s7388
    %vm7390 = vcmask 41000
    %7391 = vst.msk [vmem:[#allocation9] sm:$0x1] %vm7390, %v7389
    %v7392 = vmul.f32 %v6296, %v7281
    %v7393 = vmul.f32 %v6297, %v7282
    %v7394 = vmul.f32 %v6298, %v7283
    %v7395 = vmul.f32 %v6299, %v7284
    %v7396 = vmul.f32 %v6300, %v7285
    %v7397 = vmul.f32 %v6301, %v7286
    %v7398 = vmul.f32 %v6302, %v7287
    %v7399 = vmul.f32 %v6303, %v7288
    %v7400 = vmul.f32 %v6312, %v7289
    %v7401 = vmul.f32 %v6313, %v7290
    %v7402 = vmul.f32 %v6314, %v7291
    %v7403 = vmul.f32 %v6315, %v7292
    %v7404 = vmul.f32 %v6316, %v7293
    %v7405 = vmul.f32 %v6317, %v7294
    %v7406 = vmul.f32 %v6318, %v7295
    %v7407 = vmul.f32 %v6319, %v7296
    %v7408 = vmul.f32 %v6328, %v7297
    %v7409 = vmul.f32 %v6329, %v7298
    %v7410 = vmul.f32 %v6330, %v7299
    %v7411 = vmul.f32 %v6331, %v7300
    %v7412 = vmul.f32 %v6332, %v7301
    %v7413 = vmul.f32 %v6333, %v7302
    %v7414 = vmul.f32 %v6334, %v7303
    %v7415 = vmul.f32 %v6335, %v7304
    %v7416 = vmul.f32 %v6344, %v7305
    %v7417 = vmul.f32 %v6345, %v7306
    %v7418 = vmul.f32 %v6346, %v7307
    %v7419 = vmul.f32 %v6347, %v7308
    %v7420 = vmul.f32 %v6348, %v7309
    %v7421 = vmul.f32 %v6349, %v7310
    %v7422 = vmul.f32 %v6350, %v7311
    %v7423 = vmul.f32 %v6351, %v7312
    %v7424 = vadd.f32 %v7392, %v7393
    %v7425 = vadd.f32 %v7424, %v7394
    %v7426 = vadd.f32 %v7425, %v7395
    %v7427 = vadd.f32 %v7426, %v7396
    %v7428 = vadd.f32 %v7427, %v7397
    %v7429 = vadd.f32 %v7428, %v7398
    %v7430 = vadd.f32 %v7429, %v7399
    %v7431 = vadd.f32 %v7430, %v7400
    %v7432 = vadd.f32 %v7431, %v7401
    %v7433 = vadd.f32 %v7432, %v7402
    %v7434 = vadd.f32 %v7433, %v7403
    %v7435 = vadd.f32 %v7434, %v7404
    %v7436 = vadd.f32 %v7435, %v7405
    %v7437 = vadd.f32 %v7436, %v7406
    %v7438 = vadd.f32 %v7437, %v7407
    %v7439 = vadd.f32 %v7438, %v7408
    %v7440 = vadd.f32 %v7439, %v7409
    %v7441 = vadd.f32 %v7440, %v7410
    %v7442 = vadd.f32 %v7441, %v7411
    %v7443 = vadd.f32 %v7442, %v7412
    %v7444 = vadd.f32 %v7443, %v7413
    %v7445 = vadd.f32 %v7444, %v7414
    %v7446 = vadd.f32 %v7445, %v7415
    %v7447 = vadd.f32 %v7446, %v7416
    %v7448 = vadd.f32 %v7447, %v7417
    %v7449 = vadd.f32 %v7448, %v7418
    %v7450 = vadd.f32 %v7449, %v7419
    %v7451 = vadd.f32 %v7450, %v7420
    %v7452 = vadd.f32 %v7451, %v7421
    %v7453 = vadd.f32 %v7452, %v7422
    %v7454 = vadd.f32 %v7453, %v7423
    %7455 = vadd.xlane.f32.xlu0 %v7454
    %v7456 = vpop.xlane.xlu0 %7455
    %v7457 = vrot.slane %v7456, 4
    %v7458 = vadd.f32 %v7456, %v7457
    %v7459 = vrot.slane %v7458, 2
    %v7460 = vadd.f32 %v7458, %v7459
    %v7461 = vrot.slane %v7460, 1
    %v7462 = vadd.f32 %v7460, %v7461
    %s7463 = vtos %v7462
    %s7464 = sadd.f32 %s7463, %s7387
    %v7465 = vstv %s7464
    %7466 = vst.msk [vmem:[#allocation9 + $0x1] sm:$0x1] %vm7390, %v7465
    %v7467 = vld [vmem:[#allocation4 + $0x600] sm:$0xff]
    %v7468 = vld [vmem:[#allocation4 + $0x608] sm:$0xff]
    %v7469 = vld [vmem:[#allocation4 + $0x610] sm:$0xff]
    %v7470 = vld [vmem:[#allocation4 + $0x618] sm:$0xff]
    %v7471 = vld [vmem:[#allocation4 + $0x620] sm:$0xff]
    %v7472 = vld [vmem:[#allocation4 + $0x628] sm:$0xff]
    %v7473 = vld [vmem:[#allocation4 + $0x630] sm:$0xff]
    %v7474 = vld [vmem:[#allocation4 + $0x638] sm:$0xff]
    %v7475 = vld [vmem:[#allocation4 + $0x640] sm:$0xff]
    %v7476 = vld [vmem:[#allocation4 + $0x648] sm:$0xff]
    %v7477 = vld [vmem:[#allocation4 + $0x650] sm:$0xff]
    %v7478 = vld [vmem:[#allocation4 + $0x658] sm:$0xff]
    %v7479 = vld [vmem:[#allocation4 + $0x660] sm:$0xff]
    %v7480 = vld [vmem:[#allocation4 + $0x668] sm:$0xff]
    %v7481 = vld [vmem:[#allocation4 + $0x670] sm:$0xff]
    %v7482 = vld [vmem:[#allocation4 + $0x678] sm:$0xff]
    %v7483 = vld [vmem:[#allocation4 + $0x680] sm:$0xff]
    %v7484 = vld [vmem:[#allocation4 + $0x688] sm:$0xff]
    %v7485 = vld [vmem:[#allocation4 + $0x690] sm:$0xff]
    %v7486 = vld [vmem:[#allocation4 + $0x698] sm:$0xff]
    %v7487 = vld [vmem:[#allocation4 + $0x6a0] sm:$0xff]
    %v7488 = vld [vmem:[#allocation4 + $0x6a8] sm:$0xff]
    %v7489 = vld [vmem:[#allocation4 + $0x6b0] sm:$0xff]
    %v7490 = vld [vmem:[#allocation4 + $0x6b8] sm:$0xff]
    %v7491 = vld [vmem:[#allocation4 + $0x6c0] sm:$0xff]
    %v7492 = vld [vmem:[#allocation4 + $0x6c8] sm:$0xff]
    %v7493 = vld [vmem:[#allocation4 + $0x6d0] sm:$0xff]
    %v7494 = vld [vmem:[#allocation4 + $0x6d8] sm:$0xff]
    %v7495 = vld [vmem:[#allocation4 + $0x6e0] sm:$0xff]
    %v7496 = vld [vmem:[#allocation4 + $0x6e8] sm:$0xff]
    %v7497 = vld [vmem:[#allocation4 + $0x6f0] sm:$0xff]
    %v7498 = vld [vmem:[#allocation4 + $0x6f8] sm:$0xff]
    %v7499 = vmul.f32 %v6288, %v7467
    %v7500 = vmul.f32 %v6289, %v7468
    %v7501 = vmul.f32 %v6290, %v7469
    %v7502 = vmul.f32 %v6291, %v7470
    %v7503 = vmul.f32 %v6292, %v7471
    %v7504 = vmul.f32 %v6293, %v7472
    %v7505 = vmul.f32 %v6294, %v7473
    %v7506 = vmul.f32 %v6295, %v7474
    %v7507 = vmul.f32 %v6304, %v7475
    %v7508 = vmul.f32 %v6305, %v7476
    %v7509 = vmul.f32 %v6306, %v7477
    %v7510 = vmul.f32 %v6307, %v7478
    %v7511 = vmul.f32 %v6308, %v7479
    %v7512 = vmul.f32 %v6309, %v7480
    %v7513 = vmul.f32 %v6310, %v7481
    %v7514 = vmul.f32 %v6311, %v7482
    %v7515 = vmul.f32 %v6320, %v7483
    %v7516 = vmul.f32 %v6321, %v7484
    %v7517 = vmul.f32 %v6322, %v7485
    %v7518 = vmul.f32 %v6323, %v7486
    %v7519 = vmul.f32 %v6324, %v7487
    %v7520 = vmul.f32 %v6325, %v7488
    %v7521 = vmul.f32 %v6326, %v7489
    %v7522 = vmul.f32 %v6327, %v7490
    %v7523 = vmul.f32 %v6336, %v7491
    %v7524 = vmul.f32 %v6337, %v7492
    %v7525 = vmul.f32 %v6338, %v7493
    %v7526 = vmul.f32 %v6339, %v7494
    %v7527 = vmul.f32 %v6340, %v7495
    %v7528 = vmul.f32 %v6341, %v7496
    %v7529 = vmul.f32 %v6342, %v7497
    %v7530 = vmul.f32 %v6343, %v7498
    %v7531 = vadd.f32 %v7499, %v7500
    %v7532 = vadd.f32 %v7531, %v7501
    %v7533 = vadd.f32 %v7532, %v7502
    %v7534 = vadd.f32 %v7533, %v7503
    %v7535 = vadd.f32 %v7534, %v7504
    %v7536 = vadd.f32 %v7535, %v7505
    %v7537 = vadd.f32 %v7536, %v7506
    %v7538 = vadd.f32 %v7537, %v7507
    %v7539 = vadd.f32 %v7538, %v7508
    %v7540 = vadd.f32 %v7539, %v7509
    %v7541 = vadd.f32 %v7540, %v7510
    %v7542 = vadd.f32 %v7541, %v7511
    %v7543 = vadd.f32 %v7542, %v7512
    %v7544 = vadd.f32 %v7543, %v7513
    %v7545 = vadd.f32 %v7544, %v7514
    %v7546 = vadd.f32 %v7545, %v7515
    %v7547 = vadd.f32 %v7546, %v7516
    %v7548 = vadd.f32 %v7547, %v7517
    %v7549 = vadd.f32 %v7548, %v7518
    %v7550 = vadd.f32 %v7549, %v7519
    %v7551 = vadd.f32 %v7550, %v7520
    %v7552 = vadd.f32 %v7551, %v7521
    %v7553 = vadd.f32 %v7552, %v7522
    %v7554 = vadd.f32 %v7553, %v7523
    %v7555 = vadd.f32 %v7554, %v7524
    %v7556 = vadd.f32 %v7555, %v7525
    %v7557 = vadd.f32 %v7556, %v7526
    %v7558 = vadd.f32 %v7557, %v7527
    %v7559 = vadd.f32 %v7558, %v7528
    %v7560 = vadd.f32 %v7559, %v7529
    %v7561 = vadd.f32 %v7560, %v7530
    %7562 = vadd.xlane.f32.xlu0 %v7561
    %v7563 = vpop.xlane.xlu0 %7562
    %v7564 = vrot.slane %v7563, 4
    %v7565 = vadd.f32 %v7563, %v7564
    %v7566 = vrot.slane %v7565, 2
    %v7567 = vadd.f32 %v7565, %v7566
    %v7568 = vrot.slane %v7567, 1
    %v7569 = vadd.f32 %v7567, %v7568
    %s7570 = vtos %v7569
    %7571 = vrot.lane.b32.xlu0 %v6352, 122
    %v7572 = vpop.permute.xlu0 %7571
    %s7573 = vtos %v7572
    %s7574 = sadd.f32 %s7570, %s7573
    %v7575 = vstv %s7574
    %vm7576 = vcmask 49200
    %7577 = vst.msk [vmem:[#allocation9] sm:$0x1] %vm7576, %v7575
    %v7578 = vmul.f32 %v6296, %v7467
    %v7579 = vmul.f32 %v6297, %v7468
    %v7580 = vmul.f32 %v6298, %v7469
    %v7581 = vmul.f32 %v6299, %v7470
    %v7582 = vmul.f32 %v6300, %v7471
    %v7583 = vmul.f32 %v6301, %v7472
    %v7584 = vmul.f32 %v6302, %v7473
    %v7585 = vmul.f32 %v6303, %v7474
    %v7586 = vmul.f32 %v6312, %v7475
    %v7587 = vmul.f32 %v6313, %v7476
    %v7588 = vmul.f32 %v6314, %v7477
    %v7589 = vmul.f32 %v6315, %v7478
    %v7590 = vmul.f32 %v6316, %v7479
    %v7591 = vmul.f32 %v6317, %v7480
    %v7592 = vmul.f32 %v6318, %v7481
    %v7593 = vmul.f32 %v6319, %v7482
    %v7594 = vmul.f32 %v6328, %v7483
    %v7595 = vmul.f32 %v6329, %v7484
    %v7596 = vmul.f32 %v6330, %v7485
    %v7597 = vmul.f32 %v6331, %v7486
    %v7598 = vmul.f32 %v6332, %v7487
    %v7599 = vmul.f32 %v6333, %v7488
    %v7600 = vmul.f32 %v6334, %v7489
    %v7601 = vmul.f32 %v6335, %v7490
    %v7602 = vmul.f32 %v6344, %v7491
    %v7603 = vmul.f32 %v6345, %v7492
    %v7604 = vmul.f32 %v6346, %v7493
    %v7605 = vmul.f32 %v6347, %v7494
    %v7606 = vmul.f32 %v6348, %v7495
    %v7607 = vmul.f32 %v6349, %v7496
    %v7608 = vmul.f32 %v6350, %v7497
    %v7609 = vmul.f32 %v6351, %v7498
    %v7610 = vadd.f32 %v7578, %v7579
    %v7611 = vadd.f32 %v7610, %v7580
    %v7612 = vadd.f32 %v7611, %v7581
    %v7613 = vadd.f32 %v7612, %v7582
    %v7614 = vadd.f32 %v7613, %v7583
    %v7615 = vadd.f32 %v7614, %v7584
    %v7616 = vadd.f32 %v7615, %v7585
    %v7617 = vadd.f32 %v7616, %v7586
    %v7618 = vadd.f32 %v7617, %v7587
    %v7619 = vadd.f32 %v7618, %v7588
    %v7620 = vadd.f32 %v7619, %v7589
    %v7621 = vadd.f32 %v7620, %v7590
    %v7622 = vadd.f32 %v7621, %v7591
    %v7623 = vadd.f32 %v7622, %v7592
    %v7624 = vadd.f32 %v7623, %v7593
    %v7625 = vadd.f32 %v7624, %v7594
    %v7626 = vadd.f32 %v7625, %v7595
    %v7627 = vadd.f32 %v7626, %v7596
    %v7628 = vadd.f32 %v7627, %v7597
    %v7629 = vadd.f32 %v7628, %v7598
    %v7630 = vadd.f32 %v7629, %v7599
    %v7631 = vadd.f32 %v7630, %v7600
    %v7632 = vadd.f32 %v7631, %v7601
    %v7633 = vadd.f32 %v7632, %v7602
    %v7634 = vadd.f32 %v7633, %v7603
    %v7635 = vadd.f32 %v7634, %v7604
    %v7636 = vadd.f32 %v7635, %v7605
    %v7637 = vadd.f32 %v7636, %v7606
    %v7638 = vadd.f32 %v7637, %v7607
    %v7639 = vadd.f32 %v7638, %v7608
    %v7640 = vadd.f32 %v7639, %v7609
    %7641 = vadd.xlane.f32.xlu0 %v7640
    %v7642 = vpop.xlane.xlu0 %7641
    %v7643 = vrot.slane %v7642, 4
    %v7644 = vadd.f32 %v7642, %v7643
    %v7645 = vrot.slane %v7644, 2
    %v7646 = vadd.f32 %v7644, %v7645
    %v7647 = vrot.slane %v7646, 1
    %v7648 = vadd.f32 %v7646, %v7647
    %s7649 = vtos %v7648
    %s7650 = sadd.f32 %s7649, %s7573
    %v7651 = vstv %s7650
    %7652 = vst.msk [vmem:[#allocation9 + $0x1] sm:$0x1] %vm7576, %v7651
    %v7653 = vld [vmem:[#allocation4 + $0x700] sm:$0xff]
    %v7654 = vld [vmem:[#allocation4 + $0x708] sm:$0xff]
    %v7655 = vld [vmem:[#allocation4 + $0x710] sm:$0xff]
    %v7656 = vld [vmem:[#allocation4 + $0x718] sm:$0xff]
    %v7657 = vld [vmem:[#allocation4 + $0x720] sm:$0xff]
    %v7658 = vld [vmem:[#allocation4 + $0x728] sm:$0xff]
    %v7659 = vld [vmem:[#allocation4 + $0x730] sm:$0xff]
    %v7660 = vld [vmem:[#allocation4 + $0x738] sm:$0xff]
    %v7661 = vld [vmem:[#allocation4 + $0x740] sm:$0xff]
    %v7662 = vld [vmem:[#allocation4 + $0x748] sm:$0xff]
    %v7663 = vld [vmem:[#allocation4 + $0x750] sm:$0xff]
    %v7664 = vld [vmem:[#allocation4 + $0x758] sm:$0xff]
    %v7665 = vld [vmem:[#allocation4 + $0x760] sm:$0xff]
    %v7666 = vld [vmem:[#allocation4 + $0x768] sm:$0xff]
    %v7667 = vld [vmem:[#allocation4 + $0x770] sm:$0xff]
    %v7668 = vld [vmem:[#allocation4 + $0x778] sm:$0xff]
    %v7669 = vld [vmem:[#allocation4 + $0x780] sm:$0xff]
    %v7670 = vld [vmem:[#allocation4 + $0x788] sm:$0xff]
    %v7671 = vld [vmem:[#allocation4 + $0x790] sm:$0xff]
    %v7672 = vld [vmem:[#allocation4 + $0x798] sm:$0xff]
    %v7673 = vld [vmem:[#allocation4 + $0x7a0] sm:$0xff]
    %v7674 = vld [vmem:[#allocation4 + $0x7a8] sm:$0xff]
    %v7675 = vld [vmem:[#allocation4 + $0x7b0] sm:$0xff]
    %v7676 = vld [vmem:[#allocation4 + $0x7b8] sm:$0xff]
    %v7677 = vld [vmem:[#allocation4 + $0x7c0] sm:$0xff]
    %v7678 = vld [vmem:[#allocation4 + $0x7c8] sm:$0xff]
    %v7679 = vld [vmem:[#allocation4 + $0x7d0] sm:$0xff]
    %v7680 = vld [vmem:[#allocation4 + $0x7d8] sm:$0xff]
    %v7681 = vld [vmem:[#allocation4 + $0x7e0] sm:$0xff]
    %v7682 = vld [vmem:[#allocation4 + $0x7e8] sm:$0xff]
    %v7683 = vld [vmem:[#allocation4 + $0x7f0] sm:$0xff]
    %v7684 = vld [vmem:[#allocation4 + $0x7f8] sm:$0xff]
    %v7685 = vmul.f32 %v6288, %v7653
    %v7686 = vmul.f32 %v6289, %v7654
    %v7687 = vmul.f32 %v6290, %v7655
    %v7688 = vmul.f32 %v6291, %v7656
    %v7689 = vmul.f32 %v6292, %v7657
    %v7690 = vmul.f32 %v6293, %v7658
    %v7691 = vmul.f32 %v6294, %v7659
    %v7692 = vmul.f32 %v6295, %v7660
    %v7693 = vmul.f32 %v6304, %v7661
    %v7694 = vmul.f32 %v6305, %v7662
    %v7695 = vmul.f32 %v6306, %v7663
    %v7696 = vmul.f32 %v6307, %v7664
    %v7697 = vmul.f32 %v6308, %v7665
    %v7698 = vmul.f32 %v6309, %v7666
    %v7699 = vmul.f32 %v6310, %v7667
    %v7700 = vmul.f32 %v6311, %v7668
    %v7701 = vmul.f32 %v6320, %v7669
    %v7702 = vmul.f32 %v6321, %v7670
    %v7703 = vmul.f32 %v6322, %v7671
    %v7704 = vmul.f32 %v6323, %v7672
    %v7705 = vmul.f32 %v6324, %v7673
    %v7706 = vmul.f32 %v6325, %v7674
    %v7707 = vmul.f32 %v6326, %v7675
    %v7708 = vmul.f32 %v6327, %v7676
    %v7709 = vmul.f32 %v6336, %v7677
    %v7710 = vmul.f32 %v6337, %v7678
    %v7711 = vmul.f32 %v6338, %v7679
    %v7712 = vmul.f32 %v6339, %v7680
    %v7713 = vmul.f32 %v6340, %v7681
    %v7714 = vmul.f32 %v6341, %v7682
    %v7715 = vmul.f32 %v6342, %v7683
    %v7716 = vmul.f32 %v6343, %v7684
    %v7717 = vadd.f32 %v7685, %v7686
    %v7718 = vadd.f32 %v7717, %v7687
    %v7719 = vadd.f32 %v7718, %v7688
    %v7720 = vadd.f32 %v7719, %v7689
    %v7721 = vadd.f32 %v7720, %v7690
    %v7722 = vadd.f32 %v7721, %v7691
    %v7723 = vadd.f32 %v7722, %v7692
    %v7724 = vadd.f32 %v7723, %v7693
    %v7725 = vadd.f32 %v7724, %v7694
    %v7726 = vadd.f32 %v7725, %v7695
    %v7727 = vadd.f32 %v7726, %v7696
    %v7728 = vadd.f32 %v7727, %v7697
    %v7729 = vadd.f32 %v7728, %v7698
    %v7730 = vadd.f32 %v7729, %v7699
    %v7731 = vadd.f32 %v7730, %v7700
    %v7732 = vadd.f32 %v7731, %v7701
    %v7733 = vadd.f32 %v7732, %v7702
    %v7734 = vadd.f32 %v7733, %v7703
    %v7735 = vadd.f32 %v7734, %v7704
    %v7736 = vadd.f32 %v7735, %v7705
    %v7737 = vadd.f32 %v7736, %v7706
    %v7738 = vadd.f32 %v7737, %v7707
    %v7739 = vadd.f32 %v7738, %v7708
    %v7740 = vadd.f32 %v7739, %v7709
    %v7741 = vadd.f32 %v7740, %v7710
    %v7742 = vadd.f32 %v7741, %v7711
    %v7743 = vadd.f32 %v7742, %v7712
    %v7744 = vadd.f32 %v7743, %v7713
    %v7745 = vadd.f32 %v7744, %v7714
    %v7746 = vadd.f32 %v7745, %v7715
    %v7747 = vadd.f32 %v7746, %v7716
    %7748 = vadd.xlane.f32.xlu0 %v7747
    %v7749 = vpop.xlane.xlu0 %7748
    %v7750 = vrot.slane %v7749, 4
    %v7751 = vadd.f32 %v7749, %v7750
    %v7752 = vrot.slane %v7751, 2
    %v7753 = vadd.f32 %v7751, %v7752
    %v7754 = vrot.slane %v7753, 1
    %v7755 = vadd.f32 %v7753, %v7754
    %s7756 = vtos %v7755
    %7757 = vrot.lane.b32.xlu0 %v6352, 121
    %v7758 = vpop.permute.xlu0 %7757
    %s7759 = vtos %v7758
    %s7760 = sadd.f32 %s7756, %s7759
    %v7761 = vstv %s7760
    %vm7762 = vcmask 57400
    %7763 = vst.msk [vmem:[#allocation9] sm:$0x1] %vm7762, %v7761
    %v7764 = vmul.f32 %v6296, %v7653
    %v7765 = vmul.f32 %v6297, %v7654
    %v7766 = vmul.f32 %v6298, %v7655
    %v7767 = vmul.f32 %v6299, %v7656
    %v7768 = vmul.f32 %v6300, %v7657
    %v7769 = vmul.f32 %v6301, %v7658
    %v7770 = vmul.f32 %v6302, %v7659
    %v7771 = vmul.f32 %v6303, %v7660
    %v7772 = vmul.f32 %v6312, %v7661
    %v7773 = vmul.f32 %v6313, %v7662
    %v7774 = vmul.f32 %v6314, %v7663
    %v7775 = vmul.f32 %v6315, %v7664
    %v7776 = vmul.f32 %v6316, %v7665
    %v7777 = vmul.f32 %v6317, %v7666
    %v7778 = vmul.f32 %v6318, %v7667
    %v7779 = vmul.f32 %v6319, %v7668
    %v7780 = vmul.f32 %v6328, %v7669
    %v7781 = vmul.f32 %v6329, %v7670
    %v7782 = vmul.f32 %v6330, %v7671
    %v7783 = vmul.f32 %v6331, %v7672
    %v7784 = vmul.f32 %v6332, %v7673
    %v7785 = vmul.f32 %v6333, %v7674
    %v7786 = vmul.f32 %v6334, %v7675
    %v7787 = vmul.f32 %v6335, %v7676
    %v7788 = vmul.f32 %v6344, %v7677
    %v7789 = vmul.f32 %v6345, %v7678
    %v7790 = vmul.f32 %v6346, %v7679
    %v7791 = vmul.f32 %v6347, %v7680
    %v7792 = vmul.f32 %v6348, %v7681
    %v7793 = vmul.f32 %v6349, %v7682
    %v7794 = vmul.f32 %v6350, %v7683
    %v7795 = vmul.f32 %v6351, %v7684
    %v7796 = vadd.f32 %v7764, %v7765
    %v7797 = vadd.f32 %v7796, %v7766
    %v7798 = vadd.f32 %v7797, %v7767
    %v7799 = vadd.f32 %v7798, %v7768
    %v7800 = vadd.f32 %v7799, %v7769
    %v7801 = vadd.f32 %v7800, %v7770
    %v7802 = vadd.f32 %v7801, %v7771
    %v7803 = vadd.f32 %v7802, %v7772
    %v7804 = vadd.f32 %v7803, %v7773
    %v7805 = vadd.f32 %v7804, %v7774
    %v7806 = vadd.f32 %v7805, %v7775
    %v7807 = vadd.f32 %v7806, %v7776
    %v7808 = vadd.f32 %v7807, %v7777
    %v7809 = vadd.f32 %v7808, %v7778
    %v7810 = vadd.f32 %v7809, %v7779
    %v7811 = vadd.f32 %v7810, %v7780
    %v7812 = vadd.f32 %v7811, %v7781
    %v7813 = vadd.f32 %v7812, %v7782
    %v7814 = vadd.f32 %v7813, %v7783
    %v7815 = vadd.f32 %v7814, %v7784
    %v7816 = vadd.f32 %v7815, %v7785
    %v7817 = vadd.f32 %v7816, %v7786
    %v7818 = vadd.f32 %v7817, %v7787
    %v7819 = vadd.f32 %v7818, %v7788
    %v7820 = vadd.f32 %v7819, %v7789
    %v7821 = vadd.f32 %v7820, %v7790
    %v7822 = vadd.f32 %v7821, %v7791
    %v7823 = vadd.f32 %v7822, %v7792
    %v7824 = vadd.f32 %v7823, %v7793
    %v7825 = vadd.f32 %v7824, %v7794
    %v7826 = vadd.f32 %v7825, %v7795
    %7827 = vadd.xlane.f32.xlu0 %v7826
    %v7828 = vpop.xlane.xlu0 %7827
    %v7829 = vrot.slane %v7828, 4
    %v7830 = vadd.f32 %v7828, %v7829
    %v7831 = vrot.slane %v7830, 2
    %v7832 = vadd.f32 %v7830, %v7831
    %v7833 = vrot.slane %v7832, 1
    %v7834 = vadd.f32 %v7832, %v7833
    %s7835 = vtos %v7834
    %s7836 = sadd.f32 %s7835, %s7759
    %v7837 = vstv %s7836
    %7838 = vst.msk [vmem:[#allocation9 + $0x1] sm:$0x1] %vm7762, %v7837
    %v7839 = vld [vmem:[#allocation4 + $0x800] sm:$0xff]
    %v7840 = vld [vmem:[#allocation4 + $0x808] sm:$0xff]
    %v7841 = vld [vmem:[#allocation4 + $0x810] sm:$0xff]
    %v7842 = vld [vmem:[#allocation4 + $0x818] sm:$0xff]
    %v7843 = vld [vmem:[#allocation4 + $0x820] sm:$0xff]
    %v7844 = vld [vmem:[#allocation4 + $0x828] sm:$0xff]
    %v7845 = vld [vmem:[#allocation4 + $0x830] sm:$0xff]
    %v7846 = vld [vmem:[#allocation4 + $0x838] sm:$0xff]
    %v7847 = vld [vmem:[#allocation4 + $0x840] sm:$0xff]
    %v7848 = vld [vmem:[#allocation4 + $0x848] sm:$0xff]
    %v7849 = vld [vmem:[#allocation4 + $0x850] sm:$0xff]
    %v7850 = vld [vmem:[#allocation4 + $0x858] sm:$0xff]
    %v7851 = vld [vmem:[#allocation4 + $0x860] sm:$0xff]
    %v7852 = vld [vmem:[#allocation4 + $0x868] sm:$0xff]
    %v7853 = vld [vmem:[#allocation4 + $0x870] sm:$0xff]
    %v7854 = vld [vmem:[#allocation4 + $0x878] sm:$0xff]
    %v7855 = vld [vmem:[#allocation4 + $0x880] sm:$0xff]
    %v7856 = vld [vmem:[#allocation4 + $0x888] sm:$0xff]
    %v7857 = vld [vmem:[#allocation4 + $0x890] sm:$0xff]
    %v7858 = vld [vmem:[#allocation4 + $0x898] sm:$0xff]
    %v7859 = vld [vmem:[#allocation4 + $0x8a0] sm:$0xff]
    %v7860 = vld [vmem:[#allocation4 + $0x8a8] sm:$0xff]
    %v7861 = vld [vmem:[#allocation4 + $0x8b0] sm:$0xff]
    %v7862 = vld [vmem:[#allocation4 + $0x8b8] sm:$0xff]
    %v7863 = vld [vmem:[#allocation4 + $0x8c0] sm:$0xff]
    %v7864 = vld [vmem:[#allocation4 + $0x8c8] sm:$0xff]
    %v7865 = vld [vmem:[#allocation4 + $0x8d0] sm:$0xff]
    %v7866 = vld [vmem:[#allocation4 + $0x8d8] sm:$0xff]
    %v7867 = vld [vmem:[#allocation4 + $0x8e0] sm:$0xff]
    %v7868 = vld [vmem:[#allocation4 + $0x8e8] sm:$0xff]
    %v7869 = vld [vmem:[#allocation4 + $0x8f0] sm:$0xff]
    %v7870 = vld [vmem:[#allocation4 + $0x8f8] sm:$0xff]
    %v7871 = vmul.f32 %v6288, %v7839
    %v7872 = vmul.f32 %v6289, %v7840
    %v7873 = vmul.f32 %v6290, %v7841
    %v7874 = vmul.f32 %v6291, %v7842
    %v7875 = vmul.f32 %v6292, %v7843
    %v7876 = vmul.f32 %v6293, %v7844
    %v7877 = vmul.f32 %v6294, %v7845
    %v7878 = vmul.f32 %v6295, %v7846
    %v7879 = vmul.f32 %v6304, %v7847
    %v7880 = vmul.f32 %v6305, %v7848
    %v7881 = vmul.f32 %v6306, %v7849
    %v7882 = vmul.f32 %v6307, %v7850
    %v7883 = vmul.f32 %v6308, %v7851
    %v7884 = vmul.f32 %v6309, %v7852
    %v7885 = vmul.f32 %v6310, %v7853
    %v7886 = vmul.f32 %v6311, %v7854
    %v7887 = vmul.f32 %v6320, %v7855
    %v7888 = vmul.f32 %v6321, %v7856
    %v7889 = vmul.f32 %v6322, %v7857
    %v7890 = vmul.f32 %v6323, %v7858
    %v7891 = vmul.f32 %v6324, %v7859
    %v7892 = vmul.f32 %v6325, %v7860
    %v7893 = vmul.f32 %v6326, %v7861
    %v7894 = vmul.f32 %v6327, %v7862
    %v7895 = vmul.f32 %v6336, %v7863
    %v7896 = vmul.f32 %v6337, %v7864
    %v7897 = vmul.f32 %v6338, %v7865
    %v7898 = vmul.f32 %v6339, %v7866
    %v7899 = vmul.f32 %v6340, %v7867
    %v7900 = vmul.f32 %v6341, %v7868
    %v7901 = vmul.f32 %v6342, %v7869
    %v7902 = vmul.f32 %v6343, %v7870
    %v7903 = vadd.f32 %v7871, %v7872
    %v7904 = vadd.f32 %v7903, %v7873
    %v7905 = vadd.f32 %v7904, %v7874
    %v7906 = vadd.f32 %v7905, %v7875
    %v7907 = vadd.f32 %v7906, %v7876
    %v7908 = vadd.f32 %v7907, %v7877
    %v7909 = vadd.f32 %v7908, %v7878
    %v7910 = vadd.f32 %v7909, %v7879
    %v7911 = vadd.f32 %v7910, %v7880
    %v7912 = vadd.f32 %v7911, %v7881
    %v7913 = vadd.f32 %v7912, %v7882
    %v7914 = vadd.f32 %v7913, %v7883
    %v7915 = vadd.f32 %v7914, %v7884
    %v7916 = vadd.f32 %v7915, %v7885
    %v7917 = vadd.f32 %v7916, %v7886
    %v7918 = vadd.f32 %v7917, %v7887
    %v7919 = vadd.f32 %v7918, %v7888
    %v7920 = vadd.f32 %v7919, %v7889
    %v7921 = vadd.f32 %v7920, %v7890
    %v7922 = vadd.f32 %v7921, %v7891
    %v7923 = vadd.f32 %v7922, %v7892
    %v7924 = vadd.f32 %v7923, %v7893
    %v7925 = vadd.f32 %v7924, %v7894
    %v7926 = vadd.f32 %v7925, %v7895
    %v7927 = vadd.f32 %v7926, %v7896
    %v7928 = vadd.f32 %v7927, %v7897
    %v7929 = vadd.f32 %v7928, %v7898
    %v7930 = vadd.f32 %v7929, %v7899
    %v7931 = vadd.f32 %v7930, %v7900
    %v7932 = vadd.f32 %v7931, %v7901
    %v7933 = vadd.f32 %v7932, %v7902
    %7934 = vadd.xlane.f32.xlu0 %v7933
    %v7935 = vpop.xlane.xlu0 %7934
    %v7936 = vrot.slane %v7935, 4
    %v7937 = vadd.f32 %v7935, %v7936
    %v7938 = vrot.slane %v7937, 2
    %v7939 = vadd.f32 %v7937, %v7938
    %v7940 = vrot.slane %v7939, 1
    %v7941 = vadd.f32 %v7939, %v7940
    %s7942 = vtos %v7941
    %7943 = vrot.lane.b32.xlu0 %v6352, 120
    %v7944 = vpop.permute.xlu0 %7943
    %s7945 = vtos %v7944
    %s7946 = sadd.f32 %s7942, %s7945
    %v7947 = vstv %s7946
    %vm7948 = vcmask 65600
    %7949 = vst.msk [vmem:[#allocation9] sm:$0x1] %vm7948, %v7947
    %v7950 = vmul.f32 %v6296, %v7839
    %v7951 = vmul.f32 %v6297, %v7840
    %v7952 = vmul.f32 %v6298, %v7841
    %v7953 = vmul.f32 %v6299, %v7842
    %v7954 = vmul.f32 %v6300, %v7843
    %v7955 = vmul.f32 %v6301, %v7844
    %v7956 = vmul.f32 %v6302, %v7845
    %v7957 = vmul.f32 %v6303, %v7846
    %v7958 = vmul.f32 %v6312, %v7847
    %v7959 = vmul.f32 %v6313, %v7848
    %v7960 = vmul.f32 %v6314, %v7849
    %v7961 = vmul.f32 %v6315, %v7850
    %v7962 = vmul.f32 %v6316, %v7851
    %v7963 = vmul.f32 %v6317, %v7852
    %v7964 = vmul.f32 %v6318, %v7853
    %v7965 = vmul.f32 %v6319, %v7854
    %v7966 = vmul.f32 %v6328, %v7855
    %v7967 = vmul.f32 %v6329, %v7856
    %v7968 = vmul.f32 %v6330, %v7857
    %v7969 = vmul.f32 %v6331, %v7858
    %v7970 = vmul.f32 %v6332, %v7859
    %v7971 = vmul.f32 %v6333, %v7860
    %v7972 = vmul.f32 %v6334, %v7861
    %v7973 = vmul.f32 %v6335, %v7862
    %v7974 = vmul.f32 %v6344, %v7863
    %v7975 = vmul.f32 %v6345, %v7864
    %v7976 = vmul.f32 %v6346, %v7865
    %v7977 = vmul.f32 %v6347, %v7866
    %v7978 = vmul.f32 %v6348, %v7867
    %v7979 = vmul.f32 %v6349, %v7868
    %v7980 = vmul.f32 %v6350, %v7869
    %v7981 = vmul.f32 %v6351, %v7870
    %v7982 = vadd.f32 %v7950, %v7951
    %v7983 = vadd.f32 %v7982, %v7952
    %v7984 = vadd.f32 %v7983, %v7953
    %v7985 = vadd.f32 %v7984, %v7954
    %v7986 = vadd.f32 %v7985, %v7955
    %v7987 = vadd.f32 %v7986, %v7956
    %v7988 = vadd.f32 %v7987, %v7957
    %v7989 = vadd.f32 %v7988, %v7958
    %v7990 = vadd.f32 %v7989, %v7959
    %v7991 = vadd.f32 %v7990, %v7960
    %v7992 = vadd.f32 %v7991, %v7961
    %v7993 = vadd.f32 %v7992, %v7962
    %v7994 = vadd.f32 %v7993, %v7963
    %v7995 = vadd.f32 %v7994, %v7964
    %v7996 = vadd.f32 %v7995, %v7965
    %v7997 = vadd.f32 %v7996, %v7966
    %v7998 = vadd.f32 %v7997, %v7967
    %v7999 = vadd.f32 %v7998, %v7968
    %v8000 = vadd.f32 %v7999, %v7969
    %v8001 = vadd.f32 %v8000, %v7970
    %v8002 = vadd.f32 %v8001, %v7971
    %v8003 = vadd.f32 %v8002, %v7972
    %v8004 = vadd.f32 %v8003, %v7973
    %v8005 = vadd.f32 %v8004, %v7974
    %v8006 = vadd.f32 %v8005, %v7975
    %v8007 = vadd.f32 %v8006, %v7976
    %v8008 = vadd.f32 %v8007, %v7977
    %v8009 = vadd.f32 %v8008, %v7978
    %v8010 = vadd.f32 %v8009, %v7979
    %v8011 = vadd.f32 %v8010, %v7980
    %v8012 = vadd.f32 %v8011, %v7981
    %8013 = vadd.xlane.f32.xlu0 %v8012
    %v8014 = vpop.xlane.xlu0 %8013
    %v8015 = vrot.slane %v8014, 4
    %v8016 = vadd.f32 %v8014, %v8015
    %v8017 = vrot.slane %v8016, 2
    %v8018 = vadd.f32 %v8016, %v8017
    %v8019 = vrot.slane %v8018, 1
    %v8020 = vadd.f32 %v8018, %v8019
    %s8021 = vtos %v8020
    %s8022 = sadd.f32 %s8021, %s7945
    %v8023 = vstv %s8022
    %8024 = vst.msk [vmem:[#allocation9 + $0x1] sm:$0x1] %vm7948, %v8023
    %v8025 = vld [vmem:[#allocation4 + $0x900] sm:$0xff]
    %v8026 = vld [vmem:[#allocation4 + $0x908] sm:$0xff]
    %v8027 = vld [vmem:[#allocation4 + $0x910] sm:$0xff]
    %v8028 = vld [vmem:[#allocation4 + $0x918] sm:$0xff]
    %v8029 = vld [vmem:[#allocation4 + $0x920] sm:$0xff]
    %v8030 = vld [vmem:[#allocation4 + $0x928] sm:$0xff]
    %v8031 = vld [vmem:[#allocation4 + $0x930] sm:$0xff]
    %v8032 = vld [vmem:[#allocation4 + $0x938] sm:$0xff]
    %v8033 = vld [vmem:[#allocation4 + $0x940] sm:$0xff]
    %v8034 = vld [vmem:[#allocation4 + $0x948] sm:$0xff]
    %v8035 = vld [vmem:[#allocation4 + $0x950] sm:$0xff]
    %v8036 = vld [vmem:[#allocation4 + $0x958] sm:$0xff]
    %v8037 = vld [vmem:[#allocation4 + $0x960] sm:$0xff]
    %v8038 = vld [vmem:[#allocation4 + $0x968] sm:$0xff]
    %v8039 = vld [vmem:[#allocation4 + $0x970] sm:$0xff]
    %v8040 = vld [vmem:[#allocation4 + $0x978] sm:$0xff]
    %v8041 = vld [vmem:[#allocation4 + $0x980] sm:$0xff]
    %v8042 = vld [vmem:[#allocation4 + $0x988] sm:$0xff]
    %v8043 = vld [vmem:[#allocation4 + $0x990] sm:$0xff]
    %v8044 = vld [vmem:[#allocation4 + $0x998] sm:$0xff]
    %v8045 = vld [vmem:[#allocation4 + $0x9a0] sm:$0xff]
    %v8046 = vld [vmem:[#allocation4 + $0x9a8] sm:$0xff]
    %v8047 = vld [vmem:[#allocation4 + $0x9b0] sm:$0xff]
    %v8048 = vld [vmem:[#allocation4 + $0x9b8] sm:$0xff]
    %v8049 = vld [vmem:[#allocation4 + $0x9c0] sm:$0xff]
    %v8050 = vld [vmem:[#allocation4 + $0x9c8] sm:$0xff]
    %v8051 = vld [vmem:[#allocation4 + $0x9d0] sm:$0xff]
    %v8052 = vld [vmem:[#allocation4 + $0x9d8] sm:$0xff]
    %v8053 = vld [vmem:[#allocation4 + $0x9e0] sm:$0xff]
    %v8054 = vld [vmem:[#allocation4 + $0x9e8] sm:$0xff]
    %v8055 = vld [vmem:[#allocation4 + $0x9f0] sm:$0xff]
    %v8056 = vld [vmem:[#allocation4 + $0x9f8] sm:$0xff]
    %v8057 = vmul.f32 %v6288, %v8025
    %v8058 = vmul.f32 %v6289, %v8026
    %v8059 = vmul.f32 %v6290, %v8027
    %v8060 = vmul.f32 %v6291, %v8028
    %v8061 = vmul.f32 %v6292, %v8029
    %v8062 = vmul.f32 %v6293, %v8030
    %v8063 = vmul.f32 %v6294, %v8031
    %v8064 = vmul.f32 %v6295, %v8032
    %v8065 = vmul.f32 %v6304, %v8033
    %v8066 = vmul.f32 %v6305, %v8034
    %v8067 = vmul.f32 %v6306, %v8035
    %v8068 = vmul.f32 %v6307, %v8036
    %v8069 = vmul.f32 %v6308, %v8037
    %v8070 = vmul.f32 %v6309, %v8038
    %v8071 = vmul.f32 %v6310, %v8039
    %v8072 = vmul.f32 %v6311, %v8040
    %v8073 = vmul.f32 %v6320, %v8041
    %v8074 = vmul.f32 %v6321, %v8042
    %v8075 = vmul.f32 %v6322, %v8043
    %v8076 = vmul.f32 %v6323, %v8044
    %v8077 = vmul.f32 %v6324, %v8045
    %v8078 = vmul.f32 %v6325, %v8046
    %v8079 = vmul.f32 %v6326, %v8047
    %v8080 = vmul.f32 %v6327, %v8048
    %v8081 = vmul.f32 %v6336, %v8049
    %v8082 = vmul.f32 %v6337, %v8050
    %v8083 = vmul.f32 %v6338, %v8051
    %v8084 = vmul.f32 %v6339, %v8052
    %v8085 = vmul.f32 %v6340, %v8053
    %v8086 = vmul.f32 %v6341, %v8054
    %v8087 = vmul.f32 %v6342, %v8055
    %v8088 = vmul.f32 %v6343, %v8056
    %v8089 = vadd.f32 %v8057, %v8058
    %v8090 = vadd.f32 %v8089, %v8059
    %v8091 = vadd.f32 %v8090, %v8060
    %v8092 = vadd.f32 %v8091, %v8061
    %v8093 = vadd.f32 %v8092, %v8062
    %v8094 = vadd.f32 %v8093, %v8063
    %v8095 = vadd.f32 %v8094, %v8064
    %v8096 = vadd.f32 %v8095, %v8065
    %v8097 = vadd.f32 %v8096, %v8066
    %v8098 = vadd.f32 %v8097, %v8067
    %v8099 = vadd.f32 %v8098, %v8068
    %v8100 = vadd.f32 %v8099, %v8069
    %v8101 = vadd.f32 %v8100, %v8070
    %v8102 = vadd.f32 %v8101, %v8071
    %v8103 = vadd.f32 %v8102, %v8072
    %v8104 = vadd.f32 %v8103, %v8073
    %v8105 = vadd.f32 %v8104, %v8074
    %v8106 = vadd.f32 %v8105, %v8075
    %v8107 = vadd.f32 %v8106, %v8076
    %v8108 = vadd.f32 %v8107, %v8077
    %v8109 = vadd.f32 %v8108, %v8078
    %v8110 = vadd.f32 %v8109, %v8079
    %v8111 = vadd.f32 %v8110, %v8080
    %v8112 = vadd.f32 %v8111, %v8081
    %v8113 = vadd.f32 %v8112, %v8082
    %v8114 = vadd.f32 %v8113, %v8083
    %v8115 = vadd.f32 %v8114, %v8084
    %v8116 = vadd.f32 %v8115, %v8085
    %v8117 = vadd.f32 %v8116, %v8086
    %v8118 = vadd.f32 %v8117, %v8087
    %v8119 = vadd.f32 %v8118, %v8088
    %8120 = vadd.xlane.f32.xlu0 %v8119
    %v8121 = vpop.xlane.xlu0 %8120
    %v8122 = vrot.slane %v8121, 4
    %v8123 = vadd.f32 %v8121, %v8122
    %v8124 = vrot.slane %v8123, 2
    %v8125 = vadd.f32 %v8123, %v8124
    %v8126 = vrot.slane %v8125, 1
    %v8127 = vadd.f32 %v8125, %v8126
    %s8128 = vtos %v8127
    %8129 = vrot.lane.b32.xlu0 %v6352, 119
    %v8130 = vpop.permute.xlu0 %8129
    %s8131 = vtos %v8130
    %s8132 = sadd.f32 %s8128, %s8131
    %v8133 = vstv %s8132
    %vm8134 = vcmask 73800
    %8135 = vst.msk [vmem:[#allocation9] sm:$0x1] %vm8134, %v8133
    %v8136 = vmul.f32 %v6296, %v8025
    %v8137 = vmul.f32 %v6297, %v8026
    %v8138 = vmul.f32 %v6298, %v8027
    %v8139 = vmul.f32 %v6299, %v8028
    %v8140 = vmul.f32 %v6300, %v8029
    %v8141 = vmul.f32 %v6301, %v8030
    %v8142 = vmul.f32 %v6302, %v8031
    %v8143 = vmul.f32 %v6303, %v8032
    %v8144 = vmul.f32 %v6312, %v8033
    %v8145 = vmul.f32 %v6313, %v8034
    %v8146 = vmul.f32 %v6314, %v8035
    %v8147 = vmul.f32 %v6315, %v8036
    %v8148 = vmul.f32 %v6316, %v8037
    %v8149 = vmul.f32 %v6317, %v8038
    %v8150 = vmul.f32 %v6318, %v8039
    %v8151 = vmul.f32 %v6319, %v8040
    %v8152 = vmul.f32 %v6328, %v8041
    %v8153 = vmul.f32 %v6329, %v8042
    %v8154 = vmul.f32 %v6330, %v8043
    %v8155 = vmul.f32 %v6331, %v8044
    %v8156 = vmul.f32 %v6332, %v8045
    %v8157 = vmul.f32 %v6333, %v8046
    %v8158 = vmul.f32 %v6334, %v8047
    %v8159 = vmul.f32 %v6335, %v8048
    %v8160 = vmul.f32 %v6344, %v8049
    %v8161 = vmul.f32 %v6345, %v8050
    %v8162 = vmul.f32 %v6346, %v8051
    %v8163 = vmul.f32 %v6347, %v8052
    %v8164 = vmul.f32 %v6348, %v8053
    %v8165 = vmul.f32 %v6349, %v8054
    %v8166 = vmul.f32 %v6350, %v8055
    %v8167 = vmul.f32 %v6351, %v8056
    %v8168 = vadd.f32 %v8136, %v8137
    %v8169 = vadd.f32 %v8168, %v8138
    %v8170 = vadd.f32 %v8169, %v8139
    %v8171 = vadd.f32 %v8170, %v8140
    %v8172 = vadd.f32 %v8171, %v8141
    %v8173 = vadd.f32 %v8172, %v8142
    %v8174 = vadd.f32 %v8173, %v8143
    %v8175 = vadd.f32 %v8174, %v8144
    %v8176 = vadd.f32 %v8175, %v8145
    %v8177 = vadd.f32 %v8176, %v8146
    %v8178 = vadd.f32 %v8177, %v8147
    %v8179 = vadd.f32 %v8178, %v8148
    %v8180 = vadd.f32 %v8179, %v8149
    %v8181 = vadd.f32 %v8180, %v8150
    %v8182 = vadd.f32 %v8181, %v8151
    %v8183 = vadd.f32 %v8182, %v8152
    %v8184 = vadd.f32 %v8183, %v8153
    %v8185 = vadd.f32 %v8184, %v8154
    %v8186 = vadd.f32 %v8185, %v8155
    %v8187 = vadd.f32 %v8186, %v8156
    %v8188 = vadd.f32 %v8187, %v8157
    %v8189 = vadd.f32 %v8188, %v8158
    %v8190 = vadd.f32 %v8189, %v8159
    %v8191 = vadd.f32 %v8190, %v8160
    %v8192 = vadd.f32 %v8191, %v8161
    %v8193 = vadd.f32 %v8192, %v8162
    %v8194 = vadd.f32 %v8193, %v8163
    %v8195 = vadd.f32 %v8194, %v8164
    %v8196 = vadd.f32 %v8195, %v8165
    %v8197 = vadd.f32 %v8196, %v8166
    %v8198 = vadd.f32 %v8197, %v8167
    %8199 = vadd.xlane.f32.xlu0 %v8198
    %v8200 = vpop.xlane.xlu0 %8199
    %v8201 = vrot.slane %v8200, 4
    %v8202 = vadd.f32 %v8200, %v8201
    %v8203 = vrot.slane %v8202, 2
    %v8204 = vadd.f32 %v8202, %v8203
    %v8205 = vrot.slane %v8204, 1
    %v8206 = vadd.f32 %v8204, %v8205
    %s8207 = vtos %v8206
    %s8208 = sadd.f32 %s8207, %s8131
    %v8209 = vstv %s8208
    %8210 = vst.msk [vmem:[#allocation9 + $0x1] sm:$0x1] %vm8134, %v8209
    // Predicated region
    $region30: #{vanilla_cnn_forward.1} parent=1 // pred_check
      _
    $region31: #{vanilla_cnn_forward.1} parent=1 // pred_check_branch
      %8212 = sbr.rel (0) target = $region33
    $region32: #{vanilla_cnn_forward.1} parent=1 // pred_region
      %s8214 = ssub.s32 32, 32
      %8215 = vsyncadd [#allocation6], %s8214
      %s8217 = sshll.u32 [#allocation9], 4
      %s8218 = int_to_ptr.vmem [resolvable:$true] %s8217
      %8220 = dma.vmem_to_hbm [thread:$0]  %s8218, 32, %s5, [#allocation6]
    $region33: #{vanilla_cnn_forward.1} parent=1 // pred_fallthru
      _
    // Predicated region
    $region34: #{vanilla_cnn_forward.1} parent=1 // pred_check
      _
    $region35: #{vanilla_cnn_forward.1} parent=1 // pred_check_branch
      %8222 = sbr.rel (0) target = $region37
    $region36: #{vanilla_cnn_forward.1} parent=1 // pred_region
      %8223 = dma.done [#allocation6], 32
    $region37: #{vanilla_cnn_forward.1} parent=1 // pred_fallthru
      _
    %8224 = vsyncpa [#allocation5], 1
    %8225 = vsyncpa [#allocation8], 1
    %8226 = vsyncpa [#allocation6], 1

</llo_original>
